<compile_context>
chip_gen: v7x
topology: tpu7x:2x2x1
jax: 0.10.0
libtpu: 0.0.40
codegen_flags: <defaults>
</compile_context>

<pallas_src>
import functools

import jax
import jax.numpy as jnp
from jax.experimental import pallas as pl
from jax.experimental.pallas import tpu as pltpu


def _round_up(x, m):
    return (x + m - 1) // m * m


# ---------------------------------------------------------------------------
# Pallas kernel: tiled matmul (MXU, bf16 in / f32 acc) + folded BN + ReLU
# ---------------------------------------------------------------------------
def _mm_bn_relu_kernel(x_ref, w_ref, scale_ref, bias_ref, o_ref, acc_ref):
    k = pl.program_id(2)

    @pl.when(k == 0)
    def _():
        acc_ref[...] = jnp.zeros_like(acc_ref)

    acc_ref[...] += jnp.dot(x_ref[...], w_ref[...],
                            preferred_element_type=jnp.float32)

    @pl.when(k == pl.num_programs(2) - 1)
    def _():
        y = acc_ref[...] * scale_ref[...] + bias_ref[...]
        o_ref[...] = jnp.maximum(y, 0.0).astype(o_ref.dtype)


def _pick_tk(kp):
    for cand in (512, 384, 256, 128):
        if kp % cand == 0:
            return cand
    return 128


def fused_matmul_bn_relu(x2d, w2d, scale, bias):
    """relu((x2d @ w2d) * scale + bias)  with folded inference BatchNorm.

    x2d: (M, K), w2d: (K, N)  -> cast to bf16 for the MXU.
    scale/bias: (N,) float32.  Returns (M, N) float32.
    """
    M, K = x2d.shape
    Kw, N = w2d.shape
    assert K == Kw

    # ---- tiling: modest tiles that fit every generation's VMEM budget ------
    tm = 256 if M >= 256 else _round_up(M, 8)
    tn = 256 if N % 256 == 0 else 128
    Kp = _round_up(K, 128)
    tk = _pick_tk(Kp)
    Mp = _round_up(M, tm)
    Np = _round_up(N, tn)

    xb = x2d.astype(jnp.bfloat16)
    wb = w2d.astype(jnp.bfloat16)
    if (Mp, Kp) != (M, K):
        xb = jnp.pad(xb, ((0, Mp - M), (0, Kp - K)))
    if (Kp, Np) != (K, N):
        wb = jnp.pad(wb, ((0, Kp - K), (0, Np - N)))
    sc = jnp.pad(scale.astype(jnp.float32), (0, Np - N)).reshape(1, Np)
    bs = jnp.pad(bias.astype(jnp.float32), (0, Np - N)).reshape(1, Np)

    grid = (Mp // tm, Np // tn, Kp // tk)
    out = pl.pallas_call(
        _mm_bn_relu_kernel,
        out_shape=jax.ShapeDtypeStruct((Mp, Np), jnp.float32),
        grid_spec=pltpu.PrefetchScalarGridSpec(
            num_scalar_prefetch=0,
            grid=grid,
            in_specs=[
                pl.BlockSpec((tm, tk), lambda i, j, k: (i, k)),
                pl.BlockSpec((tk, tn), lambda i, j, k: (k, j)),
                # scale/bias only depend on the N grid axis (no re-broadcast per M/K step)
                pl.BlockSpec((1, tn), lambda i, j, k: (0, j)),
                pl.BlockSpec((1, tn), lambda i, j, k: (0, j)),
            ],
            out_specs=pl.BlockSpec((tm, tn), lambda i, j, k: (i, j)),
            scratch_shapes=[pltpu.VMEM((tm, tn), jnp.float32)],
        ),
        compiler_params=pltpu.CompilerParams(
            dimension_semantics=("parallel", "parallel", "arbitrary"),
            vmem_limit_bytes=32 * 1024 * 1024,
        ),
    )(xb, wb, sc, bs)

    if (Mp, Np) != (M, N):
        out = out[:M, :N]
    return out


# ---------------------------------------------------------------------------
# BasicConv2d equivalents (conv + BN(eval, folded) + ReLU)
# ---------------------------------------------------------------------------
def conv1x1_bn_relu(x_nhwc, w_oihw, scale, bias):
    N, H, W, Cin = x_nhwc.shape
    Cout = w_oihw.shape[0]
    wmat = w_oihw.reshape(Cout, Cin).T                       # (Cin, Cout)
    y = fused_matmul_bn_relu(x_nhwc.reshape(N * H * W, Cin), wmat, scale, bias)
    return y.reshape(N, H, W, Cout)


def conv3x3_bn_relu(x_nhwc, w_oihw, scale, bias, *, stride, padding):
    N, H, W, Cin = x_nhwc.shape
    Cout = w_oihw.shape[0]
    x_bf = x_nhwc.astype(jnp.bfloat16)                       # halve im2col traffic
    if padding:
        x_bf = jnp.pad(x_bf, ((0, 0), (padding, padding),
                              (padding, padding), (0, 0)))
    Hp, Wp = H + 2 * padding, W + 2 * padding
    Ho = (Hp - 3) // stride + 1
    Wo = (Wp - 3) // stride + 1
    # im2col glue: patches ordered (ky, kx, cin) along the last axis.
    # TODO(synk): stream the 9 shifted windows straight from HBM inside the
    # kernel (avoids materializing the 9x im2col tensor); the stride-2 windows
    # need element-offset BlockSpecs, kept as XLA glue here for robustness.
    patches = []
    for ky in range(3):
        for kx in range(3):
            patches.append(
                x_bf[:, ky:ky + stride * (Ho - 1) + 1:stride,
                        kx:kx + stride * (Wo - 1) + 1:stride, :])
    pat = jnp.concatenate(patches, axis=-1)                  # (N, Ho, Wo, 9*Cin)
    wmat = jnp.transpose(w_oihw, (2, 3, 1, 0)).reshape(9 * Cin, Cout)
    y = fused_matmul_bn_relu(pat.reshape(N * Ho * Wo, 9 * Cin), wmat, scale, bias)
    return y.reshape(N, Ho, Wo, Cout)


def maxpool3x3_s2(x_nhwc):
    """MaxPool2d(3, stride=2): fused maximum tree over the 9 strided views
    (single read of the input, no 9x stack materialization)."""
    N, H, W, C = x_nhwc.shape
    Ho = (H - 3) // 2 + 1
    Wo = (W - 3) // 2 + 1
    out = None
    for ky in range(3):
        for kx in range(3):
            v = x_nhwc[:, ky:ky + 2 * (Ho - 1) + 1:2,
                          kx:kx + 2 * (Wo - 1) + 1:2, :]
            out = v if out is None else jnp.maximum(out, v)
    return out


# ---------------------------------------------------------------------------
# Parameter init (deterministic, synthetic).  BatchNorm is applied in
# inference mode and folded to (scale, bias).
# ---------------------------------------------------------------------------
def init_basic_conv(key, cin, cout, ksize, eps=1e-3):
    k1, k2, k3, k4, k5 = jax.random.split(key, 5)
    w = jax.random.normal(k1, (cout, cin, ksize, ksize), jnp.float32) * 0.05
    gamma = jax.random.uniform(k2, (cout,), jnp.float32, minval=0.5, maxval=1.5)
    beta = jax.random.normal(k3, (cout,), jnp.float32) * 0.1
    r_mean = jax.random.normal(k4, (cout,), jnp.float32) * 0.1
    r_var = jax.random.uniform(k5, (cout,), jnp.float32, minval=0.5, maxval=1.5)
    scale = gamma / jnp.sqrt(r_var + eps)
    bias = beta - r_mean * scale
    return w, scale, bias


def init_mixed_6a_params(key):
    ks = jax.random.split(key, 4)
    return {
        "b0":   init_basic_conv(ks[0], 320, 384, 3),   # branch0: 3x3 /2
        "b1_0": init_basic_conv(ks[1], 320, 256, 1),   # branch1: 1x1
        "b1_1": init_basic_conv(ks[2], 256, 256, 3),   # branch1: 3x3 pad1
        "b1_2": init_basic_conv(ks[3], 256, 384, 3),   # branch1: 3x3 /2
    }


# ---------------------------------------------------------------------------
# Mixed_6a forward
# ---------------------------------------------------------------------------
def mixed_6a_forward(x_nchw, params):
    x = jnp.transpose(x_nchw, (0, 2, 3, 1))                  # NCHW -> NHWC

    # branch0: 3x3 stride-2 conv, 320 -> 384
    b0 = conv3x3_bn_relu(x, *params["b0"], stride=2, padding=0)

    # branch1: 1x1 -> 3x3 (pad 1) -> 3x3 stride 2
    b1 = conv1x1_bn_relu(x, *params["b1_0"])
    b1 = conv3x3_bn_relu(b1, *params["b1_1"], stride=1, padding=1)
    b1 = conv3x3_bn_relu(b1, *params["b1_2"], stride=2, padding=0)

    # branch2: MaxPool2d(3, stride=2)
    b2 = maxpool3x3_s2(x)

    out = jnp.concatenate([b0, b1, b2], axis=-1)             # channel concat
    return jnp.transpose(out, (0, 3, 1, 2))                  # NHWC -> NCHW


# ---------------------------------------------------------------------------
if __name__ == "__main__":
    key = jax.random.PRNGKey(0)
    k_x, k_p = jax.random.split(key)

    # Small but module-consistent shapes: in-channels are fixed at 320.
    N, C, H, W = 2, 320, 15, 15
    x = jax.random.normal(k_x, (N, C, H, W), jnp.float32)
    params = init_mixed_6a_params(k_p)

    fwd = jax.jit(functools.partial(mixed_6a_forward, params=params))
    out = jax.block_until_ready(fwd(x))

    Ho = (H - 3) // 2 + 1
    Wo = (W - 3) // 2 + 1
    expected = (N, 384 + 384 + 320, Ho, Wo)
    assert out.shape == expected, (out.shape, expected)
    assert out.dtype == jnp.float32
    assert bool(jnp.isfinite(out).all())
    print("KERNEL_OK")
</pallas_src>

<mosaic_0001>
module attributes {stable_mosaic.version = 11 : i64} {
  func.func @_mm_bn_relu_kernel(%arg0: i32, %arg1: i32, %arg2: i32, %arg3: memref<256x384xbf16, #tpu.memory_space<vmem>>, %arg4: memref<384x256xbf16, #tpu.memory_space<vmem>>, %arg5: memref<1x256xf32, #tpu.memory_space<vmem>>, %arg6: memref<1x256xf32, #tpu.memory_space<vmem>>, %arg7: memref<256x256xf32, #tpu.memory_space<vmem>>, %arg8: memref<256x256xf32, #tpu.memory_space<vmem>>) attributes {dimension_semantics = [#tpu.dimension_semantics<parallel>, #tpu.dimension_semantics<parallel>, #tpu.dimension_semantics<arbitrary>], iteration_bounds = array<i64: 2, 1, 1>, scalar_prefetch = 0 : i64, scratch_operands = 1 : i64, tpu.core_type = #tpu.core_type<tc>, window_params = [{transform_indices = @transform_0, window_bounds = array<i64: 256, 384>}, {transform_indices = @transform_1, window_bounds = array<i64: 384, 256>}, {transform_indices = @transform_2, window_bounds = array<i64: 1, 256>}, {transform_indices = @transform_3, window_bounds = array<i64: 1, 256>}, {transform_indices = @transform_4, window_bounds = array<i64: 256, 256>}]} {
    %c0_i32 = arith.constant 0 : i32
    %0 = arith.cmpi eq, %arg2, %c0_i32 : i32
    %1 = arith.extui %0 : i1 to i32
    %c0_i32_0 = arith.constant 0 : i32
    %2 = arith.cmpi ne, %1, %c0_i32_0 : i32
    scf.if %2 {
      %cst_10 = arith.constant 0.000000e+00 : f32
      %12 = vector.broadcast %cst_10 : f32 to vector<256x256xf32>
      %c0_11 = arith.constant 0 : index
      %c0_12 = arith.constant 0 : index
      %13 = vector.load %arg8[%c0_11, %c0_12] : memref<256x256xf32, #tpu.memory_space<vmem>>, vector<256x256xf32>
      tpu.vector_store %arg8[%c0_11, %c0_12], %12 {strides = array<i32>} : memref<256x256xf32, #tpu.memory_space<vmem>>, vector<256x256xf32>,
    } else {
    }
    %c0 = arith.constant 0 : index
    %c0_1 = arith.constant 0 : index
    %3 = vector.load %arg8[%c0, %c0_1] : memref<256x256xf32, #tpu.memory_space<vmem>>, vector<256x256xf32>
    %c0_2 = arith.constant 0 : index
    %c0_3 = arith.constant 0 : index
    %4 = vector.load %arg3[%c0_2, %c0_3] : memref<256x384xbf16, #tpu.memory_space<vmem>>, vector<256x384xbf16>
    %c0_4 = arith.constant 0 : index
    %c0_5 = arith.constant 0 : index
    %5 = vector.load %arg4[%c0_4, %c0_5] : memref<384x256xbf16, #tpu.memory_space<vmem>>, vector<384x256xbf16>
    %cst = arith.constant dense<0.000000e+00> : vector<256x256xf32>
    %6 = tpu.matmul %4, %5, %cst {dimension_numbers = #tpu.dot_dimension_numbers<[1], [0], [0], [1], [0, 0, 1, 1], [], []>} : vector<256x384xbf16>, vector<384x256xbf16>, vector<256x256xf32> -> vector<256x256xf32>
    %7 = arith.addf %3, %6 : vector<256x256xf32>
    %c0_6 = arith.constant 0 : index
    %c0_7 = arith.constant 0 : index
    %8 = vector.load %arg8[%c0_6, %c0_7] : memref<256x256xf32, #tpu.memory_space<vmem>>, vector<256x256xf32>
    tpu.vector_store %arg8[%c0_6, %c0_7], %7 {strides = array<i32>} : memref<256x256xf32, #tpu.memory_space<vmem>>, vector<256x256xf32>,
    %c0_i32_8 = arith.constant 0 : i32
    %9 = arith.cmpi eq, %arg2, %c0_i32_8 : i32
    %10 = arith.extui %9 : i1 to i32
    %c0_i32_9 = arith.constant 0 : i32
    %11 = arith.cmpi ne, %10, %c0_i32_9 : i32
    scf.if %11 {
      %c0_10 = arith.constant 0 : index
      %c0_11 = arith.constant 0 : index
      %12 = vector.load %arg8[%c0_10, %c0_11] : memref<256x256xf32, #tpu.memory_space<vmem>>, vector<256x256xf32>
      %c0_12 = arith.constant 0 : index
      %c0_13 = arith.constant 0 : index
      %13 = vector.load %arg5[%c0_12, %c0_13] : memref<1x256xf32, #tpu.memory_space<vmem>>, vector<1x256xf32>
      %14 = vector.broadcast %13 : vector<1x256xf32> to vector<256x256xf32>
      %15 = arith.mulf %12, %14 : vector<256x256xf32>
      %c0_14 = arith.constant 0 : index
      %c0_15 = arith.constant 0 : index
      %16 = vector.load %arg6[%c0_14, %c0_15] : memref<1x256xf32, #tpu.memory_space<vmem>>, vector<1x256xf32>
      %17 = vector.broadcast %16 : vector<1x256xf32> to vector<256x256xf32>
      %18 = arith.addf %15, %17 : vector<256x256xf32>
      %cst_16 = arith.constant 0.000000e+00 : f32
      %19 = vector.broadcast %cst_16 : f32 to vector<256x256xf32>
      %20 = arith.maximumf %18, %19 : vector<256x256xf32>
      %c0_17 = arith.constant 0 : index
      %c0_18 = arith.constant 0 : index
      %21 = vector.load %arg7[%c0_17, %c0_18] : memref<256x256xf32, #tpu.memory_space<vmem>>, vector<256x256xf32>
      tpu.vector_store %arg7[%c0_17, %c0_18], %20 {strides = array<i32>} : memref<256x256xf32, #tpu.memory_space<vmem>>, vector<256x256xf32>,
    } else {
    }
    return
  }
  func.func @transform_0(%arg0: i32, %arg1: i32, %arg2: i32) -> (i32, i32) {
    %c0_i32 = arith.constant 0 : i32
    return %arg0, %arg2 : i32, i32
  }
  func.func @transform_1(%arg0: i32, %arg1: i32, %arg2: i32) -> (i32, i32) {
    %c0_i32 = arith.constant 0 : i32
    return %arg2, %arg1 : i32, i32
  }
  func.func @transform_2(%arg0: i32, %arg1: i32, %arg2: i32) -> (i32, i32) {
    %c0_i32 = arith.constant 0 : i32
    %c0_i32_0 = arith.constant 0 : i32
    return %c0_i32, %arg1 : i32, i32
  }
  func.func @transform_3(%arg0: i32, %arg1: i32, %arg2: i32) -> (i32, i32) {
    %c0_i32 = arith.constant 0 : i32
    %c0_i32_0 = arith.constant 0 : i32
    return %c0_i32, %arg1 : i32, i32
  }
  func.func @transform_4(%arg0: i32, %arg1: i32, %arg2: i32) -> (i32, i32) {
    %c0_i32 = arith.constant 0 : i32
    return %arg0, %arg1 : i32, i32
  }
}

module attributes {stable_mosaic.version = 11 : i64} {
  func.func @_mm_bn_relu_kernel(%arg0: i32, %arg1: i32, %arg2: i32, %arg3: memref<256x384xbf16, #tpu.memory_space<vmem>>, %arg4: memref<384x256xbf16, #tpu.memory_space<vmem>>, %arg5: memref<1x256xf32, #tpu.memory_space<vmem>>, %arg6: memref<1x256xf32, #tpu.memory_space<vmem>>, %arg7: memref<256x256xf32, #tpu.memory_space<vmem>>, %arg8: memref<256x256xf32, #tpu.memory_space<vmem>>) attributes {dimension_semantics = [#tpu.dimension_semantics<parallel>, #tpu.dimension_semantics<parallel>, #tpu.dimension_semantics<arbitrary>], iteration_bounds = array<i64: 2, 1, 6>, scalar_prefetch = 0 : i64, scratch_operands = 1 : i64, tpu.core_type = #tpu.core_type<tc>, window_params = [{transform_indices = @transform_0, window_bounds = array<i64: 256, 384>}, {transform_indices = @transform_1, window_bounds = array<i64: 384, 256>}, {transform_indices = @transform_2, window_bounds = array<i64: 1, 256>}, {transform_indices = @transform_3, window_bounds = array<i64: 1, 256>}, {transform_indices = @transform_4, window_bounds = array<i64: 256, 256>}]} {
    %c0_i32 = arith.constant 0 : i32
    %0 = arith.cmpi eq, %arg2, %c0_i32 : i32
    %1 = arith.extui %0 : i1 to i32
    %c0_i32_0 = arith.constant 0 : i32
    %2 = arith.cmpi ne, %1, %c0_i32_0 : i32
    scf.if %2 {
      %cst_9 = arith.constant 0.000000e+00 : f32
      %12 = vector.broadcast %cst_9 : f32 to vector<256x256xf32>
      %c0_10 = arith.constant 0 : index
      %c0_11 = arith.constant 0 : index
      %13 = vector.load %arg8[%c0_10, %c0_11] : memref<256x256xf32, #tpu.memory_space<vmem>>, vector<256x256xf32>
      tpu.vector_store %arg8[%c0_10, %c0_11], %12 {strides = array<i32>} : memref<256x256xf32, #tpu.memory_space<vmem>>, vector<256x256xf32>,
    } else {
    }
    %c0 = arith.constant 0 : index
    %c0_1 = arith.constant 0 : index
    %3 = vector.load %arg8[%c0, %c0_1] : memref<256x256xf32, #tpu.memory_space<vmem>>, vector<256x256xf32>
    %c0_2 = arith.constant 0 : index
    %c0_3 = arith.constant 0 : index
    %4 = vector.load %arg3[%c0_2, %c0_3] : memref<256x384xbf16, #tpu.memory_space<vmem>>, vector<256x384xbf16>
    %c0_4 = arith.constant 0 : index
    %c0_5 = arith.constant 0 : index
    %5 = vector.load %arg4[%c0_4, %c0_5] : memref<384x256xbf16, #tpu.memory_space<vmem>>, vector<384x256xbf16>
    %cst = arith.constant dense<0.000000e+00> : vector<256x256xf32>
    %6 = tpu.matmul %4, %5, %cst {dimension_numbers = #tpu.dot_dimension_numbers<[1], [0], [0], [1], [0, 0, 1, 1], [], []>} : vector<256x384xbf16>, vector<384x256xbf16>, vector<256x256xf32> -> vector<256x256xf32>
    %7 = arith.addf %3, %6 : vector<256x256xf32>
    %c0_6 = arith.constant 0 : index
    %c0_7 = arith.constant 0 : index
    %8 = vector.load %arg8[%c0_6, %c0_7] : memref<256x256xf32, #tpu.memory_space<vmem>>, vector<256x256xf32>
    tpu.vector_store %arg8[%c0_6, %c0_7], %7 {strides = array<i32>} : memref<256x256xf32, #tpu.memory_space<vmem>>, vector<256x256xf32>,
    %c5_i32 = arith.constant 5 : i32
    %9 = arith.cmpi eq, %arg2, %c5_i32 : i32
    %10 = arith.extui %9 : i1 to i32
    %c0_i32_8 = arith.constant 0 : i32
    %11 = arith.cmpi ne, %10, %c0_i32_8 : i32
    scf.if %11 {
      %c0_9 = arith.constant 0 : index
      %c0_10 = arith.constant 0 : index
      %12 = vector.load %arg8[%c0_9, %c0_10] : memref<256x256xf32, #tpu.memory_space<vmem>>, vector<256x256xf32>
      %c0_11 = arith.constant 0 : index
      %c0_12 = arith.constant 0 : index
      %13 = vector.load %arg5[%c0_11, %c0_12] : memref<1x256xf32, #tpu.memory_space<vmem>>, vector<1x256xf32>
      %14 = vector.broadcast %13 : vector<1x256xf32> to vector<256x256xf32>
      %15 = arith.mulf %12, %14 : vector<256x256xf32>
      %c0_13 = arith.constant 0 : index
      %c0_14 = arith.constant 0 : index
      %16 = vector.load %arg6[%c0_13, %c0_14] : memref<1x256xf32, #tpu.memory_space<vmem>>, vector<1x256xf32>
      %17 = vector.broadcast %16 : vector<1x256xf32> to vector<256x256xf32>
      %18 = arith.addf %15, %17 : vector<256x256xf32>
      %cst_15 = arith.constant 0.000000e+00 : f32
      %19 = vector.broadcast %cst_15 : f32 to vector<256x256xf32>
      %20 = arith.maximumf %18, %19 : vector<256x256xf32>
      %c0_16 = arith.constant 0 : index
      %c0_17 = arith.constant 0 : index
      %21 = vector.load %arg7[%c0_16, %c0_17] : memref<256x256xf32, #tpu.memory_space<vmem>>, vector<256x256xf32>
      tpu.vector_store %arg7[%c0_16, %c0_17], %20 {strides = array<i32>} : memref<256x256xf32, #tpu.memory_space<vmem>>, vector<256x256xf32>,
    } else {
    }
    return
  }
  func.func @transform_0(%arg0: i32, %arg1: i32, %arg2: i32) -> (i32, i32) {
    %c0_i32 = arith.constant 0 : i32
    return %arg0, %arg2 : i32, i32
  }
  func.func @transform_1(%arg0: i32, %arg1: i32, %arg2: i32) -> (i32, i32) {
    %c0_i32 = arith.constant 0 : i32
    return %arg2, %arg1 : i32, i32
  }
  func.func @transform_2(%arg0: i32, %arg1: i32, %arg2: i32) -> (i32, i32) {
    %c0_i32 = arith.constant 0 : i32
    %c0_i32_0 = arith.constant 0 : i32
    return %c0_i32, %arg1 : i32, i32
  }
  func.func @transform_3(%arg0: i32, %arg1: i32, %arg2: i32) -> (i32, i32) {
    %c0_i32 = arith.constant 0 : i32
    %c0_i32_0 = arith.constant 0 : i32
    return %c0_i32, %arg1 : i32, i32
  }
  func.func @transform_4(%arg0: i32, %arg1: i32, %arg2: i32) -> (i32, i32) {
    %c0_i32 = arith.constant 0 : i32
    return %arg0, %arg1 : i32, i32
  }
}

module attributes {stable_mosaic.version = 11 : i64} {
  func.func @_mm_bn_relu_kernel(%arg0: i32, %arg1: i32, %arg2: i32, %arg3: memref<104x384xbf16, #tpu.memory_space<vmem>>, %arg4: memref<384x128xbf16, #tpu.memory_space<vmem>>, %arg5: memref<1x128xf32, #tpu.memory_space<vmem>>, %arg6: memref<1x128xf32, #tpu.memory_space<vmem>>, %arg7: memref<104x128xf32, #tpu.memory_space<vmem>>, %arg8: memref<104x128xf32, #tpu.memory_space<vmem>>) attributes {dimension_semantics = [#tpu.dimension_semantics<parallel>, #tpu.dimension_semantics<parallel>, #tpu.dimension_semantics<arbitrary>], iteration_bounds = array<i64: 1, 3, 6>, scalar_prefetch = 0 : i64, scratch_operands = 1 : i64, tpu.core_type = #tpu.core_type<tc>, window_params = [{transform_indices = @transform_0, window_bounds = array<i64: 104, 384>}, {transform_indices = @transform_1, window_bounds = array<i64: 384, 128>}, {transform_indices = @transform_2, window_bounds = array<i64: 1, 128>}, {transform_indices = @transform_3, window_bounds = array<i64: 1, 128>}, {transform_indices = @transform_4, window_bounds = array<i64: 104, 128>}]} {
    %c0_i32 = arith.constant 0 : i32
    %0 = arith.cmpi eq, %arg2, %c0_i32 : i32
    %1 = arith.extui %0 : i1 to i32
    %c0_i32_0 = arith.constant 0 : i32
    %2 = arith.cmpi ne, %1, %c0_i32_0 : i32
    scf.if %2 {
      %cst_9 = arith.constant 0.000000e+00 : f32
      %12 = vector.broadcast %cst_9 : f32 to vector<104x128xf32>
      %c0_10 = arith.constant 0 : index
      %c0_11 = arith.constant 0 : index
      %13 = vector.load %arg8[%c0_10, %c0_11] : memref<104x128xf32, #tpu.memory_space<vmem>>, vector<104x128xf32>
      tpu.vector_store %arg8[%c0_10, %c0_11], %12 {strides = array<i32>} : memref<104x128xf32, #tpu.memory_space<vmem>>, vector<104x128xf32>,
    } else {
    }
    %c0 = arith.constant 0 : index
    %c0_1 = arith.constant 0 : index
    %3 = vector.load %arg8[%c0, %c0_1] : memref<104x128xf32, #tpu.memory_space<vmem>>, vector<104x128xf32>
    %c0_2 = arith.constant 0 : index
    %c0_3 = arith.constant 0 : index
    %4 = vector.load %arg3[%c0_2, %c0_3] : memref<104x384xbf16, #tpu.memory_space<vmem>>, vector<104x384xbf16>
    %c0_4 = arith.constant 0 : index
    %c0_5 = arith.constant 0 : index
    %5 = vector.load %arg4[%c0_4, %c0_5] : memref<384x128xbf16, #tpu.memory_space<vmem>>, vector<384x128xbf16>
    %cst = arith.constant dense<0.000000e+00> : vector<104x128xf32>
    %6 = tpu.matmul %4, %5, %cst {dimension_numbers = #tpu.dot_dimension_numbers<[1], [0], [0], [1], [0, 0, 1, 1], [], []>} : vector<104x384xbf16>, vector<384x128xbf16>, vector<104x128xf32> -> vector<104x128xf32>
    %7 = arith.addf %3, %6 : vector<104x128xf32>
    %c0_6 = arith.constant 0 : index
    %c0_7 = arith.constant 0 : index
    %8 = vector.load %arg8[%c0_6, %c0_7] : memref<104x128xf32, #tpu.memory_space<vmem>>, vector<104x128xf32>
    tpu.vector_store %arg8[%c0_6, %c0_7], %7 {strides = array<i32>} : memref<104x128xf32, #tpu.memory_space<vmem>>, vector<104x128xf32>,
    %c5_i32 = arith.constant 5 : i32
    %9 = arith.cmpi eq, %arg2, %c5_i32 : i32
    %10 = arith.extui %9 : i1 to i32
    %c0_i32_8 = arith.constant 0 : i32
    %11 = arith.cmpi ne, %10, %c0_i32_8 : i32
    scf.if %11 {
      %c0_9 = arith.constant 0 : index
      %c0_10 = arith.constant 0 : index
      %12 = vector.load %arg8[%c0_9, %c0_10] : memref<104x128xf32, #tpu.memory_space<vmem>>, vector<104x128xf32>
      %c0_11 = arith.constant 0 : index
      %c0_12 = arith.constant 0 : index
      %13 = vector.load %arg5[%c0_11, %c0_12] : memref<1x128xf32, #tpu.memory_space<vmem>>, vector<1x128xf32>
      %14 = vector.broadcast %13 : vector<1x128xf32> to vector<104x128xf32>
      %15 = arith.mulf %12, %14 : vector<104x128xf32>
      %c0_13 = arith.constant 0 : index
      %c0_14 = arith.constant 0 : index
      %16 = vector.load %arg6[%c0_13, %c0_14] : memref<1x128xf32, #tpu.memory_space<vmem>>, vector<1x128xf32>
      %17 = vector.broadcast %16 : vector<1x128xf32> to vector<104x128xf32>
      %18 = arith.addf %15, %17 : vector<104x128xf32>
      %cst_15 = arith.constant 0.000000e+00 : f32
      %19 = vector.broadcast %cst_15 : f32 to vector<104x128xf32>
      %20 = arith.maximumf %18, %19 : vector<104x128xf32>
      %c0_16 = arith.constant 0 : index
      %c0_17 = arith.constant 0 : index
      %21 = vector.load %arg7[%c0_16, %c0_17] : memref<104x128xf32, #tpu.memory_space<vmem>>, vector<104x128xf32>
      tpu.vector_store %arg7[%c0_16, %c0_17], %20 {strides = array<i32>} : memref<104x128xf32, #tpu.memory_space<vmem>>, vector<104x128xf32>,
    } else {
    }
    return
  }
  func.func @transform_0(%arg0: i32, %arg1: i32, %arg2: i32) -> (i32, i32) {
    %c0_i32 = arith.constant 0 : i32
    return %arg0, %arg2 : i32, i32
  }
  func.func @transform_1(%arg0: i32, %arg1: i32, %arg2: i32) -> (i32, i32) {
    %c0_i32 = arith.constant 0 : i32
    return %arg2, %arg1 : i32, i32
  }
  func.func @transform_2(%arg0: i32, %arg1: i32, %arg2: i32) -> (i32, i32) {
    %c0_i32 = arith.constant 0 : i32
    %c0_i32_0 = arith.constant 0 : i32
    return %c0_i32, %arg1 : i32, i32
  }
  func.func @transform_3(%arg0: i32, %arg1: i32, %arg2: i32) -> (i32, i32) {
    %c0_i32 = arith.constant 0 : i32
    %c0_i32_0 = arith.constant 0 : i32
    return %c0_i32, %arg1 : i32, i32
  }
  func.func @transform_4(%arg0: i32, %arg1: i32, %arg2: i32) -> (i32, i32) {
    %c0_i32 = arith.constant 0 : i32
    return %arg0, %arg1 : i32, i32
  }
}

module attributes {stable_mosaic.version = 11 : i64} {
  func.func @_mm_bn_relu_kernel(%arg0: i32, %arg1: i32, %arg2: i32, %arg3: memref<104x128xbf16, #tpu.memory_space<vmem>>, %arg4: memref<128x128xbf16, #tpu.memory_space<vmem>>, %arg5: memref<1x128xf32, #tpu.memory_space<vmem>>, %arg6: memref<1x128xf32, #tpu.memory_space<vmem>>, %arg7: memref<104x128xf32, #tpu.memory_space<vmem>>, %arg8: memref<104x128xf32, #tpu.memory_space<vmem>>) attributes {dimension_semantics = [#tpu.dimension_semantics<parallel>, #tpu.dimension_semantics<parallel>, #tpu.dimension_semantics<arbitrary>], iteration_bounds = array<i64: 1, 3, 23>, scalar_prefetch = 0 : i64, scratch_operands = 1 : i64, tpu.core_type = #tpu.core_type<tc>, window_params = [{transform_indices = @transform_0, window_bounds = array<i64: 104, 128>}, {transform_indices = @transform_1, window_bounds = array<i64: 128, 128>}, {transform_indices = @transform_2, window_bounds = array<i64: 1, 128>}, {transform_indices = @transform_3, window_bounds = array<i64: 1, 128>}, {transform_indices = @transform_4, window_bounds = array<i64: 104, 128>}]} {
    %c0_i32 = arith.constant 0 : i32
    %0 = arith.cmpi eq, %arg2, %c0_i32 : i32
    %1 = arith.extui %0 : i1 to i32
    %c0_i32_0 = arith.constant 0 : i32
    %2 = arith.cmpi ne, %1, %c0_i32_0 : i32
    scf.if %2 {
      %cst_9 = arith.constant 0.000000e+00 : f32
      %12 = vector.broadcast %cst_9 : f32 to vector<104x128xf32>
      %c0_10 = arith.constant 0 : index
      %c0_11 = arith.constant 0 : index
      %13 = vector.load %arg8[%c0_10, %c0_11] : memref<104x128xf32, #tpu.memory_space<vmem>>, vector<104x128xf32>
      tpu.vector_store %arg8[%c0_10, %c0_11], %12 {strides = array<i32>} : memref<104x128xf32, #tpu.memory_space<vmem>>, vector<104x128xf32>,
    } else {
    }
    %c0 = arith.constant 0 : index
    %c0_1 = arith.constant 0 : index
    %3 = vector.load %arg8[%c0, %c0_1] : memref<104x128xf32, #tpu.memory_space<vmem>>, vector<104x128xf32>
    %c0_2 = arith.constant 0 : index
    %c0_3 = arith.constant 0 : index
    %4 = vector.load %arg3[%c0_2, %c0_3] : memref<104x128xbf16, #tpu.memory_space<vmem>>, vector<104x128xbf16>
    %c0_4 = arith.constant 0 : index
    %c0_5 = arith.constant 0 : index
    %5 = vector.load %arg4[%c0_4, %c0_5] : memref<128x128xbf16, #tpu.memory_space<vmem>>, vector<128x128xbf16>
    %cst = arith.constant dense<0.000000e+00> : vector<104x128xf32>
    %6 = tpu.matmul %4, %5, %cst {dimension_numbers = #tpu.dot_dimension_numbers<[1], [0], [0], [1], [0, 0, 1, 1], [], []>} : vector<104x128xbf16>, vector<128x128xbf16>, vector<104x128xf32> -> vector<104x128xf32>
    %7 = arith.addf %3, %6 : vector<104x128xf32>
    %c0_6 = arith.constant 0 : index
    %c0_7 = arith.constant 0 : index
    %8 = vector.load %arg8[%c0_6, %c0_7] : memref<104x128xf32, #tpu.memory_space<vmem>>, vector<104x128xf32>
    tpu.vector_store %arg8[%c0_6, %c0_7], %7 {strides = array<i32>} : memref<104x128xf32, #tpu.memory_space<vmem>>, vector<104x128xf32>,
    %c22_i32 = arith.constant 22 : i32
    %9 = arith.cmpi eq, %arg2, %c22_i32 : i32
    %10 = arith.extui %9 : i1 to i32
    %c0_i32_8 = arith.constant 0 : i32
    %11 = arith.cmpi ne, %10, %c0_i32_8 : i32
    scf.if %11 {
      %c0_9 = arith.constant 0 : index
      %c0_10 = arith.constant 0 : index
      %12 = vector.load %arg8[%c0_9, %c0_10] : memref<104x128xf32, #tpu.memory_space<vmem>>, vector<104x128xf32>
      %c0_11 = arith.constant 0 : index
      %c0_12 = arith.constant 0 : index
      %13 = vector.load %arg5[%c0_11, %c0_12] : memref<1x128xf32, #tpu.memory_space<vmem>>, vector<1x128xf32>
      %14 = vector.broadcast %13 : vector<1x128xf32> to vector<104x128xf32>
      %15 = arith.mulf %12, %14 : vector<104x128xf32>
      %c0_13 = arith.constant 0 : index
      %c0_14 = arith.constant 0 : index
      %16 = vector.load %arg6[%c0_13, %c0_14] : memref<1x128xf32, #tpu.memory_space<vmem>>, vector<1x128xf32>
      %17 = vector.broadcast %16 : vector<1x128xf32> to vector<104x128xf32>
      %18 = arith.addf %15, %17 : vector<104x128xf32>
      %cst_15 = arith.constant 0.000000e+00 : f32
      %19 = vector.broadcast %cst_15 : f32 to vector<104x128xf32>
      %20 = arith.maximumf %18, %19 : vector<104x128xf32>
      %c0_16 = arith.constant 0 : index
      %c0_17 = arith.constant 0 : index
      %21 = vector.load %arg7[%c0_16, %c0_17] : memref<104x128xf32, #tpu.memory_space<vmem>>, vector<104x128xf32>
      tpu.vector_store %arg7[%c0_16, %c0_17], %20 {strides = array<i32>} : memref<104x128xf32, #tpu.memory_space<vmem>>, vector<104x128xf32>,
    } else {
    }
    return
  }
  func.func @transform_0(%arg0: i32, %arg1: i32, %arg2: i32) -> (i32, i32) {
    %c0_i32 = arith.constant 0 : i32
    return %arg0, %arg2 : i32, i32
  }
  func.func @transform_1(%arg0: i32, %arg1: i32, %arg2: i32) -> (i32, i32) {
    %c0_i32 = arith.constant 0 : i32
    return %arg2, %arg1 : i32, i32
  }
  func.func @transform_2(%arg0: i32, %arg1: i32, %arg2: i32) -> (i32, i32) {
    %c0_i32 = arith.constant 0 : i32
    %c0_i32_0 = arith.constant 0 : i32
    return %c0_i32, %arg1 : i32, i32
  }
  func.func @transform_3(%arg0: i32, %arg1: i32, %arg2: i32) -> (i32, i32) {
    %c0_i32 = arith.constant 0 : i32
    %c0_i32_0 = arith.constant 0 : i32
    return %c0_i32, %arg1 : i32, i32
  }
  func.func @transform_4(%arg0: i32, %arg1: i32, %arg2: i32) -> (i32, i32) {
    %c0_i32 = arith.constant 0 : i32
    return %arg0, %arg1 : i32, i32
  }
}

</mosaic_0001>

<llo_original>
// kernel: mixed_6a_forward.5
$region0: #{mixed_6a_forward.5}
  #allocation0 [shape = 'u32[]', space=smem, size = 0x4, offset = 0x4, fixed_abs, tag = 'smem constant byte address 0x4 - core index']
  #allocation1 [shape = 'u32[144,128]{1,0:T(1,128)}', space=vmem, size = 0x12000, scoped, tag = 'internal scratch']
  #allocation2 [shape = 'f32[256,256]{1,0:T(8,128)}', space=vmem, size = 0x40000, scoped, tag = 'scratch operand']
  %s0 = inlined_call_operand.vmem [shape: bf16[512,384], index: 0, kind: input, shape index: {}]
  %s1 = inlined_call_operand.vmem [shape: bf16[384,256], index: 1, kind: input, shape index: {}]
  %s2 = inlined_call_operand.vmem [shape: f32[1,256], index: 2, kind: input, shape index: {}]
  %s3 = inlined_call_operand.vmem [shape: f32[1,256], index: 3, kind: input, shape index: {}]
  %s4 = inlined_call_operand.vmem [shape: f32[512,256], index: 4, kind: output, shape index: {}]
  %s5 = sld [smem:[#allocation0]]
  $region57: #{mixed_6a_forward.5} parent=0
    _
  %s7 = ssub.s32 1, %s5
  %s8 = scalar_select 0, %s7, %s5
  loop: start=0, step=1, limit=4
  $region2: #{mixed_6a_forward.5} parent=0 // loop_pre_header
    _
  $region3: #{mixed_6a_forward.5} parent=0 // loop_header
    %s10 = sphi 0, %s14
    %p11 = scmp.ge.s32.totalorder %s10, 4
    %s17 = sphi 0, %s36
    %s18 = sphi 0, %s32
    %s19 = sphi 0, %s28
    %s20 = sphi 0, %s17
    %s21 = sphi 0, %s18
    %s22 = sphi 0, %s19
    %s23 = sphi 0, %s20
    %s24 = sphi 0, %s21
    %s25 = sphi 0, %s22
    %s41 = sphi 0, %s43
    %s44 = sphi 0, %s41
    %s45 = sphi 0, %s44
    %s61 = sphi 0, %s45
    %s69 = sphi 0, %s71
    %s72 = sphi 0, %s69
    %s73 = sphi 0, %s72
    %s89 = sphi 0, %s73
    %s95 = sphi 0, %s97
    %s98 = sphi 0, %s95
    %s99 = sphi 0, %s98
    %s115 = sphi 0, %s99
    %s121 = sphi 0, %s123
    %s124 = sphi 0, %s121
    %s125 = sphi 0, %s124
    %s141 = sphi 0, %s125
    %s149 = sphi 0, %s151
    %s152 = sphi 0, %s149
    %s153 = sphi 0, %s152
    %s169 = sphi 0, %s153
  $region4: #{mixed_6a_forward.5} parent=0 // loop_header_branch
    %13 = sbr.rel (%p11) target = $region8
  $region5: #{mixed_6a_forward.5} parent=0 // loop_body
    %s15 = ssub.s32 %s10, 1
    %s16 = ssub.s32 %s10, 2
    %s26 = sadd.s32 1, %s19
    %p27 = scmp.ge.s32.totalorder %s26, 1
    %s28 = scalar_select %p27, 0, %s26
    %s29 = sadd.s32 1, %s18
    %s30 = scalar_select %p27, %s29, %s18
    %p31 = scmp.ge.s32.totalorder %s30, 1
    %s32 = scalar_select %p31, 0, %s30
    %s33 = sadd.s32 1, %s17
    %s34 = scalar_select %p31, %s33, %s17
    %p35 = scmp.ge.s32.totalorder %s34, 2
    %s36 = scalar_select %p35, 0, %s34
    %s37 = ssub.s32 %s17, %s36
    %s38 = ssub.s32 %s19, %s28
    %s39 = sor.u32 %s37, %s38
    %p40 = scmp.eq.s32.totalorder %s39, 0
    %s42 = sadd.s32 %s41, 1
    %s43 = scalar_select %p40, %s41, %s42
    %p46 = pneg %p40
    %p47 = scmp.eq.s32.totalorder %s10, 1
    %p48 = por %p46, %p47
    %p49 = scmp.ne.s32.totalorder %s41, %s44
    %p50 = scmp.eq.s32.totalorder %s10, 0
    %p51 = por %p49, %p50
    %p52 = scmp.ne.s32.totalorder %s41, %s44
    %p53 = scmp.eq.s32.totalorder %s15, 1
    %p54 = por %p52, %p53
    %p55 = scmp.ne.s32.totalorder %s44, %s45
    %p56 = scmp.eq.s32.totalorder %s15, 0
    %p57 = por %p55, %p56
    %p58 = scmp.ne.s32.totalorder %s44, %s45
    %p59 = scmp.eq.s32.totalorder %s16, 1
    %p60 = por %p58, %p59
    %p62 = scmp.ne.s32.totalorder %s45, %s61
    %p63 = scmp.eq.s32.totalorder %s16, 0
    %p64 = por %p62, %p63
    %s65 = ssub.s32 %s19, %s28
    %s66 = ssub.s32 %s18, %s32
    %s67 = sor.u32 %s65, %s66
    %p68 = scmp.eq.s32.totalorder %s67, 0
    %s70 = sadd.s32 %s69, 1
    %s71 = scalar_select %p68, %s69, %s70
    %p74 = pneg %p68
    %p75 = scmp.eq.s32.totalorder %s10, 1
    %p76 = por %p74, %p75
    %p77 = scmp.ne.s32.totalorder %s69, %s72
    %p78 = scmp.eq.s32.totalorder %s10, 0
    %p79 = por %p77, %p78
    %p80 = scmp.ne.s32.totalorder %s69, %s72
    %p81 = scmp.eq.s32.totalorder %s15, 1
    %p82 = por %p80, %p81
    %p83 = scmp.ne.s32.totalorder %s72, %s73
    %p84 = scmp.eq.s32.totalorder %s15, 0
    %p85 = por %p83, %p84
    %p86 = scmp.ne.s32.totalorder %s72, %s73
    %p87 = scmp.eq.s32.totalorder %s16, 1
    %p88 = por %p86, %p87
    %p90 = scmp.ne.s32.totalorder %s73, %s89
    %p91 = scmp.eq.s32.totalorder %s16, 0
    %p92 = por %p90, %p91
    %s93 = ssub.s32 %s18, %s32
    %p94 = scmp.eq.s32.totalorder %s93, 0
    %s96 = sadd.s32 %s95, 1
    %s97 = scalar_select %p94, %s95, %s96
    %p100 = pneg %p94
    %p101 = scmp.eq.s32.totalorder %s10, 1
    %p102 = por %p100, %p101
    %p103 = scmp.ne.s32.totalorder %s95, %s98
    %p104 = scmp.eq.s32.totalorder %s10, 0
    %p105 = por %p103, %p104
    %p106 = scmp.ne.s32.totalorder %s95, %s98
    %p107 = scmp.eq.s32.totalorder %s15, 1
    %p108 = por %p106, %p107
    %p109 = scmp.ne.s32.totalorder %s98, %s99
    %p110 = scmp.eq.s32.totalorder %s15, 0
    %p111 = por %p109, %p110
    %p112 = scmp.ne.s32.totalorder %s98, %s99
    %p113 = scmp.eq.s32.totalorder %s16, 1
    %p114 = por %p112, %p113
    %p116 = scmp.ne.s32.totalorder %s99, %s115
    %p117 = scmp.eq.s32.totalorder %s16, 0
    %p118 = por %p116, %p117
    %s119 = ssub.s32 %s18, %s32
    %p120 = scmp.eq.s32.totalorder %s119, 0
    %s122 = sadd.s32 %s121, 1
    %s123 = scalar_select %p120, %s121, %s122
    %p126 = pneg %p120
    %p127 = scmp.eq.s32.totalorder %s10, 1
    %p128 = por %p126, %p127
    %p129 = scmp.ne.s32.totalorder %s121, %s124
    %p130 = scmp.eq.s32.totalorder %s10, 0
    %p131 = por %p129, %p130
    %p132 = scmp.ne.s32.totalorder %s121, %s124
    %p133 = scmp.eq.s32.totalorder %s15, 1
    %p134 = por %p132, %p133
    %p135 = scmp.ne.s32.totalorder %s124, %s125
    %p136 = scmp.eq.s32.totalorder %s15, 0
    %p137 = por %p135, %p136
    %p138 = scmp.ne.s32.totalorder %s124, %s125
    %p139 = scmp.eq.s32.totalorder %s16, 1
    %p140 = por %p138, %p139
    %p142 = scmp.ne.s32.totalorder %s125, %s141
    %p143 = scmp.eq.s32.totalorder %s16, 0
    %p144 = por %p142, %p143
    %s145 = ssub.s32 %s17, %s36
    %s146 = ssub.s32 %s18, %s32
    %s147 = sor.u32 %s145, %s146
    %p148 = scmp.eq.s32.totalorder %s147, 0
    %s150 = sadd.s32 %s149, 1
    %s151 = scalar_select %p148, %s149, %s150
    %p154 = pneg %p148
    %p155 = scmp.eq.s32.totalorder %s10, 1
    %p156 = por %p154, %p155
    %p157 = scmp.ne.s32.totalorder %s149, %s152
    %p158 = scmp.eq.s32.totalorder %s10, 0
    %p159 = por %p157, %p158
    %p160 = scmp.ne.s32.totalorder %s149, %s152
    %p161 = scmp.eq.s32.totalorder %s15, 1
    %p162 = por %p160, %p161
    %p163 = scmp.ne.s32.totalorder %s152, %s153
    %p164 = scmp.eq.s32.totalorder %s15, 0
    %p165 = por %p163, %p164
    %p166 = scmp.ne.s32.totalorder %s152, %s153
    %p167 = scmp.eq.s32.totalorder %s16, 1
    %p168 = por %p166, %p167
    %p170 = scmp.ne.s32.totalorder %s153, %s169
    %p171 = scmp.eq.s32.totalorder %s16, 0
    %p172 = por %p170, %p171
    %p173 = scmp.le.s32.totalorder 1, %s10
    %p174 = scmp.lt.s32.totalorder %s10, 3
    %p175 = pnand %p173, %p174
    %p176 = pneg %p175
    // Predicated region
    $region9: #{mixed_6a_forward.5} parent=5 // pred_check
      _
    $region10: #{mixed_6a_forward.5} parent=5 // pred_check_branch
      %178 = sbr.rel (%p175) target = $region12
    $region11: #{mixed_6a_forward.5} parent=5 // pred_region
      %s179 = ssub.s32 %s10, 1
      // Predicated region
      $region13: #{mixed_6a_forward.5} parent=11 // pred_check
        %p180 = pneg %p85
      $region14: #{mixed_6a_forward.5} parent=11 // pred_check_branch
        %182 = sbr.rel (%p180) target = $region16
      $region15: #{mixed_6a_forward.5} parent=11 // pred_region
        %s183 = smul.u32 48, %s22
        %s184 = smul.u32 2, %s21
        %p185 = scmp.lt.s32.totalorder %s183, 47
        %s186 = scalar_select %p185, %s183, 47
        %p187 = scmp.lt.s32.totalorder %s184, 1
        %s188 = scalar_select %p187, %s184, 1
        %s189 = smul.addr %s186, 2
        %s190 = sadd.s32 %s188, %s189
        %s191 = smul.addr %s190, 4
        %s192 = scalar_lea.vmem %s1, %s191
        %s193 = smul.u32 48, %s22
        %s194 = smul.u32 2, %s21
      $region16: #{mixed_6a_forward.5} parent=11 // pred_fallthru
        _
      // Predicated region
      $region17: #{mixed_6a_forward.5} parent=11 // pred_check
        %p195 = pneg %p111
      $region18: #{mixed_6a_forward.5} parent=11 // pred_check_branch
        %197 = sbr.rel (%p195) target = $region20
      $region19: #{mixed_6a_forward.5} parent=11 // pred_region
        %s198 = smul.u32 2, %s21
        %p199 = scmp.lt.s32.totalorder %s198, 1
        %s200 = scalar_select %p199, %s198, 1
        %s201 = scalar_lea.vmem %s2, %s200
        %s202 = smul.u32 2, %s21
      $region20: #{mixed_6a_forward.5} parent=11 // pred_fallthru
        _
      // Predicated region
      $region21: #{mixed_6a_forward.5} parent=11 // pred_check
        %p203 = pneg %p137
      $region22: #{mixed_6a_forward.5} parent=11 // pred_check_branch
        %205 = sbr.rel (%p203) target = $region24
      $region23: #{mixed_6a_forward.5} parent=11 // pred_region
        %s206 = smul.u32 2, %s21
        %p207 = scmp.lt.s32.totalorder %s206, 1
        %s208 = scalar_select %p207, %s206, 1
        %s209 = scalar_lea.vmem %s3, %s208
        %s210 = smul.u32 2, %s21
      $region24: #{mixed_6a_forward.5} parent=11 // pred_fallthru
        _
    $region12: #{mixed_6a_forward.5} parent=5 // pred_fallthru
      _
    %p211 = scmp.lt.s32.totalorder %s10, 2
    // Predicated region
    $region25: #{mixed_6a_forward.5} parent=5 // pred_check
      %p212 = pneg %p211
    $region26: #{mixed_6a_forward.5} parent=5 // pred_check_branch
      %214 = sbr.rel (%p212) target = $region28
    $region27: #{mixed_6a_forward.5} parent=5 // pred_region
      // Predicated region
      $region29: #{mixed_6a_forward.5} parent=27 // pred_check
        %p215 = pneg %p51
      $region30: #{mixed_6a_forward.5} parent=27 // pred_check_branch
        %217 = sbr.rel (%p215) target = $region32
      $region31: #{mixed_6a_forward.5} parent=27 // pred_region
        %s218 = smul.u32 32, %s17
        %s219 = smul.u32 3, %s19
        %p220 = scmp.lt.s32.totalorder %s218, 63
        %s221 = scalar_select %p220, %s218, 63
        %p222 = scmp.lt.s32.totalorder %s219, 2
        %s223 = scalar_select %p222, %s219, 2
        %s224 = smul.addr %s221, 3
        %s225 = sadd.s32 %s223, %s224
        %s226 = smul.addr %s225, 4
        %s227 = scalar_lea.vmem %s0, %s226
        %s228 = smul.u32 32, %s17
        %s229 = smul.u32 3, %s19
      $region32: #{mixed_6a_forward.5} parent=27 // pred_fallthru
        _
    $region28: #{mixed_6a_forward.5} parent=5 // pred_fallthru
      _
    %p230 = scmp.le.s32.totalorder 1, %s10
    %p231 = scmp.lt.s32.totalorder %s10, 3
    %p232 = pnand %p230, %p231
    %p233 = pneg %p232
    // Predicated region
    $region33: #{mixed_6a_forward.5} parent=5 // pred_check
      _
    $region34: #{mixed_6a_forward.5} parent=5 // pred_check_branch
      %235 = sbr.rel (%p232) target = $region36
    $region35: #{mixed_6a_forward.5} parent=5 // pred_region
      %s236 = ssub.s32 %s10, 1
      %s237 = smul.u32 32, %s20
      %s238 = smul.u32 3, %s22
      %p239 = scmp.lt.s32.totalorder %s237, 63
      %s240 = scalar_select %p239, %s237, 63
      %p241 = scmp.lt.s32.totalorder %s238, 2
      %s242 = scalar_select %p241, %s238, 2
      %s243 = smul.addr %s240, 3
      %s244 = sadd.s32 %s242, %s243
      %s245 = smul.addr %s244, 4
      %s246 = scalar_lea.vmem %s0, %s245
      %p247 = pneg %p57
      %p248 = pneg %p54
      %s249 = smul.u32 48, %s22
      %s250 = smul.u32 2, %s21
      %p251 = scmp.lt.s32.totalorder %s249, 47
      %s252 = scalar_select %p251, %s249, 47
      %p253 = scmp.lt.s32.totalorder %s250, 1
      %s254 = scalar_select %p253, %s250, 1
      %s255 = smul.addr %s252, 2
      %s256 = sadd.s32 %s254, %s255
      %s257 = smul.addr %s256, 4
      %s258 = scalar_lea.vmem %s1, %s257
      %p259 = pneg %p85
      %p260 = pneg %p82
      %s261 = smul.u32 2, %s21
      %p262 = scmp.lt.s32.totalorder %s261, 1
      %s263 = scalar_select %p262, %s261, 1
      %s264 = scalar_lea.vmem %s2, %s263
      %p265 = pneg %p111
      %p266 = pneg %p108
      %s267 = smul.u32 2, %s21
      %p268 = scmp.lt.s32.totalorder %s267, 1
      %s269 = scalar_select %p268, %s267, 1
      %s270 = scalar_lea.vmem %s3, %s269
      %p271 = pneg %p137
      %p272 = pneg %p134
      %p273 = pneg %p165
      %p274 = pneg %p162
      %s275 = smul.u32 32, %s20
      %s276 = smul.u32 2, %s21
      %p277 = scmp.lt.s32.totalorder %s275, 63
      %s278 = scalar_select %p277, %s275, 63
      %p279 = scmp.lt.s32.totalorder %s276, 1
      %s280 = scalar_select %p279, %s276, 1
      %s281 = smul.addr %s278, 2
      %s282 = sadd.s32 %s280, %s281
      %s283 = smul.addr %s282, 8
      %s284 = scalar_lea.vmem %s4, %s283
      %s285 = smul.u32 32, %s20
      %s286 = smul.u32 3, %s22
      %p287 = scmp.lt.s32.totalorder %s285, 63
      %s288 = scalar_select %p287, %s285, 63
      %p289 = scmp.lt.s32.totalorder %s286, 2
      %s290 = scalar_select %p289, %s286, 2
      %s291 = smul.addr %s288, 3
      %s292 = sadd.s32 %s290, %s291
      %s293 = smul.addr %s292, 4
      %s294 = scalar_lea.vmem %s0, %s293
      %s295 = smul.u32 32, %s20
      %s296 = smul.u32 3, %s22
      %s297 = smul.u32 48, %s22
      %s298 = smul.u32 2, %s21
      %p299 = scmp.lt.s32.totalorder %s297, 47
      %s300 = scalar_select %p299, %s297, 47
      %p301 = scmp.lt.s32.totalorder %s298, 1
      %s302 = scalar_select %p301, %s298, 1
      %s303 = smul.addr %s300, 2
      %s304 = sadd.s32 %s302, %s303
      %s305 = smul.addr %s304, 4
      %s306 = scalar_lea.vmem %s1, %s305
      %s307 = smul.u32 48, %s22
      %s308 = smul.u32 2, %s21
      %s309 = smul.u32 2, %s21
      %p310 = scmp.lt.s32.totalorder %s309, 1
      %s311 = scalar_select %p310, %s309, 1
      %s312 = scalar_lea.vmem %s2, %s311
      %s313 = smul.u32 2, %s21
      %s314 = smul.u32 2, %s21
      %p315 = scmp.lt.s32.totalorder %s314, 1
      %s316 = scalar_select %p315, %s314, 1
      %s317 = scalar_lea.vmem %s3, %s316
      %s318 = smul.u32 2, %s21
      %s319 = smul.u32 32, %s20
      %s320 = smul.u32 2, %s21
      %p321 = scmp.lt.s32.totalorder %s319, 63
      %s322 = scalar_select %p321, %s319, 63
      %p323 = scmp.lt.s32.totalorder %s320, 1
      %s324 = scalar_select %p323, %s320, 1
      %s325 = smul.addr %s322, 2
      %s326 = sadd.s32 %s324, %s325
      %s327 = smul.addr %s326, 8
      %s328 = scalar_lea.vmem %s4, %s327
      %s329 = smul.u32 32, %s20
      %s330 = smul.u32 2, %s21
      %p332 = scmp.eq.s32.totalorder %s22, 0
      // Predicated region
      $region37: #{mixed_6a_forward.5} parent=35 // pred_check
        %p333 = pneg %p332
      $region38: #{mixed_6a_forward.5} parent=35 // pred_check_branch
        %335 = sbr.rel (%p333) target = $region40
      $region39: #{mixed_6a_forward.5} parent=35 // pred_region
        %336 = vst [vmem:[#allocation2] sm:$0xff] 0.0
        %337 = vst [vmem:[#allocation2 + $0x8] sm:$0xff] 0.0
        %338 = vst [vmem:[#allocation2 + $0x10] sm:$0xff] 0.0
        %339 = vst [vmem:[#allocation2 + $0x18] sm:$0xff] 0.0
        %340 = vst [vmem:[#allocation2 + $0x20] sm:$0xff] 0.0
        %341 = vst [vmem:[#allocation2 + $0x28] sm:$0xff] 0.0
        %342 = vst [vmem:[#allocation2 + $0x30] sm:$0xff] 0.0
        %343 = vst [vmem:[#allocation2 + $0x38] sm:$0xff] 0.0
        %344 = vst [vmem:[#allocation2 + $0x40] sm:$0xff] 0.0
        %345 = vst [vmem:[#allocation2 + $0x48] sm:$0xff] 0.0
        %346 = vst [vmem:[#allocation2 + $0x50] sm:$0xff] 0.0
        %347 = vst [vmem:[#allocation2 + $0x58] sm:$0xff] 0.0
        %348 = vst [vmem:[#allocation2 + $0x60] sm:$0xff] 0.0
        %349 = vst [vmem:[#allocation2 + $0x68] sm:$0xff] 0.0
        %350 = vst [vmem:[#allocation2 + $0x70] sm:$0xff] 0.0
        %351 = vst [vmem:[#allocation2 + $0x78] sm:$0xff] 0.0
        %352 = vst [vmem:[#allocation2 + $0x80] sm:$0xff] 0.0
        %353 = vst [vmem:[#allocation2 + $0x88] sm:$0xff] 0.0
        %354 = vst [vmem:[#allocation2 + $0x90] sm:$0xff] 0.0
        %355 = vst [vmem:[#allocation2 + $0x98] sm:$0xff] 0.0
        %356 = vst [vmem:[#allocation2 + $0xa0] sm:$0xff] 0.0
        %357 = vst [vmem:[#allocation2 + $0xa8] sm:$0xff] 0.0
        %358 = vst [vmem:[#allocation2 + $0xb0] sm:$0xff] 0.0
        %359 = vst [vmem:[#allocation2 + $0xb8] sm:$0xff] 0.0
        %360 = vst [vmem:[#allocation2 + $0xc0] sm:$0xff] 0.0
        %361 = vst [vmem:[#allocation2 + $0xc8] sm:$0xff] 0.0
        %362 = vst [vmem:[#allocation2 + $0xd0] sm:$0xff] 0.0
        %363 = vst [vmem:[#allocation2 + $0xd8] sm:$0xff] 0.0
        %364 = vst [vmem:[#allocation2 + $0xe0] sm:$0xff] 0.0
        %365 = vst [vmem:[#allocation2 + $0xe8] sm:$0xff] 0.0
        %366 = vst [vmem:[#allocation2 + $0xf0] sm:$0xff] 0.0
        %367 = vst [vmem:[#allocation2 + $0xf8] sm:$0xff] 0.0
        %368 = vst [vmem:[#allocation2 + $0x100] sm:$0xff] 0.0
        %369 = vst [vmem:[#allocation2 + $0x108] sm:$0xff] 0.0
        %370 = vst [vmem:[#allocation2 + $0x110] sm:$0xff] 0.0
        %371 = vst [vmem:[#allocation2 + $0x118] sm:$0xff] 0.0
        %372 = vst [vmem:[#allocation2 + $0x120] sm:$0xff] 0.0
        %373 = vst [vmem:[#allocation2 + $0x128] sm:$0xff] 0.0
        %374 = vst [vmem:[#allocation2 + $0x130] sm:$0xff] 0.0
        %375 = vst [vmem:[#allocation2 + $0x138] sm:$0xff] 0.0
        %376 = vst [vmem:[#allocation2 + $0x140] sm:$0xff] 0.0
        %377 = vst [vmem:[#allocation2 + $0x148] sm:$0xff] 0.0
        %378 = vst [vmem:[#allocation2 + $0x150] sm:$0xff] 0.0
        %379 = vst [vmem:[#allocation2 + $0x158] sm:$0xff] 0.0
        %380 = vst [vmem:[#allocation2 + $0x160] sm:$0xff] 0.0
        %381 = vst [vmem:[#allocation2 + $0x168] sm:$0xff] 0.0
        %382 = vst [vmem:[#allocation2 + $0x170] sm:$0xff] 0.0
        %383 = vst [vmem:[#allocation2 + $0x178] sm:$0xff] 0.0
        %384 = vst [vmem:[#allocation2 + $0x180] sm:$0xff] 0.0
        %385 = vst [vmem:[#allocation2 + $0x188] sm:$0xff] 0.0
        %386 = vst [vmem:[#allocation2 + $0x190] sm:$0xff] 0.0
        %387 = vst [vmem:[#allocation2 + $0x198] sm:$0xff] 0.0
        %388 = vst [vmem:[#allocation2 + $0x1a0] sm:$0xff] 0.0
        %389 = vst [vmem:[#allocation2 + $0x1a8] sm:$0xff] 0.0
        %390 = vst [vmem:[#allocation2 + $0x1b0] sm:$0xff] 0.0
        %391 = vst [vmem:[#allocation2 + $0x1b8] sm:$0xff] 0.0
        %392 = vst [vmem:[#allocation2 + $0x1c0] sm:$0xff] 0.0
        %393 = vst [vmem:[#allocation2 + $0x1c8] sm:$0xff] 0.0
        %394 = vst [vmem:[#allocation2 + $0x1d0] sm:$0xff] 0.0
        %395 = vst [vmem:[#allocation2 + $0x1d8] sm:$0xff] 0.0
        %396 = vst [vmem:[#allocation2 + $0x1e0] sm:$0xff] 0.0
        %397 = vst [vmem:[#allocation2 + $0x1e8] sm:$0xff] 0.0
        %398 = vst [vmem:[#allocation2 + $0x1f0] sm:$0xff] 0.0
        %399 = vst [vmem:[#allocation2 + $0x1f8] sm:$0xff] 0.0
      $region40: #{mixed_6a_forward.5} parent=35 // pred_fallthru
        _
      %v400 = vld [vmem:[#allocation2] sm:$0xff]
      %v401 = vld [vmem:[#allocation2 + $0x8] sm:$0xff]
      %v402 = vld [vmem:[#allocation2 + $0x10] sm:$0xff]
      %v403 = vld [vmem:[#allocation2 + $0x18] sm:$0xff]
      %v404 = vld [vmem:[#allocation2 + $0x20] sm:$0xff]
      %v405 = vld [vmem:[#allocation2 + $0x28] sm:$0xff]
      %v406 = vld [vmem:[#allocation2 + $0x30] sm:$0xff]
      %v407 = vld [vmem:[#allocation2 + $0x38] sm:$0xff]
      %v408 = vld [vmem:[#allocation2 + $0x40] sm:$0xff]
      %v409 = vld [vmem:[#allocation2 + $0x48] sm:$0xff]
      %v410 = vld [vmem:[#allocation2 + $0x50] sm:$0xff]
      %v411 = vld [vmem:[#allocation2 + $0x58] sm:$0xff]
      %v412 = vld [vmem:[#allocation2 + $0x60] sm:$0xff]
      %v413 = vld [vmem:[#allocation2 + $0x68] sm:$0xff]
      %v414 = vld [vmem:[#allocation2 + $0x70] sm:$0xff]
      %v415 = vld [vmem:[#allocation2 + $0x78] sm:$0xff]
      %v416 = vld [vmem:[#allocation2 + $0x80] sm:$0xff]
      %v417 = vld [vmem:[#allocation2 + $0x88] sm:$0xff]
      %v418 = vld [vmem:[#allocation2 + $0x90] sm:$0xff]
      %v419 = vld [vmem:[#allocation2 + $0x98] sm:$0xff]
      %v420 = vld [vmem:[#allocation2 + $0xa0] sm:$0xff]
      %v421 = vld [vmem:[#allocation2 + $0xa8] sm:$0xff]
      %v422 = vld [vmem:[#allocation2 + $0xb0] sm:$0xff]
      %v423 = vld [vmem:[#allocation2 + $0xb8] sm:$0xff]
      %v424 = vld [vmem:[#allocation2 + $0xc0] sm:$0xff]
      %v425 = vld [vmem:[#allocation2 + $0xc8] sm:$0xff]
      %v426 = vld [vmem:[#allocation2 + $0xd0] sm:$0xff]
      %v427 = vld [vmem:[#allocation2 + $0xd8] sm:$0xff]
      %v428 = vld [vmem:[#allocation2 + $0xe0] sm:$0xff]
      %v429 = vld [vmem:[#allocation2 + $0xe8] sm:$0xff]
      %v430 = vld [vmem:[#allocation2 + $0xf0] sm:$0xff]
      %v431 = vld [vmem:[#allocation2 + $0xf8] sm:$0xff]
      %v432 = vld [vmem:[#allocation2 + $0x100] sm:$0xff]
      %v433 = vld [vmem:[#allocation2 + $0x108] sm:$0xff]
      %v434 = vld [vmem:[#allocation2 + $0x110] sm:$0xff]
      %v435 = vld [vmem:[#allocation2 + $0x118] sm:$0xff]
      %v436 = vld [vmem:[#allocation2 + $0x120] sm:$0xff]
      %v437 = vld [vmem:[#allocation2 + $0x128] sm:$0xff]
      %v438 = vld [vmem:[#allocation2 + $0x130] sm:$0xff]
      %v439 = vld [vmem:[#allocation2 + $0x138] sm:$0xff]
      %v440 = vld [vmem:[#allocation2 + $0x140] sm:$0xff]
      %v441 = vld [vmem:[#allocation2 + $0x148] sm:$0xff]
      %v442 = vld [vmem:[#allocation2 + $0x150] sm:$0xff]
      %v443 = vld [vmem:[#allocation2 + $0x158] sm:$0xff]
      %v444 = vld [vmem:[#allocation2 + $0x160] sm:$0xff]
      %v445 = vld [vmem:[#allocation2 + $0x168] sm:$0xff]
      %v446 = vld [vmem:[#allocation2 + $0x170] sm:$0xff]
      %v447 = vld [vmem:[#allocation2 + $0x178] sm:$0xff]
      %v448 = vld [vmem:[#allocation2 + $0x180] sm:$0xff]
      %v449 = vld [vmem:[#allocation2 + $0x188] sm:$0xff]
      %v450 = vld [vmem:[#allocation2 + $0x190] sm:$0xff]
      %v451 = vld [vmem:[#allocation2 + $0x198] sm:$0xff]
      %v452 = vld [vmem:[#allocation2 + $0x1a0] sm:$0xff]
      %v453 = vld [vmem:[#allocation2 + $0x1a8] sm:$0xff]
      %v454 = vld [vmem:[#allocation2 + $0x1b0] sm:$0xff]
      %v455 = vld [vmem:[#allocation2 + $0x1b8] sm:$0xff]
      %v456 = vld [vmem:[#allocation2 + $0x1c0] sm:$0xff]
      %v457 = vld [vmem:[#allocation2 + $0x1c8] sm:$0xff]
      %v458 = vld [vmem:[#allocation2 + $0x1d0] sm:$0xff]
      %v459 = vld [vmem:[#allocation2 + $0x1d8] sm:$0xff]
      %v460 = vld [vmem:[#allocation2 + $0x1e0] sm:$0xff]
      %v461 = vld [vmem:[#allocation2 + $0x1e8] sm:$0xff]
      %v462 = vld [vmem:[#allocation2 + $0x1f0] sm:$0xff]
      %v463 = vld [vmem:[#allocation2 + $0x1f8] sm:$0xff]
      %v464 = vld [vmem:[%s294] sm:$0xff]
      %v465 = vld [vmem:[%s294 + $0x8] sm:$0xf]
      %v466 = vld [vmem:[%s294 + $0xc] sm:$0xff]
      %v467 = vld [vmem:[%s294 + $0x14] sm:$0xf]
      %v468 = vld [vmem:[%s294 + $0x18] sm:$0xff]
      %v469 = vld [vmem:[%s294 + $0x20] sm:$0xf]
      %v470 = vld [vmem:[%s294 + $0x24] sm:$0xff]
      %v471 = vld [vmem:[%s294 + $0x2c] sm:$0xf]
      %v472 = vld [vmem:[%s294 + $0x30] sm:$0xff]
      %v473 = vld [vmem:[%s294 + $0x38] sm:$0xf]
      %v474 = vld [vmem:[%s294 + $0x3c] sm:$0xff]
      %v475 = vld [vmem:[%s294 + $0x44] sm:$0xf]
      %v476 = vld [vmem:[%s294 + $0x48] sm:$0xff]
      %v477 = vld [vmem:[%s294 + $0x50] sm:$0xf]
      %v478 = vld [vmem:[%s294 + $0x54] sm:$0xff]
      %v479 = vld [vmem:[%s294 + $0x5c] sm:$0xf]
      %v480 = vld [vmem:[%s294 + $0x60] sm:$0xff]
      %v481 = vld [vmem:[%s294 + $0x68] sm:$0xf]
      %v482 = vld [vmem:[%s294 + $0x6c] sm:$0xff]
      %v483 = vld [vmem:[%s294 + $0x74] sm:$0xf]
      %v484 = vld [vmem:[%s294 + $0x78] sm:$0xff]
      %v485 = vld [vmem:[%s294 + $0x80] sm:$0xf]
      %v486 = vld [vmem:[%s294 + $0x84] sm:$0xff]
      %v487 = vld [vmem:[%s294 + $0x8c] sm:$0xf]
      %v488 = vld [vmem:[%s294 + $0x90] sm:$0xff]
      %v489 = vld [vmem:[%s294 + $0x98] sm:$0xf]
      %v490 = vld [vmem:[%s294 + $0x9c] sm:$0xff]
      %v491 = vld [vmem:[%s294 + $0xa4] sm:$0xf]
      %v492 = vld [vmem:[%s294 + $0xa8] sm:$0xff]
      %v493 = vld [vmem:[%s294 + $0xb0] sm:$0xf]
      %v494 = vld [vmem:[%s294 + $0xb4] sm:$0xff]
      %v495 = vld [vmem:[%s294 + $0xbc] sm:$0xf]
      %v496 = vld [vmem:[%s294 + $0xc0] sm:$0xff]
      %v497 = vld [vmem:[%s294 + $0xc8] sm:$0xf]
      %v498 = vld [vmem:[%s294 + $0xcc] sm:$0xff]
      %v499 = vld [vmem:[%s294 + $0xd4] sm:$0xf]
      %v500 = vld [vmem:[%s294 + $0xd8] sm:$0xff]
      %v501 = vld [vmem:[%s294 + $0xe0] sm:$0xf]
      %v502 = vld [vmem:[%s294 + $0xe4] sm:$0xff]
      %v503 = vld [vmem:[%s294 + $0xec] sm:$0xf]
      %v504 = vld [vmem:[%s294 + $0xf0] sm:$0xff]
      %v505 = vld [vmem:[%s294 + $0xf8] sm:$0xf]
      %v506 = vld [vmem:[%s294 + $0xfc] sm:$0xff]
      %v507 = vld [vmem:[%s294 + $0x104] sm:$0xf]
      %v508 = vld [vmem:[%s294 + $0x108] sm:$0xff]
      %v509 = vld [vmem:[%s294 + $0x110] sm:$0xf]
      %v510 = vld [vmem:[%s294 + $0x114] sm:$0xff]
      %v511 = vld [vmem:[%s294 + $0x11c] sm:$0xf]
      %v512 = vld [vmem:[%s294 + $0x120] sm:$0xff]
      %v513 = vld [vmem:[%s294 + $0x128] sm:$0xf]
      %v514 = vld [vmem:[%s294 + $0x12c] sm:$0xff]
      %v515 = vld [vmem:[%s294 + $0x134] sm:$0xf]
      %v516 = vld [vmem:[%s294 + $0x138] sm:$0xff]
      %v517 = vld [vmem:[%s294 + $0x140] sm:$0xf]
      %v518 = vld [vmem:[%s294 + $0x144] sm:$0xff]
      %v519 = vld [vmem:[%s294 + $0x14c] sm:$0xf]
      %v520 = vld [vmem:[%s294 + $0x150] sm:$0xff]
      %v521 = vld [vmem:[%s294 + $0x158] sm:$0xf]
      %v522 = vld [vmem:[%s294 + $0x15c] sm:$0xff]
      %v523 = vld [vmem:[%s294 + $0x164] sm:$0xf]
      %v524 = vld [vmem:[%s294 + $0x168] sm:$0xff]
      %v525 = vld [vmem:[%s294 + $0x170] sm:$0xf]
      %v526 = vld [vmem:[%s294 + $0x174] sm:$0xff]
      %v527 = vld [vmem:[%s294 + $0x17c] sm:$0xf]
      %v528 = vld [vmem:[%s306] sm:$0xff]
      %v529 = vld [vmem:[%s306 + $0x8] sm:$0xff]
      %v530 = vld [vmem:[%s306 + $0x10] sm:$0xff]
      %v531 = vld [vmem:[%s306 + $0x18] sm:$0xff]
      %v532 = vld [vmem:[%s306 + $0x20] sm:$0xff]
      %v533 = vld [vmem:[%s306 + $0x28] sm:$0xff]
      %v534 = vld [vmem:[%s306 + $0x30] sm:$0xff]
      %v535 = vld [vmem:[%s306 + $0x38] sm:$0xff]
      %v536 = vld [vmem:[%s306 + $0x40] sm:$0xff]
      %v537 = vld [vmem:[%s306 + $0x48] sm:$0xff]
      %v538 = vld [vmem:[%s306 + $0x50] sm:$0xff]
      %v539 = vld [vmem:[%s306 + $0x58] sm:$0xff]
      %v540 = vld [vmem:[%s306 + $0x60] sm:$0xff]
      %v541 = vld [vmem:[%s306 + $0x68] sm:$0xff]
      %v542 = vld [vmem:[%s306 + $0x70] sm:$0xff]
      %v543 = vld [vmem:[%s306 + $0x78] sm:$0xff]
      %v544 = vld [vmem:[%s306 + $0x80] sm:$0xff]
      %v545 = vld [vmem:[%s306 + $0x88] sm:$0xff]
      %v546 = vld [vmem:[%s306 + $0x90] sm:$0xff]
      %v547 = vld [vmem:[%s306 + $0x98] sm:$0xff]
      %v548 = vld [vmem:[%s306 + $0xa0] sm:$0xff]
      %v549 = vld [vmem:[%s306 + $0xa8] sm:$0xff]
      %v550 = vld [vmem:[%s306 + $0xb0] sm:$0xff]
      %v551 = vld [vmem:[%s306 + $0xb8] sm:$0xff]
      %v552 = vld [vmem:[%s306 + $0xc0] sm:$0xff]
      %v553 = vld [vmem:[%s306 + $0xc8] sm:$0xff]
      %v554 = vld [vmem:[%s306 + $0xd0] sm:$0xff]
      %v555 = vld [vmem:[%s306 + $0xd8] sm:$0xff]
      %v556 = vld [vmem:[%s306 + $0xe0] sm:$0xff]
      %v557 = vld [vmem:[%s306 + $0xe8] sm:$0xff]
      %v558 = vld [vmem:[%s306 + $0xf0] sm:$0xff]
      %v559 = vld [vmem:[%s306 + $0xf8] sm:$0xff]
      %v560 = vld [vmem:[%s306 + $0x100] sm:$0xff]
      %v561 = vld [vmem:[%s306 + $0x108] sm:$0xff]
      %v562 = vld [vmem:[%s306 + $0x110] sm:$0xff]
      %v563 = vld [vmem:[%s306 + $0x118] sm:$0xff]
      %v564 = vld [vmem:[%s306 + $0x120] sm:$0xff]
      %v565 = vld [vmem:[%s306 + $0x128] sm:$0xff]
      %v566 = vld [vmem:[%s306 + $0x130] sm:$0xff]
      %v567 = vld [vmem:[%s306 + $0x138] sm:$0xff]
      %v568 = vld [vmem:[%s306 + $0x140] sm:$0xff]
      %v569 = vld [vmem:[%s306 + $0x148] sm:$0xff]
      %v570 = vld [vmem:[%s306 + $0x150] sm:$0xff]
      %v571 = vld [vmem:[%s306 + $0x158] sm:$0xff]
      %v572 = vld [vmem:[%s306 + $0x160] sm:$0xff]
      %v573 = vld [vmem:[%s306 + $0x168] sm:$0xff]
      %v574 = vld [vmem:[%s306 + $0x170] sm:$0xff]
      %v575 = vld [vmem:[%s306 + $0x178] sm:$0xff]
      %v640 = vunpack.c.l.b16 %v464
      %v641 = vunpack.c.h.b16 %v464
      %v642 = vunpack.c.l.b16 %v465
      %v643 = vunpack.c.l.b16 %v466
      %v644 = vunpack.c.h.b16 %v466
      %v645 = vunpack.c.l.b16 %v467
      %v646 = vunpack.c.l.b16 %v468
      %v647 = vunpack.c.h.b16 %v468
      %v648 = vunpack.c.l.b16 %v469
      %v649 = vunpack.c.l.b16 %v470
      %v650 = vunpack.c.h.b16 %v470
      %v651 = vunpack.c.l.b16 %v471
      %v652 = vunpack.c.l.b16 %v472
      %v653 = vunpack.c.h.b16 %v472
      %v654 = vunpack.c.l.b16 %v473
      %v655 = vunpack.c.l.b16 %v474
      %v656 = vunpack.c.h.b16 %v474
      %v657 = vunpack.c.l.b16 %v475
      %v658 = vunpack.c.l.b16 %v476
      %v659 = vunpack.c.h.b16 %v476
      %v660 = vunpack.c.l.b16 %v477
      %v661 = vunpack.c.l.b16 %v478
      %v662 = vunpack.c.h.b16 %v478
      %v663 = vunpack.c.l.b16 %v479
      %v664 = vunpack.c.l.b16 %v480
      %v665 = vunpack.c.h.b16 %v480
      %v666 = vunpack.c.l.b16 %v481
      %v667 = vunpack.c.l.b16 %v482
      %v668 = vunpack.c.h.b16 %v482
      %v669 = vunpack.c.l.b16 %v483
      %v670 = vunpack.c.l.b16 %v484
      %v671 = vunpack.c.h.b16 %v484
      %v672 = vunpack.c.l.b16 %v485
      %v673 = vunpack.c.l.b16 %v486
      %v674 = vunpack.c.h.b16 %v486
      %v675 = vunpack.c.l.b16 %v487
      %v676 = vunpack.c.l.b16 %v488
      %v677 = vunpack.c.h.b16 %v488
      %v678 = vunpack.c.l.b16 %v489
      %v679 = vunpack.c.l.b16 %v490
      %v680 = vunpack.c.h.b16 %v490
      %v681 = vunpack.c.l.b16 %v491
      %v682 = vunpack.c.l.b16 %v492
      %v683 = vunpack.c.h.b16 %v492
      %v684 = vunpack.c.l.b16 %v493
      %v685 = vunpack.c.l.b16 %v494
      %v686 = vunpack.c.h.b16 %v494
      %v687 = vunpack.c.l.b16 %v495
      %v688 = vunpack.c.l.b16 %v496
      %v689 = vunpack.c.h.b16 %v496
      %v690 = vunpack.c.l.b16 %v497
      %v691 = vunpack.c.l.b16 %v498
      %v692 = vunpack.c.h.b16 %v498
      %v693 = vunpack.c.l.b16 %v499
      %v694 = vunpack.c.l.b16 %v500
      %v695 = vunpack.c.h.b16 %v500
      %v696 = vunpack.c.l.b16 %v501
      %v697 = vunpack.c.l.b16 %v502
      %v698 = vunpack.c.h.b16 %v502
      %v699 = vunpack.c.l.b16 %v503
      %v700 = vunpack.c.l.b16 %v504
      %v701 = vunpack.c.h.b16 %v504
      %v702 = vunpack.c.l.b16 %v505
      %v703 = vunpack.c.l.b16 %v506
      %v704 = vunpack.c.h.b16 %v506
      %v705 = vunpack.c.l.b16 %v507
      %v706 = vunpack.c.l.b16 %v508
      %v707 = vunpack.c.h.b16 %v508
      %v708 = vunpack.c.l.b16 %v509
      %v709 = vunpack.c.l.b16 %v510
      %v710 = vunpack.c.h.b16 %v510
      %v711 = vunpack.c.l.b16 %v511
      %v712 = vunpack.c.l.b16 %v512
      %v713 = vunpack.c.h.b16 %v512
      %v714 = vunpack.c.l.b16 %v513
      %v715 = vunpack.c.l.b16 %v514
      %v716 = vunpack.c.h.b16 %v514
      %v717 = vunpack.c.l.b16 %v515
      %v718 = vunpack.c.l.b16 %v516
      %v719 = vunpack.c.h.b16 %v516
      %v720 = vunpack.c.l.b16 %v517
      %v721 = vunpack.c.l.b16 %v518
      %v722 = vunpack.c.h.b16 %v518
      %v723 = vunpack.c.l.b16 %v519
      %v724 = vunpack.c.l.b16 %v520
      %v725 = vunpack.c.h.b16 %v520
      %v726 = vunpack.c.l.b16 %v521
      %v727 = vunpack.c.l.b16 %v522
      %v728 = vunpack.c.h.b16 %v522
      %v729 = vunpack.c.l.b16 %v523
      %v730 = vunpack.c.l.b16 %v524
      %v731 = vunpack.c.h.b16 %v524
      %v732 = vunpack.c.l.b16 %v525
      %v733 = vunpack.c.l.b16 %v526
      %v734 = vunpack.c.h.b16 %v526
      %v735 = vunpack.c.l.b16 %v527
      %v736 = vpack.c.b16 %v643, %v640
      %v737 = vpack.c.b16 %v644, %v641
      %v738 = vpack.c.b16 %v645, %v642
      %v739 = vpack.c.b16 %v649, %v646
      %v740 = vpack.c.b16 %v650, %v647
      %v741 = vpack.c.b16 %v651, %v648
      %v742 = vpack.c.b16 %v655, %v652
      %v743 = vpack.c.b16 %v656, %v653
      %v744 = vpack.c.b16 %v657, %v654
      %v745 = vpack.c.b16 %v661, %v658
      %v746 = vpack.c.b16 %v662, %v659
      %v747 = vpack.c.b16 %v663, %v660
      %v748 = vpack.c.b16 %v667, %v664
      %v749 = vpack.c.b16 %v668, %v665
      %v750 = vpack.c.b16 %v669, %v666
      %v751 = vpack.c.b16 %v673, %v670
      %v752 = vpack.c.b16 %v674, %v671
      %v753 = vpack.c.b16 %v675, %v672
      %v754 = vpack.c.b16 %v679, %v676
      %v755 = vpack.c.b16 %v680, %v677
      %v756 = vpack.c.b16 %v681, %v678
      %v757 = vpack.c.b16 %v685, %v682
      %v758 = vpack.c.b16 %v686, %v683
      %v759 = vpack.c.b16 %v687, %v684
      %v760 = vpack.c.b16 %v691, %v688
      %v761 = vpack.c.b16 %v692, %v689
      %v762 = vpack.c.b16 %v693, %v690
      %v763 = vpack.c.b16 %v697, %v694
      %v764 = vpack.c.b16 %v698, %v695
      %v765 = vpack.c.b16 %v699, %v696
      %v766 = vpack.c.b16 %v703, %v700
      %v767 = vpack.c.b16 %v704, %v701
      %v768 = vpack.c.b16 %v705, %v702
      %v769 = vpack.c.b16 %v709, %v706
      %v770 = vpack.c.b16 %v710, %v707
      %v771 = vpack.c.b16 %v711, %v708
      %v772 = vpack.c.b16 %v715, %v712
      %v773 = vpack.c.b16 %v716, %v713
      %v774 = vpack.c.b16 %v717, %v714
      %v775 = vpack.c.b16 %v721, %v718
      %v776 = vpack.c.b16 %v722, %v719
      %v777 = vpack.c.b16 %v723, %v720
      %v778 = vpack.c.b16 %v727, %v724
      %v779 = vpack.c.b16 %v728, %v725
      %v780 = vpack.c.b16 %v729, %v726
      %v781 = vpack.c.b16 %v733, %v730
      %v782 = vpack.c.b16 %v734, %v731
      %v783 = vpack.c.b16 %v735, %v732
      %v880 = vunpack.c.l.b16 %v528
      %v881 = vunpack.c.h.b16 %v528
      %v882 = vunpack.c.l.b16 %v529
      %v883 = vunpack.c.h.b16 %v529
      %v884 = vunpack.c.l.b16 %v530
      %v885 = vunpack.c.h.b16 %v530
      %v886 = vunpack.c.l.b16 %v531
      %v887 = vunpack.c.h.b16 %v531
      %v888 = vunpack.c.l.b16 %v532
      %v889 = vunpack.c.h.b16 %v532
      %v890 = vunpack.c.l.b16 %v533
      %v891 = vunpack.c.h.b16 %v533
      %v892 = vunpack.c.l.b16 %v534
      %v893 = vunpack.c.h.b16 %v534
      %v894 = vunpack.c.l.b16 %v535
      %v895 = vunpack.c.h.b16 %v535
      %v896 = vunpack.c.l.b16 %v536
      %v897 = vunpack.c.h.b16 %v536
      %v898 = vunpack.c.l.b16 %v537
      %v899 = vunpack.c.h.b16 %v537
      %v900 = vunpack.c.l.b16 %v538
      %v901 = vunpack.c.h.b16 %v538
      %v902 = vunpack.c.l.b16 %v539
      %v903 = vunpack.c.h.b16 %v539
      %v904 = vunpack.c.l.b16 %v540
      %v905 = vunpack.c.h.b16 %v540
      %v906 = vunpack.c.l.b16 %v541
      %v907 = vunpack.c.h.b16 %v541
      %v908 = vunpack.c.l.b16 %v542
      %v909 = vunpack.c.h.b16 %v542
      %v910 = vunpack.c.l.b16 %v543
      %v911 = vunpack.c.h.b16 %v543
      %v912 = vunpack.c.l.b16 %v544
      %v913 = vunpack.c.h.b16 %v544
      %v914 = vunpack.c.l.b16 %v545
      %v915 = vunpack.c.h.b16 %v545
      %v916 = vunpack.c.l.b16 %v546
      %v917 = vunpack.c.h.b16 %v546
      %v918 = vunpack.c.l.b16 %v547
      %v919 = vunpack.c.h.b16 %v547
      %v920 = vunpack.c.l.b16 %v548
      %v921 = vunpack.c.h.b16 %v548
      %v922 = vunpack.c.l.b16 %v549
      %v923 = vunpack.c.h.b16 %v549
      %v924 = vunpack.c.l.b16 %v550
      %v925 = vunpack.c.h.b16 %v550
      %v926 = vunpack.c.l.b16 %v551
      %v927 = vunpack.c.h.b16 %v551
      %v928 = vunpack.c.l.b16 %v552
      %v929 = vunpack.c.h.b16 %v552
      %v930 = vunpack.c.l.b16 %v553
      %v931 = vunpack.c.h.b16 %v553
      %v932 = vunpack.c.l.b16 %v554
      %v933 = vunpack.c.h.b16 %v554
      %v934 = vunpack.c.l.b16 %v555
      %v935 = vunpack.c.h.b16 %v555
      %v936 = vunpack.c.l.b16 %v556
      %v937 = vunpack.c.h.b16 %v556
      %v938 = vunpack.c.l.b16 %v557
      %v939 = vunpack.c.h.b16 %v557
      %v940 = vunpack.c.l.b16 %v558
      %v941 = vunpack.c.h.b16 %v558
      %v942 = vunpack.c.l.b16 %v559
      %v943 = vunpack.c.h.b16 %v559
      %v944 = vunpack.c.l.b16 %v560
      %v945 = vunpack.c.h.b16 %v560
      %v946 = vunpack.c.l.b16 %v561
      %v947 = vunpack.c.h.b16 %v561
      %v948 = vunpack.c.l.b16 %v562
      %v949 = vunpack.c.h.b16 %v562
      %v950 = vunpack.c.l.b16 %v563
      %v951 = vunpack.c.h.b16 %v563
      %v952 = vunpack.c.l.b16 %v564
      %v953 = vunpack.c.h.b16 %v564
      %v954 = vunpack.c.l.b16 %v565
      %v955 = vunpack.c.h.b16 %v565
      %v956 = vunpack.c.l.b16 %v566
      %v957 = vunpack.c.h.b16 %v566
      %v958 = vunpack.c.l.b16 %v567
      %v959 = vunpack.c.h.b16 %v567
      %v960 = vunpack.c.l.b16 %v568
      %v961 = vunpack.c.h.b16 %v568
      %v962 = vunpack.c.l.b16 %v569
      %v963 = vunpack.c.h.b16 %v569
      %v964 = vunpack.c.l.b16 %v570
      %v965 = vunpack.c.h.b16 %v570
      %v966 = vunpack.c.l.b16 %v571
      %v967 = vunpack.c.h.b16 %v571
      %v968 = vunpack.c.l.b16 %v572
      %v969 = vunpack.c.h.b16 %v572
      %v970 = vunpack.c.l.b16 %v573
      %v971 = vunpack.c.h.b16 %v573
      %v972 = vunpack.c.l.b16 %v574
      %v973 = vunpack.c.h.b16 %v574
      %v974 = vunpack.c.l.b16 %v575
      %v975 = vunpack.c.h.b16 %v575
      %v976 = vpack.c.b16 %v882, %v880
      %v977 = vpack.c.b16 %v883, %v881
      %v978 = vpack.c.b16 %v886, %v884
      %v979 = vpack.c.b16 %v887, %v885
      %v980 = vpack.c.b16 %v890, %v888
      %v981 = vpack.c.b16 %v891, %v889
      %v982 = vpack.c.b16 %v894, %v892
      %v983 = vpack.c.b16 %v895, %v893
      %v984 = vpack.c.b16 %v898, %v896
      %v985 = vpack.c.b16 %v899, %v897
      %v986 = vpack.c.b16 %v902, %v900
      %v987 = vpack.c.b16 %v903, %v901
      %v988 = vpack.c.b16 %v906, %v904
      %v989 = vpack.c.b16 %v907, %v905
      %v990 = vpack.c.b16 %v910, %v908
      %v991 = vpack.c.b16 %v911, %v909
      %v992 = vpack.c.b16 %v914, %v912
      %v993 = vpack.c.b16 %v915, %v913
      %v994 = vpack.c.b16 %v918, %v916
      %v995 = vpack.c.b16 %v919, %v917
      %v996 = vpack.c.b16 %v922, %v920
      %v997 = vpack.c.b16 %v923, %v921
      %v998 = vpack.c.b16 %v926, %v924
      %v999 = vpack.c.b16 %v927, %v925
      %v1000 = vpack.c.b16 %v930, %v928
      %v1001 = vpack.c.b16 %v931, %v929
      %v1002 = vpack.c.b16 %v934, %v932
      %v1003 = vpack.c.b16 %v935, %v933
      %v1004 = vpack.c.b16 %v938, %v936
      %v1005 = vpack.c.b16 %v939, %v937
      %v1006 = vpack.c.b16 %v942, %v940
      %v1007 = vpack.c.b16 %v943, %v941
      %v1008 = vpack.c.b16 %v946, %v944
      %v1009 = vpack.c.b16 %v947, %v945
      %v1010 = vpack.c.b16 %v950, %v948
      %v1011 = vpack.c.b16 %v951, %v949
      %v1012 = vpack.c.b16 %v954, %v952
      %v1013 = vpack.c.b16 %v955, %v953
      %v1014 = vpack.c.b16 %v958, %v956
      %v1015 = vpack.c.b16 %v959, %v957
      %v1016 = vpack.c.b16 %v962, %v960
      %v1017 = vpack.c.b16 %v963, %v961
      %v1018 = vpack.c.b16 %v966, %v964
      %v1019 = vpack.c.b16 %v967, %v965
      %v1020 = vpack.c.b16 %v970, %v968
      %v1021 = vpack.c.b16 %v971, %v969
      %v1022 = vpack.c.b16 %v974, %v972
      %v1023 = vpack.c.b16 %v975, %v973
      %1072 = vmatprep.subr.bf16.mxu0 %v977
      %1073 = vmatpush1.bf16.msra.mxu0 %v976
      %1074 = vmatprep.subr.bf16.mxu0 %v979
      %1075 = vmatpush1.bf16.msra.mxu0 %v978
      %1076 = vmatprep.subr.bf16.mxu0 %v981
      %1077 = vmatpush1.bf16.msra.mxu0 %v980
      %1078 = vmatprep.subr.bf16.mxu0 %v983
      %1079 = vmatpush1.bf16.msra.mxu0 %v982
      %1080 = vmatprep.subr.bf16.mxu0 %v985
      %1081 = vmatpush1.bf16.msra.mxu0 %v984
      %1082 = vmatprep.subr.bf16.mxu0 %v987
      %1083 = vmatpush1.bf16.msra.mxu0 %v986
      %1084 = vmatprep.subr.bf16.mxu0 %v989
      %1085 = vmatpush1.bf16.msra.mxu0 %v988
      %1086 = vmatprep.subr.bf16.mxu0 %v991
      %1087 = vmatpush1.bf16.msra.mxu0 %v990
      %1088 = vmatprep.subr.bf16.mxu0 %v993
      %1089 = vmatpush1.bf16.msra.mxu0 %v992
      %1090 = vmatprep.subr.bf16.mxu0 %v995
      %1091 = vmatpush1.bf16.msra.mxu0 %v994
      %1092 = vmatprep.subr.bf16.mxu0 %v997
      %1093 = vmatpush1.bf16.msra.mxu0 %v996
      %1094 = vmatprep.subr.bf16.mxu0 %v999
      %1095 = vmatpush1.bf16.msra.mxu0 %v998
      %1096 = vmatprep.subr.bf16.mxu0 %v1001
      %1097 = vmatpush1.bf16.msra.mxu0 %v1000
      %1098 = vmatprep.subr.bf16.mxu0 %v1003
      %1099 = vmatpush1.bf16.msra.mxu0 %v1002
      %1100 = vmatprep.subr.bf16.mxu0 %v1005
      %1101 = vmatpush1.bf16.msra.mxu0 %v1004
      %1102 = vmatprep.subr.bf16.mxu0 %v1007
      %1103 = vmatpush1.bf16.msra.mxu0 %v1006
      %1104 = vmatprep.mubr.bf16.mxu0 %v737
      %1105 = vmatmul.mubr.bf16.gmra.mrb[0].mxu0 %v736
      %v1106 = vpop.f32.mrb[0].mxu0
      %v1107 = vadd.f32 0.0, %v1106
      %v1108 = vpop.f32.mrb[0].mxu0
      %v1109 = vadd.f32 0.0, %v1108
      %v1110 = vpop.f32.mrb[0].mxu0
      %v1111 = vadd.f32 0.0, %v1110
      %v1112 = vpop.f32.mrb[0].mxu0
      %v1113 = vadd.f32 0.0, %v1112
      %1114 = vmatprep.mubr.bf16.mxu0 %v740
      %1115 = vmatmul.mubr.bf16.gmra.mrb[0].mxu0 %v739
      %v1116 = vpop.f32.mrb[0].mxu0
      %v1117 = vadd.f32 0.0, %v1116
      %v1118 = vpop.f32.mrb[0].mxu0
      %v1119 = vadd.f32 0.0, %v1118
      %v1120 = vpop.f32.mrb[0].mxu0
      %v1121 = vadd.f32 0.0, %v1120
      %v1122 = vpop.f32.mrb[0].mxu0
      %v1123 = vadd.f32 0.0, %v1122
      %1124 = vmatprep.mubr.bf16.mxu0 %v743
      %1125 = vmatmul.mubr.bf16.gmra.mrb[0].mxu0 %v742
      %v1126 = vpop.f32.mrb[0].mxu0
      %v1127 = vadd.f32 0.0, %v1126
      %v1128 = vpop.f32.mrb[0].mxu0
      %v1129 = vadd.f32 0.0, %v1128
      %v1130 = vpop.f32.mrb[0].mxu0
      %v1131 = vadd.f32 0.0, %v1130
      %v1132 = vpop.f32.mrb[0].mxu0
      %v1133 = vadd.f32 0.0, %v1132
      %1134 = vmatprep.mubr.bf16.mxu0 %v746
      %1135 = vmatmul.mubr.bf16.gmra.mrb[0].mxu0 %v745
      %v1136 = vpop.f32.mrb[0].mxu0
      %v1137 = vadd.f32 0.0, %v1136
      %v1138 = vpop.f32.mrb[0].mxu0
      %v1139 = vadd.f32 0.0, %v1138
      %v1140 = vpop.f32.mrb[0].mxu0
      %v1141 = vadd.f32 0.0, %v1140
      %v1142 = vpop.f32.mrb[0].mxu0
      %v1143 = vadd.f32 0.0, %v1142
      %1144 = vmatprep.mubr.bf16.mxu0 %v749
      %1145 = vmatmul.mubr.bf16.gmra.mrb[0].mxu0 %v748
      %v1146 = vpop.f32.mrb[0].mxu0
      %v1147 = vadd.f32 0.0, %v1146
      %v1148 = vpop.f32.mrb[0].mxu0
      %v1149 = vadd.f32 0.0, %v1148
      %v1150 = vpop.f32.mrb[0].mxu0
      %v1151 = vadd.f32 0.0, %v1150
      %v1152 = vpop.f32.mrb[0].mxu0
      %v1153 = vadd.f32 0.0, %v1152
      %1154 = vmatprep.mubr.bf16.mxu0 %v752
      %1155 = vmatmul.mubr.bf16.gmra.mrb[0].mxu0 %v751
      %v1156 = vpop.f32.mrb[0].mxu0
      %v1157 = vadd.f32 0.0, %v1156
      %v1158 = vpop.f32.mrb[0].mxu0
      %v1159 = vadd.f32 0.0, %v1158
      %v1160 = vpop.f32.mrb[0].mxu0
      %v1161 = vadd.f32 0.0, %v1160
      %v1162 = vpop.f32.mrb[0].mxu0
      %v1163 = vadd.f32 0.0, %v1162
      %1164 = vmatprep.mubr.bf16.mxu0 %v755
      %1165 = vmatmul.mubr.bf16.gmra.mrb[0].mxu0 %v754
      %v1166 = vpop.f32.mrb[0].mxu0
      %v1167 = vadd.f32 0.0, %v1166
      %v1168 = vpop.f32.mrb[0].mxu0
      %v1169 = vadd.f32 0.0, %v1168
      %v1170 = vpop.f32.mrb[0].mxu0
      %v1171 = vadd.f32 0.0, %v1170
      %v1172 = vpop.f32.mrb[0].mxu0
      %v1173 = vadd.f32 0.0, %v1172
      %1174 = vmatprep.mubr.bf16.mxu0 %v758
      %1175 = vmatmul.mubr.bf16.gmra.mrb[0].mxu0 %v757
      %v1176 = vpop.f32.mrb[0].mxu0
      %v1177 = vadd.f32 0.0, %v1176
      %v1178 = vpop.f32.mrb[0].mxu0
      %v1179 = vadd.f32 0.0, %v1178
      %v1180 = vpop.f32.mrb[0].mxu0
      %v1181 = vadd.f32 0.0, %v1180
      %v1182 = vpop.f32.mrb[0].mxu0
      %v1183 = vadd.f32 0.0, %v1182
      %1184 = vmatprep.mubr.bf16.mxu0 %v761
      %1185 = vmatmul.mubr.bf16.gmra.mrb[0].mxu0 %v760
      %v1186 = vpop.f32.mrb[0].mxu0
      %v1187 = vadd.f32 0.0, %v1186
      %v1188 = vpop.f32.mrb[0].mxu0
      %v1189 = vadd.f32 0.0, %v1188
      %v1190 = vpop.f32.mrb[0].mxu0
      %v1191 = vadd.f32 0.0, %v1190
      %v1192 = vpop.f32.mrb[0].mxu0
      %v1193 = vadd.f32 0.0, %v1192
      %1194 = vmatprep.mubr.bf16.mxu0 %v764
      %1195 = vmatmul.mubr.bf16.gmra.mrb[0].mxu0 %v763
      %v1196 = vpop.f32.mrb[0].mxu0
      %v1197 = vadd.f32 0.0, %v1196
      %v1198 = vpop.f32.mrb[0].mxu0
      %v1199 = vadd.f32 0.0, %v1198
      %v1200 = vpop.f32.mrb[0].mxu0
      %v1201 = vadd.f32 0.0, %v1200
      %v1202 = vpop.f32.mrb[0].mxu0
      %v1203 = vadd.f32 0.0, %v1202
      %1204 = vmatprep.mubr.bf16.mxu0 %v767
      %1205 = vmatmul.mubr.bf16.gmra.mrb[0].mxu0 %v766
      %v1206 = vpop.f32.mrb[0].mxu0
      %v1207 = vadd.f32 0.0, %v1206
      %v1208 = vpop.f32.mrb[0].mxu0
      %v1209 = vadd.f32 0.0, %v1208
      %v1210 = vpop.f32.mrb[0].mxu0
      %v1211 = vadd.f32 0.0, %v1210
      %v1212 = vpop.f32.mrb[0].mxu0
      %v1213 = vadd.f32 0.0, %v1212
      %1214 = vmatprep.mubr.bf16.mxu0 %v770
      %1215 = vmatmul.mubr.bf16.gmra.mrb[0].mxu0 %v769
      %v1216 = vpop.f32.mrb[0].mxu0
      %v1217 = vadd.f32 0.0, %v1216
      %v1218 = vpop.f32.mrb[0].mxu0
      %v1219 = vadd.f32 0.0, %v1218
      %v1220 = vpop.f32.mrb[0].mxu0
      %v1221 = vadd.f32 0.0, %v1220
      %v1222 = vpop.f32.mrb[0].mxu0
      %v1223 = vadd.f32 0.0, %v1222
      %1224 = vmatprep.mubr.bf16.mxu0 %v773
      %1225 = vmatmul.mubr.bf16.gmra.mrb[0].mxu0 %v772
      %v1226 = vpop.f32.mrb[0].mxu0
      %v1227 = vadd.f32 0.0, %v1226
      %v1228 = vpop.f32.mrb[0].mxu0
      %v1229 = vadd.f32 0.0, %v1228
      %v1230 = vpop.f32.mrb[0].mxu0
      %v1231 = vadd.f32 0.0, %v1230
      %v1232 = vpop.f32.mrb[0].mxu0
      %v1233 = vadd.f32 0.0, %v1232
      %1234 = vmatprep.mubr.bf16.mxu0 %v776
      %1235 = vmatmul.mubr.bf16.gmra.mrb[0].mxu0 %v775
      %v1236 = vpop.f32.mrb[0].mxu0
      %v1237 = vadd.f32 0.0, %v1236
      %v1238 = vpop.f32.mrb[0].mxu0
      %v1239 = vadd.f32 0.0, %v1238
      %v1240 = vpop.f32.mrb[0].mxu0
      %v1241 = vadd.f32 0.0, %v1240
      %v1242 = vpop.f32.mrb[0].mxu0
      %v1243 = vadd.f32 0.0, %v1242
      %1244 = vmatprep.mubr.bf16.mxu0 %v779
      %1245 = vmatmul.mubr.bf16.gmra.mrb[0].mxu0 %v778
      %v1246 = vpop.f32.mrb[0].mxu0
      %v1247 = vadd.f32 0.0, %v1246
      %v1248 = vpop.f32.mrb[0].mxu0
      %v1249 = vadd.f32 0.0, %v1248
      %v1250 = vpop.f32.mrb[0].mxu0
      %v1251 = vadd.f32 0.0, %v1250
      %v1252 = vpop.f32.mrb[0].mxu0
      %v1253 = vadd.f32 0.0, %v1252
      %1254 = vmatprep.mubr.bf16.mxu0 %v782
      %1255 = vmatmul.mubr.bf16.gmra.mrb[0].mxu0 %v781
      %v1256 = vpop.f32.mrb[0].mxu0
      %v1257 = vadd.f32 0.0, %v1256
      %v1258 = vpop.f32.mrb[0].mxu0
      %v1259 = vadd.f32 0.0, %v1258
      %v1260 = vpop.f32.mrb[0].mxu0
      %v1261 = vadd.f32 0.0, %v1260
      %v1262 = vpop.f32.mrb[0].mxu0
      %v1263 = vadd.f32 0.0, %v1262
      %1264 = vdwg.mxu0
      %1265 = vmatprep.subr.bf16.mxu0 %v1009
      %1266 = vmatpush1.bf16.msra.mxu0 %v1008
      %1267 = vmatprep.subr.bf16.mxu0 %v1011
      %1268 = vmatpush1.bf16.msra.mxu0 %v1010
      %1269 = vmatprep.subr.bf16.mxu0 %v1013
      %1270 = vmatpush1.bf16.msra.mxu0 %v1012
      %1271 = vmatprep.subr.bf16.mxu0 %v1015
      %1272 = vmatpush1.bf16.msra.mxu0 %v1014
      %1273 = vmatprep.subr.bf16.mxu0 %v1017
      %1274 = vmatpush1.bf16.msra.mxu0 %v1016
      %1275 = vmatprep.subr.bf16.mxu0 %v1019
      %1276 = vmatpush1.bf16.msra.mxu0 %v1018
      %1277 = vmatprep.subr.bf16.mxu0 %v1021
      %1278 = vmatpush1.bf16.msra.mxu0 %v1020
      %1279 = vmatprep.subr.bf16.mxu0 %v1023
      %1280 = vmatpush1.bf16.msra.mxu0 %v1022
      %1281 = vmatprep.subr.bf16.mxu0 0
      %1282 = vmatpush1.bf16.msra.mxu0 0
      %1283 = vmatprep.subr.bf16.mxu0 0
      %1284 = vmatpush1.bf16.msra.mxu0 0
      %1285 = vmatprep.subr.bf16.mxu0 0
      %1286 = vmatpush1.bf16.msra.mxu0 0
      %1287 = vmatprep.subr.bf16.mxu0 0
      %1288 = vmatpush1.bf16.msra.mxu0 0
      %1289 = vmatprep.subr.bf16.mxu0 0
      %1290 = vmatpush1.bf16.msra.mxu0 0
      %1291 = vmatprep.subr.bf16.mxu0 0
      %1292 = vmatpush1.bf16.msra.mxu0 0
      %1293 = vmatprep.subr.bf16.mxu0 0
      %1294 = vmatpush1.bf16.msra.mxu0 0
      %1295 = vmatprep.subr.bf16.mxu0 0
      %1296 = vmatpush1.bf16.msra.mxu0 0
      %1297 = vmatprep.mubr.bf16.mxu0 0
      %1298 = vmatmul.mubr.bf16.gmra.mrb[0].mxu0 %v738
      %v1299 = vpop.f32.mrb[0].mxu0
      %v1300 = vadd.f32 %v1107, %v1299
      %v1301 = vpop.f32.mrb[0].mxu0
      %v1302 = vadd.f32 %v1109, %v1301
      %v1303 = vpop.f32.mrb[0].mxu0
      %v1304 = vadd.f32 %v1111, %v1303
      %v1305 = vpop.f32.mrb[0].mxu0
      %v1306 = vadd.f32 %v1113, %v1305
      %1307 = vmatprep.mubr.bf16.mxu0 0
      %1308 = vmatmul.mubr.bf16.gmra.mrb[0].mxu0 %v741
      %v1309 = vpop.f32.mrb[0].mxu0
      %v1310 = vadd.f32 %v1117, %v1309
      %v1311 = vpop.f32.mrb[0].mxu0
      %v1312 = vadd.f32 %v1119, %v1311
      %v1313 = vpop.f32.mrb[0].mxu0
      %v1314 = vadd.f32 %v1121, %v1313
      %v1315 = vpop.f32.mrb[0].mxu0
      %v1316 = vadd.f32 %v1123, %v1315
      %1317 = vmatprep.mubr.bf16.mxu0 0
      %1318 = vmatmul.mubr.bf16.gmra.mrb[0].mxu0 %v744
      %v1319 = vpop.f32.mrb[0].mxu0
      %v1320 = vadd.f32 %v1127, %v1319
      %v1321 = vpop.f32.mrb[0].mxu0
      %v1322 = vadd.f32 %v1129, %v1321
      %v1323 = vpop.f32.mrb[0].mxu0
      %v1324 = vadd.f32 %v1131, %v1323
      %v1325 = vpop.f32.mrb[0].mxu0
      %v1326 = vadd.f32 %v1133, %v1325
      %1327 = vmatprep.mubr.bf16.mxu0 0
      %1328 = vmatmul.mubr.bf16.gmra.mrb[0].mxu0 %v747
      %v1329 = vpop.f32.mrb[0].mxu0
      %v1330 = vadd.f32 %v1137, %v1329
      %v1331 = vpop.f32.mrb[0].mxu0
      %v1332 = vadd.f32 %v1139, %v1331
      %v1333 = vpop.f32.mrb[0].mxu0
      %v1334 = vadd.f32 %v1141, %v1333
      %v1335 = vpop.f32.mrb[0].mxu0
      %v1336 = vadd.f32 %v1143, %v1335
      %1337 = vmatprep.mubr.bf16.mxu0 0
      %1338 = vmatmul.mubr.bf16.gmra.mrb[0].mxu0 %v750
      %v1339 = vpop.f32.mrb[0].mxu0
      %v1340 = vadd.f32 %v1147, %v1339
      %v1341 = vpop.f32.mrb[0].mxu0
      %v1342 = vadd.f32 %v1149, %v1341
      %v1343 = vpop.f32.mrb[0].mxu0
      %v1344 = vadd.f32 %v1151, %v1343
      %v1345 = vpop.f32.mrb[0].mxu0
      %v1346 = vadd.f32 %v1153, %v1345
      %1347 = vmatprep.mubr.bf16.mxu0 0
      %1348 = vmatmul.mubr.bf16.gmra.mrb[0].mxu0 %v753
      %v1349 = vpop.f32.mrb[0].mxu0
      %v1350 = vadd.f32 %v1157, %v1349
      %v1351 = vpop.f32.mrb[0].mxu0
      %v1352 = vadd.f32 %v1159, %v1351
      %v1353 = vpop.f32.mrb[0].mxu0
      %v1354 = vadd.f32 %v1161, %v1353
      %v1355 = vpop.f32.mrb[0].mxu0
      %v1356 = vadd.f32 %v1163, %v1355
      %1357 = vmatprep.mubr.bf16.mxu0 0
      %1358 = vmatmul.mubr.bf16.gmra.mrb[0].mxu0 %v756
      %v1359 = vpop.f32.mrb[0].mxu0
      %v1360 = vadd.f32 %v1167, %v1359
      %v1361 = vpop.f32.mrb[0].mxu0
      %v1362 = vadd.f32 %v1169, %v1361
      %v1363 = vpop.f32.mrb[0].mxu0
      %v1364 = vadd.f32 %v1171, %v1363
      %v1365 = vpop.f32.mrb[0].mxu0
      %v1366 = vadd.f32 %v1173, %v1365
      %1367 = vmatprep.mubr.bf16.mxu0 0
      %1368 = vmatmul.mubr.bf16.gmra.mrb[0].mxu0 %v759
      %v1369 = vpop.f32.mrb[0].mxu0
      %v1370 = vadd.f32 %v1177, %v1369
      %v1371 = vpop.f32.mrb[0].mxu0
      %v1372 = vadd.f32 %v1179, %v1371
      %v1373 = vpop.f32.mrb[0].mxu0
      %v1374 = vadd.f32 %v1181, %v1373
      %v1375 = vpop.f32.mrb[0].mxu0
      %v1376 = vadd.f32 %v1183, %v1375
      %1377 = vmatprep.mubr.bf16.mxu0 0
      %1378 = vmatmul.mubr.bf16.gmra.mrb[0].mxu0 %v762
      %v1379 = vpop.f32.mrb[0].mxu0
      %v1380 = vadd.f32 %v1187, %v1379
      %v1381 = vpop.f32.mrb[0].mxu0
      %v1382 = vadd.f32 %v1189, %v1381
      %v1383 = vpop.f32.mrb[0].mxu0
      %v1384 = vadd.f32 %v1191, %v1383
      %v1385 = vpop.f32.mrb[0].mxu0
      %v1386 = vadd.f32 %v1193, %v1385
      %1387 = vmatprep.mubr.bf16.mxu0 0
      %1388 = vmatmul.mubr.bf16.gmra.mrb[0].mxu0 %v765
      %v1389 = vpop.f32.mrb[0].mxu0
      %v1390 = vadd.f32 %v1197, %v1389
      %v1391 = vpop.f32.mrb[0].mxu0
      %v1392 = vadd.f32 %v1199, %v1391
      %v1393 = vpop.f32.mrb[0].mxu0
      %v1394 = vadd.f32 %v1201, %v1393
      %v1395 = vpop.f32.mrb[0].mxu0
      %v1396 = vadd.f32 %v1203, %v1395
      %1397 = vmatprep.mubr.bf16.mxu0 0
      %1398 = vmatmul.mubr.bf16.gmra.mrb[0].mxu0 %v768
      %v1399 = vpop.f32.mrb[0].mxu0
      %v1400 = vadd.f32 %v1207, %v1399
      %v1401 = vpop.f32.mrb[0].mxu0
      %v1402 = vadd.f32 %v1209, %v1401
      %v1403 = vpop.f32.mrb[0].mxu0
      %v1404 = vadd.f32 %v1211, %v1403
      %v1405 = vpop.f32.mrb[0].mxu0
      %v1406 = vadd.f32 %v1213, %v1405
      %1407 = vmatprep.mubr.bf16.mxu0 0
      %1408 = vmatmul.mubr.bf16.gmra.mrb[0].mxu0 %v771
      %v1409 = vpop.f32.mrb[0].mxu0
      %v1410 = vadd.f32 %v1217, %v1409
      %v1411 = vpop.f32.mrb[0].mxu0
      %v1412 = vadd.f32 %v1219, %v1411
      %v1413 = vpop.f32.mrb[0].mxu0
      %v1414 = vadd.f32 %v1221, %v1413
      %v1415 = vpop.f32.mrb[0].mxu0
      %v1416 = vadd.f32 %v1223, %v1415
      %1417 = vmatprep.mubr.bf16.mxu0 0
      %1418 = vmatmul.mubr.bf16.gmra.mrb[0].mxu0 %v774
      %v1419 = vpop.f32.mrb[0].mxu0
      %v1420 = vadd.f32 %v1227, %v1419
      %v1421 = vpop.f32.mrb[0].mxu0
      %v1422 = vadd.f32 %v1229, %v1421
      %v1423 = vpop.f32.mrb[0].mxu0
      %v1424 = vadd.f32 %v1231, %v1423
      %v1425 = vpop.f32.mrb[0].mxu0
      %v1426 = vadd.f32 %v1233, %v1425
      %1427 = vmatprep.mubr.bf16.mxu0 0
      %1428 = vmatmul.mubr.bf16.gmra.mrb[0].mxu0 %v777
      %v1429 = vpop.f32.mrb[0].mxu0
      %v1430 = vadd.f32 %v1237, %v1429
      %v1431 = vpop.f32.mrb[0].mxu0
      %v1432 = vadd.f32 %v1239, %v1431
      %v1433 = vpop.f32.mrb[0].mxu0
      %v1434 = vadd.f32 %v1241, %v1433
      %v1435 = vpop.f32.mrb[0].mxu0
      %v1436 = vadd.f32 %v1243, %v1435
      %1437 = vmatprep.mubr.bf16.mxu0 0
      %1438 = vmatmul.mubr.bf16.gmra.mrb[0].mxu0 %v780
      %v1439 = vpop.f32.mrb[0].mxu0
      %v1440 = vadd.f32 %v1247, %v1439
      %v1441 = vpop.f32.mrb[0].mxu0
      %v1442 = vadd.f32 %v1249, %v1441
      %v1443 = vpop.f32.mrb[0].mxu0
      %v1444 = vadd.f32 %v1251, %v1443
      %v1445 = vpop.f32.mrb[0].mxu0
      %v1446 = vadd.f32 %v1253, %v1445
      %1447 = vmatprep.mubr.bf16.mxu0 0
      %1448 = vmatmul.mubr.bf16.gmra.mrb[0].mxu0 %v783
      %v1449 = vpop.f32.mrb[0].mxu0
      %v1450 = vadd.f32 %v1257, %v1449
      %v1451 = vpop.f32.mrb[0].mxu0
      %v1452 = vadd.f32 %v1259, %v1451
      %v1453 = vpop.f32.mrb[0].mxu0
      %v1454 = vadd.f32 %v1261, %v1453
      %v1455 = vpop.f32.mrb[0].mxu0
      %v1456 = vadd.f32 %v1263, %v1455
      %1457 = vdwg.mxu0
      %v1458 = vadd.f32 %v400, %v1300
      %v1459 = vadd.f32 %v401, %v1302
      %v1460 = vadd.f32 %v402, %v1304
      %v1461 = vadd.f32 %v403, %v1306
      %v1462 = vadd.f32 %v404, %v1310
      %v1463 = vadd.f32 %v405, %v1312
      %v1464 = vadd.f32 %v406, %v1314
      %v1465 = vadd.f32 %v407, %v1316
      %v1466 = vadd.f32 %v408, %v1320
      %v1467 = vadd.f32 %v409, %v1322
      %v1468 = vadd.f32 %v410, %v1324
      %v1469 = vadd.f32 %v411, %v1326
      %v1470 = vadd.f32 %v412, %v1330
      %v1471 = vadd.f32 %v413, %v1332
      %v1472 = vadd.f32 %v414, %v1334
      %v1473 = vadd.f32 %v415, %v1336
      %v1474 = vadd.f32 %v416, %v1340
      %v1475 = vadd.f32 %v417, %v1342
      %v1476 = vadd.f32 %v418, %v1344
      %v1477 = vadd.f32 %v419, %v1346
      %v1478 = vadd.f32 %v420, %v1350
      %v1479 = vadd.f32 %v421, %v1352
      %v1480 = vadd.f32 %v422, %v1354
      %v1481 = vadd.f32 %v423, %v1356
      %v1482 = vadd.f32 %v424, %v1360
      %v1483 = vadd.f32 %v425, %v1362
      %v1484 = vadd.f32 %v426, %v1364
      %v1485 = vadd.f32 %v427, %v1366
      %v1486 = vadd.f32 %v428, %v1370
      %v1487 = vadd.f32 %v429, %v1372
      %v1488 = vadd.f32 %v430, %v1374
      %v1489 = vadd.f32 %v431, %v1376
      %v1490 = vadd.f32 %v432, %v1380
      %v1491 = vadd.f32 %v433, %v1382
      %v1492 = vadd.f32 %v434, %v1384
      %v1493 = vadd.f32 %v435, %v1386
      %v1494 = vadd.f32 %v436, %v1390
      %v1495 = vadd.f32 %v437, %v1392
      %v1496 = vadd.f32 %v438, %v1394
      %v1497 = vadd.f32 %v439, %v1396
      %v1498 = vadd.f32 %v440, %v1400
      %v1499 = vadd.f32 %v441, %v1402
      %v1500 = vadd.f32 %v442, %v1404
      %v1501 = vadd.f32 %v443, %v1406
      %v1502 = vadd.f32 %v444, %v1410
      %v1503 = vadd.f32 %v445, %v1412
      %v1504 = vadd.f32 %v446, %v1414
      %v1505 = vadd.f32 %v447, %v1416
      %v1506 = vadd.f32 %v448, %v1420
      %v1507 = vadd.f32 %v449, %v1422
      %v1508 = vadd.f32 %v450, %v1424
      %v1509 = vadd.f32 %v451, %v1426
      %v1510 = vadd.f32 %v452, %v1430
      %v1511 = vadd.f32 %v453, %v1432
      %v1512 = vadd.f32 %v454, %v1434
      %v1513 = vadd.f32 %v455, %v1436
      %v1514 = vadd.f32 %v456, %v1440
      %v1515 = vadd.f32 %v457, %v1442
      %v1516 = vadd.f32 %v458, %v1444
      %v1517 = vadd.f32 %v459, %v1446
      %v1518 = vadd.f32 %v460, %v1450
      %v1519 = vadd.f32 %v461, %v1452
      %v1520 = vadd.f32 %v462, %v1454
      %v1521 = vadd.f32 %v463, %v1456
      %1522 = vst [vmem:[#allocation2] sm:$0xff] %v1458
      %1523 = vst [vmem:[#allocation2 + $0x8] sm:$0xff] %v1459
      %1524 = vst [vmem:[#allocation2 + $0x10] sm:$0xff] %v1460
      %1525 = vst [vmem:[#allocation2 + $0x18] sm:$0xff] %v1461
      %1526 = vst [vmem:[#allocation2 + $0x20] sm:$0xff] %v1462
      %1527 = vst [vmem:[#allocation2 + $0x28] sm:$0xff] %v1463
      %1528 = vst [vmem:[#allocation2 + $0x30] sm:$0xff] %v1464
      %1529 = vst [vmem:[#allocation2 + $0x38] sm:$0xff] %v1465
      %1530 = vst [vmem:[#allocation2 + $0x40] sm:$0xff] %v1466
      %1531 = vst [vmem:[#allocation2 + $0x48] sm:$0xff] %v1467
      %1532 = vst [vmem:[#allocation2 + $0x50] sm:$0xff] %v1468
      %1533 = vst [vmem:[#allocation2 + $0x58] sm:$0xff] %v1469
      %1534 = vst [vmem:[#allocation2 + $0x60] sm:$0xff] %v1470
      %1535 = vst [vmem:[#allocation2 + $0x68] sm:$0xff] %v1471
      %1536 = vst [vmem:[#allocation2 + $0x70] sm:$0xff] %v1472
      %1537 = vst [vmem:[#allocation2 + $0x78] sm:$0xff] %v1473
      %1538 = vst [vmem:[#allocation2 + $0x80] sm:$0xff] %v1474
      %1539 = vst [vmem:[#allocation2 + $0x88] sm:$0xff] %v1475
      %1540 = vst [vmem:[#allocation2 + $0x90] sm:$0xff] %v1476
      %1541 = vst [vmem:[#allocation2 + $0x98] sm:$0xff] %v1477
      %1542 = vst [vmem:[#allocation2 + $0xa0] sm:$0xff] %v1478
      %1543 = vst [vmem:[#allocation2 + $0xa8] sm:$0xff] %v1479
      %1544 = vst [vmem:[#allocation2 + $0xb0] sm:$0xff] %v1480
      %1545 = vst [vmem:[#allocation2 + $0xb8] sm:$0xff] %v1481
      %1546 = vst [vmem:[#allocation2 + $0xc0] sm:$0xff] %v1482
      %1547 = vst [vmem:[#allocation2 + $0xc8] sm:$0xff] %v1483
      %1548 = vst [vmem:[#allocation2 + $0xd0] sm:$0xff] %v1484
      %1549 = vst [vmem:[#allocation2 + $0xd8] sm:$0xff] %v1485
      %1550 = vst [vmem:[#allocation2 + $0xe0] sm:$0xff] %v1486
      %1551 = vst [vmem:[#allocation2 + $0xe8] sm:$0xff] %v1487
      %1552 = vst [vmem:[#allocation2 + $0xf0] sm:$0xff] %v1488
      %1553 = vst [vmem:[#allocation2 + $0xf8] sm:$0xff] %v1489
      %1554 = vst [vmem:[#allocation2 + $0x100] sm:$0xff] %v1490
      %1555 = vst [vmem:[#allocation2 + $0x108] sm:$0xff] %v1491
      %1556 = vst [vmem:[#allocation2 + $0x110] sm:$0xff] %v1492
      %1557 = vst [vmem:[#allocation2 + $0x118] sm:$0xff] %v1493
      %1558 = vst [vmem:[#allocation2 + $0x120] sm:$0xff] %v1494
      %1559 = vst [vmem:[#allocation2 + $0x128] sm:$0xff] %v1495
      %1560 = vst [vmem:[#allocation2 + $0x130] sm:$0xff] %v1496
      %1561 = vst [vmem:[#allocation2 + $0x138] sm:$0xff] %v1497
      %1562 = vst [vmem:[#allocation2 + $0x140] sm:$0xff] %v1498
      %1563 = vst [vmem:[#allocation2 + $0x148] sm:$0xff] %v1499
      %1564 = vst [vmem:[#allocation2 + $0x150] sm:$0xff] %v1500
      %1565 = vst [vmem:[#allocation2 + $0x158] sm:$0xff] %v1501
      %1566 = vst [vmem:[#allocation2 + $0x160] sm:$0xff] %v1502
      %1567 = vst [vmem:[#allocation2 + $0x168] sm:$0xff] %v1503
      %1568 = vst [vmem:[#allocation2 + $0x170] sm:$0xff] %v1504
      %1569 = vst [vmem:[#allocation2 + $0x178] sm:$0xff] %v1505
      %1570 = vst [vmem:[#allocation2 + $0x180] sm:$0xff] %v1506
      %1571 = vst [vmem:[#allocation2 + $0x188] sm:$0xff] %v1507
      %1572 = vst [vmem:[#allocation2 + $0x190] sm:$0xff] %v1508
      %1573 = vst [vmem:[#allocation2 + $0x198] sm:$0xff] %v1509
      %1574 = vst [vmem:[#allocation2 + $0x1a0] sm:$0xff] %v1510
      %1575 = vst [vmem:[#allocation2 + $0x1a8] sm:$0xff] %v1511
      %1576 = vst [vmem:[#allocation2 + $0x1b0] sm:$0xff] %v1512
      %1577 = vst [vmem:[#allocation2 + $0x1b8] sm:$0xff] %v1513
      %1578 = vst [vmem:[#allocation2 + $0x1c0] sm:$0xff] %v1514
      %1579 = vst [vmem:[#allocation2 + $0x1c8] sm:$0xff] %v1515
      %1580 = vst [vmem:[#allocation2 + $0x1d0] sm:$0xff] %v1516
      %1581 = vst [vmem:[#allocation2 + $0x1d8] sm:$0xff] %v1517
      %1582 = vst [vmem:[#allocation2 + $0x1e0] sm:$0xff] %v1518
      %1583 = vst [vmem:[#allocation2 + $0x1e8] sm:$0xff] %v1519
      %1584 = vst [vmem:[#allocation2 + $0x1f0] sm:$0xff] %v1520
      %1585 = vst [vmem:[#allocation2 + $0x1f8] sm:$0xff] %v1521
      // Predicated region
      $region41: #{mixed_6a_forward.5} parent=35 // pred_check
        %p1586 = pneg %p332
      $region42: #{mixed_6a_forward.5} parent=35 // pred_check_branch
        %1588 = sbr.rel (%p1586) target = $region44
      $region43: #{mixed_6a_forward.5} parent=35 // pred_region
        %v1589 = vld [vmem:[#allocation2] sm:$0xff]
        %v1590 = vld [vmem:[#allocation2 + $0x8] sm:$0xff]
        %v1591 = vld [vmem:[#allocation2 + $0x10] sm:$0xff]
        %v1592 = vld [vmem:[#allocation2 + $0x18] sm:$0xff]
        %v1593 = vld [vmem:[#allocation2 + $0x20] sm:$0xff]
        %v1594 = vld [vmem:[#allocation2 + $0x28] sm:$0xff]
        %v1595 = vld [vmem:[#allocation2 + $0x30] sm:$0xff]
        %v1596 = vld [vmem:[#allocation2 + $0x38] sm:$0xff]
        %v1597 = vld [vmem:[#allocation2 + $0x40] sm:$0xff]
        %v1598 = vld [vmem:[#allocation2 + $0x48] sm:$0xff]
        %v1599 = vld [vmem:[#allocation2 + $0x50] sm:$0xff]
        %v1600 = vld [vmem:[#allocation2 + $0x58] sm:$0xff]
        %v1601 = vld [vmem:[#allocation2 + $0x60] sm:$0xff]
        %v1602 = vld [vmem:[#allocation2 + $0x68] sm:$0xff]
        %v1603 = vld [vmem:[#allocation2 + $0x70] sm:$0xff]
        %v1604 = vld [vmem:[#allocation2 + $0x78] sm:$0xff]
        %v1605 = vld [vmem:[#allocation2 + $0x80] sm:$0xff]
        %v1606 = vld [vmem:[#allocation2 + $0x88] sm:$0xff]
        %v1607 = vld [vmem:[#allocation2 + $0x90] sm:$0xff]
        %v1608 = vld [vmem:[#allocation2 + $0x98] sm:$0xff]
        %v1609 = vld [vmem:[#allocation2 + $0xa0] sm:$0xff]
        %v1610 = vld [vmem:[#allocation2 + $0xa8] sm:$0xff]
        %v1611 = vld [vmem:[#allocation2 + $0xb0] sm:$0xff]
        %v1612 = vld [vmem:[#allocation2 + $0xb8] sm:$0xff]
        %v1613 = vld [vmem:[#allocation2 + $0xc0] sm:$0xff]
        %v1614 = vld [vmem:[#allocation2 + $0xc8] sm:$0xff]
        %v1615 = vld [vmem:[#allocation2 + $0xd0] sm:$0xff]
        %v1616 = vld [vmem:[#allocation2 + $0xd8] sm:$0xff]
        %v1617 = vld [vmem:[#allocation2 + $0xe0] sm:$0xff]
        %v1618 = vld [vmem:[#allocation2 + $0xe8] sm:$0xff]
        %v1619 = vld [vmem:[#allocation2 + $0xf0] sm:$0xff]
        %v1620 = vld [vmem:[#allocation2 + $0xf8] sm:$0xff]
        %v1621 = vld [vmem:[#allocation2 + $0x100] sm:$0xff]
        %v1622 = vld [vmem:[#allocation2 + $0x108] sm:$0xff]
        %v1623 = vld [vmem:[#allocation2 + $0x110] sm:$0xff]
        %v1624 = vld [vmem:[#allocation2 + $0x118] sm:$0xff]
        %v1625 = vld [vmem:[#allocation2 + $0x120] sm:$0xff]
        %v1626 = vld [vmem:[#allocation2 + $0x128] sm:$0xff]
        %v1627 = vld [vmem:[#allocation2 + $0x130] sm:$0xff]
        %v1628 = vld [vmem:[#allocation2 + $0x138] sm:$0xff]
        %v1629 = vld [vmem:[#allocation2 + $0x140] sm:$0xff]
        %v1630 = vld [vmem:[#allocation2 + $0x148] sm:$0xff]
        %v1631 = vld [vmem:[#allocation2 + $0x150] sm:$0xff]
        %v1632 = vld [vmem:[#allocation2 + $0x158] sm:$0xff]
        %v1633 = vld [vmem:[#allocation2 + $0x160] sm:$0xff]
        %v1634 = vld [vmem:[#allocation2 + $0x168] sm:$0xff]
        %v1635 = vld [vmem:[#allocation2 + $0x170] sm:$0xff]
        %v1636 = vld [vmem:[#allocation2 + $0x178] sm:$0xff]
        %v1637 = vld [vmem:[#allocation2 + $0x180] sm:$0xff]
        %v1638 = vld [vmem:[#allocation2 + $0x188] sm:$0xff]
        %v1639 = vld [vmem:[#allocation2 + $0x190] sm:$0xff]
        %v1640 = vld [vmem:[#allocation2 + $0x198] sm:$0xff]
        %v1641 = vld [vmem:[#allocation2 + $0x1a0] sm:$0xff]
        %v1642 = vld [vmem:[#allocation2 + $0x1a8] sm:$0xff]
        %v1643 = vld [vmem:[#allocation2 + $0x1b0] sm:$0xff]
        %v1644 = vld [vmem:[#allocation2 + $0x1b8] sm:$0xff]
        %v1645 = vld [vmem:[#allocation2 + $0x1c0] sm:$0xff]
        %v1646 = vld [vmem:[#allocation2 + $0x1c8] sm:$0xff]
        %v1647 = vld [vmem:[#allocation2 + $0x1d0] sm:$0xff]
        %v1648 = vld [vmem:[#allocation2 + $0x1d8] sm:$0xff]
        %v1649 = vld [vmem:[#allocation2 + $0x1e0] sm:$0xff]
        %v1650 = vld [vmem:[#allocation2 + $0x1e8] sm:$0xff]
        %v1651 = vld [vmem:[#allocation2 + $0x1f0] sm:$0xff]
        %v1652 = vld [vmem:[#allocation2 + $0x1f8] sm:$0xff]
        %v1653 = vld [vmem:[%s312] sm:$0x3]
        %v1655 = vlaneseq
        %v1656 = vshrl.u32 %v1655, 7
        %v1657 = vsub.s32 0, %v1656
        %v1658 = vrot.slane %v1653, %v1657
        %v1659 = vlaneseq
        %v1660 = vshrl.u32 %v1659, 7
        %v1661 = vsub.s32 1, %v1660
        %v1662 = vrot.slane %v1653, %v1661
        %v1665 = vmul.f32 %v1589, %v1658
        %v1666 = vmul.f32 %v1590, %v1662
        %v1667 = vmul.f32 %v1591, %v1658
        %v1668 = vmul.f32 %v1592, %v1662
        %v1669 = vmul.f32 %v1593, %v1658
        %v1670 = vmul.f32 %v1594, %v1662
        %v1671 = vmul.f32 %v1595, %v1658
        %v1672 = vmul.f32 %v1596, %v1662
        %v1673 = vmul.f32 %v1597, %v1658
        %v1674 = vmul.f32 %v1598, %v1662
        %v1675 = vmul.f32 %v1599, %v1658
        %v1676 = vmul.f32 %v1600, %v1662
        %v1677 = vmul.f32 %v1601, %v1658
        %v1678 = vmul.f32 %v1602, %v1662
        %v1679 = vmul.f32 %v1603, %v1658
        %v1680 = vmul.f32 %v1604, %v1662
        %v1681 = vmul.f32 %v1605, %v1658
        %v1682 = vmul.f32 %v1606, %v1662
        %v1683 = vmul.f32 %v1607, %v1658
        %v1684 = vmul.f32 %v1608, %v1662
        %v1685 = vmul.f32 %v1609, %v1658
        %v1686 = vmul.f32 %v1610, %v1662
        %v1687 = vmul.f32 %v1611, %v1658
        %v1688 = vmul.f32 %v1612, %v1662
        %v1689 = vmul.f32 %v1613, %v1658
        %v1690 = vmul.f32 %v1614, %v1662
        %v1691 = vmul.f32 %v1615, %v1658
        %v1692 = vmul.f32 %v1616, %v1662
        %v1693 = vmul.f32 %v1617, %v1658
        %v1694 = vmul.f32 %v1618, %v1662
        %v1695 = vmul.f32 %v1619, %v1658
        %v1696 = vmul.f32 %v1620, %v1662
        %v1697 = vmul.f32 %v1621, %v1658
        %v1698 = vmul.f32 %v1622, %v1662
        %v1699 = vmul.f32 %v1623, %v1658
        %v1700 = vmul.f32 %v1624, %v1662
        %v1701 = vmul.f32 %v1625, %v1658
        %v1702 = vmul.f32 %v1626, %v1662
        %v1703 = vmul.f32 %v1627, %v1658
        %v1704 = vmul.f32 %v1628, %v1662
        %v1705 = vmul.f32 %v1629, %v1658
        %v1706 = vmul.f32 %v1630, %v1662
        %v1707 = vmul.f32 %v1631, %v1658
        %v1708 = vmul.f32 %v1632, %v1662
        %v1709 = vmul.f32 %v1633, %v1658
        %v1710 = vmul.f32 %v1634, %v1662
        %v1711 = vmul.f32 %v1635, %v1658
        %v1712 = vmul.f32 %v1636, %v1662
        %v1713 = vmul.f32 %v1637, %v1658
        %v1714 = vmul.f32 %v1638, %v1662
        %v1715 = vmul.f32 %v1639, %v1658
        %v1716 = vmul.f32 %v1640, %v1662
        %v1717 = vmul.f32 %v1641, %v1658
        %v1718 = vmul.f32 %v1642, %v1662
        %v1719 = vmul.f32 %v1643, %v1658
        %v1720 = vmul.f32 %v1644, %v1662
        %v1721 = vmul.f32 %v1645, %v1658
        %v1722 = vmul.f32 %v1646, %v1662
        %v1723 = vmul.f32 %v1647, %v1658
        %v1724 = vmul.f32 %v1648, %v1662
        %v1725 = vmul.f32 %v1649, %v1658
        %v1726 = vmul.f32 %v1650, %v1662
        %v1727 = vmul.f32 %v1651, %v1658
        %v1728 = vmul.f32 %v1652, %v1662
        %v1729 = vld [vmem:[%s317] sm:$0x3]
        %v1731 = vlaneseq
        %v1732 = vshrl.u32 %v1731, 7
        %v1733 = vsub.s32 0, %v1732
        %v1734 = vrot.slane %v1729, %v1733
        %v1735 = vlaneseq
        %v1736 = vshrl.u32 %v1735, 7
        %v1737 = vsub.s32 1, %v1736
        %v1738 = vrot.slane %v1729, %v1737
        %v1741 = vadd.f32 %v1665, %v1734
        %v1742 = vadd.f32 %v1666, %v1738
        %v1743 = vadd.f32 %v1667, %v1734
        %v1744 = vadd.f32 %v1668, %v1738
        %v1745 = vadd.f32 %v1669, %v1734
        %v1746 = vadd.f32 %v1670, %v1738
        %v1747 = vadd.f32 %v1671, %v1734
        %v1748 = vadd.f32 %v1672, %v1738
        %v1749 = vadd.f32 %v1673, %v1734
        %v1750 = vadd.f32 %v1674, %v1738
        %v1751 = vadd.f32 %v1675, %v1734
        %v1752 = vadd.f32 %v1676, %v1738
        %v1753 = vadd.f32 %v1677, %v1734
        %v1754 = vadd.f32 %v1678, %v1738
        %v1755 = vadd.f32 %v1679, %v1734
        %v1756 = vadd.f32 %v1680, %v1738
        %v1757 = vadd.f32 %v1681, %v1734
        %v1758 = vadd.f32 %v1682, %v1738
        %v1759 = vadd.f32 %v1683, %v1734
        %v1760 = vadd.f32 %v1684, %v1738
        %v1761 = vadd.f32 %v1685, %v1734
        %v1762 = vadd.f32 %v1686, %v1738
        %v1763 = vadd.f32 %v1687, %v1734
        %v1764 = vadd.f32 %v1688, %v1738
        %v1765 = vadd.f32 %v1689, %v1734
        %v1766 = vadd.f32 %v1690, %v1738
        %v1767 = vadd.f32 %v1691, %v1734
        %v1768 = vadd.f32 %v1692, %v1738
        %v1769 = vadd.f32 %v1693, %v1734
        %v1770 = vadd.f32 %v1694, %v1738
        %v1771 = vadd.f32 %v1695, %v1734
        %v1772 = vadd.f32 %v1696, %v1738
        %v1773 = vadd.f32 %v1697, %v1734
        %v1774 = vadd.f32 %v1698, %v1738
        %v1775 = vadd.f32 %v1699, %v1734
        %v1776 = vadd.f32 %v1700, %v1738
        %v1777 = vadd.f32 %v1701, %v1734
        %v1778 = vadd.f32 %v1702, %v1738
        %v1779 = vadd.f32 %v1703, %v1734
        %v1780 = vadd.f32 %v1704, %v1738
        %v1781 = vadd.f32 %v1705, %v1734
        %v1782 = vadd.f32 %v1706, %v1738
        %v1783 = vadd.f32 %v1707, %v1734
        %v1784 = vadd.f32 %v1708, %v1738
        %v1785 = vadd.f32 %v1709, %v1734
        %v1786 = vadd.f32 %v1710, %v1738
        %v1787 = vadd.f32 %v1711, %v1734
        %v1788 = vadd.f32 %v1712, %v1738
        %v1789 = vadd.f32 %v1713, %v1734
        %v1790 = vadd.f32 %v1714, %v1738
        %v1791 = vadd.f32 %v1715, %v1734
        %v1792 = vadd.f32 %v1716, %v1738
        %v1793 = vadd.f32 %v1717, %v1734
        %v1794 = vadd.f32 %v1718, %v1738
        %v1795 = vadd.f32 %v1719, %v1734
        %v1796 = vadd.f32 %v1720, %v1738
        %v1797 = vadd.f32 %v1721, %v1734
        %v1798 = vadd.f32 %v1722, %v1738
        %v1799 = vadd.f32 %v1723, %v1734
        %v1800 = vadd.f32 %v1724, %v1738
        %v1801 = vadd.f32 %v1725, %v1734
        %v1802 = vadd.f32 %v1726, %v1738
        %v1803 = vadd.f32 %v1727, %v1734
        %v1804 = vadd.f32 %v1728, %v1738
        %v1805 = vmax.f32 %v1741, 0.0
        %v1806 = vmax.f32 %v1742, 0.0
        %v1807 = vmax.f32 %v1743, 0.0
        %v1808 = vmax.f32 %v1744, 0.0
        %v1809 = vmax.f32 %v1745, 0.0
        %v1810 = vmax.f32 %v1746, 0.0
        %v1811 = vmax.f32 %v1747, 0.0
        %v1812 = vmax.f32 %v1748, 0.0
        %v1813 = vmax.f32 %v1749, 0.0
        %v1814 = vmax.f32 %v1750, 0.0
        %v1815 = vmax.f32 %v1751, 0.0
        %v1816 = vmax.f32 %v1752, 0.0
        %v1817 = vmax.f32 %v1753, 0.0
        %v1818 = vmax.f32 %v1754, 0.0
        %v1819 = vmax.f32 %v1755, 0.0
        %v1820 = vmax.f32 %v1756, 0.0
        %v1821 = vmax.f32 %v1757, 0.0
        %v1822 = vmax.f32 %v1758, 0.0
        %v1823 = vmax.f32 %v1759, 0.0
        %v1824 = vmax.f32 %v1760, 0.0
        %v1825 = vmax.f32 %v1761, 0.0
        %v1826 = vmax.f32 %v1762, 0.0
        %v1827 = vmax.f32 %v1763, 0.0
        %v1828 = vmax.f32 %v1764, 0.0
        %v1829 = vmax.f32 %v1765, 0.0
        %v1830 = vmax.f32 %v1766, 0.0
        %v1831 = vmax.f32 %v1767, 0.0
        %v1832 = vmax.f32 %v1768, 0.0
        %v1833 = vmax.f32 %v1769, 0.0
        %v1834 = vmax.f32 %v1770, 0.0
        %v1835 = vmax.f32 %v1771, 0.0
        %v1836 = vmax.f32 %v1772, 0.0
        %v1837 = vmax.f32 %v1773, 0.0
        %v1838 = vmax.f32 %v1774, 0.0
        %v1839 = vmax.f32 %v1775, 0.0
        %v1840 = vmax.f32 %v1776, 0.0
        %v1841 = vmax.f32 %v1777, 0.0
        %v1842 = vmax.f32 %v1778, 0.0
        %v1843 = vmax.f32 %v1779, 0.0
        %v1844 = vmax.f32 %v1780, 0.0
        %v1845 = vmax.f32 %v1781, 0.0
        %v1846 = vmax.f32 %v1782, 0.0
        %v1847 = vmax.f32 %v1783, 0.0
        %v1848 = vmax.f32 %v1784, 0.0
        %v1849 = vmax.f32 %v1785, 0.0
        %v1850 = vmax.f32 %v1786, 0.0
        %v1851 = vmax.f32 %v1787, 0.0
        %v1852 = vmax.f32 %v1788, 0.0
        %v1853 = vmax.f32 %v1789, 0.0
        %v1854 = vmax.f32 %v1790, 0.0
        %v1855 = vmax.f32 %v1791, 0.0
        %v1856 = vmax.f32 %v1792, 0.0
        %v1857 = vmax.f32 %v1793, 0.0
        %v1858 = vmax.f32 %v1794, 0.0
        %v1859 = vmax.f32 %v1795, 0.0
        %v1860 = vmax.f32 %v1796, 0.0
        %v1861 = vmax.f32 %v1797, 0.0
        %v1862 = vmax.f32 %v1798, 0.0
        %v1863 = vmax.f32 %v1799, 0.0
        %v1864 = vmax.f32 %v1800, 0.0
        %v1865 = vmax.f32 %v1801, 0.0
        %v1866 = vmax.f32 %v1802, 0.0
        %v1867 = vmax.f32 %v1803, 0.0
        %v1868 = vmax.f32 %v1804, 0.0
        %1869 = vst [vmem:[%s328] sm:$0xff] %v1805
        %1870 = vst [vmem:[%s328 + $0x8] sm:$0xff] %v1806
        %1871 = vst [vmem:[%s328 + $0x10] sm:$0xff] %v1807
        %1872 = vst [vmem:[%s328 + $0x18] sm:$0xff] %v1808
        %1873 = vst [vmem:[%s328 + $0x20] sm:$0xff] %v1809
        %1874 = vst [vmem:[%s328 + $0x28] sm:$0xff] %v1810
        %1875 = vst [vmem:[%s328 + $0x30] sm:$0xff] %v1811
        %1876 = vst [vmem:[%s328 + $0x38] sm:$0xff] %v1812
        %1877 = vst [vmem:[%s328 + $0x40] sm:$0xff] %v1813
        %1878 = vst [vmem:[%s328 + $0x48] sm:$0xff] %v1814
        %1879 = vst [vmem:[%s328 + $0x50] sm:$0xff] %v1815
        %1880 = vst [vmem:[%s328 + $0x58] sm:$0xff] %v1816
        %1881 = vst [vmem:[%s328 + $0x60] sm:$0xff] %v1817
        %1882 = vst [vmem:[%s328 + $0x68] sm:$0xff] %v1818
        %1883 = vst [vmem:[%s328 + $0x70] sm:$0xff] %v1819
        %1884 = vst [vmem:[%s328 + $0x78] sm:$0xff] %v1820
        %1885 = vst [vmem:[%s328 + $0x80] sm:$0xff] %v1821
        %1886 = vst [vmem:[%s328 + $0x88] sm:$0xff] %v1822
        %1887 = vst [vmem:[%s328 + $0x90] sm:$0xff] %v1823
        %1888 = vst [vmem:[%s328 + $0x98] sm:$0xff] %v1824
        %1889 = vst [vmem:[%s328 + $0xa0] sm:$0xff] %v1825
        %1890 = vst [vmem:[%s328 + $0xa8] sm:$0xff] %v1826
        %1891 = vst [vmem:[%s328 + $0xb0] sm:$0xff] %v1827
        %1892 = vst [vmem:[%s328 + $0xb8] sm:$0xff] %v1828
        %1893 = vst [vmem:[%s328 + $0xc0] sm:$0xff] %v1829
        %1894 = vst [vmem:[%s328 + $0xc8] sm:$0xff] %v1830
        %1895 = vst [vmem:[%s328 + $0xd0] sm:$0xff] %v1831
        %1896 = vst [vmem:[%s328 + $0xd8] sm:$0xff] %v1832
        %1897 = vst [vmem:[%s328 + $0xe0] sm:$0xff] %v1833
        %1898 = vst [vmem:[%s328 + $0xe8] sm:$0xff] %v1834
        %1899 = vst [vmem:[%s328 + $0xf0] sm:$0xff] %v1835
        %1900 = vst [vmem:[%s328 + $0xf8] sm:$0xff] %v1836
        %1901 = vst [vmem:[%s328 + $0x100] sm:$0xff] %v1837
        %1902 = vst [vmem:[%s328 + $0x108] sm:$0xff] %v1838
        %1903 = vst [vmem:[%s328 + $0x110] sm:$0xff] %v1839
        %1904 = vst [vmem:[%s328 + $0x118] sm:$0xff] %v1840
        %1905 = vst [vmem:[%s328 + $0x120] sm:$0xff] %v1841
        %1906 = vst [vmem:[%s328 + $0x128] sm:$0xff] %v1842
        %1907 = vst [vmem:[%s328 + $0x130] sm:$0xff] %v1843
        %1908 = vst [vmem:[%s328 + $0x138] sm:$0xff] %v1844
        %1909 = vst [vmem:[%s328 + $0x140] sm:$0xff] %v1845
        %1910 = vst [vmem:[%s328 + $0x148] sm:$0xff] %v1846
        %1911 = vst [vmem:[%s328 + $0x150] sm:$0xff] %v1847
        %1912 = vst [vmem:[%s328 + $0x158] sm:$0xff] %v1848
        %1913 = vst [vmem:[%s328 + $0x160] sm:$0xff] %v1849
        %1914 = vst [vmem:[%s328 + $0x168] sm:$0xff] %v1850
        %1915 = vst [vmem:[%s328 + $0x170] sm:$0xff] %v1851
        %1916 = vst [vmem:[%s328 + $0x178] sm:$0xff] %v1852
        %1917 = vst [vmem:[%s328 + $0x180] sm:$0xff] %v1853
        %1918 = vst [vmem:[%s328 + $0x188] sm:$0xff] %v1854
        %1919 = vst [vmem:[%s328 + $0x190] sm:$0xff] %v1855
        %1920 = vst [vmem:[%s328 + $0x198] sm:$0xff] %v1856
        %1921 = vst [vmem:[%s328 + $0x1a0] sm:$0xff] %v1857
        %1922 = vst [vmem:[%s328 + $0x1a8] sm:$0xff] %v1858
        %1923 = vst [vmem:[%s328 + $0x1b0] sm:$0xff] %v1859
        %1924 = vst [vmem:[%s328 + $0x1b8] sm:$0xff] %v1860
        %1925 = vst [vmem:[%s328 + $0x1c0] sm:$0xff] %v1861
        %1926 = vst [vmem:[%s328 + $0x1c8] sm:$0xff] %v1862
        %1927 = vst [vmem:[%s328 + $0x1d0] sm:$0xff] %v1863
        %1928 = vst [vmem:[%s328 + $0x1d8] sm:$0xff] %v1864
        %1929 = vst [vmem:[%s328 + $0x1e0] sm:$0xff] %v1865
        %1930 = vst [vmem:[%s328 + $0x1e8] sm:$0xff] %v1866
        %1931 = vst [vmem:[%s328 + $0x1f0] sm:$0xff] %v1867
        %1932 = vst [vmem:[%s328 + $0x1f8] sm:$0xff] %v1868
      $region44: #{mixed_6a_forward.5} parent=35 // pred_fallthru
        _
      %s1933 = smul.u32 32, %s20
      %s1934 = smul.u32 2, %s21
      %p1935 = scmp.lt.s32.totalorder %s1933, 63
      %s1936 = scalar_select %p1935, %s1933, 63
      %p1937 = scmp.lt.s32.totalorder %s1934, 1
      %s1938 = scalar_select %p1937, %s1934, 1
      %s1939 = smul.addr %s1936, 2
      %s1940 = sadd.s32 %s1938, %s1939
      %s1941 = smul.addr %s1940, 8
      %s1942 = scalar_lea.vmem %s4, %s1941
      // Predicated region
      $region45: #{mixed_6a_forward.5} parent=35 // pred_check
        %p1943 = pneg %p162
      $region46: #{mixed_6a_forward.5} parent=35 // pred_check_branch
        %1945 = sbr.rel (%p1943) target = $region48
      $region47: #{mixed_6a_forward.5} parent=35 // pred_region
        %s1946 = smul.u32 32, %s20
        %s1947 = smul.u32 2, %s21
      $region48: #{mixed_6a_forward.5} parent=35 // pred_fallthru
        _
    $region36: #{mixed_6a_forward.5} parent=5 // pred_fallthru
      _
    %p1948 = scmp.le.s32.totalorder 2, %s10
    // Predicated region
    $region49: #{mixed_6a_forward.5} parent=5 // pred_check
      %p1949 = pneg %p1948
    $region50: #{mixed_6a_forward.5} parent=5 // pred_check_branch
      %1951 = sbr.rel (%p1949) target = $region52
    $region51: #{mixed_6a_forward.5} parent=5 // pred_region
      %s1952 = ssub.s32 %s10, 2
      // Predicated region
      $region53: #{mixed_6a_forward.5} parent=51 // pred_check
        %p1953 = pneg %p168
      $region54: #{mixed_6a_forward.5} parent=51 // pred_check_branch
        %1955 = sbr.rel (%p1953) target = $region56
      $region55: #{mixed_6a_forward.5} parent=51 // pred_region
        %s1956 = smul.u32 32, %s23
        %s1957 = smul.u32 2, %s24
        %p1958 = scmp.lt.s32.totalorder %s1956, 63
        %s1959 = scalar_select %p1958, %s1956, 63
        %p1960 = scmp.lt.s32.totalorder %s1957, 1
        %s1961 = scalar_select %p1960, %s1957, 1
        %s1962 = smul.addr %s1959, 2
        %s1963 = sadd.s32 %s1961, %s1962
        %s1964 = smul.addr %s1963, 8
        %s1965 = scalar_lea.vmem %s4, %s1964
      $region56: #{mixed_6a_forward.5} parent=51 // pred_fallthru
        _
    $region52: #{mixed_6a_forward.5} parent=5 // pred_fallthru
      _
  $region6: #{mixed_6a_forward.5} parent=0 // loop_footer
    %s14 = sadd.s32 1, %s10
  $region7: #{mixed_6a_forward.5} parent=0 // loop_footer_branch
    %9 = sbr.rel target = $region3
  $region8: #{mixed_6a_forward.5} parent=0 // loop_exit
    _

// kernel: mixed_6a_forward.6
$region0: #{mixed_6a_forward.6}
  #allocation0 [shape = 'u32[]', space=smem, size = 0x4, offset = 0x4, fixed_abs, tag = 'smem constant byte address 0x4 - core index']
  #allocation1 [shape = 'u32[144,128]{1,0:T(1,128)}', space=vmem, size = 0x12000, scoped, tag = 'internal scratch']
  #allocation2 [shape = 'f32[256,256]{1,0:T(8,128)}', space=vmem, size = 0x40000, scoped, tag = 'scratch operand']
  %s0 = inlined_call_operand.vmem [shape: bf16[512,2304], index: 0, kind: input, shape index: {}]
  %s1 = inlined_call_operand.vmem [shape: bf16[2304,256], index: 1, kind: input, shape index: {}]
  %s2 = inlined_call_operand.vmem [shape: f32[1,256], index: 2, kind: input, shape index: {}]
  %s3 = inlined_call_operand.vmem [shape: f32[1,256], index: 3, kind: input, shape index: {}]
  %s4 = inlined_call_operand.vmem [shape: f32[512,256], index: 4, kind: output, shape index: {}]
  %s5 = sld [smem:[#allocation0]]
  $region83: #{mixed_6a_forward.6} parent=0
    _
  %s7 = ssub.s32 1, %s5
  %s8 = scalar_select 0, %s7, %s5
  $region1: #{mixed_6a_forward.6} parent=0
    #allocation3 [shape = 'u8[393216]{0}', space=vmem, size = 0x60000, scoped, tag = 'input window, operand 0']
    loop: start=0, step=1, limit=14
    $region2: #{mixed_6a_forward.6} parent=1 // loop_pre_header
      _
    $region3: #{mixed_6a_forward.6} parent=1 // loop_header
      %s10 = sphi 0, %s14
      %p11 = scmp.ge.s32.totalorder %s10, 14
      %s17 = sphi 0, %s36
      %s18 = sphi 0, %s32
      %s19 = sphi 0, %s28
      %s20 = sphi 0, %s17
      %s21 = sphi 0, %s18
      %s22 = sphi 0, %s19
      %s23 = sphi 0, %s20
      %s24 = sphi 0, %s21
      %s25 = sphi 0, %s22
      %s41 = sphi 0, %s43
      %s44 = sphi 0, %s41
      %s45 = sphi 0, %s44
      %s61 = sphi 0, %s45
      %s69 = sphi 0, %s71
      %s72 = sphi 0, %s69
      %s73 = sphi 0, %s72
      %s89 = sphi 0, %s73
      %s95 = sphi 0, %s97
      %s98 = sphi 0, %s95
      %s99 = sphi 0, %s98
      %s115 = sphi 0, %s99
      %s121 = sphi 0, %s123
      %s124 = sphi 0, %s121
      %s125 = sphi 0, %s124
      %s141 = sphi 0, %s125
      %s149 = sphi 0, %s151
      %s152 = sphi 0, %s149
      %s153 = sphi 0, %s152
      %s169 = sphi 0, %s153
    $region4: #{mixed_6a_forward.6} parent=1 // loop_header_branch
      %13 = sbr.rel (%p11) target = $region8
    $region5: #{mixed_6a_forward.6} parent=1 // loop_body
      %s15 = ssub.s32 %s10, 1
      %s16 = ssub.s32 %s10, 2
      %s26 = sadd.s32 1, %s19
      %p27 = scmp.ge.s32.totalorder %s26, 6
      %s28 = scalar_select %p27, 0, %s26
      %s29 = sadd.s32 1, %s18
      %s30 = scalar_select %p27, %s29, %s18
      %p31 = scmp.ge.s32.totalorder %s30, 1
      %s32 = scalar_select %p31, 0, %s30
      %s33 = sadd.s32 1, %s17
      %s34 = scalar_select %p31, %s33, %s17
      %p35 = scmp.ge.s32.totalorder %s34, 2
      %s36 = scalar_select %p35, 0, %s34
      %s37 = ssub.s32 %s17, %s36
      %s38 = ssub.s32 %s19, %s28
      %s39 = sor.u32 %s37, %s38
      %p40 = scmp.eq.s32.totalorder %s39, 0
      %s42 = sadd.s32 %s41, 1
      %s43 = scalar_select %p40, %s41, %s42
      %p46 = pneg %p40
      %p47 = scmp.eq.s32.totalorder %s10, 11
      %p48 = por %p46, %p47
      %p49 = scmp.ne.s32.totalorder %s41, %s44
      %p50 = scmp.eq.s32.totalorder %s10, 0
      %p51 = por %p49, %p50
      %p52 = scmp.ne.s32.totalorder %s41, %s44
      %p53 = scmp.eq.s32.totalorder %s15, 11
      %p54 = por %p52, %p53
      %p55 = scmp.ne.s32.totalorder %s44, %s45
      %p56 = scmp.eq.s32.totalorder %s15, 0
      %p57 = por %p55, %p56
      %p58 = scmp.ne.s32.totalorder %s44, %s45
      %p59 = scmp.eq.s32.totalorder %s16, 11
      %p60 = por %p58, %p59
      %p62 = scmp.ne.s32.totalorder %s45, %s61
      %p63 = scmp.eq.s32.totalorder %s16, 0
      %p64 = por %p62, %p63
      %s65 = ssub.s32 %s19, %s28
      %s66 = ssub.s32 %s18, %s32
      %s67 = sor.u32 %s65, %s66
      %p68 = scmp.eq.s32.totalorder %s67, 0
      %s70 = sadd.s32 %s69, 1
      %s71 = scalar_select %p68, %s69, %s70
      %p74 = pneg %p68
      %p75 = scmp.eq.s32.totalorder %s10, 11
      %p76 = por %p74, %p75
      %p77 = scmp.ne.s32.totalorder %s69, %s72
      %p78 = scmp.eq.s32.totalorder %s10, 0
      %p79 = por %p77, %p78
      %p80 = scmp.ne.s32.totalorder %s69, %s72
      %p81 = scmp.eq.s32.totalorder %s15, 11
      %p82 = por %p80, %p81
      %p83 = scmp.ne.s32.totalorder %s72, %s73
      %p84 = scmp.eq.s32.totalorder %s15, 0
      %p85 = por %p83, %p84
      %p86 = scmp.ne.s32.totalorder %s72, %s73
      %p87 = scmp.eq.s32.totalorder %s16, 11
      %p88 = por %p86, %p87
      %p90 = scmp.ne.s32.totalorder %s73, %s89
      %p91 = scmp.eq.s32.totalorder %s16, 0
      %p92 = por %p90, %p91
      %s93 = ssub.s32 %s18, %s32
      %p94 = scmp.eq.s32.totalorder %s93, 0
      %s96 = sadd.s32 %s95, 1
      %s97 = scalar_select %p94, %s95, %s96
      %p100 = pneg %p94
      %p101 = scmp.eq.s32.totalorder %s10, 11
      %p102 = por %p100, %p101
      %p103 = scmp.ne.s32.totalorder %s95, %s98
      %p104 = scmp.eq.s32.totalorder %s10, 0
      %p105 = por %p103, %p104
      %p106 = scmp.ne.s32.totalorder %s95, %s98
      %p107 = scmp.eq.s32.totalorder %s15, 11
      %p108 = por %p106, %p107
      %p109 = scmp.ne.s32.totalorder %s98, %s99
      %p110 = scmp.eq.s32.totalorder %s15, 0
      %p111 = por %p109, %p110
      %p112 = scmp.ne.s32.totalorder %s98, %s99
      %p113 = scmp.eq.s32.totalorder %s16, 11
      %p114 = por %p112, %p113
      %p116 = scmp.ne.s32.totalorder %s99, %s115
      %p117 = scmp.eq.s32.totalorder %s16, 0
      %p118 = por %p116, %p117
      %s119 = ssub.s32 %s18, %s32
      %p120 = scmp.eq.s32.totalorder %s119, 0
      %s122 = sadd.s32 %s121, 1
      %s123 = scalar_select %p120, %s121, %s122
      %p126 = pneg %p120
      %p127 = scmp.eq.s32.totalorder %s10, 11
      %p128 = por %p126, %p127
      %p129 = scmp.ne.s32.totalorder %s121, %s124
      %p130 = scmp.eq.s32.totalorder %s10, 0
      %p131 = por %p129, %p130
      %p132 = scmp.ne.s32.totalorder %s121, %s124
      %p133 = scmp.eq.s32.totalorder %s15, 11
      %p134 = por %p132, %p133
      %p135 = scmp.ne.s32.totalorder %s124, %s125
      %p136 = scmp.eq.s32.totalorder %s15, 0
      %p137 = por %p135, %p136
      %p138 = scmp.ne.s32.totalorder %s124, %s125
      %p139 = scmp.eq.s32.totalorder %s16, 11
      %p140 = por %p138, %p139
      %p142 = scmp.ne.s32.totalorder %s125, %s141
      %p143 = scmp.eq.s32.totalorder %s16, 0
      %p144 = por %p142, %p143
      %s145 = ssub.s32 %s17, %s36
      %s146 = ssub.s32 %s18, %s32
      %s147 = sor.u32 %s145, %s146
      %p148 = scmp.eq.s32.totalorder %s147, 0
      %s150 = sadd.s32 %s149, 1
      %s151 = scalar_select %p148, %s149, %s150
      %p154 = pneg %p148
      %p155 = scmp.eq.s32.totalorder %s10, 11
      %p156 = por %p154, %p155
      %p157 = scmp.ne.s32.totalorder %s149, %s152
      %p158 = scmp.eq.s32.totalorder %s10, 0
      %p159 = por %p157, %p158
      %p160 = scmp.ne.s32.totalorder %s149, %s152
      %p161 = scmp.eq.s32.totalorder %s15, 11
      %p162 = por %p160, %p161
      %p163 = scmp.ne.s32.totalorder %s152, %s153
      %p164 = scmp.eq.s32.totalorder %s15, 0
      %p165 = por %p163, %p164
      %p166 = scmp.ne.s32.totalorder %s152, %s153
      %p167 = scmp.eq.s32.totalorder %s16, 11
      %p168 = por %p166, %p167
      %p170 = scmp.ne.s32.totalorder %s153, %s169
      %p171 = scmp.eq.s32.totalorder %s16, 0
      %p172 = por %p170, %p171
      %p173 = scmp.le.s32.totalorder 1, %s10
      %p174 = scmp.lt.s32.totalorder %s10, 13
      %p175 = pnand %p173, %p174
      %p176 = pneg %p175
      // Predicated region
      $region9: #{mixed_6a_forward.6} parent=5 // pred_check
        _
      $region10: #{mixed_6a_forward.6} parent=5 // pred_check_branch
        %178 = sbr.rel (%p175) target = $region12
      $region11: #{mixed_6a_forward.6} parent=5 // pred_region
        %s179 = ssub.s32 %s10, 1
        // Predicated region
        $region13: #{mixed_6a_forward.6} parent=11 // pred_check
          %p180 = pneg %p111
        $region14: #{mixed_6a_forward.6} parent=11 // pred_check_branch
          %182 = sbr.rel (%p180) target = $region16
        $region15: #{mixed_6a_forward.6} parent=11 // pred_region
          %s183 = smul.u32 2, %s21
          %p184 = scmp.lt.s32.totalorder %s183, 1
          %s185 = scalar_select %p184, %s183, 1
          %s186 = scalar_lea.vmem %s2, %s185
          %s187 = smul.u32 2, %s21
        $region16: #{mixed_6a_forward.6} parent=11 // pred_fallthru
          _
        // Predicated region
        $region17: #{mixed_6a_forward.6} parent=11 // pred_check
          %p188 = pneg %p137
        $region18: #{mixed_6a_forward.6} parent=11 // pred_check_branch
          %190 = sbr.rel (%p188) target = $region20
        $region19: #{mixed_6a_forward.6} parent=11 // pred_region
          %s191 = smul.u32 2, %s21
          %p192 = scmp.lt.s32.totalorder %s191, 1
          %s193 = scalar_select %p192, %s191, 1
          %s194 = scalar_lea.vmem %s3, %s193
          %s195 = smul.u32 2, %s21
        $region20: #{mixed_6a_forward.6} parent=11 // pred_fallthru
          _
      $region12: #{mixed_6a_forward.6} parent=5 // pred_fallthru
        _
      %p196 = scmp.lt.s32.totalorder %s10, 12
      // Predicated region
      $region21: #{mixed_6a_forward.6} parent=5 // pred_check
        %p197 = pneg %p196
      $region22: #{mixed_6a_forward.6} parent=5 // pred_check_branch
        %199 = sbr.rel (%p197) target = $region24
      $region23: #{mixed_6a_forward.6} parent=5 // pred_region
        // Predicated region
        $region25: #{mixed_6a_forward.6} parent=23 // pred_check
          %p200 = pneg %p51
        $region26: #{mixed_6a_forward.6} parent=23 // pred_check_branch
          %202 = sbr.rel (%p200) target = $region28
        $region27: #{mixed_6a_forward.6} parent=23 // pred_region
          %s203 = sand.u32 %s41, 1
          %s204 = sand.u32 %s41, 1
          %s205 = smul.addr %s204, 384
          %s206 = scalar_lea.vmem [#allocation3], %s205
          %s207 = smul.u32 32, %s17
          %s208 = smul.u32 3, %s19
          %s209 = smul.addr %s207, 18
          %s210 = sadd.s32 %s208, %s209
          %s211 = smul.addr %s210, 4
          %s212 = scalar_lea.vmem %s0, %s211
          // Predicated region
          $region29: #{mixed_6a_forward.6} parent=27 // pred_check
            _
          $region30: #{mixed_6a_forward.6} parent=27 // pred_check_branch
            %214 = sbr.rel (0) target = $region32
          $region31: #{mixed_6a_forward.6} parent=27 // pred_region
            // Predicated region
            $region33: #{mixed_6a_forward.6} parent=31 // pred_check
              _
            $region34: #{mixed_6a_forward.6} parent=31 // pred_check_branch
              %216 = sbr.rel (0) target = $region36
            $region35: #{mixed_6a_forward.6} parent=31 // pred_region
              %s217 = scalar_lea.vmem %s212, 8
              %s218 = scalar_lea.vmem %s206, 8 [#allocation3]
              loop: start=0, step=1, limit=1
              $region37: #{mixed_6a_forward.6} parent=35 // loop_pre_header
                _
              $region38: #{mixed_6a_forward.6} parent=35 // loop_header
                %s220 = sphi 0, %s224
                %p221 = scmp.ge.s32.totalorder %s220, 1
                %s225 = sphi %s212, %s212
                %s226 = sphi %s206, %s206
              $region39: #{mixed_6a_forward.6} parent=35 // loop_header_branch
                %223 = sbr.rel (%p221) target = $region43
              $region40: #{mixed_6a_forward.6} parent=35 // loop_body
                %v227 = vld [vmem:[%s225] sm:$0xff]
                %228 = vst [vmem:[%s226] sm:$0xff] %v227
                %v229 = vld [vmem:[%s225 + $0x48] sm:$0xff]
                %230 = vst [vmem:[%s226 + $0xc] sm:$0xff] %v229
                %v231 = vld [vmem:[%s225 + $0x90] sm:$0xff]
                %232 = vst [vmem:[%s226 + $0x18] sm:$0xff] %v231
                %v233 = vld [vmem:[%s225 + $0xd8] sm:$0xff]
                %234 = vst [vmem:[%s226 + $0x24] sm:$0xff] %v233
                %v235 = vld [vmem:[%s225 + $0x120] sm:$0xff]
                %236 = vst [vmem:[%s226 + $0x30] sm:$0xff] %v235
                %v237 = vld [vmem:[%s225 + $0x168] sm:$0xff]
                %238 = vst [vmem:[%s226 + $0x3c] sm:$0xff] %v237
                %v239 = vld [vmem:[%s225 + $0x1b0] sm:$0xff]
                %240 = vst [vmem:[%s226 + $0x48] sm:$0xff] %v239
                %v241 = vld [vmem:[%s225 + $0x1f8] sm:$0xff]
                %242 = vst [vmem:[%s226 + $0x54] sm:$0xff] %v241
                %v243 = vld [vmem:[%s225 + $0x240] sm:$0xff]
                %244 = vst [vmem:[%s226 + $0x60] sm:$0xff] %v243
                %v245 = vld [vmem:[%s225 + $0x288] sm:$0xff]
                %246 = vst [vmem:[%s226 + $0x6c] sm:$0xff] %v245
                %v247 = vld [vmem:[%s225 + $0x2d0] sm:$0xff]
                %248 = vst [vmem:[%s226 + $0x78] sm:$0xff] %v247
                %v249 = vld [vmem:[%s225 + $0x318] sm:$0xff]
                %250 = vst [vmem:[%s226 + $0x84] sm:$0xff] %v249
                %v251 = vld [vmem:[%s225 + $0x360] sm:$0xff]
                %252 = vst [vmem:[%s226 + $0x90] sm:$0xff] %v251
                %v253 = vld [vmem:[%s225 + $0x3a8] sm:$0xff]
                %254 = vst [vmem:[%s226 + $0x9c] sm:$0xff] %v253
                %v255 = vld [vmem:[%s225 + $0x3f0] sm:$0xff]
                %256 = vst [vmem:[%s226 + $0xa8] sm:$0xff] %v255
                %v257 = vld [vmem:[%s225 + $0x438] sm:$0xff]
                %258 = vst [vmem:[%s226 + $0xb4] sm:$0xff] %v257
                %v259 = vld [vmem:[%s225 + $0x480] sm:$0xff]
                %260 = vst [vmem:[%s226 + $0xc0] sm:$0xff] %v259
                %v261 = vld [vmem:[%s225 + $0x4c8] sm:$0xff]
                %262 = vst [vmem:[%s226 + $0xcc] sm:$0xff] %v261
                %v263 = vld [vmem:[%s225 + $0x510] sm:$0xff]
                %264 = vst [vmem:[%s226 + $0xd8] sm:$0xff] %v263
                %v265 = vld [vmem:[%s225 + $0x558] sm:$0xff]
                %266 = vst [vmem:[%s226 + $0xe4] sm:$0xff] %v265
                %v267 = vld [vmem:[%s225 + $0x5a0] sm:$0xff]
                %268 = vst [vmem:[%s226 + $0xf0] sm:$0xff] %v267
                %v269 = vld [vmem:[%s225 + $0x5e8] sm:$0xff]
                %270 = vst [vmem:[%s226 + $0xfc] sm:$0xff] %v269
                %v271 = vld [vmem:[%s225 + $0x630] sm:$0xff]
                %272 = vst [vmem:[%s226 + $0x108] sm:$0xff] %v271
                %v273 = vld [vmem:[%s225 + $0x678] sm:$0xff]
                %274 = vst [vmem:[%s226 + $0x114] sm:$0xff] %v273
                %v275 = vld [vmem:[%s225 + $0x6c0] sm:$0xff]
                %276 = vst [vmem:[%s226 + $0x120] sm:$0xff] %v275
                %v277 = vld [vmem:[%s225 + $0x708] sm:$0xff]
                %278 = vst [vmem:[%s226 + $0x12c] sm:$0xff] %v277
                %v279 = vld [vmem:[%s225 + $0x750] sm:$0xff]
                %280 = vst [vmem:[%s226 + $0x138] sm:$0xff] %v279
                %v281 = vld [vmem:[%s225 + $0x798] sm:$0xff]
                %282 = vst [vmem:[%s226 + $0x144] sm:$0xff] %v281
                %v283 = vld [vmem:[%s225 + $0x7e0] sm:$0xff]
                %284 = vst [vmem:[%s226 + $0x150] sm:$0xff] %v283
                %v285 = vld [vmem:[%s225 + $0x828] sm:$0xff]
                %286 = vst [vmem:[%s226 + $0x15c] sm:$0xff] %v285
                %v287 = vld [vmem:[%s225 + $0x870] sm:$0xff]
                %288 = vst [vmem:[%s226 + $0x168] sm:$0xff] %v287
                %v289 = vld [vmem:[%s225 + $0x8b8] sm:$0xff]
                %290 = vst [vmem:[%s226 + $0x174] sm:$0xff] %v289
              $region41: #{mixed_6a_forward.6} parent=35 // loop_footer
                %s224 = sadd.s32 1, %s220
              $region42: #{mixed_6a_forward.6} parent=35 // loop_footer_branch
                %219 = sbr.rel target = $region38
              $region43: #{mixed_6a_forward.6} parent=35 // loop_exit
                _
              loop: start=0, step=1, limit=1
              $region44: #{mixed_6a_forward.6} parent=35 // loop_pre_header
                _
              $region45: #{mixed_6a_forward.6} parent=35 // loop_header
                %s293 = sphi 0, %s297
                %p294 = scmp.ge.s32.totalorder %s293, 1
                %s298 = sphi %s217, %s217
                %s299 = sphi %s218, %s218
              $region46: #{mixed_6a_forward.6} parent=35 // loop_header_branch
                %296 = sbr.rel (%p294) target = $region50
              $region47: #{mixed_6a_forward.6} parent=35 // loop_body
                %v300 = vld [vmem:[%s298] sm:$0xf]
                %301 = vst [vmem:[%s299] sm:$0xf] %v300
                %v302 = vld [vmem:[%s298 + $0x48] sm:$0xf]
                %303 = vst [vmem:[%s299 + $0xc] sm:$0xf] %v302
                %v304 = vld [vmem:[%s298 + $0x90] sm:$0xf]
                %305 = vst [vmem:[%s299 + $0x18] sm:$0xf] %v304
                %v306 = vld [vmem:[%s298 + $0xd8] sm:$0xf]
                %307 = vst [vmem:[%s299 + $0x24] sm:$0xf] %v306
                %v308 = vld [vmem:[%s298 + $0x120] sm:$0xf]
                %309 = vst [vmem:[%s299 + $0x30] sm:$0xf] %v308
                %v310 = vld [vmem:[%s298 + $0x168] sm:$0xf]
                %311 = vst [vmem:[%s299 + $0x3c] sm:$0xf] %v310
                %v312 = vld [vmem:[%s298 + $0x1b0] sm:$0xf]
                %313 = vst [vmem:[%s299 + $0x48] sm:$0xf] %v312
                %v314 = vld [vmem:[%s298 + $0x1f8] sm:$0xf]
                %315 = vst [vmem:[%s299 + $0x54] sm:$0xf] %v314
                %v316 = vld [vmem:[%s298 + $0x240] sm:$0xf]
                %317 = vst [vmem:[%s299 + $0x60] sm:$0xf] %v316
                %v318 = vld [vmem:[%s298 + $0x288] sm:$0xf]
                %319 = vst [vmem:[%s299 + $0x6c] sm:$0xf] %v318
                %v320 = vld [vmem:[%s298 + $0x2d0] sm:$0xf]
                %321 = vst [vmem:[%s299 + $0x78] sm:$0xf] %v320
                %v322 = vld [vmem:[%s298 + $0x318] sm:$0xf]
                %323 = vst [vmem:[%s299 + $0x84] sm:$0xf] %v322
                %v324 = vld [vmem:[%s298 + $0x360] sm:$0xf]
                %325 = vst [vmem:[%s299 + $0x90] sm:$0xf] %v324
                %v326 = vld [vmem:[%s298 + $0x3a8] sm:$0xf]
                %327 = vst [vmem:[%s299 + $0x9c] sm:$0xf] %v326
                %v328 = vld [vmem:[%s298 + $0x3f0] sm:$0xf]
                %329 = vst [vmem:[%s299 + $0xa8] sm:$0xf] %v328
                %v330 = vld [vmem:[%s298 + $0x438] sm:$0xf]
                %331 = vst [vmem:[%s299 + $0xb4] sm:$0xf] %v330
                %v332 = vld [vmem:[%s298 + $0x480] sm:$0xf]
                %333 = vst [vmem:[%s299 + $0xc0] sm:$0xf] %v332
                %v334 = vld [vmem:[%s298 + $0x4c8] sm:$0xf]
                %335 = vst [vmem:[%s299 + $0xcc] sm:$0xf] %v334
                %v336 = vld [vmem:[%s298 + $0x510] sm:$0xf]
                %337 = vst [vmem:[%s299 + $0xd8] sm:$0xf] %v336
                %v338 = vld [vmem:[%s298 + $0x558] sm:$0xf]
                %339 = vst [vmem:[%s299 + $0xe4] sm:$0xf] %v338
                %v340 = vld [vmem:[%s298 + $0x5a0] sm:$0xf]
                %341 = vst [vmem:[%s299 + $0xf0] sm:$0xf] %v340
                %v342 = vld [vmem:[%s298 + $0x5e8] sm:$0xf]
                %343 = vst [vmem:[%s299 + $0xfc] sm:$0xf] %v342
                %v344 = vld [vmem:[%s298 + $0x630] sm:$0xf]
                %345 = vst [vmem:[%s299 + $0x108] sm:$0xf] %v344
                %v346 = vld [vmem:[%s298 + $0x678] sm:$0xf]
                %347 = vst [vmem:[%s299 + $0x114] sm:$0xf] %v346
                %v348 = vld [vmem:[%s298 + $0x6c0] sm:$0xf]
                %349 = vst [vmem:[%s299 + $0x120] sm:$0xf] %v348
                %v350 = vld [vmem:[%s298 + $0x708] sm:$0xf]
                %351 = vst [vmem:[%s299 + $0x12c] sm:$0xf] %v350
                %v352 = vld [vmem:[%s298 + $0x750] sm:$0xf]
                %353 = vst [vmem:[%s299 + $0x138] sm:$0xf] %v352
                %v354 = vld [vmem:[%s298 + $0x798] sm:$0xf]
                %355 = vst [vmem:[%s299 + $0x144] sm:$0xf] %v354
                %v356 = vld [vmem:[%s298 + $0x7e0] sm:$0xf]
                %357 = vst [vmem:[%s299 + $0x150] sm:$0xf] %v356
                %v358 = vld [vmem:[%s298 + $0x828] sm:$0xf]
                %359 = vst [vmem:[%s299 + $0x15c] sm:$0xf] %v358
                %v360 = vld [vmem:[%s298 + $0x870] sm:$0xf]
                %361 = vst [vmem:[%s299 + $0x168] sm:$0xf] %v360
                %v362 = vld [vmem:[%s298 + $0x8b8] sm:$0xf]
                %363 = vst [vmem:[%s299 + $0x174] sm:$0xf] %v362
              $region48: #{mixed_6a_forward.6} parent=35 // loop_footer
                %s297 = sadd.s32 1, %s293
              $region49: #{mixed_6a_forward.6} parent=35 // loop_footer_branch
                %292 = sbr.rel target = $region45
              $region50: #{mixed_6a_forward.6} parent=35 // loop_exit
                _
            $region36: #{mixed_6a_forward.6} parent=31 // pred_fallthru
              _
          $region32: #{mixed_6a_forward.6} parent=27 // pred_fallthru
            _
          %364 = vnop
        $region28: #{mixed_6a_forward.6} parent=23 // pred_fallthru
          _
        // Predicated region
        $region51: #{mixed_6a_forward.6} parent=23 // pred_check
          %p365 = pneg %p79
        $region52: #{mixed_6a_forward.6} parent=23 // pred_check_branch
          %367 = sbr.rel (%p365) target = $region54
        $region53: #{mixed_6a_forward.6} parent=23 // pred_region
          %s368 = smul.u32 48, %s19
          %s369 = smul.u32 2, %s18
          %p370 = scmp.lt.s32.totalorder %s368, 287
          %s371 = scalar_select %p370, %s368, 287
          %p372 = scmp.lt.s32.totalorder %s369, 1
          %s373 = scalar_select %p372, %s369, 1
          %s374 = smul.addr %s371, 2
          %s375 = sadd.s32 %s373, %s374
          %s376 = smul.addr %s375, 4
          %s377 = scalar_lea.vmem %s1, %s376
          %s378 = smul.u32 48, %s19
          %s379 = smul.u32 2, %s18
        $region54: #{mixed_6a_forward.6} parent=23 // pred_fallthru
          _
      $region24: #{mixed_6a_forward.6} parent=5 // pred_fallthru
        _
      %p380 = scmp.le.s32.totalorder 1, %s10
      %p381 = scmp.lt.s32.totalorder %s10, 13
      %p382 = pnand %p380, %p381
      %p383 = pneg %p382
      // Predicated region
      $region55: #{mixed_6a_forward.6} parent=5 // pred_check
        _
      $region56: #{mixed_6a_forward.6} parent=5 // pred_check_branch
        %385 = sbr.rel (%p382) target = $region58
      $region57: #{mixed_6a_forward.6} parent=5 // pred_region
        %s386 = ssub.s32 %s10, 1
        %s387 = sand.u32 %s44, 1
        %s388 = sand.u32 %s44, 1
        %s389 = smul.addr %s388, 384
        %s390 = scalar_lea.vmem [#allocation3], %s389
        // Predicated region
        $region59: #{mixed_6a_forward.6} parent=57 // pred_check
          %p391 = pneg %p57
        $region60: #{mixed_6a_forward.6} parent=57 // pred_check_branch
          %393 = sbr.rel (%p391) target = $region62
        $region61: #{mixed_6a_forward.6} parent=57 // pred_region
          _
        $region62: #{mixed_6a_forward.6} parent=57 // pred_fallthru
          _
        %s394 = sand.u32 %s44, 1
        %s395 = sand.u32 %s44, 1
        %s396 = smul.addr %s395, 384
        %s397 = scalar_lea.vmem [#allocation3], %s396
        %p398 = pneg %p57
        %p399 = pneg %p54
        %s400 = smul.u32 48, %s22
        %s401 = smul.u32 2, %s21
        %p402 = scmp.lt.s32.totalorder %s400, 287
        %s403 = scalar_select %p402, %s400, 287
        %p404 = scmp.lt.s32.totalorder %s401, 1
        %s405 = scalar_select %p404, %s401, 1
        %s406 = smul.addr %s403, 2
        %s407 = sadd.s32 %s405, %s406
        %s408 = smul.addr %s407, 4
        %s409 = scalar_lea.vmem %s1, %s408
        %p410 = pneg %p85
        %p411 = pneg %p82
        %s412 = smul.u32 2, %s21
        %p413 = scmp.lt.s32.totalorder %s412, 1
        %s414 = scalar_select %p413, %s412, 1
        %s415 = scalar_lea.vmem %s2, %s414
        %p416 = pneg %p111
        %p417 = pneg %p108
        %s418 = smul.u32 2, %s21
        %p419 = scmp.lt.s32.totalorder %s418, 1
        %s420 = scalar_select %p419, %s418, 1
        %s421 = scalar_lea.vmem %s3, %s420
        %p422 = pneg %p137
        %p423 = pneg %p134
        %p424 = pneg %p165
        %p425 = pneg %p162
        %s426 = smul.u32 32, %s20
        %s427 = smul.u32 2, %s21
        %p428 = scmp.lt.s32.totalorder %s426, 63
        %s429 = scalar_select %p428, %s426, 63
        %p430 = scmp.lt.s32.totalorder %s427, 1
        %s431 = scalar_select %p430, %s427, 1
        %s432 = smul.addr %s429, 2
        %s433 = sadd.s32 %s431, %s432
        %s434 = smul.addr %s433, 8
        %s435 = scalar_lea.vmem %s4, %s434
        %s436 = smul.u32 32, %s20
        %s437 = smul.u32 3, %s22
        %s438 = smul.u32 48, %s22
        %s439 = smul.u32 2, %s21
        %p440 = scmp.lt.s32.totalorder %s438, 287
        %s441 = scalar_select %p440, %s438, 287
        %p442 = scmp.lt.s32.totalorder %s439, 1
        %s443 = scalar_select %p442, %s439, 1
        %s444 = smul.addr %s441, 2
        %s445 = sadd.s32 %s443, %s444
        %s446 = smul.addr %s445, 4
        %s447 = scalar_lea.vmem %s1, %s446
        %s448 = smul.u32 48, %s22
        %s449 = smul.u32 2, %s21
        %s450 = smul.u32 2, %s21
        %p451 = scmp.lt.s32.totalorder %s450, 1
        %s452 = scalar_select %p451, %s450, 1
        %s453 = scalar_lea.vmem %s2, %s452
        %s454 = smul.u32 2, %s21
        %s455 = smul.u32 2, %s21
        %p456 = scmp.lt.s32.totalorder %s455, 1
        %s457 = scalar_select %p456, %s455, 1
        %s458 = scalar_lea.vmem %s3, %s457
        %s459 = smul.u32 2, %s21
        %s460 = smul.u32 32, %s20
        %s461 = smul.u32 2, %s21
        %p462 = scmp.lt.s32.totalorder %s460, 63
        %s463 = scalar_select %p462, %s460, 63
        %p464 = scmp.lt.s32.totalorder %s461, 1
        %s465 = scalar_select %p464, %s461, 1
        %s466 = smul.addr %s463, 2
        %s467 = sadd.s32 %s465, %s466
        %s468 = smul.addr %s467, 8
        %s469 = scalar_lea.vmem %s4, %s468
        %s470 = smul.u32 32, %s20
        %s471 = smul.u32 2, %s21
        %p473 = scmp.eq.s32.totalorder %s22, 0
        // Predicated region
        $region63: #{mixed_6a_forward.6} parent=57 // pred_check
          %p474 = pneg %p473
        $region64: #{mixed_6a_forward.6} parent=57 // pred_check_branch
          %476 = sbr.rel (%p474) target = $region66
        $region65: #{mixed_6a_forward.6} parent=57 // pred_region
          %477 = vst [vmem:[#allocation2] sm:$0xff] 0.0
          %478 = vst [vmem:[#allocation2 + $0x8] sm:$0xff] 0.0
          %479 = vst [vmem:[#allocation2 + $0x10] sm:$0xff] 0.0
          %480 = vst [vmem:[#allocation2 + $0x18] sm:$0xff] 0.0
          %481 = vst [vmem:[#allocation2 + $0x20] sm:$0xff] 0.0
          %482 = vst [vmem:[#allocation2 + $0x28] sm:$0xff] 0.0
          %483 = vst [vmem:[#allocation2 + $0x30] sm:$0xff] 0.0
          %484 = vst [vmem:[#allocation2 + $0x38] sm:$0xff] 0.0
          %485 = vst [vmem:[#allocation2 + $0x40] sm:$0xff] 0.0
          %486 = vst [vmem:[#allocation2 + $0x48] sm:$0xff] 0.0
          %487 = vst [vmem:[#allocation2 + $0x50] sm:$0xff] 0.0
          %488 = vst [vmem:[#allocation2 + $0x58] sm:$0xff] 0.0
          %489 = vst [vmem:[#allocation2 + $0x60] sm:$0xff] 0.0
          %490 = vst [vmem:[#allocation2 + $0x68] sm:$0xff] 0.0
          %491 = vst [vmem:[#allocation2 + $0x70] sm:$0xff] 0.0
          %492 = vst [vmem:[#allocation2 + $0x78] sm:$0xff] 0.0
          %493 = vst [vmem:[#allocation2 + $0x80] sm:$0xff] 0.0
          %494 = vst [vmem:[#allocation2 + $0x88] sm:$0xff] 0.0
          %495 = vst [vmem:[#allocation2 + $0x90] sm:$0xff] 0.0
          %496 = vst [vmem:[#allocation2 + $0x98] sm:$0xff] 0.0
          %497 = vst [vmem:[#allocation2 + $0xa0] sm:$0xff] 0.0
          %498 = vst [vmem:[#allocation2 + $0xa8] sm:$0xff] 0.0
          %499 = vst [vmem:[#allocation2 + $0xb0] sm:$0xff] 0.0
          %500 = vst [vmem:[#allocation2 + $0xb8] sm:$0xff] 0.0
          %501 = vst [vmem:[#allocation2 + $0xc0] sm:$0xff] 0.0
          %502 = vst [vmem:[#allocation2 + $0xc8] sm:$0xff] 0.0
          %503 = vst [vmem:[#allocation2 + $0xd0] sm:$0xff] 0.0
          %504 = vst [vmem:[#allocation2 + $0xd8] sm:$0xff] 0.0
          %505 = vst [vmem:[#allocation2 + $0xe0] sm:$0xff] 0.0
          %506 = vst [vmem:[#allocation2 + $0xe8] sm:$0xff] 0.0
          %507 = vst [vmem:[#allocation2 + $0xf0] sm:$0xff] 0.0
          %508 = vst [vmem:[#allocation2 + $0xf8] sm:$0xff] 0.0
          %509 = vst [vmem:[#allocation2 + $0x100] sm:$0xff] 0.0
          %510 = vst [vmem:[#allocation2 + $0x108] sm:$0xff] 0.0
          %511 = vst [vmem:[#allocation2 + $0x110] sm:$0xff] 0.0
          %512 = vst [vmem:[#allocation2 + $0x118] sm:$0xff] 0.0
          %513 = vst [vmem:[#allocation2 + $0x120] sm:$0xff] 0.0
          %514 = vst [vmem:[#allocation2 + $0x128] sm:$0xff] 0.0
          %515 = vst [vmem:[#allocation2 + $0x130] sm:$0xff] 0.0
          %516 = vst [vmem:[#allocation2 + $0x138] sm:$0xff] 0.0
          %517 = vst [vmem:[#allocation2 + $0x140] sm:$0xff] 0.0
          %518 = vst [vmem:[#allocation2 + $0x148] sm:$0xff] 0.0
          %519 = vst [vmem:[#allocation2 + $0x150] sm:$0xff] 0.0
          %520 = vst [vmem:[#allocation2 + $0x158] sm:$0xff] 0.0
          %521 = vst [vmem:[#allocation2 + $0x160] sm:$0xff] 0.0
          %522 = vst [vmem:[#allocation2 + $0x168] sm:$0xff] 0.0
          %523 = vst [vmem:[#allocation2 + $0x170] sm:$0xff] 0.0
          %524 = vst [vmem:[#allocation2 + $0x178] sm:$0xff] 0.0
          %525 = vst [vmem:[#allocation2 + $0x180] sm:$0xff] 0.0
          %526 = vst [vmem:[#allocation2 + $0x188] sm:$0xff] 0.0
          %527 = vst [vmem:[#allocation2 + $0x190] sm:$0xff] 0.0
          %528 = vst [vmem:[#allocation2 + $0x198] sm:$0xff] 0.0
          %529 = vst [vmem:[#allocation2 + $0x1a0] sm:$0xff] 0.0
          %530 = vst [vmem:[#allocation2 + $0x1a8] sm:$0xff] 0.0
          %531 = vst [vmem:[#allocation2 + $0x1b0] sm:$0xff] 0.0
          %532 = vst [vmem:[#allocation2 + $0x1b8] sm:$0xff] 0.0
          %533 = vst [vmem:[#allocation2 + $0x1c0] sm:$0xff] 0.0
          %534 = vst [vmem:[#allocation2 + $0x1c8] sm:$0xff] 0.0
          %535 = vst [vmem:[#allocation2 + $0x1d0] sm:$0xff] 0.0
          %536 = vst [vmem:[#allocation2 + $0x1d8] sm:$0xff] 0.0
          %537 = vst [vmem:[#allocation2 + $0x1e0] sm:$0xff] 0.0
          %538 = vst [vmem:[#allocation2 + $0x1e8] sm:$0xff] 0.0
          %539 = vst [vmem:[#allocation2 + $0x1f0] sm:$0xff] 0.0
          %540 = vst [vmem:[#allocation2 + $0x1f8] sm:$0xff] 0.0
        $region66: #{mixed_6a_forward.6} parent=57 // pred_fallthru
          _
        %v541 = vld [vmem:[#allocation2] sm:$0xff]
        %v542 = vld [vmem:[#allocation2 + $0x8] sm:$0xff]
        %v543 = vld [vmem:[#allocation2 + $0x10] sm:$0xff]
        %v544 = vld [vmem:[#allocation2 + $0x18] sm:$0xff]
        %v545 = vld [vmem:[#allocation2 + $0x20] sm:$0xff]
        %v546 = vld [vmem:[#allocation2 + $0x28] sm:$0xff]
        %v547 = vld [vmem:[#allocation2 + $0x30] sm:$0xff]
        %v548 = vld [vmem:[#allocation2 + $0x38] sm:$0xff]
        %v549 = vld [vmem:[#allocation2 + $0x40] sm:$0xff]
        %v550 = vld [vmem:[#allocation2 + $0x48] sm:$0xff]
        %v551 = vld [vmem:[#allocation2 + $0x50] sm:$0xff]
        %v552 = vld [vmem:[#allocation2 + $0x58] sm:$0xff]
        %v553 = vld [vmem:[#allocation2 + $0x60] sm:$0xff]
        %v554 = vld [vmem:[#allocation2 + $0x68] sm:$0xff]
        %v555 = vld [vmem:[#allocation2 + $0x70] sm:$0xff]
        %v556 = vld [vmem:[#allocation2 + $0x78] sm:$0xff]
        %v557 = vld [vmem:[#allocation2 + $0x80] sm:$0xff]
        %v558 = vld [vmem:[#allocation2 + $0x88] sm:$0xff]
        %v559 = vld [vmem:[#allocation2 + $0x90] sm:$0xff]
        %v560 = vld [vmem:[#allocation2 + $0x98] sm:$0xff]
        %v561 = vld [vmem:[#allocation2 + $0xa0] sm:$0xff]
        %v562 = vld [vmem:[#allocation2 + $0xa8] sm:$0xff]
        %v563 = vld [vmem:[#allocation2 + $0xb0] sm:$0xff]
        %v564 = vld [vmem:[#allocation2 + $0xb8] sm:$0xff]
        %v565 = vld [vmem:[#allocation2 + $0xc0] sm:$0xff]
        %v566 = vld [vmem:[#allocation2 + $0xc8] sm:$0xff]
        %v567 = vld [vmem:[#allocation2 + $0xd0] sm:$0xff]
        %v568 = vld [vmem:[#allocation2 + $0xd8] sm:$0xff]
        %v569 = vld [vmem:[#allocation2 + $0xe0] sm:$0xff]
        %v570 = vld [vmem:[#allocation2 + $0xe8] sm:$0xff]
        %v571 = vld [vmem:[#allocation2 + $0xf0] sm:$0xff]
        %v572 = vld [vmem:[#allocation2 + $0xf8] sm:$0xff]
        %v573 = vld [vmem:[#allocation2 + $0x100] sm:$0xff]
        %v574 = vld [vmem:[#allocation2 + $0x108] sm:$0xff]
        %v575 = vld [vmem:[#allocation2 + $0x110] sm:$0xff]
        %v576 = vld [vmem:[#allocation2 + $0x118] sm:$0xff]
        %v577 = vld [vmem:[#allocation2 + $0x120] sm:$0xff]
        %v578 = vld [vmem:[#allocation2 + $0x128] sm:$0xff]
        %v579 = vld [vmem:[#allocation2 + $0x130] sm:$0xff]
        %v580 = vld [vmem:[#allocation2 + $0x138] sm:$0xff]
        %v581 = vld [vmem:[#allocation2 + $0x140] sm:$0xff]
        %v582 = vld [vmem:[#allocation2 + $0x148] sm:$0xff]
        %v583 = vld [vmem:[#allocation2 + $0x150] sm:$0xff]
        %v584 = vld [vmem:[#allocation2 + $0x158] sm:$0xff]
        %v585 = vld [vmem:[#allocation2 + $0x160] sm:$0xff]
        %v586 = vld [vmem:[#allocation2 + $0x168] sm:$0xff]
        %v587 = vld [vmem:[#allocation2 + $0x170] sm:$0xff]
        %v588 = vld [vmem:[#allocation2 + $0x178] sm:$0xff]
        %v589 = vld [vmem:[#allocation2 + $0x180] sm:$0xff]
        %v590 = vld [vmem:[#allocation2 + $0x188] sm:$0xff]
        %v591 = vld [vmem:[#allocation2 + $0x190] sm:$0xff]
        %v592 = vld [vmem:[#allocation2 + $0x198] sm:$0xff]
        %v593 = vld [vmem:[#allocation2 + $0x1a0] sm:$0xff]
        %v594 = vld [vmem:[#allocation2 + $0x1a8] sm:$0xff]
        %v595 = vld [vmem:[#allocation2 + $0x1b0] sm:$0xff]
        %v596 = vld [vmem:[#allocation2 + $0x1b8] sm:$0xff]
        %v597 = vld [vmem:[#allocation2 + $0x1c0] sm:$0xff]
        %v598 = vld [vmem:[#allocation2 + $0x1c8] sm:$0xff]
        %v599 = vld [vmem:[#allocation2 + $0x1d0] sm:$0xff]
        %v600 = vld [vmem:[#allocation2 + $0x1d8] sm:$0xff]
        %v601 = vld [vmem:[#allocation2 + $0x1e0] sm:$0xff]
        %v602 = vld [vmem:[#allocation2 + $0x1e8] sm:$0xff]
        %v603 = vld [vmem:[#allocation2 + $0x1f0] sm:$0xff]
        %v604 = vld [vmem:[#allocation2 + $0x1f8] sm:$0xff]
        %v605 = vld [vmem:[%s390] sm:$0xff]
        %v606 = vld [vmem:[%s390 + $0x8] sm:$0xf]
        %v607 = vld [vmem:[%s390 + $0xc] sm:$0xff]
        %v608 = vld [vmem:[%s390 + $0x14] sm:$0xf]
        %v609 = vld [vmem:[%s390 + $0x18] sm:$0xff]
        %v610 = vld [vmem:[%s390 + $0x20] sm:$0xf]
        %v611 = vld [vmem:[%s390 + $0x24] sm:$0xff]
        %v612 = vld [vmem:[%s390 + $0x2c] sm:$0xf]
        %v613 = vld [vmem:[%s390 + $0x30] sm:$0xff]
        %v614 = vld [vmem:[%s390 + $0x38] sm:$0xf]
        %v615 = vld [vmem:[%s390 + $0x3c] sm:$0xff]
        %v616 = vld [vmem:[%s390 + $0x44] sm:$0xf]
        %v617 = vld [vmem:[%s390 + $0x48] sm:$0xff]
        %v618 = vld [vmem:[%s390 + $0x50] sm:$0xf]
        %v619 = vld [vmem:[%s390 + $0x54] sm:$0xff]
        %v620 = vld [vmem:[%s390 + $0x5c] sm:$0xf]
        %v621 = vld [vmem:[%s390 + $0x60] sm:$0xff]
        %v622 = vld [vmem:[%s390 + $0x68] sm:$0xf]
        %v623 = vld [vmem:[%s390 + $0x6c] sm:$0xff]
        %v624 = vld [vmem:[%s390 + $0x74] sm:$0xf]
        %v625 = vld [vmem:[%s390 + $0x78] sm:$0xff]
        %v626 = vld [vmem:[%s390 + $0x80] sm:$0xf]
        %v627 = vld [vmem:[%s390 + $0x84] sm:$0xff]
        %v628 = vld [vmem:[%s390 + $0x8c] sm:$0xf]
        %v629 = vld [vmem:[%s390 + $0x90] sm:$0xff]
        %v630 = vld [vmem:[%s390 + $0x98] sm:$0xf]
        %v631 = vld [vmem:[%s390 + $0x9c] sm:$0xff]
        %v632 = vld [vmem:[%s390 + $0xa4] sm:$0xf]
        %v633 = vld [vmem:[%s390 + $0xa8] sm:$0xff]
        %v634 = vld [vmem:[%s390 + $0xb0] sm:$0xf]
        %v635 = vld [vmem:[%s390 + $0xb4] sm:$0xff]
        %v636 = vld [vmem:[%s390 + $0xbc] sm:$0xf]
        %v637 = vld [vmem:[%s390 + $0xc0] sm:$0xff]
        %v638 = vld [vmem:[%s390 + $0xc8] sm:$0xf]
        %v639 = vld [vmem:[%s390 + $0xcc] sm:$0xff]
        %v640 = vld [vmem:[%s390 + $0xd4] sm:$0xf]
        %v641 = vld [vmem:[%s390 + $0xd8] sm:$0xff]
        %v642 = vld [vmem:[%s390 + $0xe0] sm:$0xf]
        %v643 = vld [vmem:[%s390 + $0xe4] sm:$0xff]
        %v644 = vld [vmem:[%s390 + $0xec] sm:$0xf]
        %v645 = vld [vmem:[%s390 + $0xf0] sm:$0xff]
        %v646 = vld [vmem:[%s390 + $0xf8] sm:$0xf]
        %v647 = vld [vmem:[%s390 + $0xfc] sm:$0xff]
        %v648 = vld [vmem:[%s390 + $0x104] sm:$0xf]
        %v649 = vld [vmem:[%s390 + $0x108] sm:$0xff]
        %v650 = vld [vmem:[%s390 + $0x110] sm:$0xf]
        %v651 = vld [vmem:[%s390 + $0x114] sm:$0xff]
        %v652 = vld [vmem:[%s390 + $0x11c] sm:$0xf]
        %v653 = vld [vmem:[%s390 + $0x120] sm:$0xff]
        %v654 = vld [vmem:[%s390 + $0x128] sm:$0xf]
        %v655 = vld [vmem:[%s390 + $0x12c] sm:$0xff]
        %v656 = vld [vmem:[%s390 + $0x134] sm:$0xf]
        %v657 = vld [vmem:[%s390 + $0x138] sm:$0xff]
        %v658 = vld [vmem:[%s390 + $0x140] sm:$0xf]
        %v659 = vld [vmem:[%s390 + $0x144] sm:$0xff]
        %v660 = vld [vmem:[%s390 + $0x14c] sm:$0xf]
        %v661 = vld [vmem:[%s390 + $0x150] sm:$0xff]
        %v662 = vld [vmem:[%s390 + $0x158] sm:$0xf]
        %v663 = vld [vmem:[%s390 + $0x15c] sm:$0xff]
        %v664 = vld [vmem:[%s390 + $0x164] sm:$0xf]
        %v665 = vld [vmem:[%s390 + $0x168] sm:$0xff]
        %v666 = vld [vmem:[%s390 + $0x170] sm:$0xf]
        %v667 = vld [vmem:[%s390 + $0x174] sm:$0xff]
        %v668 = vld [vmem:[%s390 + $0x17c] sm:$0xf]
        %v669 = vld [vmem:[%s447] sm:$0xff]
        %v670 = vld [vmem:[%s447 + $0x8] sm:$0xff]
        %v671 = vld [vmem:[%s447 + $0x10] sm:$0xff]
        %v672 = vld [vmem:[%s447 + $0x18] sm:$0xff]
        %v673 = vld [vmem:[%s447 + $0x20] sm:$0xff]
        %v674 = vld [vmem:[%s447 + $0x28] sm:$0xff]
        %v675 = vld [vmem:[%s447 + $0x30] sm:$0xff]
        %v676 = vld [vmem:[%s447 + $0x38] sm:$0xff]
        %v677 = vld [vmem:[%s447 + $0x40] sm:$0xff]
        %v678 = vld [vmem:[%s447 + $0x48] sm:$0xff]
        %v679 = vld [vmem:[%s447 + $0x50] sm:$0xff]
        %v680 = vld [vmem:[%s447 + $0x58] sm:$0xff]
        %v681 = vld [vmem:[%s447 + $0x60] sm:$0xff]
        %v682 = vld [vmem:[%s447 + $0x68] sm:$0xff]
        %v683 = vld [vmem:[%s447 + $0x70] sm:$0xff]
        %v684 = vld [vmem:[%s447 + $0x78] sm:$0xff]
        %v685 = vld [vmem:[%s447 + $0x80] sm:$0xff]
        %v686 = vld [vmem:[%s447 + $0x88] sm:$0xff]
        %v687 = vld [vmem:[%s447 + $0x90] sm:$0xff]
        %v688 = vld [vmem:[%s447 + $0x98] sm:$0xff]
        %v689 = vld [vmem:[%s447 + $0xa0] sm:$0xff]
        %v690 = vld [vmem:[%s447 + $0xa8] sm:$0xff]
        %v691 = vld [vmem:[%s447 + $0xb0] sm:$0xff]
        %v692 = vld [vmem:[%s447 + $0xb8] sm:$0xff]
        %v693 = vld [vmem:[%s447 + $0xc0] sm:$0xff]
        %v694 = vld [vmem:[%s447 + $0xc8] sm:$0xff]
        %v695 = vld [vmem:[%s447 + $0xd0] sm:$0xff]
        %v696 = vld [vmem:[%s447 + $0xd8] sm:$0xff]
        %v697 = vld [vmem:[%s447 + $0xe0] sm:$0xff]
        %v698 = vld [vmem:[%s447 + $0xe8] sm:$0xff]
        %v699 = vld [vmem:[%s447 + $0xf0] sm:$0xff]
        %v700 = vld [vmem:[%s447 + $0xf8] sm:$0xff]
        %v701 = vld [vmem:[%s447 + $0x100] sm:$0xff]
        %v702 = vld [vmem:[%s447 + $0x108] sm:$0xff]
        %v703 = vld [vmem:[%s447 + $0x110] sm:$0xff]
        %v704 = vld [vmem:[%s447 + $0x118] sm:$0xff]
        %v705 = vld [vmem:[%s447 + $0x120] sm:$0xff]
        %v706 = vld [vmem:[%s447 + $0x128] sm:$0xff]
        %v707 = vld [vmem:[%s447 + $0x130] sm:$0xff]
        %v708 = vld [vmem:[%s447 + $0x138] sm:$0xff]
        %v709 = vld [vmem:[%s447 + $0x140] sm:$0xff]
        %v710 = vld [vmem:[%s447 + $0x148] sm:$0xff]
        %v711 = vld [vmem:[%s447 + $0x150] sm:$0xff]
        %v712 = vld [vmem:[%s447 + $0x158] sm:$0xff]
        %v713 = vld [vmem:[%s447 + $0x160] sm:$0xff]
        %v714 = vld [vmem:[%s447 + $0x168] sm:$0xff]
        %v715 = vld [vmem:[%s447 + $0x170] sm:$0xff]
        %v716 = vld [vmem:[%s447 + $0x178] sm:$0xff]
        %v781 = vunpack.c.l.b16 %v605
        %v782 = vunpack.c.h.b16 %v605
        %v783 = vunpack.c.l.b16 %v606
        %v784 = vunpack.c.l.b16 %v607
        %v785 = vunpack.c.h.b16 %v607
        %v786 = vunpack.c.l.b16 %v608
        %v787 = vunpack.c.l.b16 %v609
        %v788 = vunpack.c.h.b16 %v609
        %v789 = vunpack.c.l.b16 %v610
        %v790 = vunpack.c.l.b16 %v611
        %v791 = vunpack.c.h.b16 %v611
        %v792 = vunpack.c.l.b16 %v612
        %v793 = vunpack.c.l.b16 %v613
        %v794 = vunpack.c.h.b16 %v613
        %v795 = vunpack.c.l.b16 %v614
        %v796 = vunpack.c.l.b16 %v615
        %v797 = vunpack.c.h.b16 %v615
        %v798 = vunpack.c.l.b16 %v616
        %v799 = vunpack.c.l.b16 %v617
        %v800 = vunpack.c.h.b16 %v617
        %v801 = vunpack.c.l.b16 %v618
        %v802 = vunpack.c.l.b16 %v619
        %v803 = vunpack.c.h.b16 %v619
        %v804 = vunpack.c.l.b16 %v620
        %v805 = vunpack.c.l.b16 %v621
        %v806 = vunpack.c.h.b16 %v621
        %v807 = vunpack.c.l.b16 %v622
        %v808 = vunpack.c.l.b16 %v623
        %v809 = vunpack.c.h.b16 %v623
        %v810 = vunpack.c.l.b16 %v624
        %v811 = vunpack.c.l.b16 %v625
        %v812 = vunpack.c.h.b16 %v625
        %v813 = vunpack.c.l.b16 %v626
        %v814 = vunpack.c.l.b16 %v627
        %v815 = vunpack.c.h.b16 %v627
        %v816 = vunpack.c.l.b16 %v628
        %v817 = vunpack.c.l.b16 %v629
        %v818 = vunpack.c.h.b16 %v629
        %v819 = vunpack.c.l.b16 %v630
        %v820 = vunpack.c.l.b16 %v631
        %v821 = vunpack.c.h.b16 %v631
        %v822 = vunpack.c.l.b16 %v632
        %v823 = vunpack.c.l.b16 %v633
        %v824 = vunpack.c.h.b16 %v633
        %v825 = vunpack.c.l.b16 %v634
        %v826 = vunpack.c.l.b16 %v635
        %v827 = vunpack.c.h.b16 %v635
        %v828 = vunpack.c.l.b16 %v636
        %v829 = vunpack.c.l.b16 %v637
        %v830 = vunpack.c.h.b16 %v637
        %v831 = vunpack.c.l.b16 %v638
        %v832 = vunpack.c.l.b16 %v639
        %v833 = vunpack.c.h.b16 %v639
        %v834 = vunpack.c.l.b16 %v640
        %v835 = vunpack.c.l.b16 %v641
        %v836 = vunpack.c.h.b16 %v641
        %v837 = vunpack.c.l.b16 %v642
        %v838 = vunpack.c.l.b16 %v643
        %v839 = vunpack.c.h.b16 %v643
        %v840 = vunpack.c.l.b16 %v644
        %v841 = vunpack.c.l.b16 %v645
        %v842 = vunpack.c.h.b16 %v645
        %v843 = vunpack.c.l.b16 %v646
        %v844 = vunpack.c.l.b16 %v647
        %v845 = vunpack.c.h.b16 %v647
        %v846 = vunpack.c.l.b16 %v648
        %v847 = vunpack.c.l.b16 %v649
        %v848 = vunpack.c.h.b16 %v649
        %v849 = vunpack.c.l.b16 %v650
        %v850 = vunpack.c.l.b16 %v651
        %v851 = vunpack.c.h.b16 %v651
        %v852 = vunpack.c.l.b16 %v652
        %v853 = vunpack.c.l.b16 %v653
        %v854 = vunpack.c.h.b16 %v653
        %v855 = vunpack.c.l.b16 %v654
        %v856 = vunpack.c.l.b16 %v655
        %v857 = vunpack.c.h.b16 %v655
        %v858 = vunpack.c.l.b16 %v656
        %v859 = vunpack.c.l.b16 %v657
        %v860 = vunpack.c.h.b16 %v657
        %v861 = vunpack.c.l.b16 %v658
        %v862 = vunpack.c.l.b16 %v659
        %v863 = vunpack.c.h.b16 %v659
        %v864 = vunpack.c.l.b16 %v660
        %v865 = vunpack.c.l.b16 %v661
        %v866 = vunpack.c.h.b16 %v661
        %v867 = vunpack.c.l.b16 %v662
        %v868 = vunpack.c.l.b16 %v663
        %v869 = vunpack.c.h.b16 %v663
        %v870 = vunpack.c.l.b16 %v664
        %v871 = vunpack.c.l.b16 %v665
        %v872 = vunpack.c.h.b16 %v665
        %v873 = vunpack.c.l.b16 %v666
        %v874 = vunpack.c.l.b16 %v667
        %v875 = vunpack.c.h.b16 %v667
        %v876 = vunpack.c.l.b16 %v668
        %v877 = vpack.c.b16 %v784, %v781
        %v878 = vpack.c.b16 %v785, %v782
        %v879 = vpack.c.b16 %v786, %v783
        %v880 = vpack.c.b16 %v790, %v787
        %v881 = vpack.c.b16 %v791, %v788
        %v882 = vpack.c.b16 %v792, %v789
        %v883 = vpack.c.b16 %v796, %v793
        %v884 = vpack.c.b16 %v797, %v794
        %v885 = vpack.c.b16 %v798, %v795
        %v886 = vpack.c.b16 %v802, %v799
        %v887 = vpack.c.b16 %v803, %v800
        %v888 = vpack.c.b16 %v804, %v801
        %v889 = vpack.c.b16 %v808, %v805
        %v890 = vpack.c.b16 %v809, %v806
        %v891 = vpack.c.b16 %v810, %v807
        %v892 = vpack.c.b16 %v814, %v811
        %v893 = vpack.c.b16 %v815, %v812
        %v894 = vpack.c.b16 %v816, %v813
        %v895 = vpack.c.b16 %v820, %v817
        %v896 = vpack.c.b16 %v821, %v818
        %v897 = vpack.c.b16 %v822, %v819
        %v898 = vpack.c.b16 %v826, %v823
        %v899 = vpack.c.b16 %v827, %v824
        %v900 = vpack.c.b16 %v828, %v825
        %v901 = vpack.c.b16 %v832, %v829
        %v902 = vpack.c.b16 %v833, %v830
        %v903 = vpack.c.b16 %v834, %v831
        %v904 = vpack.c.b16 %v838, %v835
        %v905 = vpack.c.b16 %v839, %v836
        %v906 = vpack.c.b16 %v840, %v837
        %v907 = vpack.c.b16 %v844, %v841
        %v908 = vpack.c.b16 %v845, %v842
        %v909 = vpack.c.b16 %v846, %v843
        %v910 = vpack.c.b16 %v850, %v847
        %v911 = vpack.c.b16 %v851, %v848
        %v912 = vpack.c.b16 %v852, %v849
        %v913 = vpack.c.b16 %v856, %v853
        %v914 = vpack.c.b16 %v857, %v854
        %v915 = vpack.c.b16 %v858, %v855
        %v916 = vpack.c.b16 %v862, %v859
        %v917 = vpack.c.b16 %v863, %v860
        %v918 = vpack.c.b16 %v864, %v861
        %v919 = vpack.c.b16 %v868, %v865
        %v920 = vpack.c.b16 %v869, %v866
        %v921 = vpack.c.b16 %v870, %v867
        %v922 = vpack.c.b16 %v874, %v871
        %v923 = vpack.c.b16 %v875, %v872
        %v924 = vpack.c.b16 %v876, %v873
        %v1021 = vunpack.c.l.b16 %v669
        %v1022 = vunpack.c.h.b16 %v669
        %v1023 = vunpack.c.l.b16 %v670
        %v1024 = vunpack.c.h.b16 %v670
        %v1025 = vunpack.c.l.b16 %v671
        %v1026 = vunpack.c.h.b16 %v671
        %v1027 = vunpack.c.l.b16 %v672
        %v1028 = vunpack.c.h.b16 %v672
        %v1029 = vunpack.c.l.b16 %v673
        %v1030 = vunpack.c.h.b16 %v673
        %v1031 = vunpack.c.l.b16 %v674
        %v1032 = vunpack.c.h.b16 %v674
        %v1033 = vunpack.c.l.b16 %v675
        %v1034 = vunpack.c.h.b16 %v675
        %v1035 = vunpack.c.l.b16 %v676
        %v1036 = vunpack.c.h.b16 %v676
        %v1037 = vunpack.c.l.b16 %v677
        %v1038 = vunpack.c.h.b16 %v677
        %v1039 = vunpack.c.l.b16 %v678
        %v1040 = vunpack.c.h.b16 %v678
        %v1041 = vunpack.c.l.b16 %v679
        %v1042 = vunpack.c.h.b16 %v679
        %v1043 = vunpack.c.l.b16 %v680
        %v1044 = vunpack.c.h.b16 %v680
        %v1045 = vunpack.c.l.b16 %v681
        %v1046 = vunpack.c.h.b16 %v681
        %v1047 = vunpack.c.l.b16 %v682
        %v1048 = vunpack.c.h.b16 %v682
        %v1049 = vunpack.c.l.b16 %v683
        %v1050 = vunpack.c.h.b16 %v683
        %v1051 = vunpack.c.l.b16 %v684
        %v1052 = vunpack.c.h.b16 %v684
        %v1053 = vunpack.c.l.b16 %v685
        %v1054 = vunpack.c.h.b16 %v685
        %v1055 = vunpack.c.l.b16 %v686
        %v1056 = vunpack.c.h.b16 %v686
        %v1057 = vunpack.c.l.b16 %v687
        %v1058 = vunpack.c.h.b16 %v687
        %v1059 = vunpack.c.l.b16 %v688
        %v1060 = vunpack.c.h.b16 %v688
        %v1061 = vunpack.c.l.b16 %v689
        %v1062 = vunpack.c.h.b16 %v689
        %v1063 = vunpack.c.l.b16 %v690
        %v1064 = vunpack.c.h.b16 %v690
        %v1065 = vunpack.c.l.b16 %v691
        %v1066 = vunpack.c.h.b16 %v691
        %v1067 = vunpack.c.l.b16 %v692
        %v1068 = vunpack.c.h.b16 %v692
        %v1069 = vunpack.c.l.b16 %v693
        %v1070 = vunpack.c.h.b16 %v693
        %v1071 = vunpack.c.l.b16 %v694
        %v1072 = vunpack.c.h.b16 %v694
        %v1073 = vunpack.c.l.b16 %v695
        %v1074 = vunpack.c.h.b16 %v695
        %v1075 = vunpack.c.l.b16 %v696
        %v1076 = vunpack.c.h.b16 %v696
        %v1077 = vunpack.c.l.b16 %v697
        %v1078 = vunpack.c.h.b16 %v697
        %v1079 = vunpack.c.l.b16 %v698
        %v1080 = vunpack.c.h.b16 %v698
        %v1081 = vunpack.c.l.b16 %v699
        %v1082 = vunpack.c.h.b16 %v699
        %v1083 = vunpack.c.l.b16 %v700
        %v1084 = vunpack.c.h.b16 %v700
        %v1085 = vunpack.c.l.b16 %v701
        %v1086 = vunpack.c.h.b16 %v701
        %v1087 = vunpack.c.l.b16 %v702
        %v1088 = vunpack.c.h.b16 %v702
        %v1089 = vunpack.c.l.b16 %v703
        %v1090 = vunpack.c.h.b16 %v703
        %v1091 = vunpack.c.l.b16 %v704
        %v1092 = vunpack.c.h.b16 %v704
        %v1093 = vunpack.c.l.b16 %v705
        %v1094 = vunpack.c.h.b16 %v705
        %v1095 = vunpack.c.l.b16 %v706
        %v1096 = vunpack.c.h.b16 %v706
        %v1097 = vunpack.c.l.b16 %v707
        %v1098 = vunpack.c.h.b16 %v707
        %v1099 = vunpack.c.l.b16 %v708
        %v1100 = vunpack.c.h.b16 %v708
        %v1101 = vunpack.c.l.b16 %v709
        %v1102 = vunpack.c.h.b16 %v709
        %v1103 = vunpack.c.l.b16 %v710
        %v1104 = vunpack.c.h.b16 %v710
        %v1105 = vunpack.c.l.b16 %v711
        %v1106 = vunpack.c.h.b16 %v711
        %v1107 = vunpack.c.l.b16 %v712
        %v1108 = vunpack.c.h.b16 %v712
        %v1109 = vunpack.c.l.b16 %v713
        %v1110 = vunpack.c.h.b16 %v713
        %v1111 = vunpack.c.l.b16 %v714
        %v1112 = vunpack.c.h.b16 %v714
        %v1113 = vunpack.c.l.b16 %v715
        %v1114 = vunpack.c.h.b16 %v715
        %v1115 = vunpack.c.l.b16 %v716
        %v1116 = vunpack.c.h.b16 %v716
        %v1117 = vpack.c.b16 %v1023, %v1021
        %v1118 = vpack.c.b16 %v1024, %v1022
        %v1119 = vpack.c.b16 %v1027, %v1025
        %v1120 = vpack.c.b16 %v1028, %v1026
        %v1121 = vpack.c.b16 %v1031, %v1029
        %v1122 = vpack.c.b16 %v1032, %v1030
        %v1123 = vpack.c.b16 %v1035, %v1033
        %v1124 = vpack.c.b16 %v1036, %v1034
        %v1125 = vpack.c.b16 %v1039, %v1037
        %v1126 = vpack.c.b16 %v1040, %v1038
        %v1127 = vpack.c.b16 %v1043, %v1041
        %v1128 = vpack.c.b16 %v1044, %v1042
        %v1129 = vpack.c.b16 %v1047, %v1045
        %v1130 = vpack.c.b16 %v1048, %v1046
        %v1131 = vpack.c.b16 %v1051, %v1049
        %v1132 = vpack.c.b16 %v1052, %v1050
        %v1133 = vpack.c.b16 %v1055, %v1053
        %v1134 = vpack.c.b16 %v1056, %v1054
        %v1135 = vpack.c.b16 %v1059, %v1057
        %v1136 = vpack.c.b16 %v1060, %v1058
        %v1137 = vpack.c.b16 %v1063, %v1061
        %v1138 = vpack.c.b16 %v1064, %v1062
        %v1139 = vpack.c.b16 %v1067, %v1065
        %v1140 = vpack.c.b16 %v1068, %v1066
        %v1141 = vpack.c.b16 %v1071, %v1069
        %v1142 = vpack.c.b16 %v1072, %v1070
        %v1143 = vpack.c.b16 %v1075, %v1073
        %v1144 = vpack.c.b16 %v1076, %v1074
        %v1145 = vpack.c.b16 %v1079, %v1077
        %v1146 = vpack.c.b16 %v1080, %v1078
        %v1147 = vpack.c.b16 %v1083, %v1081
        %v1148 = vpack.c.b16 %v1084, %v1082
        %v1149 = vpack.c.b16 %v1087, %v1085
        %v1150 = vpack.c.b16 %v1088, %v1086
        %v1151 = vpack.c.b16 %v1091, %v1089
        %v1152 = vpack.c.b16 %v1092, %v1090
        %v1153 = vpack.c.b16 %v1095, %v1093
        %v1154 = vpack.c.b16 %v1096, %v1094
        %v1155 = vpack.c.b16 %v1099, %v1097
        %v1156 = vpack.c.b16 %v1100, %v1098
        %v1157 = vpack.c.b16 %v1103, %v1101
        %v1158 = vpack.c.b16 %v1104, %v1102
        %v1159 = vpack.c.b16 %v1107, %v1105
        %v1160 = vpack.c.b16 %v1108, %v1106
        %v1161 = vpack.c.b16 %v1111, %v1109
        %v1162 = vpack.c.b16 %v1112, %v1110
        %v1163 = vpack.c.b16 %v1115, %v1113
        %v1164 = vpack.c.b16 %v1116, %v1114
        %1213 = vmatprep.subr.bf16.mxu0 %v1118
        %1214 = vmatpush1.bf16.msra.mxu0 %v1117
        %1215 = vmatprep.subr.bf16.mxu0 %v1120
        %1216 = vmatpush1.bf16.msra.mxu0 %v1119
        %1217 = vmatprep.subr.bf16.mxu0 %v1122
        %1218 = vmatpush1.bf16.msra.mxu0 %v1121
        %1219 = vmatprep.subr.bf16.mxu0 %v1124
        %1220 = vmatpush1.bf16.msra.mxu0 %v1123
        %1221 = vmatprep.subr.bf16.mxu0 %v1126
        %1222 = vmatpush1.bf16.msra.mxu0 %v1125
        %1223 = vmatprep.subr.bf16.mxu0 %v1128
        %1224 = vmatpush1.bf16.msra.mxu0 %v1127
        %1225 = vmatprep.subr.bf16.mxu0 %v1130
        %1226 = vmatpush1.bf16.msra.mxu0 %v1129
        %1227 = vmatprep.subr.bf16.mxu0 %v1132
        %1228 = vmatpush1.bf16.msra.mxu0 %v1131
        %1229 = vmatprep.subr.bf16.mxu0 %v1134
        %1230 = vmatpush1.bf16.msra.mxu0 %v1133
        %1231 = vmatprep.subr.bf16.mxu0 %v1136
        %1232 = vmatpush1.bf16.msra.mxu0 %v1135
        %1233 = vmatprep.subr.bf16.mxu0 %v1138
        %1234 = vmatpush1.bf16.msra.mxu0 %v1137
        %1235 = vmatprep.subr.bf16.mxu0 %v1140
        %1236 = vmatpush1.bf16.msra.mxu0 %v1139
        %1237 = vmatprep.subr.bf16.mxu0 %v1142
        %1238 = vmatpush1.bf16.msra.mxu0 %v1141
        %1239 = vmatprep.subr.bf16.mxu0 %v1144
        %1240 = vmatpush1.bf16.msra.mxu0 %v1143
        %1241 = vmatprep.subr.bf16.mxu0 %v1146
        %1242 = vmatpush1.bf16.msra.mxu0 %v1145
        %1243 = vmatprep.subr.bf16.mxu0 %v1148
        %1244 = vmatpush1.bf16.msra.mxu0 %v1147
        %1245 = vmatprep.mubr.bf16.mxu0 %v878
        %1246 = vmatmul.mubr.bf16.gmra.mrb[0].mxu0 %v877
        %v1247 = vpop.f32.mrb[0].mxu0
        %v1248 = vadd.f32 0.0, %v1247
        %v1249 = vpop.f32.mrb[0].mxu0
        %v1250 = vadd.f32 0.0, %v1249
        %v1251 = vpop.f32.mrb[0].mxu0
        %v1252 = vadd.f32 0.0, %v1251
        %v1253 = vpop.f32.mrb[0].mxu0
        %v1254 = vadd.f32 0.0, %v1253
        %1255 = vmatprep.mubr.bf16.mxu0 %v881
        %1256 = vmatmul.mubr.bf16.gmra.mrb[0].mxu0 %v880
        %v1257 = vpop.f32.mrb[0].mxu0
        %v1258 = vadd.f32 0.0, %v1257
        %v1259 = vpop.f32.mrb[0].mxu0
        %v1260 = vadd.f32 0.0, %v1259
        %v1261 = vpop.f32.mrb[0].mxu0
        %v1262 = vadd.f32 0.0, %v1261
        %v1263 = vpop.f32.mrb[0].mxu0
        %v1264 = vadd.f32 0.0, %v1263
        %1265 = vmatprep.mubr.bf16.mxu0 %v884
        %1266 = vmatmul.mubr.bf16.gmra.mrb[0].mxu0 %v883
        %v1267 = vpop.f32.mrb[0].mxu0
        %v1268 = vadd.f32 0.0, %v1267
        %v1269 = vpop.f32.mrb[0].mxu0
        %v1270 = vadd.f32 0.0, %v1269
        %v1271 = vpop.f32.mrb[0].mxu0
        %v1272 = vadd.f32 0.0, %v1271
        %v1273 = vpop.f32.mrb[0].mxu0
        %v1274 = vadd.f32 0.0, %v1273
        %1275 = vmatprep.mubr.bf16.mxu0 %v887
        %1276 = vmatmul.mubr.bf16.gmra.mrb[0].mxu0 %v886
        %v1277 = vpop.f32.mrb[0].mxu0
        %v1278 = vadd.f32 0.0, %v1277
        %v1279 = vpop.f32.mrb[0].mxu0
        %v1280 = vadd.f32 0.0, %v1279
        %v1281 = vpop.f32.mrb[0].mxu0
        %v1282 = vadd.f32 0.0, %v1281
        %v1283 = vpop.f32.mrb[0].mxu0
        %v1284 = vadd.f32 0.0, %v1283
        %1285 = vmatprep.mubr.bf16.mxu0 %v890
        %1286 = vmatmul.mubr.bf16.gmra.mrb[0].mxu0 %v889
        %v1287 = vpop.f32.mrb[0].mxu0
        %v1288 = vadd.f32 0.0, %v1287
        %v1289 = vpop.f32.mrb[0].mxu0
        %v1290 = vadd.f32 0.0, %v1289
        %v1291 = vpop.f32.mrb[0].mxu0
        %v1292 = vadd.f32 0.0, %v1291
        %v1293 = vpop.f32.mrb[0].mxu0
        %v1294 = vadd.f32 0.0, %v1293
        %1295 = vmatprep.mubr.bf16.mxu0 %v893
        %1296 = vmatmul.mubr.bf16.gmra.mrb[0].mxu0 %v892
        %v1297 = vpop.f32.mrb[0].mxu0
        %v1298 = vadd.f32 0.0, %v1297
        %v1299 = vpop.f32.mrb[0].mxu0
        %v1300 = vadd.f32 0.0, %v1299
        %v1301 = vpop.f32.mrb[0].mxu0
        %v1302 = vadd.f32 0.0, %v1301
        %v1303 = vpop.f32.mrb[0].mxu0
        %v1304 = vadd.f32 0.0, %v1303
        %1305 = vmatprep.mubr.bf16.mxu0 %v896
        %1306 = vmatmul.mubr.bf16.gmra.mrb[0].mxu0 %v895
        %v1307 = vpop.f32.mrb[0].mxu0
        %v1308 = vadd.f32 0.0, %v1307
        %v1309 = vpop.f32.mrb[0].mxu0
        %v1310 = vadd.f32 0.0, %v1309
        %v1311 = vpop.f32.mrb[0].mxu0
        %v1312 = vadd.f32 0.0, %v1311
        %v1313 = vpop.f32.mrb[0].mxu0
        %v1314 = vadd.f32 0.0, %v1313
        %1315 = vmatprep.mubr.bf16.mxu0 %v899
        %1316 = vmatmul.mubr.bf16.gmra.mrb[0].mxu0 %v898
        %v1317 = vpop.f32.mrb[0].mxu0
        %v1318 = vadd.f32 0.0, %v1317
        %v1319 = vpop.f32.mrb[0].mxu0
        %v1320 = vadd.f32 0.0, %v1319
        %v1321 = vpop.f32.mrb[0].mxu0
        %v1322 = vadd.f32 0.0, %v1321
        %v1323 = vpop.f32.mrb[0].mxu0
        %v1324 = vadd.f32 0.0, %v1323
        %1325 = vmatprep.mubr.bf16.mxu0 %v902
        %1326 = vmatmul.mubr.bf16.gmra.mrb[0].mxu0 %v901
        %v1327 = vpop.f32.mrb[0].mxu0
        %v1328 = vadd.f32 0.0, %v1327
        %v1329 = vpop.f32.mrb[0].mxu0
        %v1330 = vadd.f32 0.0, %v1329
        %v1331 = vpop.f32.mrb[0].mxu0
        %v1332 = vadd.f32 0.0, %v1331
        %v1333 = vpop.f32.mrb[0].mxu0
        %v1334 = vadd.f32 0.0, %v1333
        %1335 = vmatprep.mubr.bf16.mxu0 %v905
        %1336 = vmatmul.mubr.bf16.gmra.mrb[0].mxu0 %v904
        %v1337 = vpop.f32.mrb[0].mxu0
        %v1338 = vadd.f32 0.0, %v1337
        %v1339 = vpop.f32.mrb[0].mxu0
        %v1340 = vadd.f32 0.0, %v1339
        %v1341 = vpop.f32.mrb[0].mxu0
        %v1342 = vadd.f32 0.0, %v1341
        %v1343 = vpop.f32.mrb[0].mxu0
        %v1344 = vadd.f32 0.0, %v1343
        %1345 = vmatprep.mubr.bf16.mxu0 %v908
        %1346 = vmatmul.mubr.bf16.gmra.mrb[0].mxu0 %v907
        %v1347 = vpop.f32.mrb[0].mxu0
        %v1348 = vadd.f32 0.0, %v1347
        %v1349 = vpop.f32.mrb[0].mxu0
        %v1350 = vadd.f32 0.0, %v1349
        %v1351 = vpop.f32.mrb[0].mxu0
        %v1352 = vadd.f32 0.0, %v1351
        %v1353 = vpop.f32.mrb[0].mxu0
        %v1354 = vadd.f32 0.0, %v1353
        %1355 = vmatprep.mubr.bf16.mxu0 %v911
        %1356 = vmatmul.mubr.bf16.gmra.mrb[0].mxu0 %v910
        %v1357 = vpop.f32.mrb[0].mxu0
        %v1358 = vadd.f32 0.0, %v1357
        %v1359 = vpop.f32.mrb[0].mxu0
        %v1360 = vadd.f32 0.0, %v1359
        %v1361 = vpop.f32.mrb[0].mxu0
        %v1362 = vadd.f32 0.0, %v1361
        %v1363 = vpop.f32.mrb[0].mxu0
        %v1364 = vadd.f32 0.0, %v1363
        %1365 = vmatprep.mubr.bf16.mxu0 %v914
        %1366 = vmatmul.mubr.bf16.gmra.mrb[0].mxu0 %v913
        %v1367 = vpop.f32.mrb[0].mxu0
        %v1368 = vadd.f32 0.0, %v1367
        %v1369 = vpop.f32.mrb[0].mxu0
        %v1370 = vadd.f32 0.0, %v1369
        %v1371 = vpop.f32.mrb[0].mxu0
        %v1372 = vadd.f32 0.0, %v1371
        %v1373 = vpop.f32.mrb[0].mxu0
        %v1374 = vadd.f32 0.0, %v1373
        %1375 = vmatprep.mubr.bf16.mxu0 %v917
        %1376 = vmatmul.mubr.bf16.gmra.mrb[0].mxu0 %v916
        %v1377 = vpop.f32.mrb[0].mxu0
        %v1378 = vadd.f32 0.0, %v1377
        %v1379 = vpop.f32.mrb[0].mxu0
        %v1380 = vadd.f32 0.0, %v1379
        %v1381 = vpop.f32.mrb[0].mxu0
        %v1382 = vadd.f32 0.0, %v1381
        %v1383 = vpop.f32.mrb[0].mxu0
        %v1384 = vadd.f32 0.0, %v1383
        %1385 = vmatprep.mubr.bf16.mxu0 %v920
        %1386 = vmatmul.mubr.bf16.gmra.mrb[0].mxu0 %v919
        %v1387 = vpop.f32.mrb[0].mxu0
        %v1388 = vadd.f32 0.0, %v1387
        %v1389 = vpop.f32.mrb[0].mxu0
        %v1390 = vadd.f32 0.0, %v1389
        %v1391 = vpop.f32.mrb[0].mxu0
        %v1392 = vadd.f32 0.0, %v1391
        %v1393 = vpop.f32.mrb[0].mxu0
        %v1394 = vadd.f32 0.0, %v1393
        %1395 = vmatprep.mubr.bf16.mxu0 %v923
        %1396 = vmatmul.mubr.bf16.gmra.mrb[0].mxu0 %v922
        %v1397 = vpop.f32.mrb[0].mxu0
        %v1398 = vadd.f32 0.0, %v1397
        %v1399 = vpop.f32.mrb[0].mxu0
        %v1400 = vadd.f32 0.0, %v1399
        %v1401 = vpop.f32.mrb[0].mxu0
        %v1402 = vadd.f32 0.0, %v1401
        %v1403 = vpop.f32.mrb[0].mxu0
        %v1404 = vadd.f32 0.0, %v1403
        %1405 = vdwg.mxu0
        %1406 = vmatprep.subr.bf16.mxu0 %v1150
        %1407 = vmatpush1.bf16.msra.mxu0 %v1149
        %1408 = vmatprep.subr.bf16.mxu0 %v1152
        %1409 = vmatpush1.bf16.msra.mxu0 %v1151
        %1410 = vmatprep.subr.bf16.mxu0 %v1154
        %1411 = vmatpush1.bf16.msra.mxu0 %v1153
        %1412 = vmatprep.subr.bf16.mxu0 %v1156
        %1413 = vmatpush1.bf16.msra.mxu0 %v1155
        %1414 = vmatprep.subr.bf16.mxu0 %v1158
        %1415 = vmatpush1.bf16.msra.mxu0 %v1157
        %1416 = vmatprep.subr.bf16.mxu0 %v1160
        %1417 = vmatpush1.bf16.msra.mxu0 %v1159
        %1418 = vmatprep.subr.bf16.mxu0 %v1162
        %1419 = vmatpush1.bf16.msra.mxu0 %v1161
        %1420 = vmatprep.subr.bf16.mxu0 %v1164
        %1421 = vmatpush1.bf16.msra.mxu0 %v1163
        %1422 = vmatprep.subr.bf16.mxu0 0
        %1423 = vmatpush1.bf16.msra.mxu0 0
        %1424 = vmatprep.subr.bf16.mxu0 0
        %1425 = vmatpush1.bf16.msra.mxu0 0
        %1426 = vmatprep.subr.bf16.mxu0 0
        %1427 = vmatpush1.bf16.msra.mxu0 0
        %1428 = vmatprep.subr.bf16.mxu0 0
        %1429 = vmatpush1.bf16.msra.mxu0 0
        %1430 = vmatprep.subr.bf16.mxu0 0
        %1431 = vmatpush1.bf16.msra.mxu0 0
        %1432 = vmatprep.subr.bf16.mxu0 0
        %1433 = vmatpush1.bf16.msra.mxu0 0
        %1434 = vmatprep.subr.bf16.mxu0 0
        %1435 = vmatpush1.bf16.msra.mxu0 0
        %1436 = vmatprep.subr.bf16.mxu0 0
        %1437 = vmatpush1.bf16.msra.mxu0 0
        %1438 = vmatprep.mubr.bf16.mxu0 0
        %1439 = vmatmul.mubr.bf16.gmra.mrb[0].mxu0 %v879
        %v1440 = vpop.f32.mrb[0].mxu0
        %v1441 = vadd.f32 %v1248, %v1440
        %v1442 = vpop.f32.mrb[0].mxu0
        %v1443 = vadd.f32 %v1250, %v1442
        %v1444 = vpop.f32.mrb[0].mxu0
        %v1445 = vadd.f32 %v1252, %v1444
        %v1446 = vpop.f32.mrb[0].mxu0
        %v1447 = vadd.f32 %v1254, %v1446
        %1448 = vmatprep.mubr.bf16.mxu0 0
        %1449 = vmatmul.mubr.bf16.gmra.mrb[0].mxu0 %v882
        %v1450 = vpop.f32.mrb[0].mxu0
        %v1451 = vadd.f32 %v1258, %v1450
        %v1452 = vpop.f32.mrb[0].mxu0
        %v1453 = vadd.f32 %v1260, %v1452
        %v1454 = vpop.f32.mrb[0].mxu0
        %v1455 = vadd.f32 %v1262, %v1454
        %v1456 = vpop.f32.mrb[0].mxu0
        %v1457 = vadd.f32 %v1264, %v1456
        %1458 = vmatprep.mubr.bf16.mxu0 0
        %1459 = vmatmul.mubr.bf16.gmra.mrb[0].mxu0 %v885
        %v1460 = vpop.f32.mrb[0].mxu0
        %v1461 = vadd.f32 %v1268, %v1460
        %v1462 = vpop.f32.mrb[0].mxu0
        %v1463 = vadd.f32 %v1270, %v1462
        %v1464 = vpop.f32.mrb[0].mxu0
        %v1465 = vadd.f32 %v1272, %v1464
        %v1466 = vpop.f32.mrb[0].mxu0
        %v1467 = vadd.f32 %v1274, %v1466
        %1468 = vmatprep.mubr.bf16.mxu0 0
        %1469 = vmatmul.mubr.bf16.gmra.mrb[0].mxu0 %v888
        %v1470 = vpop.f32.mrb[0].mxu0
        %v1471 = vadd.f32 %v1278, %v1470
        %v1472 = vpop.f32.mrb[0].mxu0
        %v1473 = vadd.f32 %v1280, %v1472
        %v1474 = vpop.f32.mrb[0].mxu0
        %v1475 = vadd.f32 %v1282, %v1474
        %v1476 = vpop.f32.mrb[0].mxu0
        %v1477 = vadd.f32 %v1284, %v1476
        %1478 = vmatprep.mubr.bf16.mxu0 0
        %1479 = vmatmul.mubr.bf16.gmra.mrb[0].mxu0 %v891
        %v1480 = vpop.f32.mrb[0].mxu0
        %v1481 = vadd.f32 %v1288, %v1480
        %v1482 = vpop.f32.mrb[0].mxu0
        %v1483 = vadd.f32 %v1290, %v1482
        %v1484 = vpop.f32.mrb[0].mxu0
        %v1485 = vadd.f32 %v1292, %v1484
        %v1486 = vpop.f32.mrb[0].mxu0
        %v1487 = vadd.f32 %v1294, %v1486
        %1488 = vmatprep.mubr.bf16.mxu0 0
        %1489 = vmatmul.mubr.bf16.gmra.mrb[0].mxu0 %v894
        %v1490 = vpop.f32.mrb[0].mxu0
        %v1491 = vadd.f32 %v1298, %v1490
        %v1492 = vpop.f32.mrb[0].mxu0
        %v1493 = vadd.f32 %v1300, %v1492
        %v1494 = vpop.f32.mrb[0].mxu0
        %v1495 = vadd.f32 %v1302, %v1494
        %v1496 = vpop.f32.mrb[0].mxu0
        %v1497 = vadd.f32 %v1304, %v1496
        %1498 = vmatprep.mubr.bf16.mxu0 0
        %1499 = vmatmul.mubr.bf16.gmra.mrb[0].mxu0 %v897
        %v1500 = vpop.f32.mrb[0].mxu0
        %v1501 = vadd.f32 %v1308, %v1500
        %v1502 = vpop.f32.mrb[0].mxu0
        %v1503 = vadd.f32 %v1310, %v1502
        %v1504 = vpop.f32.mrb[0].mxu0
        %v1505 = vadd.f32 %v1312, %v1504
        %v1506 = vpop.f32.mrb[0].mxu0
        %v1507 = vadd.f32 %v1314, %v1506
        %1508 = vmatprep.mubr.bf16.mxu0 0
        %1509 = vmatmul.mubr.bf16.gmra.mrb[0].mxu0 %v900
        %v1510 = vpop.f32.mrb[0].mxu0
        %v1511 = vadd.f32 %v1318, %v1510
        %v1512 = vpop.f32.mrb[0].mxu0
        %v1513 = vadd.f32 %v1320, %v1512
        %v1514 = vpop.f32.mrb[0].mxu0
        %v1515 = vadd.f32 %v1322, %v1514
        %v1516 = vpop.f32.mrb[0].mxu0
        %v1517 = vadd.f32 %v1324, %v1516
        %1518 = vmatprep.mubr.bf16.mxu0 0
        %1519 = vmatmul.mubr.bf16.gmra.mrb[0].mxu0 %v903
        %v1520 = vpop.f32.mrb[0].mxu0
        %v1521 = vadd.f32 %v1328, %v1520
        %v1522 = vpop.f32.mrb[0].mxu0
        %v1523 = vadd.f32 %v1330, %v1522
        %v1524 = vpop.f32.mrb[0].mxu0
        %v1525 = vadd.f32 %v1332, %v1524
        %v1526 = vpop.f32.mrb[0].mxu0
        %v1527 = vadd.f32 %v1334, %v1526
        %1528 = vmatprep.mubr.bf16.mxu0 0
        %1529 = vmatmul.mubr.bf16.gmra.mrb[0].mxu0 %v906
        %v1530 = vpop.f32.mrb[0].mxu0
        %v1531 = vadd.f32 %v1338, %v1530
        %v1532 = vpop.f32.mrb[0].mxu0
        %v1533 = vadd.f32 %v1340, %v1532
        %v1534 = vpop.f32.mrb[0].mxu0
        %v1535 = vadd.f32 %v1342, %v1534
        %v1536 = vpop.f32.mrb[0].mxu0
        %v1537 = vadd.f32 %v1344, %v1536
        %1538 = vmatprep.mubr.bf16.mxu0 0
        %1539 = vmatmul.mubr.bf16.gmra.mrb[0].mxu0 %v909
        %v1540 = vpop.f32.mrb[0].mxu0
        %v1541 = vadd.f32 %v1348, %v1540
        %v1542 = vpop.f32.mrb[0].mxu0
        %v1543 = vadd.f32 %v1350, %v1542
        %v1544 = vpop.f32.mrb[0].mxu0
        %v1545 = vadd.f32 %v1352, %v1544
        %v1546 = vpop.f32.mrb[0].mxu0
        %v1547 = vadd.f32 %v1354, %v1546
        %1548 = vmatprep.mubr.bf16.mxu0 0
        %1549 = vmatmul.mubr.bf16.gmra.mrb[0].mxu0 %v912
        %v1550 = vpop.f32.mrb[0].mxu0
        %v1551 = vadd.f32 %v1358, %v1550
        %v1552 = vpop.f32.mrb[0].mxu0
        %v1553 = vadd.f32 %v1360, %v1552
        %v1554 = vpop.f32.mrb[0].mxu0
        %v1555 = vadd.f32 %v1362, %v1554
        %v1556 = vpop.f32.mrb[0].mxu0
        %v1557 = vadd.f32 %v1364, %v1556
        %1558 = vmatprep.mubr.bf16.mxu0 0
        %1559 = vmatmul.mubr.bf16.gmra.mrb[0].mxu0 %v915
        %v1560 = vpop.f32.mrb[0].mxu0
        %v1561 = vadd.f32 %v1368, %v1560
        %v1562 = vpop.f32.mrb[0].mxu0
        %v1563 = vadd.f32 %v1370, %v1562
        %v1564 = vpop.f32.mrb[0].mxu0
        %v1565 = vadd.f32 %v1372, %v1564
        %v1566 = vpop.f32.mrb[0].mxu0
        %v1567 = vadd.f32 %v1374, %v1566
        %1568 = vmatprep.mubr.bf16.mxu0 0
        %1569 = vmatmul.mubr.bf16.gmra.mrb[0].mxu0 %v918
        %v1570 = vpop.f32.mrb[0].mxu0
        %v1571 = vadd.f32 %v1378, %v1570
        %v1572 = vpop.f32.mrb[0].mxu0
        %v1573 = vadd.f32 %v1380, %v1572
        %v1574 = vpop.f32.mrb[0].mxu0
        %v1575 = vadd.f32 %v1382, %v1574
        %v1576 = vpop.f32.mrb[0].mxu0
        %v1577 = vadd.f32 %v1384, %v1576
        %1578 = vmatprep.mubr.bf16.mxu0 0
        %1579 = vmatmul.mubr.bf16.gmra.mrb[0].mxu0 %v921
        %v1580 = vpop.f32.mrb[0].mxu0
        %v1581 = vadd.f32 %v1388, %v1580
        %v1582 = vpop.f32.mrb[0].mxu0
        %v1583 = vadd.f32 %v1390, %v1582
        %v1584 = vpop.f32.mrb[0].mxu0
        %v1585 = vadd.f32 %v1392, %v1584
        %v1586 = vpop.f32.mrb[0].mxu0
        %v1587 = vadd.f32 %v1394, %v1586
        %1588 = vmatprep.mubr.bf16.mxu0 0
        %1589 = vmatmul.mubr.bf16.gmra.mrb[0].mxu0 %v924
        %v1590 = vpop.f32.mrb[0].mxu0
        %v1591 = vadd.f32 %v1398, %v1590
        %v1592 = vpop.f32.mrb[0].mxu0
        %v1593 = vadd.f32 %v1400, %v1592
        %v1594 = vpop.f32.mrb[0].mxu0
        %v1595 = vadd.f32 %v1402, %v1594
        %v1596 = vpop.f32.mrb[0].mxu0
        %v1597 = vadd.f32 %v1404, %v1596
        %1598 = vdwg.mxu0
        %v1599 = vadd.f32 %v541, %v1441
        %v1600 = vadd.f32 %v542, %v1443
        %v1601 = vadd.f32 %v543, %v1445
        %v1602 = vadd.f32 %v544, %v1447
        %v1603 = vadd.f32 %v545, %v1451
        %v1604 = vadd.f32 %v546, %v1453
        %v1605 = vadd.f32 %v547, %v1455
        %v1606 = vadd.f32 %v548, %v1457
        %v1607 = vadd.f32 %v549, %v1461
        %v1608 = vadd.f32 %v550, %v1463
        %v1609 = vadd.f32 %v551, %v1465
        %v1610 = vadd.f32 %v552, %v1467
        %v1611 = vadd.f32 %v553, %v1471
        %v1612 = vadd.f32 %v554, %v1473
        %v1613 = vadd.f32 %v555, %v1475
        %v1614 = vadd.f32 %v556, %v1477
        %v1615 = vadd.f32 %v557, %v1481
        %v1616 = vadd.f32 %v558, %v1483
        %v1617 = vadd.f32 %v559, %v1485
        %v1618 = vadd.f32 %v560, %v1487
        %v1619 = vadd.f32 %v561, %v1491
        %v1620 = vadd.f32 %v562, %v1493
        %v1621 = vadd.f32 %v563, %v1495
        %v1622 = vadd.f32 %v564, %v1497
        %v1623 = vadd.f32 %v565, %v1501
        %v1624 = vadd.f32 %v566, %v1503
        %v1625 = vadd.f32 %v567, %v1505
        %v1626 = vadd.f32 %v568, %v1507
        %v1627 = vadd.f32 %v569, %v1511
        %v1628 = vadd.f32 %v570, %v1513
        %v1629 = vadd.f32 %v571, %v1515
        %v1630 = vadd.f32 %v572, %v1517
        %v1631 = vadd.f32 %v573, %v1521
        %v1632 = vadd.f32 %v574, %v1523
        %v1633 = vadd.f32 %v575, %v1525
        %v1634 = vadd.f32 %v576, %v1527
        %v1635 = vadd.f32 %v577, %v1531
        %v1636 = vadd.f32 %v578, %v1533
        %v1637 = vadd.f32 %v579, %v1535
        %v1638 = vadd.f32 %v580, %v1537
        %v1639 = vadd.f32 %v581, %v1541
        %v1640 = vadd.f32 %v582, %v1543
        %v1641 = vadd.f32 %v583, %v1545
        %v1642 = vadd.f32 %v584, %v1547
        %v1643 = vadd.f32 %v585, %v1551
        %v1644 = vadd.f32 %v586, %v1553
        %v1645 = vadd.f32 %v587, %v1555
        %v1646 = vadd.f32 %v588, %v1557
        %v1647 = vadd.f32 %v589, %v1561
        %v1648 = vadd.f32 %v590, %v1563
        %v1649 = vadd.f32 %v591, %v1565
        %v1650 = vadd.f32 %v592, %v1567
        %v1651 = vadd.f32 %v593, %v1571
        %v1652 = vadd.f32 %v594, %v1573
        %v1653 = vadd.f32 %v595, %v1575
        %v1654 = vadd.f32 %v596, %v1577
        %v1655 = vadd.f32 %v597, %v1581
        %v1656 = vadd.f32 %v598, %v1583
        %v1657 = vadd.f32 %v599, %v1585
        %v1658 = vadd.f32 %v600, %v1587
        %v1659 = vadd.f32 %v601, %v1591
        %v1660 = vadd.f32 %v602, %v1593
        %v1661 = vadd.f32 %v603, %v1595
        %v1662 = vadd.f32 %v604, %v1597
        %1663 = vst [vmem:[#allocation2] sm:$0xff] %v1599
        %1664 = vst [vmem:[#allocation2 + $0x8] sm:$0xff] %v1600
        %1665 = vst [vmem:[#allocation2 + $0x10] sm:$0xff] %v1601
        %1666 = vst [vmem:[#allocation2 + $0x18] sm:$0xff] %v1602
        %1667 = vst [vmem:[#allocation2 + $0x20] sm:$0xff] %v1603
        %1668 = vst [vmem:[#allocation2 + $0x28] sm:$0xff] %v1604
        %1669 = vst [vmem:[#allocation2 + $0x30] sm:$0xff] %v1605
        %1670 = vst [vmem:[#allocation2 + $0x38] sm:$0xff] %v1606
        %1671 = vst [vmem:[#allocation2 + $0x40] sm:$0xff] %v1607
        %1672 = vst [vmem:[#allocation2 + $0x48] sm:$0xff] %v1608
        %1673 = vst [vmem:[#allocation2 + $0x50] sm:$0xff] %v1609
        %1674 = vst [vmem:[#allocation2 + $0x58] sm:$0xff] %v1610
        %1675 = vst [vmem:[#allocation2 + $0x60] sm:$0xff] %v1611
        %1676 = vst [vmem:[#allocation2 + $0x68] sm:$0xff] %v1612
        %1677 = vst [vmem:[#allocation2 + $0x70] sm:$0xff] %v1613
        %1678 = vst [vmem:[#allocation2 + $0x78] sm:$0xff] %v1614
        %1679 = vst [vmem:[#allocation2 + $0x80] sm:$0xff] %v1615
        %1680 = vst [vmem:[#allocation2 + $0x88] sm:$0xff] %v1616
        %1681 = vst [vmem:[#allocation2 + $0x90] sm:$0xff] %v1617
        %1682 = vst [vmem:[#allocation2 + $0x98] sm:$0xff] %v1618
        %1683 = vst [vmem:[#allocation2 + $0xa0] sm:$0xff] %v1619
        %1684 = vst [vmem:[#allocation2 + $0xa8] sm:$0xff] %v1620
        %1685 = vst [vmem:[#allocation2 + $0xb0] sm:$0xff] %v1621
        %1686 = vst [vmem:[#allocation2 + $0xb8] sm:$0xff] %v1622
        %1687 = vst [vmem:[#allocation2 + $0xc0] sm:$0xff] %v1623
        %1688 = vst [vmem:[#allocation2 + $0xc8] sm:$0xff] %v1624
        %1689 = vst [vmem:[#allocation2 + $0xd0] sm:$0xff] %v1625
        %1690 = vst [vmem:[#allocation2 + $0xd8] sm:$0xff] %v1626
        %1691 = vst [vmem:[#allocation2 + $0xe0] sm:$0xff] %v1627
        %1692 = vst [vmem:[#allocation2 + $0xe8] sm:$0xff] %v1628
        %1693 = vst [vmem:[#allocation2 + $0xf0] sm:$0xff] %v1629
        %1694 = vst [vmem:[#allocation2 + $0xf8] sm:$0xff] %v1630
        %1695 = vst [vmem:[#allocation2 + $0x100] sm:$0xff] %v1631
        %1696 = vst [vmem:[#allocation2 + $0x108] sm:$0xff] %v1632
        %1697 = vst [vmem:[#allocation2 + $0x110] sm:$0xff] %v1633
        %1698 = vst [vmem:[#allocation2 + $0x118] sm:$0xff] %v1634
        %1699 = vst [vmem:[#allocation2 + $0x120] sm:$0xff] %v1635
        %1700 = vst [vmem:[#allocation2 + $0x128] sm:$0xff] %v1636
        %1701 = vst [vmem:[#allocation2 + $0x130] sm:$0xff] %v1637
        %1702 = vst [vmem:[#allocation2 + $0x138] sm:$0xff] %v1638
        %1703 = vst [vmem:[#allocation2 + $0x140] sm:$0xff] %v1639
        %1704 = vst [vmem:[#allocation2 + $0x148] sm:$0xff] %v1640
        %1705 = vst [vmem:[#allocation2 + $0x150] sm:$0xff] %v1641
        %1706 = vst [vmem:[#allocation2 + $0x158] sm:$0xff] %v1642
        %1707 = vst [vmem:[#allocation2 + $0x160] sm:$0xff] %v1643
        %1708 = vst [vmem:[#allocation2 + $0x168] sm:$0xff] %v1644
        %1709 = vst [vmem:[#allocation2 + $0x170] sm:$0xff] %v1645
        %1710 = vst [vmem:[#allocation2 + $0x178] sm:$0xff] %v1646
        %1711 = vst [vmem:[#allocation2 + $0x180] sm:$0xff] %v1647
        %1712 = vst [vmem:[#allocation2 + $0x188] sm:$0xff] %v1648
        %1713 = vst [vmem:[#allocation2 + $0x190] sm:$0xff] %v1649
        %1714 = vst [vmem:[#allocation2 + $0x198] sm:$0xff] %v1650
        %1715 = vst [vmem:[#allocation2 + $0x1a0] sm:$0xff] %v1651
        %1716 = vst [vmem:[#allocation2 + $0x1a8] sm:$0xff] %v1652
        %1717 = vst [vmem:[#allocation2 + $0x1b0] sm:$0xff] %v1653
        %1718 = vst [vmem:[#allocation2 + $0x1b8] sm:$0xff] %v1654
        %1719 = vst [vmem:[#allocation2 + $0x1c0] sm:$0xff] %v1655
        %1720 = vst [vmem:[#allocation2 + $0x1c8] sm:$0xff] %v1656
        %1721 = vst [vmem:[#allocation2 + $0x1d0] sm:$0xff] %v1657
        %1722 = vst [vmem:[#allocation2 + $0x1d8] sm:$0xff] %v1658
        %1723 = vst [vmem:[#allocation2 + $0x1e0] sm:$0xff] %v1659
        %1724 = vst [vmem:[#allocation2 + $0x1e8] sm:$0xff] %v1660
        %1725 = vst [vmem:[#allocation2 + $0x1f0] sm:$0xff] %v1661
        %1726 = vst [vmem:[#allocation2 + $0x1f8] sm:$0xff] %v1662
        %p1727 = scmp.eq.s32.totalorder %s22, 5
        // Predicated region
        $region67: #{mixed_6a_forward.6} parent=57 // pred_check
          %p1728 = pneg %p1727
        $region68: #{mixed_6a_forward.6} parent=57 // pred_check_branch
          %1730 = sbr.rel (%p1728) target = $region70
        $region69: #{mixed_6a_forward.6} parent=57 // pred_region
          %v1731 = vld [vmem:[#allocation2] sm:$0xff]
          %v1732 = vld [vmem:[#allocation2 + $0x8] sm:$0xff]
          %v1733 = vld [vmem:[#allocation2 + $0x10] sm:$0xff]
          %v1734 = vld [vmem:[#allocation2 + $0x18] sm:$0xff]
          %v1735 = vld [vmem:[#allocation2 + $0x20] sm:$0xff]
          %v1736 = vld [vmem:[#allocation2 + $0x28] sm:$0xff]
          %v1737 = vld [vmem:[#allocation2 + $0x30] sm:$0xff]
          %v1738 = vld [vmem:[#allocation2 + $0x38] sm:$0xff]
          %v1739 = vld [vmem:[#allocation2 + $0x40] sm:$0xff]
          %v1740 = vld [vmem:[#allocation2 + $0x48] sm:$0xff]
          %v1741 = vld [vmem:[#allocation2 + $0x50] sm:$0xff]
          %v1742 = vld [vmem:[#allocation2 + $0x58] sm:$0xff]
          %v1743 = vld [vmem:[#allocation2 + $0x60] sm:$0xff]
          %v1744 = vld [vmem:[#allocation2 + $0x68] sm:$0xff]
          %v1745 = vld [vmem:[#allocation2 + $0x70] sm:$0xff]
          %v1746 = vld [vmem:[#allocation2 + $0x78] sm:$0xff]
          %v1747 = vld [vmem:[#allocation2 + $0x80] sm:$0xff]
          %v1748 = vld [vmem:[#allocation2 + $0x88] sm:$0xff]
          %v1749 = vld [vmem:[#allocation2 + $0x90] sm:$0xff]
          %v1750 = vld [vmem:[#allocation2 + $0x98] sm:$0xff]
          %v1751 = vld [vmem:[#allocation2 + $0xa0] sm:$0xff]
          %v1752 = vld [vmem:[#allocation2 + $0xa8] sm:$0xff]
          %v1753 = vld [vmem:[#allocation2 + $0xb0] sm:$0xff]
          %v1754 = vld [vmem:[#allocation2 + $0xb8] sm:$0xff]
          %v1755 = vld [vmem:[#allocation2 + $0xc0] sm:$0xff]
          %v1756 = vld [vmem:[#allocation2 + $0xc8] sm:$0xff]
          %v1757 = vld [vmem:[#allocation2 + $0xd0] sm:$0xff]
          %v1758 = vld [vmem:[#allocation2 + $0xd8] sm:$0xff]
          %v1759 = vld [vmem:[#allocation2 + $0xe0] sm:$0xff]
          %v1760 = vld [vmem:[#allocation2 + $0xe8] sm:$0xff]
          %v1761 = vld [vmem:[#allocation2 + $0xf0] sm:$0xff]
          %v1762 = vld [vmem:[#allocation2 + $0xf8] sm:$0xff]
          %v1763 = vld [vmem:[#allocation2 + $0x100] sm:$0xff]
          %v1764 = vld [vmem:[#allocation2 + $0x108] sm:$0xff]
          %v1765 = vld [vmem:[#allocation2 + $0x110] sm:$0xff]
          %v1766 = vld [vmem:[#allocation2 + $0x118] sm:$0xff]
          %v1767 = vld [vmem:[#allocation2 + $0x120] sm:$0xff]
          %v1768 = vld [vmem:[#allocation2 + $0x128] sm:$0xff]
          %v1769 = vld [vmem:[#allocation2 + $0x130] sm:$0xff]
          %v1770 = vld [vmem:[#allocation2 + $0x138] sm:$0xff]
          %v1771 = vld [vmem:[#allocation2 + $0x140] sm:$0xff]
          %v1772 = vld [vmem:[#allocation2 + $0x148] sm:$0xff]
          %v1773 = vld [vmem:[#allocation2 + $0x150] sm:$0xff]
          %v1774 = vld [vmem:[#allocation2 + $0x158] sm:$0xff]
          %v1775 = vld [vmem:[#allocation2 + $0x160] sm:$0xff]
          %v1776 = vld [vmem:[#allocation2 + $0x168] sm:$0xff]
          %v1777 = vld [vmem:[#allocation2 + $0x170] sm:$0xff]
          %v1778 = vld [vmem:[#allocation2 + $0x178] sm:$0xff]
          %v1779 = vld [vmem:[#allocation2 + $0x180] sm:$0xff]
          %v1780 = vld [vmem:[#allocation2 + $0x188] sm:$0xff]
          %v1781 = vld [vmem:[#allocation2 + $0x190] sm:$0xff]
          %v1782 = vld [vmem:[#allocation2 + $0x198] sm:$0xff]
          %v1783 = vld [vmem:[#allocation2 + $0x1a0] sm:$0xff]
          %v1784 = vld [vmem:[#allocation2 + $0x1a8] sm:$0xff]
          %v1785 = vld [vmem:[#allocation2 + $0x1b0] sm:$0xff]
          %v1786 = vld [vmem:[#allocation2 + $0x1b8] sm:$0xff]
          %v1787 = vld [vmem:[#allocation2 + $0x1c0] sm:$0xff]
          %v1788 = vld [vmem:[#allocation2 + $0x1c8] sm:$0xff]
          %v1789 = vld [vmem:[#allocation2 + $0x1d0] sm:$0xff]
          %v1790 = vld [vmem:[#allocation2 + $0x1d8] sm:$0xff]
          %v1791 = vld [vmem:[#allocation2 + $0x1e0] sm:$0xff]
          %v1792 = vld [vmem:[#allocation2 + $0x1e8] sm:$0xff]
          %v1793 = vld [vmem:[#allocation2 + $0x1f0] sm:$0xff]
          %v1794 = vld [vmem:[#allocation2 + $0x1f8] sm:$0xff]
          %v1795 = vld [vmem:[%s453] sm:$0x3]
          %v1797 = vlaneseq
          %v1798 = vshrl.u32 %v1797, 7
          %v1799 = vsub.s32 0, %v1798
          %v1800 = vrot.slane %v1795, %v1799
          %v1801 = vlaneseq
          %v1802 = vshrl.u32 %v1801, 7
          %v1803 = vsub.s32 1, %v1802
          %v1804 = vrot.slane %v1795, %v1803
          %v1807 = vmul.f32 %v1731, %v1800
          %v1808 = vmul.f32 %v1732, %v1804
          %v1809 = vmul.f32 %v1733, %v1800
          %v1810 = vmul.f32 %v1734, %v1804
          %v1811 = vmul.f32 %v1735, %v1800
          %v1812 = vmul.f32 %v1736, %v1804
          %v1813 = vmul.f32 %v1737, %v1800
          %v1814 = vmul.f32 %v1738, %v1804
          %v1815 = vmul.f32 %v1739, %v1800
          %v1816 = vmul.f32 %v1740, %v1804
          %v1817 = vmul.f32 %v1741, %v1800
          %v1818 = vmul.f32 %v1742, %v1804
          %v1819 = vmul.f32 %v1743, %v1800
          %v1820 = vmul.f32 %v1744, %v1804
          %v1821 = vmul.f32 %v1745, %v1800
          %v1822 = vmul.f32 %v1746, %v1804
          %v1823 = vmul.f32 %v1747, %v1800
          %v1824 = vmul.f32 %v1748, %v1804
          %v1825 = vmul.f32 %v1749, %v1800
          %v1826 = vmul.f32 %v1750, %v1804
          %v1827 = vmul.f32 %v1751, %v1800
          %v1828 = vmul.f32 %v1752, %v1804
          %v1829 = vmul.f32 %v1753, %v1800
          %v1830 = vmul.f32 %v1754, %v1804
          %v1831 = vmul.f32 %v1755, %v1800
          %v1832 = vmul.f32 %v1756, %v1804
          %v1833 = vmul.f32 %v1757, %v1800
          %v1834 = vmul.f32 %v1758, %v1804
          %v1835 = vmul.f32 %v1759, %v1800
          %v1836 = vmul.f32 %v1760, %v1804
          %v1837 = vmul.f32 %v1761, %v1800
          %v1838 = vmul.f32 %v1762, %v1804
          %v1839 = vmul.f32 %v1763, %v1800
          %v1840 = vmul.f32 %v1764, %v1804
          %v1841 = vmul.f32 %v1765, %v1800
          %v1842 = vmul.f32 %v1766, %v1804
          %v1843 = vmul.f32 %v1767, %v1800
          %v1844 = vmul.f32 %v1768, %v1804
          %v1845 = vmul.f32 %v1769, %v1800
          %v1846 = vmul.f32 %v1770, %v1804
          %v1847 = vmul.f32 %v1771, %v1800
          %v1848 = vmul.f32 %v1772, %v1804
          %v1849 = vmul.f32 %v1773, %v1800
          %v1850 = vmul.f32 %v1774, %v1804
          %v1851 = vmul.f32 %v1775, %v1800
          %v1852 = vmul.f32 %v1776, %v1804
          %v1853 = vmul.f32 %v1777, %v1800
          %v1854 = vmul.f32 %v1778, %v1804
          %v1855 = vmul.f32 %v1779, %v1800
          %v1856 = vmul.f32 %v1780, %v1804
          %v1857 = vmul.f32 %v1781, %v1800
          %v1858 = vmul.f32 %v1782, %v1804
          %v1859 = vmul.f32 %v1783, %v1800
          %v1860 = vmul.f32 %v1784, %v1804
          %v1861 = vmul.f32 %v1785, %v1800
          %v1862 = vmul.f32 %v1786, %v1804
          %v1863 = vmul.f32 %v1787, %v1800
          %v1864 = vmul.f32 %v1788, %v1804
          %v1865 = vmul.f32 %v1789, %v1800
          %v1866 = vmul.f32 %v1790, %v1804
          %v1867 = vmul.f32 %v1791, %v1800
          %v1868 = vmul.f32 %v1792, %v1804
          %v1869 = vmul.f32 %v1793, %v1800
          %v1870 = vmul.f32 %v1794, %v1804
          %v1871 = vld [vmem:[%s458] sm:$0x3]
          %v1873 = vlaneseq
          %v1874 = vshrl.u32 %v1873, 7
          %v1875 = vsub.s32 0, %v1874
          %v1876 = vrot.slane %v1871, %v1875
          %v1877 = vlaneseq
          %v1878 = vshrl.u32 %v1877, 7
          %v1879 = vsub.s32 1, %v1878
          %v1880 = vrot.slane %v1871, %v1879
          %v1883 = vadd.f32 %v1807, %v1876
          %v1884 = vadd.f32 %v1808, %v1880
          %v1885 = vadd.f32 %v1809, %v1876
          %v1886 = vadd.f32 %v1810, %v1880
          %v1887 = vadd.f32 %v1811, %v1876
          %v1888 = vadd.f32 %v1812, %v1880
          %v1889 = vadd.f32 %v1813, %v1876
          %v1890 = vadd.f32 %v1814, %v1880
          %v1891 = vadd.f32 %v1815, %v1876
          %v1892 = vadd.f32 %v1816, %v1880
          %v1893 = vadd.f32 %v1817, %v1876
          %v1894 = vadd.f32 %v1818, %v1880
          %v1895 = vadd.f32 %v1819, %v1876
          %v1896 = vadd.f32 %v1820, %v1880
          %v1897 = vadd.f32 %v1821, %v1876
          %v1898 = vadd.f32 %v1822, %v1880
          %v1899 = vadd.f32 %v1823, %v1876
          %v1900 = vadd.f32 %v1824, %v1880
          %v1901 = vadd.f32 %v1825, %v1876
          %v1902 = vadd.f32 %v1826, %v1880
          %v1903 = vadd.f32 %v1827, %v1876
          %v1904 = vadd.f32 %v1828, %v1880
          %v1905 = vadd.f32 %v1829, %v1876
          %v1906 = vadd.f32 %v1830, %v1880
          %v1907 = vadd.f32 %v1831, %v1876
          %v1908 = vadd.f32 %v1832, %v1880
          %v1909 = vadd.f32 %v1833, %v1876
          %v1910 = vadd.f32 %v1834, %v1880
          %v1911 = vadd.f32 %v1835, %v1876
          %v1912 = vadd.f32 %v1836, %v1880
          %v1913 = vadd.f32 %v1837, %v1876
          %v1914 = vadd.f32 %v1838, %v1880
          %v1915 = vadd.f32 %v1839, %v1876
          %v1916 = vadd.f32 %v1840, %v1880
          %v1917 = vadd.f32 %v1841, %v1876
          %v1918 = vadd.f32 %v1842, %v1880
          %v1919 = vadd.f32 %v1843, %v1876
          %v1920 = vadd.f32 %v1844, %v1880
          %v1921 = vadd.f32 %v1845, %v1876
          %v1922 = vadd.f32 %v1846, %v1880
          %v1923 = vadd.f32 %v1847, %v1876
          %v1924 = vadd.f32 %v1848, %v1880
          %v1925 = vadd.f32 %v1849, %v1876
          %v1926 = vadd.f32 %v1850, %v1880
          %v1927 = vadd.f32 %v1851, %v1876
          %v1928 = vadd.f32 %v1852, %v1880
          %v1929 = vadd.f32 %v1853, %v1876
          %v1930 = vadd.f32 %v1854, %v1880
          %v1931 = vadd.f32 %v1855, %v1876
          %v1932 = vadd.f32 %v1856, %v1880
          %v1933 = vadd.f32 %v1857, %v1876
          %v1934 = vadd.f32 %v1858, %v1880
          %v1935 = vadd.f32 %v1859, %v1876
          %v1936 = vadd.f32 %v1860, %v1880
          %v1937 = vadd.f32 %v1861, %v1876
          %v1938 = vadd.f32 %v1862, %v1880
          %v1939 = vadd.f32 %v1863, %v1876
          %v1940 = vadd.f32 %v1864, %v1880
          %v1941 = vadd.f32 %v1865, %v1876
          %v1942 = vadd.f32 %v1866, %v1880
          %v1943 = vadd.f32 %v1867, %v1876
          %v1944 = vadd.f32 %v1868, %v1880
          %v1945 = vadd.f32 %v1869, %v1876
          %v1946 = vadd.f32 %v1870, %v1880
          %v1947 = vmax.f32 %v1883, 0.0
          %v1948 = vmax.f32 %v1884, 0.0
          %v1949 = vmax.f32 %v1885, 0.0
          %v1950 = vmax.f32 %v1886, 0.0
          %v1951 = vmax.f32 %v1887, 0.0
          %v1952 = vmax.f32 %v1888, 0.0
          %v1953 = vmax.f32 %v1889, 0.0
          %v1954 = vmax.f32 %v1890, 0.0
          %v1955 = vmax.f32 %v1891, 0.0
          %v1956 = vmax.f32 %v1892, 0.0
          %v1957 = vmax.f32 %v1893, 0.0
          %v1958 = vmax.f32 %v1894, 0.0
          %v1959 = vmax.f32 %v1895, 0.0
          %v1960 = vmax.f32 %v1896, 0.0
          %v1961 = vmax.f32 %v1897, 0.0
          %v1962 = vmax.f32 %v1898, 0.0
          %v1963 = vmax.f32 %v1899, 0.0
          %v1964 = vmax.f32 %v1900, 0.0
          %v1965 = vmax.f32 %v1901, 0.0
          %v1966 = vmax.f32 %v1902, 0.0
          %v1967 = vmax.f32 %v1903, 0.0
          %v1968 = vmax.f32 %v1904, 0.0
          %v1969 = vmax.f32 %v1905, 0.0
          %v1970 = vmax.f32 %v1906, 0.0
          %v1971 = vmax.f32 %v1907, 0.0
          %v1972 = vmax.f32 %v1908, 0.0
          %v1973 = vmax.f32 %v1909, 0.0
          %v1974 = vmax.f32 %v1910, 0.0
          %v1975 = vmax.f32 %v1911, 0.0
          %v1976 = vmax.f32 %v1912, 0.0
          %v1977 = vmax.f32 %v1913, 0.0
          %v1978 = vmax.f32 %v1914, 0.0
          %v1979 = vmax.f32 %v1915, 0.0
          %v1980 = vmax.f32 %v1916, 0.0
          %v1981 = vmax.f32 %v1917, 0.0
          %v1982 = vmax.f32 %v1918, 0.0
          %v1983 = vmax.f32 %v1919, 0.0
          %v1984 = vmax.f32 %v1920, 0.0
          %v1985 = vmax.f32 %v1921, 0.0
          %v1986 = vmax.f32 %v1922, 0.0
          %v1987 = vmax.f32 %v1923, 0.0
          %v1988 = vmax.f32 %v1924, 0.0
          %v1989 = vmax.f32 %v1925, 0.0
          %v1990 = vmax.f32 %v1926, 0.0
          %v1991 = vmax.f32 %v1927, 0.0
          %v1992 = vmax.f32 %v1928, 0.0
          %v1993 = vmax.f32 %v1929, 0.0
          %v1994 = vmax.f32 %v1930, 0.0
          %v1995 = vmax.f32 %v1931, 0.0
          %v1996 = vmax.f32 %v1932, 0.0
          %v1997 = vmax.f32 %v1933, 0.0
          %v1998 = vmax.f32 %v1934, 0.0
          %v1999 = vmax.f32 %v1935, 0.0
          %v2000 = vmax.f32 %v1936, 0.0
          %v2001 = vmax.f32 %v1937, 0.0
          %v2002 = vmax.f32 %v1938, 0.0
          %v2003 = vmax.f32 %v1939, 0.0
          %v2004 = vmax.f32 %v1940, 0.0
          %v2005 = vmax.f32 %v1941, 0.0
          %v2006 = vmax.f32 %v1942, 0.0
          %v2007 = vmax.f32 %v1943, 0.0
          %v2008 = vmax.f32 %v1944, 0.0
          %v2009 = vmax.f32 %v1945, 0.0
          %v2010 = vmax.f32 %v1946, 0.0
          %2011 = vst [vmem:[%s469] sm:$0xff] %v1947
          %2012 = vst [vmem:[%s469 + $0x8] sm:$0xff] %v1948
          %2013 = vst [vmem:[%s469 + $0x10] sm:$0xff] %v1949
          %2014 = vst [vmem:[%s469 + $0x18] sm:$0xff] %v1950
          %2015 = vst [vmem:[%s469 + $0x20] sm:$0xff] %v1951
          %2016 = vst [vmem:[%s469 + $0x28] sm:$0xff] %v1952
          %2017 = vst [vmem:[%s469 + $0x30] sm:$0xff] %v1953
          %2018 = vst [vmem:[%s469 + $0x38] sm:$0xff] %v1954
          %2019 = vst [vmem:[%s469 + $0x40] sm:$0xff] %v1955
          %2020 = vst [vmem:[%s469 + $0x48] sm:$0xff] %v1956
          %2021 = vst [vmem:[%s469 + $0x50] sm:$0xff] %v1957
          %2022 = vst [vmem:[%s469 + $0x58] sm:$0xff] %v1958
          %2023 = vst [vmem:[%s469 + $0x60] sm:$0xff] %v1959
          %2024 = vst [vmem:[%s469 + $0x68] sm:$0xff] %v1960
          %2025 = vst [vmem:[%s469 + $0x70] sm:$0xff] %v1961
          %2026 = vst [vmem:[%s469 + $0x78] sm:$0xff] %v1962
          %2027 = vst [vmem:[%s469 + $0x80] sm:$0xff] %v1963
          %2028 = vst [vmem:[%s469 + $0x88] sm:$0xff] %v1964
          %2029 = vst [vmem:[%s469 + $0x90] sm:$0xff] %v1965
          %2030 = vst [vmem:[%s469 + $0x98] sm:$0xff] %v1966
          %2031 = vst [vmem:[%s469 + $0xa0] sm:$0xff] %v1967
          %2032 = vst [vmem:[%s469 + $0xa8] sm:$0xff] %v1968
          %2033 = vst [vmem:[%s469 + $0xb0] sm:$0xff] %v1969
          %2034 = vst [vmem:[%s469 + $0xb8] sm:$0xff] %v1970
          %2035 = vst [vmem:[%s469 + $0xc0] sm:$0xff] %v1971
          %2036 = vst [vmem:[%s469 + $0xc8] sm:$0xff] %v1972
          %2037 = vst [vmem:[%s469 + $0xd0] sm:$0xff] %v1973
          %2038 = vst [vmem:[%s469 + $0xd8] sm:$0xff] %v1974
          %2039 = vst [vmem:[%s469 + $0xe0] sm:$0xff] %v1975
          %2040 = vst [vmem:[%s469 + $0xe8] sm:$0xff] %v1976
          %2041 = vst [vmem:[%s469 + $0xf0] sm:$0xff] %v1977
          %2042 = vst [vmem:[%s469 + $0xf8] sm:$0xff] %v1978
          %2043 = vst [vmem:[%s469 + $0x100] sm:$0xff] %v1979
          %2044 = vst [vmem:[%s469 + $0x108] sm:$0xff] %v1980
          %2045 = vst [vmem:[%s469 + $0x110] sm:$0xff] %v1981
          %2046 = vst [vmem:[%s469 + $0x118] sm:$0xff] %v1982
          %2047 = vst [vmem:[%s469 + $0x120] sm:$0xff] %v1983
          %2048 = vst [vmem:[%s469 + $0x128] sm:$0xff] %v1984
          %2049 = vst [vmem:[%s469 + $0x130] sm:$0xff] %v1985
          %2050 = vst [vmem:[%s469 + $0x138] sm:$0xff] %v1986
          %2051 = vst [vmem:[%s469 + $0x140] sm:$0xff] %v1987
          %2052 = vst [vmem:[%s469 + $0x148] sm:$0xff] %v1988
          %2053 = vst [vmem:[%s469 + $0x150] sm:$0xff] %v1989
          %2054 = vst [vmem:[%s469 + $0x158] sm:$0xff] %v1990
          %2055 = vst [vmem:[%s469 + $0x160] sm:$0xff] %v1991
          %2056 = vst [vmem:[%s469 + $0x168] sm:$0xff] %v1992
          %2057 = vst [vmem:[%s469 + $0x170] sm:$0xff] %v1993
          %2058 = vst [vmem:[%s469 + $0x178] sm:$0xff] %v1994
          %2059 = vst [vmem:[%s469 + $0x180] sm:$0xff] %v1995
          %2060 = vst [vmem:[%s469 + $0x188] sm:$0xff] %v1996
          %2061 = vst [vmem:[%s469 + $0x190] sm:$0xff] %v1997
          %2062 = vst [vmem:[%s469 + $0x198] sm:$0xff] %v1998
          %2063 = vst [vmem:[%s469 + $0x1a0] sm:$0xff] %v1999
          %2064 = vst [vmem:[%s469 + $0x1a8] sm:$0xff] %v2000
          %2065 = vst [vmem:[%s469 + $0x1b0] sm:$0xff] %v2001
          %2066 = vst [vmem:[%s469 + $0x1b8] sm:$0xff] %v2002
          %2067 = vst [vmem:[%s469 + $0x1c0] sm:$0xff] %v2003
          %2068 = vst [vmem:[%s469 + $0x1c8] sm:$0xff] %v2004
          %2069 = vst [vmem:[%s469 + $0x1d0] sm:$0xff] %v2005
          %2070 = vst [vmem:[%s469 + $0x1d8] sm:$0xff] %v2006
          %2071 = vst [vmem:[%s469 + $0x1e0] sm:$0xff] %v2007
          %2072 = vst [vmem:[%s469 + $0x1e8] sm:$0xff] %v2008
          %2073 = vst [vmem:[%s469 + $0x1f0] sm:$0xff] %v2009
          %2074 = vst [vmem:[%s469 + $0x1f8] sm:$0xff] %v2010
        $region70: #{mixed_6a_forward.6} parent=57 // pred_fallthru
          _
        %s2075 = smul.u32 32, %s20
        %s2076 = smul.u32 2, %s21
        %p2077 = scmp.lt.s32.totalorder %s2075, 63
        %s2078 = scalar_select %p2077, %s2075, 63
        %p2079 = scmp.lt.s32.totalorder %s2076, 1
        %s2080 = scalar_select %p2079, %s2076, 1
        %s2081 = smul.addr %s2078, 2
        %s2082 = sadd.s32 %s2080, %s2081
        %s2083 = smul.addr %s2082, 8
        %s2084 = scalar_lea.vmem %s4, %s2083
        // Predicated region
        $region71: #{mixed_6a_forward.6} parent=57 // pred_check
          %p2085 = pneg %p162
        $region72: #{mixed_6a_forward.6} parent=57 // pred_check_branch
          %2087 = sbr.rel (%p2085) target = $region74
        $region73: #{mixed_6a_forward.6} parent=57 // pred_region
          %s2088 = smul.u32 32, %s20
          %s2089 = smul.u32 2, %s21
        $region74: #{mixed_6a_forward.6} parent=57 // pred_fallthru
          _
      $region58: #{mixed_6a_forward.6} parent=5 // pred_fallthru
        _
      %p2090 = scmp.le.s32.totalorder 2, %s10
      // Predicated region
      $region75: #{mixed_6a_forward.6} parent=5 // pred_check
        %p2091 = pneg %p2090
      $region76: #{mixed_6a_forward.6} parent=5 // pred_check_branch
        %2093 = sbr.rel (%p2091) target = $region78
      $region77: #{mixed_6a_forward.6} parent=5 // pred_region
        %s2094 = ssub.s32 %s10, 2
        // Predicated region
        $region79: #{mixed_6a_forward.6} parent=77 // pred_check
          %p2095 = pneg %p168
        $region80: #{mixed_6a_forward.6} parent=77 // pred_check_branch
          %2097 = sbr.rel (%p2095) target = $region82
        $region81: #{mixed_6a_forward.6} parent=77 // pred_region
          %s2098 = smul.u32 32, %s23
          %s2099 = smul.u32 2, %s24
          %p2100 = scmp.lt.s32.totalorder %s2098, 63
          %s2101 = scalar_select %p2100, %s2098, 63
          %p2102 = scmp.lt.s32.totalorder %s2099, 1
          %s2103 = scalar_select %p2102, %s2099, 1
          %s2104 = smul.addr %s2101, 2
          %s2105 = sadd.s32 %s2103, %s2104
          %s2106 = smul.addr %s2105, 8
          %s2107 = scalar_lea.vmem %s4, %s2106
        $region82: #{mixed_6a_forward.6} parent=77 // pred_fallthru
          _
      $region78: #{mixed_6a_forward.6} parent=5 // pred_fallthru
        _
    $region6: #{mixed_6a_forward.6} parent=1 // loop_footer
      %s14 = sadd.s32 1, %s10
    $region7: #{mixed_6a_forward.6} parent=1 // loop_footer_branch
      %9 = sbr.rel target = $region3
    $region8: #{mixed_6a_forward.6} parent=1 // loop_exit
      _

// kernel: mixed_6a_forward.7
$region0: #{mixed_6a_forward.7}
  #allocation0 [shape = 'u32[]', space=smem, size = 0x4, offset = 0x4, fixed_abs, tag = 'smem constant byte address 0x4 - core index']
  #allocation1 [shape = 'u32[144,128]{1,0:T(1,128)}', space=vmem, size = 0x12000, scoped, tag = 'internal scratch']
  #allocation2 [shape = 'f32[104,128]{1,0:T(8,128)}', space=vmem, size = 0xd000, scoped, tag = 'scratch operand']
  %s0 = inlined_call_operand.vmem [shape: bf16[104,2304], index: 0, kind: input, shape index: {}]
  %s1 = inlined_call_operand.vmem [shape: bf16[2304,384], index: 1, kind: input, shape index: {}]
  %s2 = inlined_call_operand.vmem [shape: f32[1,384], index: 2, kind: input, shape index: {}]
  %s3 = inlined_call_operand.vmem [shape: f32[1,384], index: 3, kind: input, shape index: {}]
  %s4 = inlined_call_operand.vmem [shape: f32[104,384], index: 4, kind: output, shape index: {}]
  %s5 = sld [smem:[#allocation0]]
  $region158: #{mixed_6a_forward.7} parent=0
    _
  %s7 = ssub.s32 1, %s5
  %s8 = scalar_select 0, %s7, %s5
  $region1: #{mixed_6a_forward.7} parent=0
    #allocation3 [shape = 'u8[159744]{0}', space=vmem, size = 0x27000, scoped, tag = 'input window, operand 0']
    #allocation4 [shape = 'u8[196608]{0}', space=vmem, size = 0x30000, scoped, tag = 'input window, operand 1']
    #allocation5 [shape = 'u8[106496]{0}', space=vmem, size = 0x1a000, scoped, tag = 'output window, operand 0']
    loop: start=0, step=1, limit=20
    $region2: #{mixed_6a_forward.7} parent=1 // loop_pre_header
      _
    $region3: #{mixed_6a_forward.7} parent=1 // loop_header
      %s10 = sphi 0, %s14
      %p11 = scmp.ge.s32.totalorder %s10, 20
      %s17 = sphi 0, %s36
      %s18 = sphi 0, %s32
      %s19 = sphi 0, %s28
      %s20 = sphi 0, %s17
      %s21 = sphi 0, %s18
      %s22 = sphi 0, %s19
      %s23 = sphi 0, %s20
      %s24 = sphi 0, %s21
      %s25 = sphi 0, %s22
      %s41 = sphi 0, %s43
      %s44 = sphi 0, %s41
      %s45 = sphi 0, %s44
      %s61 = sphi 0, %s45
      %s69 = sphi 0, %s71
      %s72 = sphi 0, %s69
      %s73 = sphi 0, %s72
      %s89 = sphi 0, %s73
      %s95 = sphi 0, %s97
      %s98 = sphi 0, %s95
      %s99 = sphi 0, %s98
      %s115 = sphi 0, %s99
      %s121 = sphi 0, %s123
      %s124 = sphi 0, %s121
      %s125 = sphi 0, %s124
      %s141 = sphi 0, %s125
      %s149 = sphi 0, %s151
      %s152 = sphi 0, %s149
      %s153 = sphi 0, %s152
      %s169 = sphi 0, %s153
    $region4: #{mixed_6a_forward.7} parent=1 // loop_header_branch
      %13 = sbr.rel (%p11) target = $region8
    $region5: #{mixed_6a_forward.7} parent=1 // loop_body
      %s15 = ssub.s32 %s10, 1
      %s16 = ssub.s32 %s10, 2
      %s26 = sadd.s32 1, %s19
      %p27 = scmp.ge.s32.totalorder %s26, 6
      %s28 = scalar_select %p27, 0, %s26
      %s29 = sadd.s32 1, %s18
      %s30 = scalar_select %p27, %s29, %s18
      %p31 = scmp.ge.s32.totalorder %s30, 3
      %s32 = scalar_select %p31, 0, %s30
      %s33 = sadd.s32 1, %s17
      %s34 = scalar_select %p31, %s33, %s17
      %p35 = scmp.ge.s32.totalorder %s34, 1
      %s36 = scalar_select %p35, 0, %s34
      %s37 = ssub.s32 %s17, %s36
      %s38 = ssub.s32 %s19, %s28
      %s39 = sor.u32 %s37, %s38
      %p40 = scmp.eq.s32.totalorder %s39, 0
      %s42 = sadd.s32 %s41, 1
      %s43 = scalar_select %p40, %s41, %s42
      %p46 = pneg %p40
      %p47 = scmp.eq.s32.totalorder %s10, 17
      %p48 = por %p46, %p47
      %p49 = scmp.ne.s32.totalorder %s41, %s44
      %p50 = scmp.eq.s32.totalorder %s10, 0
      %p51 = por %p49, %p50
      %p52 = scmp.ne.s32.totalorder %s41, %s44
      %p53 = scmp.eq.s32.totalorder %s15, 17
      %p54 = por %p52, %p53
      %p55 = scmp.ne.s32.totalorder %s44, %s45
      %p56 = scmp.eq.s32.totalorder %s15, 0
      %p57 = por %p55, %p56
      %p58 = scmp.ne.s32.totalorder %s44, %s45
      %p59 = scmp.eq.s32.totalorder %s16, 17
      %p60 = por %p58, %p59
      %p62 = scmp.ne.s32.totalorder %s45, %s61
      %p63 = scmp.eq.s32.totalorder %s16, 0
      %p64 = por %p62, %p63
      %s65 = ssub.s32 %s19, %s28
      %s66 = ssub.s32 %s18, %s32
      %s67 = sor.u32 %s65, %s66
      %p68 = scmp.eq.s32.totalorder %s67, 0
      %s70 = sadd.s32 %s69, 1
      %s71 = scalar_select %p68, %s69, %s70
      %p74 = pneg %p68
      %p75 = scmp.eq.s32.totalorder %s10, 17
      %p76 = por %p74, %p75
      %p77 = scmp.ne.s32.totalorder %s69, %s72
      %p78 = scmp.eq.s32.totalorder %s10, 0
      %p79 = por %p77, %p78
      %p80 = scmp.ne.s32.totalorder %s69, %s72
      %p81 = scmp.eq.s32.totalorder %s15, 17
      %p82 = por %p80, %p81
      %p83 = scmp.ne.s32.totalorder %s72, %s73
      %p84 = scmp.eq.s32.totalorder %s15, 0
      %p85 = por %p83, %p84
      %p86 = scmp.ne.s32.totalorder %s72, %s73
      %p87 = scmp.eq.s32.totalorder %s16, 17
      %p88 = por %p86, %p87
      %p90 = scmp.ne.s32.totalorder %s73, %s89
      %p91 = scmp.eq.s32.totalorder %s16, 0
      %p92 = por %p90, %p91
      %s93 = ssub.s32 %s18, %s32
      %p94 = scmp.eq.s32.totalorder %s93, 0
      %s96 = sadd.s32 %s95, 1
      %s97 = scalar_select %p94, %s95, %s96
      %p100 = pneg %p94
      %p101 = scmp.eq.s32.totalorder %s10, 17
      %p102 = por %p100, %p101
      %p103 = scmp.ne.s32.totalorder %s95, %s98
      %p104 = scmp.eq.s32.totalorder %s10, 0
      %p105 = por %p103, %p104
      %p106 = scmp.ne.s32.totalorder %s95, %s98
      %p107 = scmp.eq.s32.totalorder %s15, 17
      %p108 = por %p106, %p107
      %p109 = scmp.ne.s32.totalorder %s98, %s99
      %p110 = scmp.eq.s32.totalorder %s15, 0
      %p111 = por %p109, %p110
      %p112 = scmp.ne.s32.totalorder %s98, %s99
      %p113 = scmp.eq.s32.totalorder %s16, 17
      %p114 = por %p112, %p113
      %p116 = scmp.ne.s32.totalorder %s99, %s115
      %p117 = scmp.eq.s32.totalorder %s16, 0
      %p118 = por %p116, %p117
      %s119 = ssub.s32 %s18, %s32
      %p120 = scmp.eq.s32.totalorder %s119, 0
      %s122 = sadd.s32 %s121, 1
      %s123 = scalar_select %p120, %s121, %s122
      %p126 = pneg %p120
      %p127 = scmp.eq.s32.totalorder %s10, 17
      %p128 = por %p126, %p127
      %p129 = scmp.ne.s32.totalorder %s121, %s124
      %p130 = scmp.eq.s32.totalorder %s10, 0
      %p131 = por %p129, %p130
      %p132 = scmp.ne.s32.totalorder %s121, %s124
      %p133 = scmp.eq.s32.totalorder %s15, 17
      %p134 = por %p132, %p133
      %p135 = scmp.ne.s32.totalorder %s124, %s125
      %p136 = scmp.eq.s32.totalorder %s15, 0
      %p137 = por %p135, %p136
      %p138 = scmp.ne.s32.totalorder %s124, %s125
      %p139 = scmp.eq.s32.totalorder %s16, 17
      %p140 = por %p138, %p139
      %p142 = scmp.ne.s32.totalorder %s125, %s141
      %p143 = scmp.eq.s32.totalorder %s16, 0
      %p144 = por %p142, %p143
      %s145 = ssub.s32 %s17, %s36
      %s146 = ssub.s32 %s18, %s32
      %s147 = sor.u32 %s145, %s146
      %p148 = scmp.eq.s32.totalorder %s147, 0
      %s150 = sadd.s32 %s149, 1
      %s151 = scalar_select %p148, %s149, %s150
      %p154 = pneg %p148
      %p155 = scmp.eq.s32.totalorder %s10, 17
      %p156 = por %p154, %p155
      %p157 = scmp.ne.s32.totalorder %s149, %s152
      %p158 = scmp.eq.s32.totalorder %s10, 0
      %p159 = por %p157, %p158
      %p160 = scmp.ne.s32.totalorder %s149, %s152
      %p161 = scmp.eq.s32.totalorder %s15, 17
      %p162 = por %p160, %p161
      %p163 = scmp.ne.s32.totalorder %s152, %s153
      %p164 = scmp.eq.s32.totalorder %s15, 0
      %p165 = por %p163, %p164
      %p166 = scmp.ne.s32.totalorder %s152, %s153
      %p167 = scmp.eq.s32.totalorder %s16, 17
      %p168 = por %p166, %p167
      %p170 = scmp.ne.s32.totalorder %s153, %s169
      %p171 = scmp.eq.s32.totalorder %s16, 0
      %p172 = por %p170, %p171
      %p173 = scmp.le.s32.totalorder 1, %s10
      %p174 = scmp.lt.s32.totalorder %s10, 19
      %p175 = pnand %p173, %p174
      %p176 = pneg %p175
      // Predicated region
      $region9: #{mixed_6a_forward.7} parent=5 // pred_check
        _
      $region10: #{mixed_6a_forward.7} parent=5 // pred_check_branch
        %178 = sbr.rel (%p175) target = $region12
      $region11: #{mixed_6a_forward.7} parent=5 // pred_region
        %s179 = ssub.s32 %s10, 1
      $region12: #{mixed_6a_forward.7} parent=5 // pred_fallthru
        _
      %p180 = scmp.lt.s32.totalorder %s10, 18
      // Predicated region
      $region13: #{mixed_6a_forward.7} parent=5 // pred_check
        %p181 = pneg %p180
      $region14: #{mixed_6a_forward.7} parent=5 // pred_check_branch
        %183 = sbr.rel (%p181) target = $region16
      $region15: #{mixed_6a_forward.7} parent=5 // pred_region
        // Predicated region
        $region17: #{mixed_6a_forward.7} parent=15 // pred_check
          %p184 = pneg %p51
        $region18: #{mixed_6a_forward.7} parent=15 // pred_check_branch
          %186 = sbr.rel (%p184) target = $region20
        $region19: #{mixed_6a_forward.7} parent=15 // pred_region
          %s187 = sand.u32 %s41, 1
          %s188 = sand.u32 %s41, 1
          %s189 = smul.addr %s188, 156
          %s190 = scalar_lea.vmem [#allocation3], %s189
          %s191 = smul.u32 13, %s17
          %s192 = smul.u32 3, %s19
          %s193 = smul.addr %s191, 18
          %s194 = sadd.s32 %s192, %s193
          %s195 = smul.addr %s194, 4
          %s196 = scalar_lea.vmem %s0, %s195
          // Predicated region
          $region21: #{mixed_6a_forward.7} parent=19 // pred_check
            _
          $region22: #{mixed_6a_forward.7} parent=19 // pred_check_branch
            %198 = sbr.rel (0) target = $region24
          $region23: #{mixed_6a_forward.7} parent=19 // pred_region
            // Predicated region
            $region25: #{mixed_6a_forward.7} parent=23 // pred_check
              _
            $region26: #{mixed_6a_forward.7} parent=23 // pred_check_branch
              %200 = sbr.rel (0) target = $region28
            $region27: #{mixed_6a_forward.7} parent=23 // pred_region
              %s201 = scalar_lea.vmem %s196, 8
              %s202 = scalar_lea.vmem %s190, 8 [#allocation3]
              loop: start=0, step=1, limit=1
              $region29: #{mixed_6a_forward.7} parent=27 // loop_pre_header
                _
              $region30: #{mixed_6a_forward.7} parent=27 // loop_header
                %s204 = sphi 0, %s208
                %p205 = scmp.ge.s32.totalorder %s204, 1
                %s209 = sphi %s196, %s196
                %s210 = sphi %s190, %s190
              $region31: #{mixed_6a_forward.7} parent=27 // loop_header_branch
                %207 = sbr.rel (%p205) target = $region35
              $region32: #{mixed_6a_forward.7} parent=27 // loop_body
                %v211 = vld [vmem:[%s209] sm:$0xff]
                %212 = vst [vmem:[%s210] sm:$0xff] %v211
                %v213 = vld [vmem:[%s209 + $0x48] sm:$0xff]
                %214 = vst [vmem:[%s210 + $0xc] sm:$0xff] %v213
                %v215 = vld [vmem:[%s209 + $0x90] sm:$0xff]
                %216 = vst [vmem:[%s210 + $0x18] sm:$0xff] %v215
                %v217 = vld [vmem:[%s209 + $0xd8] sm:$0xff]
                %218 = vst [vmem:[%s210 + $0x24] sm:$0xff] %v217
                %v219 = vld [vmem:[%s209 + $0x120] sm:$0xff]
                %220 = vst [vmem:[%s210 + $0x30] sm:$0xff] %v219
                %v221 = vld [vmem:[%s209 + $0x168] sm:$0xff]
                %222 = vst [vmem:[%s210 + $0x3c] sm:$0xff] %v221
                %v223 = vld [vmem:[%s209 + $0x1b0] sm:$0xff]
                %224 = vst [vmem:[%s210 + $0x48] sm:$0xff] %v223
                %v225 = vld [vmem:[%s209 + $0x1f8] sm:$0xff]
                %226 = vst [vmem:[%s210 + $0x54] sm:$0xff] %v225
                %v227 = vld [vmem:[%s209 + $0x240] sm:$0xff]
                %228 = vst [vmem:[%s210 + $0x60] sm:$0xff] %v227
                %v229 = vld [vmem:[%s209 + $0x288] sm:$0xff]
                %230 = vst [vmem:[%s210 + $0x6c] sm:$0xff] %v229
                %v231 = vld [vmem:[%s209 + $0x2d0] sm:$0xff]
                %232 = vst [vmem:[%s210 + $0x78] sm:$0xff] %v231
                %v233 = vld [vmem:[%s209 + $0x318] sm:$0xff]
                %234 = vst [vmem:[%s210 + $0x84] sm:$0xff] %v233
                %v235 = vld [vmem:[%s209 + $0x360] sm:$0xff]
                %236 = vst [vmem:[%s210 + $0x90] sm:$0xff] %v235
              $region33: #{mixed_6a_forward.7} parent=27 // loop_footer
                %s208 = sadd.s32 1, %s204
              $region34: #{mixed_6a_forward.7} parent=27 // loop_footer_branch
                %203 = sbr.rel target = $region30
              $region35: #{mixed_6a_forward.7} parent=27 // loop_exit
                _
              loop: start=0, step=1, limit=1
              $region36: #{mixed_6a_forward.7} parent=27 // loop_pre_header
                _
              $region37: #{mixed_6a_forward.7} parent=27 // loop_header
                %s239 = sphi 0, %s243
                %p240 = scmp.ge.s32.totalorder %s239, 1
                %s244 = sphi %s201, %s201
                %s245 = sphi %s202, %s202
              $region38: #{mixed_6a_forward.7} parent=27 // loop_header_branch
                %242 = sbr.rel (%p240) target = $region42
              $region39: #{mixed_6a_forward.7} parent=27 // loop_body
                %v246 = vld [vmem:[%s244] sm:$0xf]
                %247 = vst [vmem:[%s245] sm:$0xf] %v246
                %v248 = vld [vmem:[%s244 + $0x48] sm:$0xf]
                %249 = vst [vmem:[%s245 + $0xc] sm:$0xf] %v248
                %v250 = vld [vmem:[%s244 + $0x90] sm:$0xf]
                %251 = vst [vmem:[%s245 + $0x18] sm:$0xf] %v250
                %v252 = vld [vmem:[%s244 + $0xd8] sm:$0xf]
                %253 = vst [vmem:[%s245 + $0x24] sm:$0xf] %v252
                %v254 = vld [vmem:[%s244 + $0x120] sm:$0xf]
                %255 = vst [vmem:[%s245 + $0x30] sm:$0xf] %v254
                %v256 = vld [vmem:[%s244 + $0x168] sm:$0xf]
                %257 = vst [vmem:[%s245 + $0x3c] sm:$0xf] %v256
                %v258 = vld [vmem:[%s244 + $0x1b0] sm:$0xf]
                %259 = vst [vmem:[%s245 + $0x48] sm:$0xf] %v258
                %v260 = vld [vmem:[%s244 + $0x1f8] sm:$0xf]
                %261 = vst [vmem:[%s245 + $0x54] sm:$0xf] %v260
                %v262 = vld [vmem:[%s244 + $0x240] sm:$0xf]
                %263 = vst [vmem:[%s245 + $0x60] sm:$0xf] %v262
                %v264 = vld [vmem:[%s244 + $0x288] sm:$0xf]
                %265 = vst [vmem:[%s245 + $0x6c] sm:$0xf] %v264
                %v266 = vld [vmem:[%s244 + $0x2d0] sm:$0xf]
                %267 = vst [vmem:[%s245 + $0x78] sm:$0xf] %v266
                %v268 = vld [vmem:[%s244 + $0x318] sm:$0xf]
                %269 = vst [vmem:[%s245 + $0x84] sm:$0xf] %v268
                %v270 = vld [vmem:[%s244 + $0x360] sm:$0xf]
                %271 = vst [vmem:[%s245 + $0x90] sm:$0xf] %v270
              $region40: #{mixed_6a_forward.7} parent=27 // loop_footer
                %s243 = sadd.s32 1, %s239
              $region41: #{mixed_6a_forward.7} parent=27 // loop_footer_branch
                %238 = sbr.rel target = $region37
              $region42: #{mixed_6a_forward.7} parent=27 // loop_exit
                _
            $region28: #{mixed_6a_forward.7} parent=23 // pred_fallthru
              _
          $region24: #{mixed_6a_forward.7} parent=19 // pred_fallthru
            _
          %272 = vnop
        $region20: #{mixed_6a_forward.7} parent=15 // pred_fallthru
          _
        // Predicated region
        $region43: #{mixed_6a_forward.7} parent=15 // pred_check
          %p273 = pneg %p79
        $region44: #{mixed_6a_forward.7} parent=15 // pred_check_branch
          %275 = sbr.rel (%p273) target = $region46
        $region45: #{mixed_6a_forward.7} parent=15 // pred_region
          %s276 = sand.u32 %s69, 1
          %s277 = sand.u32 %s69, 1
          %s278 = smul.addr %s277, 192
          %s279 = scalar_lea.vmem [#allocation4], %s278
          %s280 = smul.u32 48, %s19
          %s281 = smul.addr %s280, 3
          %s282 = sadd.s32 %s18, %s281
          %s283 = smul.addr %s282, 4
          %s284 = scalar_lea.vmem %s1, %s283
          // Predicated region
          $region47: #{mixed_6a_forward.7} parent=45 // pred_check
            _
          $region48: #{mixed_6a_forward.7} parent=45 // pred_check_branch
            %286 = sbr.rel (0) target = $region50
          $region49: #{mixed_6a_forward.7} parent=45 // pred_region
            // Predicated region
            $region51: #{mixed_6a_forward.7} parent=49 // pred_check
              _
            $region52: #{mixed_6a_forward.7} parent=49 // pred_check_branch
              %288 = sbr.rel target = $region54
            $region53: #{mixed_6a_forward.7} parent=49 // pred_region
              // Predicated region
              $region66: #{mixed_6a_forward.7} parent=53 // pred_check
                _
              $region67: #{mixed_6a_forward.7} parent=53 // pred_check_branch
                %397 = sbr.rel (0) target = $region69
              $region68: #{mixed_6a_forward.7} parent=53 // pred_region
                loop: start=0, step=1, limit=1
                $region70: #{mixed_6a_forward.7} parent=68 // loop_pre_header
                  _
                $region71: #{mixed_6a_forward.7} parent=68 // loop_header
                  %s399 = sphi 0, %s403
                  %p400 = scmp.ge.s32.totalorder %s399, 1
                  %s404 = sphi %s284, %s284
                  %s405 = sphi %s279, %s279
                $region72: #{mixed_6a_forward.7} parent=68 // loop_header_branch
                  %402 = sbr.rel (%p400) target = $region76
                $region73: #{mixed_6a_forward.7} parent=68 // loop_body
                  _
                $region74: #{mixed_6a_forward.7} parent=68 // loop_footer
                  %s403 = sadd.s32 1, %s399
                $region75: #{mixed_6a_forward.7} parent=68 // loop_footer_branch
                  %398 = sbr.rel target = $region71
                $region76: #{mixed_6a_forward.7} parent=68 // loop_exit
                  _
                loop: start=0, step=1, limit=1
                $region77: #{mixed_6a_forward.7} parent=68 // loop_pre_header
                  _
                $region78: #{mixed_6a_forward.7} parent=68 // loop_header
                  %s408 = sphi 0, %s412
                  %p409 = scmp.ge.s32.totalorder %s408, 1
                  %s413 = sphi %s284, %s284
                  %s414 = sphi %s279, %s279
                $region79: #{mixed_6a_forward.7} parent=68 // loop_header_branch
                  %411 = sbr.rel (%p409) target = $region83
                $region80: #{mixed_6a_forward.7} parent=68 // loop_body
                  %v415 = vld [vmem:[%s413] sm:$0xf]
                  %416 = vst [vmem:[%s414] sm:$0xf] %v415
                  %v417 = vld [vmem:[%s413 + $0xc] sm:$0xf]
                  %418 = vst [vmem:[%s414 + $0x4] sm:$0xf] %v417
                  %v419 = vld [vmem:[%s413 + $0x18] sm:$0xf]
                  %420 = vst [vmem:[%s414 + $0x8] sm:$0xf] %v419
                  %v421 = vld [vmem:[%s413 + $0x24] sm:$0xf]
                  %422 = vst [vmem:[%s414 + $0xc] sm:$0xf] %v421
                  %v423 = vld [vmem:[%s413 + $0x30] sm:$0xf]
                  %424 = vst [vmem:[%s414 + $0x10] sm:$0xf] %v423
                  %v425 = vld [vmem:[%s413 + $0x3c] sm:$0xf]
                  %426 = vst [vmem:[%s414 + $0x14] sm:$0xf] %v425
                  %v427 = vld [vmem:[%s413 + $0x48] sm:$0xf]
                  %428 = vst [vmem:[%s414 + $0x18] sm:$0xf] %v427
                  %v429 = vld [vmem:[%s413 + $0x54] sm:$0xf]
                  %430 = vst [vmem:[%s414 + $0x1c] sm:$0xf] %v429
                  %v431 = vld [vmem:[%s413 + $0x60] sm:$0xf]
                  %432 = vst [vmem:[%s414 + $0x20] sm:$0xf] %v431
                  %v433 = vld [vmem:[%s413 + $0x6c] sm:$0xf]
                  %434 = vst [vmem:[%s414 + $0x24] sm:$0xf] %v433
                  %v435 = vld [vmem:[%s413 + $0x78] sm:$0xf]
                  %436 = vst [vmem:[%s414 + $0x28] sm:$0xf] %v435
                  %v437 = vld [vmem:[%s413 + $0x84] sm:$0xf]
                  %438 = vst [vmem:[%s414 + $0x2c] sm:$0xf] %v437
                  %v439 = vld [vmem:[%s413 + $0x90] sm:$0xf]
                  %440 = vst [vmem:[%s414 + $0x30] sm:$0xf] %v439
                  %v441 = vld [vmem:[%s413 + $0x9c] sm:$0xf]
                  %442 = vst [vmem:[%s414 + $0x34] sm:$0xf] %v441
                  %v443 = vld [vmem:[%s413 + $0xa8] sm:$0xf]
                  %444 = vst [vmem:[%s414 + $0x38] sm:$0xf] %v443
                  %v445 = vld [vmem:[%s413 + $0xb4] sm:$0xf]
                  %446 = vst [vmem:[%s414 + $0x3c] sm:$0xf] %v445
                  %v447 = vld [vmem:[%s413 + $0xc0] sm:$0xf]
                  %448 = vst [vmem:[%s414 + $0x40] sm:$0xf] %v447
                  %v449 = vld [vmem:[%s413 + $0xcc] sm:$0xf]
                  %450 = vst [vmem:[%s414 + $0x44] sm:$0xf] %v449
                  %v451 = vld [vmem:[%s413 + $0xd8] sm:$0xf]
                  %452 = vst [vmem:[%s414 + $0x48] sm:$0xf] %v451
                  %v453 = vld [vmem:[%s413 + $0xe4] sm:$0xf]
                  %454 = vst [vmem:[%s414 + $0x4c] sm:$0xf] %v453
                  %v455 = vld [vmem:[%s413 + $0xf0] sm:$0xf]
                  %456 = vst [vmem:[%s414 + $0x50] sm:$0xf] %v455
                  %v457 = vld [vmem:[%s413 + $0xfc] sm:$0xf]
                  %458 = vst [vmem:[%s414 + $0x54] sm:$0xf] %v457
                  %v459 = vld [vmem:[%s413 + $0x108] sm:$0xf]
                  %460 = vst [vmem:[%s414 + $0x58] sm:$0xf] %v459
                  %v461 = vld [vmem:[%s413 + $0x114] sm:$0xf]
                  %462 = vst [vmem:[%s414 + $0x5c] sm:$0xf] %v461
                  %v463 = vld [vmem:[%s413 + $0x120] sm:$0xf]
                  %464 = vst [vmem:[%s414 + $0x60] sm:$0xf] %v463
                  %v465 = vld [vmem:[%s413 + $0x12c] sm:$0xf]
                  %466 = vst [vmem:[%s414 + $0x64] sm:$0xf] %v465
                  %v467 = vld [vmem:[%s413 + $0x138] sm:$0xf]
                  %468 = vst [vmem:[%s414 + $0x68] sm:$0xf] %v467
                  %v469 = vld [vmem:[%s413 + $0x144] sm:$0xf]
                  %470 = vst [vmem:[%s414 + $0x6c] sm:$0xf] %v469
                  %v471 = vld [vmem:[%s413 + $0x150] sm:$0xf]
                  %472 = vst [vmem:[%s414 + $0x70] sm:$0xf] %v471
                  %v473 = vld [vmem:[%s413 + $0x15c] sm:$0xf]
                  %474 = vst [vmem:[%s414 + $0x74] sm:$0xf] %v473
                  %v475 = vld [vmem:[%s413 + $0x168] sm:$0xf]
                  %476 = vst [vmem:[%s414 + $0x78] sm:$0xf] %v475
                  %v477 = vld [vmem:[%s413 + $0x174] sm:$0xf]
                  %478 = vst [vmem:[%s414 + $0x7c] sm:$0xf] %v477
                  %v479 = vld [vmem:[%s413 + $0x180] sm:$0xf]
                  %480 = vst [vmem:[%s414 + $0x80] sm:$0xf] %v479
                  %v481 = vld [vmem:[%s413 + $0x18c] sm:$0xf]
                  %482 = vst [vmem:[%s414 + $0x84] sm:$0xf] %v481
                  %v483 = vld [vmem:[%s413 + $0x198] sm:$0xf]
                  %484 = vst [vmem:[%s414 + $0x88] sm:$0xf] %v483
                  %v485 = vld [vmem:[%s413 + $0x1a4] sm:$0xf]
                  %486 = vst [vmem:[%s414 + $0x8c] sm:$0xf] %v485
                  %v487 = vld [vmem:[%s413 + $0x1b0] sm:$0xf]
                  %488 = vst [vmem:[%s414 + $0x90] sm:$0xf] %v487
                  %v489 = vld [vmem:[%s413 + $0x1bc] sm:$0xf]
                  %490 = vst [vmem:[%s414 + $0x94] sm:$0xf] %v489
                  %v491 = vld [vmem:[%s413 + $0x1c8] sm:$0xf]
                  %492 = vst [vmem:[%s414 + $0x98] sm:$0xf] %v491
                  %v493 = vld [vmem:[%s413 + $0x1d4] sm:$0xf]
                  %494 = vst [vmem:[%s414 + $0x9c] sm:$0xf] %v493
                  %v495 = vld [vmem:[%s413 + $0x1e0] sm:$0xf]
                  %496 = vst [vmem:[%s414 + $0xa0] sm:$0xf] %v495
                  %v497 = vld [vmem:[%s413 + $0x1ec] sm:$0xf]
                  %498 = vst [vmem:[%s414 + $0xa4] sm:$0xf] %v497
                  %v499 = vld [vmem:[%s413 + $0x1f8] sm:$0xf]
                  %500 = vst [vmem:[%s414 + $0xa8] sm:$0xf] %v499
                  %v501 = vld [vmem:[%s413 + $0x204] sm:$0xf]
                  %502 = vst [vmem:[%s414 + $0xac] sm:$0xf] %v501
                  %v503 = vld [vmem:[%s413 + $0x210] sm:$0xf]
                  %504 = vst [vmem:[%s414 + $0xb0] sm:$0xf] %v503
                  %v505 = vld [vmem:[%s413 + $0x21c] sm:$0xf]
                  %506 = vst [vmem:[%s414 + $0xb4] sm:$0xf] %v505
                  %v507 = vld [vmem:[%s413 + $0x228] sm:$0xf]
                  %508 = vst [vmem:[%s414 + $0xb8] sm:$0xf] %v507
                  %v509 = vld [vmem:[%s413 + $0x234] sm:$0xf]
                  %510 = vst [vmem:[%s414 + $0xbc] sm:$0xf] %v509
                $region81: #{mixed_6a_forward.7} parent=68 // loop_footer
                  %s412 = sadd.s32 1, %s408
                $region82: #{mixed_6a_forward.7} parent=68 // loop_footer_branch
                  %407 = sbr.rel target = $region78
                $region83: #{mixed_6a_forward.7} parent=68 // loop_exit
                  _
              $region69: #{mixed_6a_forward.7} parent=53 // pred_fallthru
                _
            $region54: #{mixed_6a_forward.7} parent=49 // pred_fallthru
              _
            // Predicated region
            $region55: #{mixed_6a_forward.7} parent=49 // pred_check
              _
            $region56: #{mixed_6a_forward.7} parent=49 // pred_check_branch
              %290 = sbr.rel (0) target = $region58
            $region57: #{mixed_6a_forward.7} parent=49 // pred_region
              loop: start=0, step=1, limit=1
              $region59: #{mixed_6a_forward.7} parent=57 // loop_pre_header
                _
              $region60: #{mixed_6a_forward.7} parent=57 // loop_header
                %s293 = sphi 0, %s297
                %p294 = scmp.ge.s32.totalorder %s293, 1
                %s298 = sphi %s284, %s284
                %s299 = sphi %s279, %s279
              $region61: #{mixed_6a_forward.7} parent=57 // loop_header_branch
                %296 = sbr.rel (%p294) target = $region65
              $region62: #{mixed_6a_forward.7} parent=57 // loop_body
                %v300 = vld [vmem:[%s298] sm:$0xf]
                %301 = vst [vmem:[%s299] sm:$0xf] %v300
                %v302 = vld [vmem:[%s298 + $0xc] sm:$0xf]
                %303 = vst [vmem:[%s299 + $0x4] sm:$0xf] %v302
                %v304 = vld [vmem:[%s298 + $0x18] sm:$0xf]
                %305 = vst [vmem:[%s299 + $0x8] sm:$0xf] %v304
                %v306 = vld [vmem:[%s298 + $0x24] sm:$0xf]
                %307 = vst [vmem:[%s299 + $0xc] sm:$0xf] %v306
                %v308 = vld [vmem:[%s298 + $0x30] sm:$0xf]
                %309 = vst [vmem:[%s299 + $0x10] sm:$0xf] %v308
                %v310 = vld [vmem:[%s298 + $0x3c] sm:$0xf]
                %311 = vst [vmem:[%s299 + $0x14] sm:$0xf] %v310
                %v312 = vld [vmem:[%s298 + $0x48] sm:$0xf]
                %313 = vst [vmem:[%s299 + $0x18] sm:$0xf] %v312
                %v314 = vld [vmem:[%s298 + $0x54] sm:$0xf]
                %315 = vst [vmem:[%s299 + $0x1c] sm:$0xf] %v314
                %v316 = vld [vmem:[%s298 + $0x60] sm:$0xf]
                %317 = vst [vmem:[%s299 + $0x20] sm:$0xf] %v316
                %v318 = vld [vmem:[%s298 + $0x6c] sm:$0xf]
                %319 = vst [vmem:[%s299 + $0x24] sm:$0xf] %v318
                %v320 = vld [vmem:[%s298 + $0x78] sm:$0xf]
                %321 = vst [vmem:[%s299 + $0x28] sm:$0xf] %v320
                %v322 = vld [vmem:[%s298 + $0x84] sm:$0xf]
                %323 = vst [vmem:[%s299 + $0x2c] sm:$0xf] %v322
                %v324 = vld [vmem:[%s298 + $0x90] sm:$0xf]
                %325 = vst [vmem:[%s299 + $0x30] sm:$0xf] %v324
                %v326 = vld [vmem:[%s298 + $0x9c] sm:$0xf]
                %327 = vst [vmem:[%s299 + $0x34] sm:$0xf] %v326
                %v328 = vld [vmem:[%s298 + $0xa8] sm:$0xf]
                %329 = vst [vmem:[%s299 + $0x38] sm:$0xf] %v328
                %v330 = vld [vmem:[%s298 + $0xb4] sm:$0xf]
                %331 = vst [vmem:[%s299 + $0x3c] sm:$0xf] %v330
                %v332 = vld [vmem:[%s298 + $0xc0] sm:$0xf]
                %333 = vst [vmem:[%s299 + $0x40] sm:$0xf] %v332
                %v334 = vld [vmem:[%s298 + $0xcc] sm:$0xf]
                %335 = vst [vmem:[%s299 + $0x44] sm:$0xf] %v334
                %v336 = vld [vmem:[%s298 + $0xd8] sm:$0xf]
                %337 = vst [vmem:[%s299 + $0x48] sm:$0xf] %v336
                %v338 = vld [vmem:[%s298 + $0xe4] sm:$0xf]
                %339 = vst [vmem:[%s299 + $0x4c] sm:$0xf] %v338
                %v340 = vld [vmem:[%s298 + $0xf0] sm:$0xf]
                %341 = vst [vmem:[%s299 + $0x50] sm:$0xf] %v340
                %v342 = vld [vmem:[%s298 + $0xfc] sm:$0xf]
                %343 = vst [vmem:[%s299 + $0x54] sm:$0xf] %v342
                %v344 = vld [vmem:[%s298 + $0x108] sm:$0xf]
                %345 = vst [vmem:[%s299 + $0x58] sm:$0xf] %v344
                %v346 = vld [vmem:[%s298 + $0x114] sm:$0xf]
                %347 = vst [vmem:[%s299 + $0x5c] sm:$0xf] %v346
                %v348 = vld [vmem:[%s298 + $0x120] sm:$0xf]
                %349 = vst [vmem:[%s299 + $0x60] sm:$0xf] %v348
                %v350 = vld [vmem:[%s298 + $0x12c] sm:$0xf]
                %351 = vst [vmem:[%s299 + $0x64] sm:$0xf] %v350
                %v352 = vld [vmem:[%s298 + $0x138] sm:$0xf]
                %353 = vst [vmem:[%s299 + $0x68] sm:$0xf] %v352
                %v354 = vld [vmem:[%s298 + $0x144] sm:$0xf]
                %355 = vst [vmem:[%s299 + $0x6c] sm:$0xf] %v354
                %v356 = vld [vmem:[%s298 + $0x150] sm:$0xf]
                %357 = vst [vmem:[%s299 + $0x70] sm:$0xf] %v356
                %v358 = vld [vmem:[%s298 + $0x15c] sm:$0xf]
                %359 = vst [vmem:[%s299 + $0x74] sm:$0xf] %v358
                %v360 = vld [vmem:[%s298 + $0x168] sm:$0xf]
                %361 = vst [vmem:[%s299 + $0x78] sm:$0xf] %v360
                %v362 = vld [vmem:[%s298 + $0x174] sm:$0xf]
                %363 = vst [vmem:[%s299 + $0x7c] sm:$0xf] %v362
                %v364 = vld [vmem:[%s298 + $0x180] sm:$0xf]
                %365 = vst [vmem:[%s299 + $0x80] sm:$0xf] %v364
                %v366 = vld [vmem:[%s298 + $0x18c] sm:$0xf]
                %367 = vst [vmem:[%s299 + $0x84] sm:$0xf] %v366
                %v368 = vld [vmem:[%s298 + $0x198] sm:$0xf]
                %369 = vst [vmem:[%s299 + $0x88] sm:$0xf] %v368
                %v370 = vld [vmem:[%s298 + $0x1a4] sm:$0xf]
                %371 = vst [vmem:[%s299 + $0x8c] sm:$0xf] %v370
                %v372 = vld [vmem:[%s298 + $0x1b0] sm:$0xf]
                %373 = vst [vmem:[%s299 + $0x90] sm:$0xf] %v372
                %v374 = vld [vmem:[%s298 + $0x1bc] sm:$0xf]
                %375 = vst [vmem:[%s299 + $0x94] sm:$0xf] %v374
                %v376 = vld [vmem:[%s298 + $0x1c8] sm:$0xf]
                %377 = vst [vmem:[%s299 + $0x98] sm:$0xf] %v376
                %v378 = vld [vmem:[%s298 + $0x1d4] sm:$0xf]
                %379 = vst [vmem:[%s299 + $0x9c] sm:$0xf] %v378
                %v380 = vld [vmem:[%s298 + $0x1e0] sm:$0xf]
                %381 = vst [vmem:[%s299 + $0xa0] sm:$0xf] %v380
                %v382 = vld [vmem:[%s298 + $0x1ec] sm:$0xf]
                %383 = vst [vmem:[%s299 + $0xa4] sm:$0xf] %v382
                %v384 = vld [vmem:[%s298 + $0x1f8] sm:$0xf]
                %385 = vst [vmem:[%s299 + $0xa8] sm:$0xf] %v384
                %v386 = vld [vmem:[%s298 + $0x204] sm:$0xf]
                %387 = vst [vmem:[%s299 + $0xac] sm:$0xf] %v386
                %v388 = vld [vmem:[%s298 + $0x210] sm:$0xf]
                %389 = vst [vmem:[%s299 + $0xb0] sm:$0xf] %v388
                %v390 = vld [vmem:[%s298 + $0x21c] sm:$0xf]
                %391 = vst [vmem:[%s299 + $0xb4] sm:$0xf] %v390
                %v392 = vld [vmem:[%s298 + $0x228] sm:$0xf]
                %393 = vst [vmem:[%s299 + $0xb8] sm:$0xf] %v392
                %v394 = vld [vmem:[%s298 + $0x234] sm:$0xf]
                %395 = vst [vmem:[%s299 + $0xbc] sm:$0xf] %v394
              $region63: #{mixed_6a_forward.7} parent=57 // loop_footer
                %s297 = sadd.s32 1, %s293
              $region64: #{mixed_6a_forward.7} parent=57 // loop_footer_branch
                %292 = sbr.rel target = $region60
              $region65: #{mixed_6a_forward.7} parent=57 // loop_exit
                _
            $region58: #{mixed_6a_forward.7} parent=49 // pred_fallthru
              _
          $region50: #{mixed_6a_forward.7} parent=45 // pred_fallthru
            _
          %511 = vnop
        $region46: #{mixed_6a_forward.7} parent=15 // pred_fallthru
          _
        // Predicated region
        $region84: #{mixed_6a_forward.7} parent=15 // pred_check
          %p512 = pneg %p105
        $region85: #{mixed_6a_forward.7} parent=15 // pred_check_branch
          %514 = sbr.rel (%p512) target = $region87
        $region86: #{mixed_6a_forward.7} parent=15 // pred_region
          %p515 = scmp.lt.s32.totalorder %s18, 2
          %s516 = scalar_select %p515, %s18, 2
          %s517 = scalar_lea.vmem %s2, %s516
        $region87: #{mixed_6a_forward.7} parent=15 // pred_fallthru
          _
        // Predicated region
        $region88: #{mixed_6a_forward.7} parent=15 // pred_check
          %p518 = pneg %p131
        $region89: #{mixed_6a_forward.7} parent=15 // pred_check_branch
          %520 = sbr.rel (%p518) target = $region91
        $region90: #{mixed_6a_forward.7} parent=15 // pred_region
          %p521 = scmp.lt.s32.totalorder %s18, 2
          %s522 = scalar_select %p521, %s18, 2
          %s523 = scalar_lea.vmem %s3, %s522
        $region91: #{mixed_6a_forward.7} parent=15 // pred_fallthru
          _
      $region16: #{mixed_6a_forward.7} parent=5 // pred_fallthru
        _
      %p524 = scmp.le.s32.totalorder 1, %s10
      %p525 = scmp.lt.s32.totalorder %s10, 19
      %p526 = pnand %p524, %p525
      %p527 = pneg %p526
      // Predicated region
      $region92: #{mixed_6a_forward.7} parent=5 // pred_check
        _
      $region93: #{mixed_6a_forward.7} parent=5 // pred_check_branch
        %529 = sbr.rel (%p526) target = $region95
      $region94: #{mixed_6a_forward.7} parent=5 // pred_region
        %s530 = ssub.s32 %s10, 1
        %s531 = sand.u32 %s44, 1
        %s532 = sand.u32 %s44, 1
        %s533 = smul.addr %s532, 156
        %s534 = scalar_lea.vmem [#allocation3], %s533
        // Predicated region
        $region96: #{mixed_6a_forward.7} parent=94 // pred_check
          %p535 = pneg %p57
        $region97: #{mixed_6a_forward.7} parent=94 // pred_check_branch
          %537 = sbr.rel (%p535) target = $region99
        $region98: #{mixed_6a_forward.7} parent=94 // pred_region
          _
        $region99: #{mixed_6a_forward.7} parent=94 // pred_fallthru
          _
        %s538 = sand.u32 %s72, 1
        %s539 = sand.u32 %s72, 1
        %s540 = smul.addr %s539, 192
        %s541 = scalar_lea.vmem [#allocation4], %s540
        // Predicated region
        $region100: #{mixed_6a_forward.7} parent=94 // pred_check
          %p542 = pneg %p85
        $region101: #{mixed_6a_forward.7} parent=94 // pred_check_branch
          %544 = sbr.rel (%p542) target = $region103
        $region102: #{mixed_6a_forward.7} parent=94 // pred_region
          _
        $region103: #{mixed_6a_forward.7} parent=94 // pred_fallthru
          _
        %s545 = sand.u32 %s44, 1
        %s546 = sand.u32 %s44, 1
        %s547 = smul.addr %s546, 156
        %s548 = scalar_lea.vmem [#allocation3], %s547
        %p549 = pneg %p57
        %p550 = pneg %p54
        %s551 = sand.u32 %s72, 1
        %s552 = sand.u32 %s72, 1
        %s553 = smul.addr %s552, 192
        %s554 = scalar_lea.vmem [#allocation4], %s553
        %p555 = pneg %p85
        %p556 = pneg %p82
        %p557 = scmp.lt.s32.totalorder %s21, 2
        %s558 = scalar_select %p557, %s21, 2
        %s559 = scalar_lea.vmem %s2, %s558
        %p560 = pneg %p111
        %p561 = pneg %p108
        %p562 = scmp.lt.s32.totalorder %s21, 2
        %s563 = scalar_select %p562, %s21, 2
        %s564 = scalar_lea.vmem %s3, %s563
        %p565 = pneg %p137
        %p566 = pneg %p134
        %p567 = pneg %p165
        %p568 = pneg %p162
        %s569 = sand.u32 %s152, 1
        %s570 = sand.u32 %s152, 1
        %s571 = smul.addr %s570, 104
        %s572 = scalar_lea.vmem [#allocation5], %s571
        %s573 = smul.u32 13, %s20
        %s574 = smul.u32 3, %s22
        %s575 = smul.u32 48, %s22
        %p576 = scmp.lt.s32.totalorder %s21, 2
        %s577 = scalar_select %p576, %s21, 2
        %s578 = scalar_lea.vmem %s2, %s577
        %p579 = scmp.lt.s32.totalorder %s21, 2
        %s580 = scalar_select %p579, %s21, 2
        %s581 = scalar_lea.vmem %s3, %s580
        %s582 = smul.u32 13, %s20
        %p584 = scmp.eq.s32.totalorder %s22, 0
        // Predicated region
        $region104: #{mixed_6a_forward.7} parent=94 // pred_check
          %p585 = pneg %p584
        $region105: #{mixed_6a_forward.7} parent=94 // pred_check_branch
          %587 = sbr.rel (%p585) target = $region107
        $region106: #{mixed_6a_forward.7} parent=94 // pred_region
          %588 = vst [vmem:[#allocation2] sm:$0xff] 0.0
          %589 = vst [vmem:[#allocation2 + $0x8] sm:$0xff] 0.0
          %590 = vst [vmem:[#allocation2 + $0x10] sm:$0xff] 0.0
          %591 = vst [vmem:[#allocation2 + $0x18] sm:$0xff] 0.0
          %592 = vst [vmem:[#allocation2 + $0x20] sm:$0xff] 0.0
          %593 = vst [vmem:[#allocation2 + $0x28] sm:$0xff] 0.0
          %594 = vst [vmem:[#allocation2 + $0x30] sm:$0xff] 0.0
          %595 = vst [vmem:[#allocation2 + $0x38] sm:$0xff] 0.0
          %596 = vst [vmem:[#allocation2 + $0x40] sm:$0xff] 0.0
          %597 = vst [vmem:[#allocation2 + $0x48] sm:$0xff] 0.0
          %598 = vst [vmem:[#allocation2 + $0x50] sm:$0xff] 0.0
          %599 = vst [vmem:[#allocation2 + $0x58] sm:$0xff] 0.0
          %600 = vst [vmem:[#allocation2 + $0x60] sm:$0xff] 0.0
        $region107: #{mixed_6a_forward.7} parent=94 // pred_fallthru
          _
        %v601 = vld [vmem:[#allocation2] sm:$0xff]
        %v602 = vld [vmem:[#allocation2 + $0x8] sm:$0xff]
        %v603 = vld [vmem:[#allocation2 + $0x10] sm:$0xff]
        %v604 = vld [vmem:[#allocation2 + $0x18] sm:$0xff]
        %v605 = vld [vmem:[#allocation2 + $0x20] sm:$0xff]
        %v606 = vld [vmem:[#allocation2 + $0x28] sm:$0xff]
        %v607 = vld [vmem:[#allocation2 + $0x30] sm:$0xff]
        %v608 = vld [vmem:[#allocation2 + $0x38] sm:$0xff]
        %v609 = vld [vmem:[#allocation2 + $0x40] sm:$0xff]
        %v610 = vld [vmem:[#allocation2 + $0x48] sm:$0xff]
        %v611 = vld [vmem:[#allocation2 + $0x50] sm:$0xff]
        %v612 = vld [vmem:[#allocation2 + $0x58] sm:$0xff]
        %v613 = vld [vmem:[#allocation2 + $0x60] sm:$0xff]
        %v614 = vld [vmem:[%s534] sm:$0xff]
        %v615 = vld [vmem:[%s534 + $0x8] sm:$0xf]
        %v616 = vld [vmem:[%s534 + $0xc] sm:$0xff]
        %v617 = vld [vmem:[%s534 + $0x14] sm:$0xf]
        %v618 = vld [vmem:[%s534 + $0x18] sm:$0xff]
        %v619 = vld [vmem:[%s534 + $0x20] sm:$0xf]
        %v620 = vld [vmem:[%s534 + $0x24] sm:$0xff]
        %v621 = vld [vmem:[%s534 + $0x2c] sm:$0xf]
        %v622 = vld [vmem:[%s534 + $0x30] sm:$0xff]
        %v623 = vld [vmem:[%s534 + $0x38] sm:$0xf]
        %v624 = vld [vmem:[%s534 + $0x3c] sm:$0xff]
        %v625 = vld [vmem:[%s534 + $0x44] sm:$0xf]
        %v626 = vld [vmem:[%s534 + $0x48] sm:$0xff]
        %v627 = vld [vmem:[%s534 + $0x50] sm:$0xf]
        %v628 = vld [vmem:[%s534 + $0x54] sm:$0xff]
        %v629 = vld [vmem:[%s534 + $0x5c] sm:$0xf]
        %v630 = vld [vmem:[%s534 + $0x60] sm:$0xff]
        %v631 = vld [vmem:[%s534 + $0x68] sm:$0xf]
        %v632 = vld [vmem:[%s534 + $0x6c] sm:$0xff]
        %v633 = vld [vmem:[%s534 + $0x74] sm:$0xf]
        %v634 = vld [vmem:[%s534 + $0x78] sm:$0xff]
        %v635 = vld [vmem:[%s534 + $0x80] sm:$0xf]
        %v636 = vld [vmem:[%s534 + $0x84] sm:$0xff]
        %v637 = vld [vmem:[%s534 + $0x8c] sm:$0xf]
        %v638 = vld [vmem:[%s534 + $0x90] sm:$0xff]
        %v639 = vld [vmem:[%s534 + $0x98] sm:$0xf]
        %v640 = vld [vmem:[%s541] sm:$0xf]
        %v641 = vld [vmem:[%s541 + $0x4] sm:$0xf]
        %v642 = vld [vmem:[%s541 + $0x8] sm:$0xf]
        %v643 = vld [vmem:[%s541 + $0xc] sm:$0xf]
        %v644 = vld [vmem:[%s541 + $0x10] sm:$0xf]
        %v645 = vld [vmem:[%s541 + $0x14] sm:$0xf]
        %v646 = vld [vmem:[%s541 + $0x18] sm:$0xf]
        %v647 = vld [vmem:[%s541 + $0x1c] sm:$0xf]
        %v648 = vld [vmem:[%s541 + $0x20] sm:$0xf]
        %v649 = vld [vmem:[%s541 + $0x24] sm:$0xf]
        %v650 = vld [vmem:[%s541 + $0x28] sm:$0xf]
        %v651 = vld [vmem:[%s541 + $0x2c] sm:$0xf]
        %v652 = vld [vmem:[%s541 + $0x30] sm:$0xf]
        %v653 = vld [vmem:[%s541 + $0x34] sm:$0xf]
        %v654 = vld [vmem:[%s541 + $0x38] sm:$0xf]
        %v655 = vld [vmem:[%s541 + $0x3c] sm:$0xf]
        %v656 = vld [vmem:[%s541 + $0x40] sm:$0xf]
        %v657 = vld [vmem:[%s541 + $0x44] sm:$0xf]
        %v658 = vld [vmem:[%s541 + $0x48] sm:$0xf]
        %v659 = vld [vmem:[%s541 + $0x4c] sm:$0xf]
        %v660 = vld [vmem:[%s541 + $0x50] sm:$0xf]
        %v661 = vld [vmem:[%s541 + $0x54] sm:$0xf]
        %v662 = vld [vmem:[%s541 + $0x58] sm:$0xf]
        %v663 = vld [vmem:[%s541 + $0x5c] sm:$0xf]
        %v664 = vld [vmem:[%s541 + $0x60] sm:$0xf]
        %v665 = vld [vmem:[%s541 + $0x64] sm:$0xf]
        %v666 = vld [vmem:[%s541 + $0x68] sm:$0xf]
        %v667 = vld [vmem:[%s541 + $0x6c] sm:$0xf]
        %v668 = vld [vmem:[%s541 + $0x70] sm:$0xf]
        %v669 = vld [vmem:[%s541 + $0x74] sm:$0xf]
        %v670 = vld [vmem:[%s541 + $0x78] sm:$0xf]
        %v671 = vld [vmem:[%s541 + $0x7c] sm:$0xf]
        %v672 = vld [vmem:[%s541 + $0x80] sm:$0xf]
        %v673 = vld [vmem:[%s541 + $0x84] sm:$0xf]
        %v674 = vld [vmem:[%s541 + $0x88] sm:$0xf]
        %v675 = vld [vmem:[%s541 + $0x8c] sm:$0xf]
        %v676 = vld [vmem:[%s541 + $0x90] sm:$0xf]
        %v677 = vld [vmem:[%s541 + $0x94] sm:$0xf]
        %v678 = vld [vmem:[%s541 + $0x98] sm:$0xf]
        %v679 = vld [vmem:[%s541 + $0x9c] sm:$0xf]
        %v680 = vld [vmem:[%s541 + $0xa0] sm:$0xf]
        %v681 = vld [vmem:[%s541 + $0xa4] sm:$0xf]
        %v682 = vld [vmem:[%s541 + $0xa8] sm:$0xf]
        %v683 = vld [vmem:[%s541 + $0xac] sm:$0xf]
        %v684 = vld [vmem:[%s541 + $0xb0] sm:$0xf]
        %v685 = vld [vmem:[%s541 + $0xb4] sm:$0xf]
        %v686 = vld [vmem:[%s541 + $0xb8] sm:$0xf]
        %v687 = vld [vmem:[%s541 + $0xbc] sm:$0xf]
        %v714 = vunpack.c.l.b16 %v614
        %v715 = vunpack.c.h.b16 %v614
        %v716 = vunpack.c.l.b16 %v615
        %v717 = vunpack.c.l.b16 %v616
        %v718 = vunpack.c.h.b16 %v616
        %v719 = vunpack.c.l.b16 %v617
        %v720 = vunpack.c.l.b16 %v618
        %v721 = vunpack.c.h.b16 %v618
        %v722 = vunpack.c.l.b16 %v619
        %v723 = vunpack.c.l.b16 %v620
        %v724 = vunpack.c.h.b16 %v620
        %v725 = vunpack.c.l.b16 %v621
        %v726 = vunpack.c.l.b16 %v622
        %v727 = vunpack.c.h.b16 %v622
        %v728 = vunpack.c.l.b16 %v623
        %v729 = vunpack.c.l.b16 %v624
        %v730 = vunpack.c.h.b16 %v624
        %v731 = vunpack.c.l.b16 %v625
        %v732 = vunpack.c.l.b16 %v626
        %v733 = vunpack.c.h.b16 %v626
        %v734 = vunpack.c.l.b16 %v627
        %v735 = vunpack.c.l.b16 %v628
        %v736 = vunpack.c.h.b16 %v628
        %v737 = vunpack.c.l.b16 %v629
        %v738 = vunpack.c.l.b16 %v630
        %v739 = vunpack.c.h.b16 %v630
        %v740 = vunpack.c.l.b16 %v631
        %v741 = vunpack.c.l.b16 %v632
        %v742 = vunpack.c.h.b16 %v632
        %v743 = vunpack.c.l.b16 %v633
        %v744 = vunpack.c.l.b16 %v634
        %v745 = vunpack.c.h.b16 %v634
        %v746 = vunpack.c.l.b16 %v635
        %v747 = vunpack.c.l.b16 %v636
        %v748 = vunpack.c.h.b16 %v636
        %v749 = vunpack.c.l.b16 %v637
        %v750 = vunpack.c.l.b16 %v638
        %v751 = vunpack.c.h.b16 %v638
        %v752 = vunpack.c.l.b16 %v639
        %v753 = vpack.c.b16 %v717, %v714
        %v754 = vpack.c.b16 %v718, %v715
        %v755 = vpack.c.b16 %v719, %v716
        %v756 = vpack.c.b16 %v723, %v720
        %v757 = vpack.c.b16 %v724, %v721
        %v758 = vpack.c.b16 %v725, %v722
        %v759 = vpack.c.b16 %v729, %v726
        %v760 = vpack.c.b16 %v730, %v727
        %v761 = vpack.c.b16 %v731, %v728
        %v762 = vpack.c.b16 %v735, %v732
        %v763 = vpack.c.b16 %v736, %v733
        %v764 = vpack.c.b16 %v737, %v734
        %v765 = vpack.c.b16 %v741, %v738
        %v766 = vpack.c.b16 %v742, %v739
        %v767 = vpack.c.b16 %v743, %v740
        %v768 = vpack.c.b16 %v747, %v744
        %v769 = vpack.c.b16 %v748, %v745
        %v770 = vpack.c.b16 %v749, %v746
        %v771 = vpack.c.b16 %v750, %v750
        %v772 = vpack.c.b16 %v751, %v751
        %v773 = vpack.c.b16 %v752, %v752
        %v843 = vunpack.c.l.b16 %v640
        %v844 = vunpack.c.l.b16 %v641
        %v845 = vunpack.c.l.b16 %v642
        %v846 = vunpack.c.l.b16 %v643
        %v847 = vunpack.c.l.b16 %v644
        %v848 = vunpack.c.l.b16 %v645
        %v849 = vunpack.c.l.b16 %v646
        %v850 = vunpack.c.l.b16 %v647
        %v851 = vunpack.c.l.b16 %v648
        %v852 = vunpack.c.l.b16 %v649
        %v853 = vunpack.c.l.b16 %v650
        %v854 = vunpack.c.l.b16 %v651
        %v855 = vunpack.c.l.b16 %v652
        %v856 = vunpack.c.l.b16 %v653
        %v857 = vunpack.c.l.b16 %v654
        %v858 = vunpack.c.l.b16 %v655
        %v859 = vunpack.c.l.b16 %v656
        %v860 = vunpack.c.l.b16 %v657
        %v861 = vunpack.c.l.b16 %v658
        %v862 = vunpack.c.l.b16 %v659
        %v863 = vunpack.c.l.b16 %v660
        %v864 = vunpack.c.l.b16 %v661
        %v865 = vunpack.c.l.b16 %v662
        %v866 = vunpack.c.l.b16 %v663
        %v867 = vunpack.c.l.b16 %v664
        %v868 = vunpack.c.l.b16 %v665
        %v869 = vunpack.c.l.b16 %v666
        %v870 = vunpack.c.l.b16 %v667
        %v871 = vunpack.c.l.b16 %v668
        %v872 = vunpack.c.l.b16 %v669
        %v873 = vunpack.c.l.b16 %v670
        %v874 = vunpack.c.l.b16 %v671
        %v875 = vunpack.c.l.b16 %v672
        %v876 = vunpack.c.l.b16 %v673
        %v877 = vunpack.c.l.b16 %v674
        %v878 = vunpack.c.l.b16 %v675
        %v879 = vunpack.c.l.b16 %v676
        %v880 = vunpack.c.l.b16 %v677
        %v881 = vunpack.c.l.b16 %v678
        %v882 = vunpack.c.l.b16 %v679
        %v883 = vunpack.c.l.b16 %v680
        %v884 = vunpack.c.l.b16 %v681
        %v885 = vunpack.c.l.b16 %v682
        %v886 = vunpack.c.l.b16 %v683
        %v887 = vunpack.c.l.b16 %v684
        %v888 = vunpack.c.l.b16 %v685
        %v889 = vunpack.c.l.b16 %v686
        %v890 = vunpack.c.l.b16 %v687
        %v891 = vpack.c.b16 %v844, %v843
        %v892 = vpack.c.b16 %v846, %v845
        %v893 = vpack.c.b16 %v848, %v847
        %v894 = vpack.c.b16 %v850, %v849
        %v895 = vpack.c.b16 %v852, %v851
        %v896 = vpack.c.b16 %v854, %v853
        %v897 = vpack.c.b16 %v856, %v855
        %v898 = vpack.c.b16 %v858, %v857
        %v899 = vpack.c.b16 %v860, %v859
        %v900 = vpack.c.b16 %v862, %v861
        %v901 = vpack.c.b16 %v864, %v863
        %v902 = vpack.c.b16 %v866, %v865
        %v903 = vpack.c.b16 %v868, %v867
        %v904 = vpack.c.b16 %v870, %v869
        %v905 = vpack.c.b16 %v872, %v871
        %v906 = vpack.c.b16 %v874, %v873
        %v907 = vpack.c.b16 %v876, %v875
        %v908 = vpack.c.b16 %v878, %v877
        %v909 = vpack.c.b16 %v880, %v879
        %v910 = vpack.c.b16 %v882, %v881
        %v911 = vpack.c.b16 %v884, %v883
        %v912 = vpack.c.b16 %v886, %v885
        %v913 = vpack.c.b16 %v888, %v887
        %v914 = vpack.c.b16 %v890, %v889
        %939 = vmatprep.subr.bf16.mxu0 0
        %940 = vmatpush1.bf16.msra.mxu0 %v891
        %941 = vmatprep.subr.bf16.mxu0 0
        %942 = vmatpush1.bf16.msra.mxu0 %v892
        %943 = vmatprep.subr.bf16.mxu0 0
        %944 = vmatpush1.bf16.msra.mxu0 %v893
        %945 = vmatprep.subr.bf16.mxu0 0
        %946 = vmatpush1.bf16.msra.mxu0 %v894
        %947 = vmatprep.subr.bf16.mxu0 0
        %948 = vmatpush1.bf16.msra.mxu0 %v895
        %949 = vmatprep.subr.bf16.mxu0 0
        %950 = vmatpush1.bf16.msra.mxu0 %v896
        %951 = vmatprep.subr.bf16.mxu0 0
        %952 = vmatpush1.bf16.msra.mxu0 %v897
        %953 = vmatprep.subr.bf16.mxu0 0
        %954 = vmatpush1.bf16.msra.mxu0 %v898
        %955 = vmatprep.subr.bf16.mxu0 0
        %956 = vmatpush1.bf16.msra.mxu0 %v899
        %957 = vmatprep.subr.bf16.mxu0 0
        %958 = vmatpush1.bf16.msra.mxu0 %v900
        %959 = vmatprep.subr.bf16.mxu0 0
        %960 = vmatpush1.bf16.msra.mxu0 %v901
        %961 = vmatprep.subr.bf16.mxu0 0
        %962 = vmatpush1.bf16.msra.mxu0 %v902
        %963 = vmatprep.subr.bf16.mxu0 0
        %964 = vmatpush1.bf16.msra.mxu0 %v903
        %965 = vmatprep.subr.bf16.mxu0 0
        %966 = vmatpush1.bf16.msra.mxu0 %v904
        %967 = vmatprep.subr.bf16.mxu0 0
        %968 = vmatpush1.bf16.msra.mxu0 %v905
        %969 = vmatprep.subr.bf16.mxu0 0
        %970 = vmatpush1.bf16.msra.mxu0 %v906
        %971 = vmatprep.mubr.bf16.mxu0 %v754
        %972 = vmatmul.mubr.bf16.gmra.mrb[0].mxu0 %v753
        %v973 = vpop.f32.mrb[0].mxu0
        %v974 = vadd.f32 0.0, %v973
        %v975 = vpop.f32.mrb[0].mxu0
        %v976 = vpop.f32.mrb[0].mxu0
        %v977 = vadd.f32 0.0, %v976
        %v978 = vpop.f32.mrb[0].mxu0
        %979 = vmatprep.mubr.bf16.mxu0 %v757
        %980 = vmatmul.mubr.bf16.gmra.mrb[0].mxu0 %v756
        %v981 = vpop.f32.mrb[0].mxu0
        %v982 = vadd.f32 0.0, %v981
        %v983 = vpop.f32.mrb[0].mxu0
        %v984 = vpop.f32.mrb[0].mxu0
        %v985 = vadd.f32 0.0, %v984
        %v986 = vpop.f32.mrb[0].mxu0
        %987 = vmatprep.mubr.bf16.mxu0 %v760
        %988 = vmatmul.mubr.bf16.gmra.mrb[0].mxu0 %v759
        %v989 = vpop.f32.mrb[0].mxu0
        %v990 = vadd.f32 0.0, %v989
        %v991 = vpop.f32.mrb[0].mxu0
        %v992 = vpop.f32.mrb[0].mxu0
        %v993 = vadd.f32 0.0, %v992
        %v994 = vpop.f32.mrb[0].mxu0
        %995 = vmatprep.mubr.bf16.mxu0 %v763
        %996 = vmatmul.mubr.bf16.gmra.mrb[0].mxu0 %v762
        %v997 = vpop.f32.mrb[0].mxu0
        %v998 = vadd.f32 0.0, %v997
        %v999 = vpop.f32.mrb[0].mxu0
        %v1000 = vpop.f32.mrb[0].mxu0
        %v1001 = vadd.f32 0.0, %v1000
        %v1002 = vpop.f32.mrb[0].mxu0
        %1003 = vmatprep.mubr.bf16.mxu0 %v766
        %1004 = vmatmul.mubr.bf16.gmra.mrb[0].mxu0 %v765
        %v1005 = vpop.f32.mrb[0].mxu0
        %v1006 = vadd.f32 0.0, %v1005
        %v1007 = vpop.f32.mrb[0].mxu0
        %v1008 = vpop.f32.mrb[0].mxu0
        %v1009 = vadd.f32 0.0, %v1008
        %v1010 = vpop.f32.mrb[0].mxu0
        %1011 = vmatprep.mubr.bf16.mxu0 %v769
        %1012 = vmatmul.mubr.bf16.gmra.mrb[0].mxu0 %v768
        %v1013 = vpop.f32.mrb[0].mxu0
        %v1014 = vadd.f32 0.0, %v1013
        %v1015 = vpop.f32.mrb[0].mxu0
        %v1016 = vpop.f32.mrb[0].mxu0
        %v1017 = vadd.f32 0.0, %v1016
        %v1018 = vpop.f32.mrb[0].mxu0
        %1019 = vmatprep.mubr.bf16.mxu0 %v772
        %1020 = vmatmul.mubr.bf16.gmra.mrb[0].mxu0 %v771
        %v1021 = vpop.f32.mrb[0].mxu0
        %v1022 = vadd.f32 0.0, %v1021
        %v1023 = vpop.f32.mrb[0].mxu0
        %v1024 = vpop.f32.mrb[0].mxu0
        %v1025 = vpop.f32.mrb[0].mxu0
        %1026 = vdwg.mxu0
        %1027 = vmatprep.subr.bf16.mxu0 0
        %1028 = vmatpush1.bf16.msra.mxu0 %v907
        %1029 = vmatprep.subr.bf16.mxu0 0
        %1030 = vmatpush1.bf16.msra.mxu0 %v908
        %1031 = vmatprep.subr.bf16.mxu0 0
        %1032 = vmatpush1.bf16.msra.mxu0 %v909
        %1033 = vmatprep.subr.bf16.mxu0 0
        %1034 = vmatpush1.bf16.msra.mxu0 %v910
        %1035 = vmatprep.subr.bf16.mxu0 0
        %1036 = vmatpush1.bf16.msra.mxu0 %v911
        %1037 = vmatprep.subr.bf16.mxu0 0
        %1038 = vmatpush1.bf16.msra.mxu0 %v912
        %1039 = vmatprep.subr.bf16.mxu0 0
        %1040 = vmatpush1.bf16.msra.mxu0 %v913
        %1041 = vmatprep.subr.bf16.mxu0 0
        %1042 = vmatpush1.bf16.msra.mxu0 %v914
        %1043 = vmatprep.subr.bf16.mxu0 0
        %1044 = vmatpush1.bf16.msra.mxu0 0
        %1045 = vmatprep.subr.bf16.mxu0 0
        %1046 = vmatpush1.bf16.msra.mxu0 0
        %1047 = vmatprep.subr.bf16.mxu0 0
        %1048 = vmatpush1.bf16.msra.mxu0 0
        %1049 = vmatprep.subr.bf16.mxu0 0
        %1050 = vmatpush1.bf16.msra.mxu0 0
        %1051 = vmatprep.subr.bf16.mxu0 0
        %1052 = vmatpush1.bf16.msra.mxu0 0
        %1053 = vmatprep.subr.bf16.mxu0 0
        %1054 = vmatpush1.bf16.msra.mxu0 0
        %1055 = vmatprep.subr.bf16.mxu0 0
        %1056 = vmatpush1.bf16.msra.mxu0 0
        %1057 = vmatprep.subr.bf16.mxu0 0
        %1058 = vmatpush1.bf16.msra.mxu0 0
        %1059 = vmatprep.mubr.bf16.mxu0 0
        %1060 = vmatmul.mubr.bf16.gmra.mrb[0].mxu0 %v755
        %v1061 = vpop.f32.mrb[0].mxu0
        %v1062 = vadd.f32 %v974, %v1061
        %v1063 = vpop.f32.mrb[0].mxu0
        %v1064 = vpop.f32.mrb[0].mxu0
        %v1065 = vadd.f32 %v977, %v1064
        %v1066 = vpop.f32.mrb[0].mxu0
        %1067 = vmatprep.mubr.bf16.mxu0 0
        %1068 = vmatmul.mubr.bf16.gmra.mrb[0].mxu0 %v758
        %v1069 = vpop.f32.mrb[0].mxu0
        %v1070 = vadd.f32 %v982, %v1069
        %v1071 = vpop.f32.mrb[0].mxu0
        %v1072 = vpop.f32.mrb[0].mxu0
        %v1073 = vadd.f32 %v985, %v1072
        %v1074 = vpop.f32.mrb[0].mxu0
        %1075 = vmatprep.mubr.bf16.mxu0 0
        %1076 = vmatmul.mubr.bf16.gmra.mrb[0].mxu0 %v761
        %v1077 = vpop.f32.mrb[0].mxu0
        %v1078 = vadd.f32 %v990, %v1077
        %v1079 = vpop.f32.mrb[0].mxu0
        %v1080 = vpop.f32.mrb[0].mxu0
        %v1081 = vadd.f32 %v993, %v1080
        %v1082 = vpop.f32.mrb[0].mxu0
        %1083 = vmatprep.mubr.bf16.mxu0 0
        %1084 = vmatmul.mubr.bf16.gmra.mrb[0].mxu0 %v764
        %v1085 = vpop.f32.mrb[0].mxu0
        %v1086 = vadd.f32 %v998, %v1085
        %v1087 = vpop.f32.mrb[0].mxu0
        %v1088 = vpop.f32.mrb[0].mxu0
        %v1089 = vadd.f32 %v1001, %v1088
        %v1090 = vpop.f32.mrb[0].mxu0
        %1091 = vmatprep.mubr.bf16.mxu0 0
        %1092 = vmatmul.mubr.bf16.gmra.mrb[0].mxu0 %v767
        %v1093 = vpop.f32.mrb[0].mxu0
        %v1094 = vadd.f32 %v1006, %v1093
        %v1095 = vpop.f32.mrb[0].mxu0
        %v1096 = vpop.f32.mrb[0].mxu0
        %v1097 = vadd.f32 %v1009, %v1096
        %v1098 = vpop.f32.mrb[0].mxu0
        %1099 = vmatprep.mubr.bf16.mxu0 0
        %1100 = vmatmul.mubr.bf16.gmra.mrb[0].mxu0 %v770
        %v1101 = vpop.f32.mrb[0].mxu0
        %v1102 = vadd.f32 %v1014, %v1101
        %v1103 = vpop.f32.mrb[0].mxu0
        %v1104 = vpop.f32.mrb[0].mxu0
        %v1105 = vadd.f32 %v1017, %v1104
        %v1106 = vpop.f32.mrb[0].mxu0
        %1107 = vmatprep.mubr.bf16.mxu0 0
        %1108 = vmatmul.mubr.bf16.gmra.mrb[0].mxu0 %v773
        %v1109 = vpop.f32.mrb[0].mxu0
        %v1110 = vadd.f32 %v1022, %v1109
        %v1111 = vpop.f32.mrb[0].mxu0
        %v1112 = vpop.f32.mrb[0].mxu0
        %v1113 = vpop.f32.mrb[0].mxu0
        %1114 = vdwg.mxu0
        %v1115 = vadd.f32 %v601, %v1062
        %v1116 = vadd.f32 %v602, %v1065
        %v1117 = vadd.f32 %v603, %v1070
        %v1118 = vadd.f32 %v604, %v1073
        %v1119 = vadd.f32 %v605, %v1078
        %v1120 = vadd.f32 %v606, %v1081
        %v1121 = vadd.f32 %v607, %v1086
        %v1122 = vadd.f32 %v608, %v1089
        %v1123 = vadd.f32 %v609, %v1094
        %v1124 = vadd.f32 %v610, %v1097
        %v1125 = vadd.f32 %v611, %v1102
        %v1126 = vadd.f32 %v612, %v1105
        %v1127 = vadd.f32 %v613, %v1110
        %1128 = vst [vmem:[#allocation2] sm:$0xff] %v1115
        %1129 = vst [vmem:[#allocation2 + $0x8] sm:$0xff] %v1116
        %1130 = vst [vmem:[#allocation2 + $0x10] sm:$0xff] %v1117
        %1131 = vst [vmem:[#allocation2 + $0x18] sm:$0xff] %v1118
        %1132 = vst [vmem:[#allocation2 + $0x20] sm:$0xff] %v1119
        %1133 = vst [vmem:[#allocation2 + $0x28] sm:$0xff] %v1120
        %1134 = vst [vmem:[#allocation2 + $0x30] sm:$0xff] %v1121
        %1135 = vst [vmem:[#allocation2 + $0x38] sm:$0xff] %v1122
        %1136 = vst [vmem:[#allocation2 + $0x40] sm:$0xff] %v1123
        %1137 = vst [vmem:[#allocation2 + $0x48] sm:$0xff] %v1124
        %1138 = vst [vmem:[#allocation2 + $0x50] sm:$0xff] %v1125
        %1139 = vst [vmem:[#allocation2 + $0x58] sm:$0xff] %v1126
        %1140 = vst [vmem:[#allocation2 + $0x60] sm:$0xff] %v1127
        %p1141 = scmp.eq.s32.totalorder %s22, 5
        // Predicated region
        $region108: #{mixed_6a_forward.7} parent=94 // pred_check
          %p1142 = pneg %p1141
        $region109: #{mixed_6a_forward.7} parent=94 // pred_check_branch
          %1144 = sbr.rel (%p1142) target = $region111
        $region110: #{mixed_6a_forward.7} parent=94 // pred_region
          %v1145 = vld [vmem:[#allocation2] sm:$0xff]
          %v1146 = vld [vmem:[#allocation2 + $0x8] sm:$0xff]
          %v1147 = vld [vmem:[#allocation2 + $0x10] sm:$0xff]
          %v1148 = vld [vmem:[#allocation2 + $0x18] sm:$0xff]
          %v1149 = vld [vmem:[#allocation2 + $0x20] sm:$0xff]
          %v1150 = vld [vmem:[#allocation2 + $0x28] sm:$0xff]
          %v1151 = vld [vmem:[#allocation2 + $0x30] sm:$0xff]
          %v1152 = vld [vmem:[#allocation2 + $0x38] sm:$0xff]
          %v1153 = vld [vmem:[#allocation2 + $0x40] sm:$0xff]
          %v1154 = vld [vmem:[#allocation2 + $0x48] sm:$0xff]
          %v1155 = vld [vmem:[#allocation2 + $0x50] sm:$0xff]
          %v1156 = vld [vmem:[#allocation2 + $0x58] sm:$0xff]
          %v1157 = vld [vmem:[#allocation2 + $0x60] sm:$0xff]
          %v1158 = vld [vmem:[%s578] sm:$0x1]
          %v1160 = vlaneseq
          %v1161 = vshrl.u32 %v1160, 7
          %v1162 = vsub.s32 0, %v1161
          %v1163 = vrot.slane %v1158, %v1162
          %v1165 = vmul.f32 %v1145, %v1163
          %v1166 = vmul.f32 %v1146, %v1163
          %v1167 = vmul.f32 %v1147, %v1163
          %v1168 = vmul.f32 %v1148, %v1163
          %v1169 = vmul.f32 %v1149, %v1163
          %v1170 = vmul.f32 %v1150, %v1163
          %v1171 = vmul.f32 %v1151, %v1163
          %v1172 = vmul.f32 %v1152, %v1163
          %v1173 = vmul.f32 %v1153, %v1163
          %v1174 = vmul.f32 %v1154, %v1163
          %v1175 = vmul.f32 %v1155, %v1163
          %v1176 = vmul.f32 %v1156, %v1163
          %v1177 = vmul.f32 %v1157, %v1163
          %v1178 = vld [vmem:[%s581] sm:$0x1]
          %v1180 = vlaneseq
          %v1181 = vshrl.u32 %v1180, 7
          %v1182 = vsub.s32 0, %v1181
          %v1183 = vrot.slane %v1178, %v1182
          %v1185 = vadd.f32 %v1165, %v1183
          %v1186 = vadd.f32 %v1166, %v1183
          %v1187 = vadd.f32 %v1167, %v1183
          %v1188 = vadd.f32 %v1168, %v1183
          %v1189 = vadd.f32 %v1169, %v1183
          %v1190 = vadd.f32 %v1170, %v1183
          %v1191 = vadd.f32 %v1171, %v1183
          %v1192 = vadd.f32 %v1172, %v1183
          %v1193 = vadd.f32 %v1173, %v1183
          %v1194 = vadd.f32 %v1174, %v1183
          %v1195 = vadd.f32 %v1175, %v1183
          %v1196 = vadd.f32 %v1176, %v1183
          %v1197 = vadd.f32 %v1177, %v1183
          %v1198 = vmax.f32 %v1185, 0.0
          %v1199 = vmax.f32 %v1186, 0.0
          %v1200 = vmax.f32 %v1187, 0.0
          %v1201 = vmax.f32 %v1188, 0.0
          %v1202 = vmax.f32 %v1189, 0.0
          %v1203 = vmax.f32 %v1190, 0.0
          %v1204 = vmax.f32 %v1191, 0.0
          %v1205 = vmax.f32 %v1192, 0.0
          %v1206 = vmax.f32 %v1193, 0.0
          %v1207 = vmax.f32 %v1194, 0.0
          %v1208 = vmax.f32 %v1195, 0.0
          %v1209 = vmax.f32 %v1196, 0.0
          %v1210 = vmax.f32 %v1197, 0.0
          %1211 = vst [vmem:[%s572] sm:$0xff] %v1198
          %1212 = vst [vmem:[%s572 + $0x8] sm:$0xff] %v1199
          %1213 = vst [vmem:[%s572 + $0x10] sm:$0xff] %v1200
          %1214 = vst [vmem:[%s572 + $0x18] sm:$0xff] %v1201
          %1215 = vst [vmem:[%s572 + $0x20] sm:$0xff] %v1202
          %1216 = vst [vmem:[%s572 + $0x28] sm:$0xff] %v1203
          %1217 = vst [vmem:[%s572 + $0x30] sm:$0xff] %v1204
          %1218 = vst [vmem:[%s572 + $0x38] sm:$0xff] %v1205
          %1219 = vst [vmem:[%s572 + $0x40] sm:$0xff] %v1206
          %1220 = vst [vmem:[%s572 + $0x48] sm:$0xff] %v1207
          %1221 = vst [vmem:[%s572 + $0x50] sm:$0xff] %v1208
          %1222 = vst [vmem:[%s572 + $0x58] sm:$0xff] %v1209
          %1223 = vst [vmem:[%s572 + $0x60] sm:$0xff] %v1210
        $region111: #{mixed_6a_forward.7} parent=94 // pred_fallthru
          _
        %s1224 = sand.u32 %s152, 1
        %s1225 = sand.u32 %s152, 1
        %s1226 = smul.addr %s1225, 104
        %s1227 = scalar_lea.vmem [#allocation5], %s1226
        // Predicated region
        $region112: #{mixed_6a_forward.7} parent=94 // pred_check
          %p1228 = pneg %p162
        $region113: #{mixed_6a_forward.7} parent=94 // pred_check_branch
          %1230 = sbr.rel (%p1228) target = $region115
        $region114: #{mixed_6a_forward.7} parent=94 // pred_region
          %s1231 = smul.u32 13, %s20
          %s1232 = smul.addr %s1231, 3
          %s1233 = sadd.s32 %s21, %s1232
          %s1234 = smul.addr %s1233, 8
          %s1235 = scalar_lea.vmem %s4, %s1234
          // Predicated region
          $region116: #{mixed_6a_forward.7} parent=114 // pred_check
            _
          $region117: #{mixed_6a_forward.7} parent=114 // pred_check_branch
            %1237 = sbr.rel (0) target = $region119
          $region118: #{mixed_6a_forward.7} parent=114 // pred_region
            // Predicated region
            $region120: #{mixed_6a_forward.7} parent=118 // pred_check
              _
            $region121: #{mixed_6a_forward.7} parent=118 // pred_check_branch
              %1239 = sbr.rel (0) target = $region123
            $region122: #{mixed_6a_forward.7} parent=118 // pred_region
              // Predicated region
              $region135: #{mixed_6a_forward.7} parent=122 // pred_check
                _
              $region136: #{mixed_6a_forward.7} parent=122 // pred_check_branch
                %1278 = sbr.rel (0) target = $region138
              $region137: #{mixed_6a_forward.7} parent=122 // pred_region
                loop: start=0, step=1, limit=1
                $region139: #{mixed_6a_forward.7} parent=137 // loop_pre_header
                  _
                $region140: #{mixed_6a_forward.7} parent=137 // loop_header
                  %s1280 = sphi 0, %s1284
                  %p1281 = scmp.ge.s32.totalorder %s1280, 1
                  %s1285 = sphi %s1227, %s1227
                  %s1286 = sphi %s1235, %s1235
                $region141: #{mixed_6a_forward.7} parent=137 // loop_header_branch
                  %1283 = sbr.rel (%p1281) target = $region145
                $region142: #{mixed_6a_forward.7} parent=137 // loop_body
                  %v1287 = vld [vmem:[%s1285] sm:$0xff]
                  %1288 = vst [vmem:[%s1286] sm:$0xff] %v1287
                  %v1289 = vld [vmem:[%s1285 + $0x8] sm:$0xff]
                  %1290 = vst [vmem:[%s1286 + $0x18] sm:$0xff] %v1289
                  %v1291 = vld [vmem:[%s1285 + $0x10] sm:$0xff]
                  %1292 = vst [vmem:[%s1286 + $0x30] sm:$0xff] %v1291
                  %v1293 = vld [vmem:[%s1285 + $0x18] sm:$0xff]
                  %1294 = vst [vmem:[%s1286 + $0x48] sm:$0xff] %v1293
                  %v1295 = vld [vmem:[%s1285 + $0x20] sm:$0xff]
                  %1296 = vst [vmem:[%s1286 + $0x60] sm:$0xff] %v1295
                  %v1297 = vld [vmem:[%s1285 + $0x28] sm:$0xff]
                  %1298 = vst [vmem:[%s1286 + $0x78] sm:$0xff] %v1297
                  %v1299 = vld [vmem:[%s1285 + $0x30] sm:$0xff]
                  %1300 = vst [vmem:[%s1286 + $0x90] sm:$0xff] %v1299
                  %v1301 = vld [vmem:[%s1285 + $0x38] sm:$0xff]
                  %1302 = vst [vmem:[%s1286 + $0xa8] sm:$0xff] %v1301
                  %v1303 = vld [vmem:[%s1285 + $0x40] sm:$0xff]
                  %1304 = vst [vmem:[%s1286 + $0xc0] sm:$0xff] %v1303
                  %v1305 = vld [vmem:[%s1285 + $0x48] sm:$0xff]
                  %1306 = vst [vmem:[%s1286 + $0xd8] sm:$0xff] %v1305
                  %v1307 = vld [vmem:[%s1285 + $0x50] sm:$0xff]
                  %1308 = vst [vmem:[%s1286 + $0xf0] sm:$0xff] %v1307
                  %v1309 = vld [vmem:[%s1285 + $0x58] sm:$0xff]
                  %1310 = vst [vmem:[%s1286 + $0x108] sm:$0xff] %v1309
                  %v1311 = vld [vmem:[%s1285 + $0x60] sm:$0xff]
                  %1312 = vst [vmem:[%s1286 + $0x120] sm:$0xff] %v1311
                $region143: #{mixed_6a_forward.7} parent=137 // loop_footer
                  %s1284 = sadd.s32 1, %s1280
                $region144: #{mixed_6a_forward.7} parent=137 // loop_footer_branch
                  %1279 = sbr.rel target = $region140
                $region145: #{mixed_6a_forward.7} parent=137 // loop_exit
                  _
              $region138: #{mixed_6a_forward.7} parent=122 // pred_fallthru
                _
              // Predicated region
              $region146: #{mixed_6a_forward.7} parent=122 // pred_check
                _
              $region147: #{mixed_6a_forward.7} parent=122 // pred_check_branch
                %1314 = sbr.rel target = $region149
              $region148: #{mixed_6a_forward.7} parent=122 // pred_region
                _
              $region149: #{mixed_6a_forward.7} parent=122 // pred_fallthru
                _
            $region123: #{mixed_6a_forward.7} parent=118 // pred_fallthru
              _
            // Predicated region
            $region124: #{mixed_6a_forward.7} parent=118 // pred_check
              _
            $region125: #{mixed_6a_forward.7} parent=118 // pred_check_branch
              %1241 = sbr.rel target = $region127
            $region126: #{mixed_6a_forward.7} parent=118 // pred_region
              loop: start=0, step=1, limit=1
              $region128: #{mixed_6a_forward.7} parent=126 // loop_pre_header
                _
              $region129: #{mixed_6a_forward.7} parent=126 // loop_header
                %s1244 = sphi 0, %s1248
                %p1245 = scmp.ge.s32.totalorder %s1244, 1
                %s1249 = sphi %s1227, %s1227
                %s1250 = sphi %s1235, %s1235
              $region130: #{mixed_6a_forward.7} parent=126 // loop_header_branch
                %1247 = sbr.rel (%p1245) target = $region134
              $region131: #{mixed_6a_forward.7} parent=126 // loop_body
                %v1251 = vld [vmem:[%s1249] sm:$0xff]
                %1252 = vst [vmem:[%s1250] sm:$0xff] %v1251
                %v1253 = vld [vmem:[%s1249 + $0x8] sm:$0xff]
                %1254 = vst [vmem:[%s1250 + $0x18] sm:$0xff] %v1253
                %v1255 = vld [vmem:[%s1249 + $0x10] sm:$0xff]
                %1256 = vst [vmem:[%s1250 + $0x30] sm:$0xff] %v1255
                %v1257 = vld [vmem:[%s1249 + $0x18] sm:$0xff]
                %1258 = vst [vmem:[%s1250 + $0x48] sm:$0xff] %v1257
                %v1259 = vld [vmem:[%s1249 + $0x20] sm:$0xff]
                %1260 = vst [vmem:[%s1250 + $0x60] sm:$0xff] %v1259
                %v1261 = vld [vmem:[%s1249 + $0x28] sm:$0xff]
                %1262 = vst [vmem:[%s1250 + $0x78] sm:$0xff] %v1261
                %v1263 = vld [vmem:[%s1249 + $0x30] sm:$0xff]
                %1264 = vst [vmem:[%s1250 + $0x90] sm:$0xff] %v1263
                %v1265 = vld [vmem:[%s1249 + $0x38] sm:$0xff]
                %1266 = vst [vmem:[%s1250 + $0xa8] sm:$0xff] %v1265
                %v1267 = vld [vmem:[%s1249 + $0x40] sm:$0xff]
                %1268 = vst [vmem:[%s1250 + $0xc0] sm:$0xff] %v1267
                %v1269 = vld [vmem:[%s1249 + $0x48] sm:$0xff]
                %1270 = vst [vmem:[%s1250 + $0xd8] sm:$0xff] %v1269
                %v1271 = vld [vmem:[%s1249 + $0x50] sm:$0xff]
                %1272 = vst [vmem:[%s1250 + $0xf0] sm:$0xff] %v1271
                %v1273 = vld [vmem:[%s1249 + $0x58] sm:$0xff]
                %1274 = vst [vmem:[%s1250 + $0x108] sm:$0xff] %v1273
                %v1275 = vld [vmem:[%s1249 + $0x60] sm:$0xff]
                %1276 = vst [vmem:[%s1250 + $0x120] sm:$0xff] %v1275
              $region132: #{mixed_6a_forward.7} parent=126 // loop_footer
                %s1248 = sadd.s32 1, %s1244
              $region133: #{mixed_6a_forward.7} parent=126 // loop_footer_branch
                %1243 = sbr.rel target = $region129
              $region134: #{mixed_6a_forward.7} parent=126 // loop_exit
                _
            $region127: #{mixed_6a_forward.7} parent=118 // pred_fallthru
              _
          $region119: #{mixed_6a_forward.7} parent=114 // pred_fallthru
            _
          %1315 = vnop
        $region115: #{mixed_6a_forward.7} parent=94 // pred_fallthru
          _
      $region95: #{mixed_6a_forward.7} parent=5 // pred_fallthru
        _
      %p1316 = scmp.le.s32.totalorder 2, %s10
      // Predicated region
      $region150: #{mixed_6a_forward.7} parent=5 // pred_check
        %p1317 = pneg %p1316
      $region151: #{mixed_6a_forward.7} parent=5 // pred_check_branch
        %1319 = sbr.rel (%p1317) target = $region153
      $region152: #{mixed_6a_forward.7} parent=5 // pred_region
        %s1320 = ssub.s32 %s10, 2
        // Predicated region
        $region154: #{mixed_6a_forward.7} parent=152 // pred_check
          %p1321 = pneg %p168
        $region155: #{mixed_6a_forward.7} parent=152 // pred_check_branch
          %1323 = sbr.rel (%p1321) target = $region157
        $region156: #{mixed_6a_forward.7} parent=152 // pred_region
          %s1324 = sand.u32 %s153, 1
          %s1325 = sand.u32 %s153, 1
          %s1326 = smul.addr %s1325, 104
          %s1327 = scalar_lea.vmem [#allocation5], %s1326
        $region157: #{mixed_6a_forward.7} parent=152 // pred_fallthru
          _
      $region153: #{mixed_6a_forward.7} parent=5 // pred_fallthru
        _
    $region6: #{mixed_6a_forward.7} parent=1 // loop_footer
      %s14 = sadd.s32 1, %s10
    $region7: #{mixed_6a_forward.7} parent=1 // loop_footer_branch
      %9 = sbr.rel target = $region3
    $region8: #{mixed_6a_forward.7} parent=1 // loop_exit
      _

// kernel: mixed_6a_forward.4
$region0: #{mixed_6a_forward.4}
  #allocation0 [shape = 'u32[]', space=smem, size = 0x4, offset = 0x4, fixed_abs, tag = 'smem constant byte address 0x4 - core index']
  #allocation1 [shape = 'u32[144,128]{1,0:T(1,128)}', space=vmem, size = 0x12000, scoped, tag = 'internal scratch']
  #allocation2 [shape = 'f32[104,128]{1,0:T(8,128)}', space=vmem, size = 0xd000, scoped, tag = 'scratch operand']
  %s0 = inlined_call_operand.vmem [shape: bf16[104,2944], index: 0, kind: input, shape index: {}]
  %s1 = inlined_call_operand.vmem [shape: bf16[2944,384], index: 1, kind: input, shape index: {}]
  %s2 = inlined_call_operand.vmem [shape: f32[1,384], index: 2, kind: input, shape index: {}]
  %s3 = inlined_call_operand.vmem [shape: f32[1,384], index: 3, kind: input, shape index: {}]
  %s4 = inlined_call_operand.vmem [shape: f32[104,384], index: 4, kind: output, shape index: {}]
  %s5 = sld [smem:[#allocation0]]
  $region173: #{mixed_6a_forward.4} parent=0
    _
  %s7 = ssub.s32 1, %s5
  %s8 = scalar_select 0, %s7, %s5
  $region1: #{mixed_6a_forward.4} parent=0
    #allocation3 [shape = 'u8[53248]{0}', space=vmem, size = 0xd000, scoped, tag = 'input window, operand 0']
    #allocation4 [shape = 'u8[65536]{0}', space=vmem, size = 0x10000, scoped, tag = 'input window, operand 1']
    #allocation5 [shape = 'u8[106496]{0}', space=vmem, size = 0x1a000, scoped, tag = 'output window, operand 0']
    loop: start=0, step=1, limit=71
    $region2: #{mixed_6a_forward.4} parent=1 // loop_pre_header
      _
    $region3: #{mixed_6a_forward.4} parent=1 // loop_header
      %s10 = sphi 0, %s14
      %p11 = scmp.ge.s32.totalorder %s10, 71
      %s17 = sphi 0, %s36
      %s18 = sphi 0, %s32
      %s19 = sphi 0, %s28
      %s20 = sphi 0, %s17
      %s21 = sphi 0, %s18
      %s22 = sphi 0, %s19
      %s23 = sphi 0, %s20
      %s24 = sphi 0, %s21
      %s25 = sphi 0, %s22
      %s41 = sphi 0, %s43
      %s44 = sphi 0, %s41
      %s45 = sphi 0, %s44
      %s61 = sphi 0, %s45
      %s69 = sphi 0, %s71
      %s72 = sphi 0, %s69
      %s73 = sphi 0, %s72
      %s89 = sphi 0, %s73
      %s95 = sphi 0, %s97
      %s98 = sphi 0, %s95
      %s99 = sphi 0, %s98
      %s115 = sphi 0, %s99
      %s121 = sphi 0, %s123
      %s124 = sphi 0, %s121
      %s125 = sphi 0, %s124
      %s141 = sphi 0, %s125
      %s149 = sphi 0, %s151
      %s152 = sphi 0, %s149
      %s153 = sphi 0, %s152
      %s169 = sphi 0, %s153
    $region4: #{mixed_6a_forward.4} parent=1 // loop_header_branch
      %13 = sbr.rel (%p11) target = $region8
    $region5: #{mixed_6a_forward.4} parent=1 // loop_body
      %s15 = ssub.s32 %s10, 1
      %s16 = ssub.s32 %s10, 2
      %s26 = sadd.s32 1, %s19
      %p27 = scmp.ge.s32.totalorder %s26, 23
      %s28 = scalar_select %p27, 0, %s26
      %s29 = sadd.s32 1, %s18
      %s30 = scalar_select %p27, %s29, %s18
      %p31 = scmp.ge.s32.totalorder %s30, 3
      %s32 = scalar_select %p31, 0, %s30
      %s33 = sadd.s32 1, %s17
      %s34 = scalar_select %p31, %s33, %s17
      %p35 = scmp.ge.s32.totalorder %s34, 1
      %s36 = scalar_select %p35, 0, %s34
      %s37 = ssub.s32 %s17, %s36
      %s38 = ssub.s32 %s19, %s28
      %s39 = sor.u32 %s37, %s38
      %p40 = scmp.eq.s32.totalorder %s39, 0
      %s42 = sadd.s32 %s41, 1
      %s43 = scalar_select %p40, %s41, %s42
      %p46 = pneg %p40
      %p47 = scmp.eq.s32.totalorder %s10, 68
      %p48 = por %p46, %p47
      %p49 = scmp.ne.s32.totalorder %s41, %s44
      %p50 = scmp.eq.s32.totalorder %s10, 0
      %p51 = por %p49, %p50
      %p52 = scmp.ne.s32.totalorder %s41, %s44
      %p53 = scmp.eq.s32.totalorder %s15, 68
      %p54 = por %p52, %p53
      %p55 = scmp.ne.s32.totalorder %s44, %s45
      %p56 = scmp.eq.s32.totalorder %s15, 0
      %p57 = por %p55, %p56
      %p58 = scmp.ne.s32.totalorder %s44, %s45
      %p59 = scmp.eq.s32.totalorder %s16, 68
      %p60 = por %p58, %p59
      %p62 = scmp.ne.s32.totalorder %s45, %s61
      %p63 = scmp.eq.s32.totalorder %s16, 0
      %p64 = por %p62, %p63
      %s65 = ssub.s32 %s19, %s28
      %s66 = ssub.s32 %s18, %s32
      %s67 = sor.u32 %s65, %s66
      %p68 = scmp.eq.s32.totalorder %s67, 0
      %s70 = sadd.s32 %s69, 1
      %s71 = scalar_select %p68, %s69, %s70
      %p74 = pneg %p68
      %p75 = scmp.eq.s32.totalorder %s10, 68
      %p76 = por %p74, %p75
      %p77 = scmp.ne.s32.totalorder %s69, %s72
      %p78 = scmp.eq.s32.totalorder %s10, 0
      %p79 = por %p77, %p78
      %p80 = scmp.ne.s32.totalorder %s69, %s72
      %p81 = scmp.eq.s32.totalorder %s15, 68
      %p82 = por %p80, %p81
      %p83 = scmp.ne.s32.totalorder %s72, %s73
      %p84 = scmp.eq.s32.totalorder %s15, 0
      %p85 = por %p83, %p84
      %p86 = scmp.ne.s32.totalorder %s72, %s73
      %p87 = scmp.eq.s32.totalorder %s16, 68
      %p88 = por %p86, %p87
      %p90 = scmp.ne.s32.totalorder %s73, %s89
      %p91 = scmp.eq.s32.totalorder %s16, 0
      %p92 = por %p90, %p91
      %s93 = ssub.s32 %s18, %s32
      %p94 = scmp.eq.s32.totalorder %s93, 0
      %s96 = sadd.s32 %s95, 1
      %s97 = scalar_select %p94, %s95, %s96
      %p100 = pneg %p94
      %p101 = scmp.eq.s32.totalorder %s10, 68
      %p102 = por %p100, %p101
      %p103 = scmp.ne.s32.totalorder %s95, %s98
      %p104 = scmp.eq.s32.totalorder %s10, 0
      %p105 = por %p103, %p104
      %p106 = scmp.ne.s32.totalorder %s95, %s98
      %p107 = scmp.eq.s32.totalorder %s15, 68
      %p108 = por %p106, %p107
      %p109 = scmp.ne.s32.totalorder %s98, %s99
      %p110 = scmp.eq.s32.totalorder %s15, 0
      %p111 = por %p109, %p110
      %p112 = scmp.ne.s32.totalorder %s98, %s99
      %p113 = scmp.eq.s32.totalorder %s16, 68
      %p114 = por %p112, %p113
      %p116 = scmp.ne.s32.totalorder %s99, %s115
      %p117 = scmp.eq.s32.totalorder %s16, 0
      %p118 = por %p116, %p117
      %s119 = ssub.s32 %s18, %s32
      %p120 = scmp.eq.s32.totalorder %s119, 0
      %s122 = sadd.s32 %s121, 1
      %s123 = scalar_select %p120, %s121, %s122
      %p126 = pneg %p120
      %p127 = scmp.eq.s32.totalorder %s10, 68
      %p128 = por %p126, %p127
      %p129 = scmp.ne.s32.totalorder %s121, %s124
      %p130 = scmp.eq.s32.totalorder %s10, 0
      %p131 = por %p129, %p130
      %p132 = scmp.ne.s32.totalorder %s121, %s124
      %p133 = scmp.eq.s32.totalorder %s15, 68
      %p134 = por %p132, %p133
      %p135 = scmp.ne.s32.totalorder %s124, %s125
      %p136 = scmp.eq.s32.totalorder %s15, 0
      %p137 = por %p135, %p136
      %p138 = scmp.ne.s32.totalorder %s124, %s125
      %p139 = scmp.eq.s32.totalorder %s16, 68
      %p140 = por %p138, %p139
      %p142 = scmp.ne.s32.totalorder %s125, %s141
      %p143 = scmp.eq.s32.totalorder %s16, 0
      %p144 = por %p142, %p143
      %s145 = ssub.s32 %s17, %s36
      %s146 = ssub.s32 %s18, %s32
      %s147 = sor.u32 %s145, %s146
      %p148 = scmp.eq.s32.totalorder %s147, 0
      %s150 = sadd.s32 %s149, 1
      %s151 = scalar_select %p148, %s149, %s150
      %p154 = pneg %p148
      %p155 = scmp.eq.s32.totalorder %s10, 68
      %p156 = por %p154, %p155
      %p157 = scmp.ne.s32.totalorder %s149, %s152
      %p158 = scmp.eq.s32.totalorder %s10, 0
      %p159 = por %p157, %p158
      %p160 = scmp.ne.s32.totalorder %s149, %s152
      %p161 = scmp.eq.s32.totalorder %s15, 68
      %p162 = por %p160, %p161
      %p163 = scmp.ne.s32.totalorder %s152, %s153
      %p164 = scmp.eq.s32.totalorder %s15, 0
      %p165 = por %p163, %p164
      %p166 = scmp.ne.s32.totalorder %s152, %s153
      %p167 = scmp.eq.s32.totalorder %s16, 68
      %p168 = por %p166, %p167
      %p170 = scmp.ne.s32.totalorder %s153, %s169
      %p171 = scmp.eq.s32.totalorder %s16, 0
      %p172 = por %p170, %p171
      %p173 = scmp.le.s32.totalorder 1, %s10
      %p174 = scmp.lt.s32.totalorder %s10, 70
      %p175 = pnand %p173, %p174
      %p176 = pneg %p175
      // Predicated region
      $region9: #{mixed_6a_forward.4} parent=5 // pred_check
        _
      $region10: #{mixed_6a_forward.4} parent=5 // pred_check_branch
        %178 = sbr.rel (%p175) target = $region12
      $region11: #{mixed_6a_forward.4} parent=5 // pred_region
        %s179 = ssub.s32 %s10, 1
      $region12: #{mixed_6a_forward.4} parent=5 // pred_fallthru
        _
      %p180 = scmp.lt.s32.totalorder %s10, 69
      // Predicated region
      $region13: #{mixed_6a_forward.4} parent=5 // pred_check
        %p181 = pneg %p180
      $region14: #{mixed_6a_forward.4} parent=5 // pred_check_branch
        %183 = sbr.rel (%p181) target = $region16
      $region15: #{mixed_6a_forward.4} parent=5 // pred_region
        // Predicated region
        $region17: #{mixed_6a_forward.4} parent=15 // pred_check
          %p184 = pneg %p51
        $region18: #{mixed_6a_forward.4} parent=15 // pred_check_branch
          %186 = sbr.rel (%p184) target = $region20
        $region19: #{mixed_6a_forward.4} parent=15 // pred_region
          %s187 = sand.u32 %s41, 1
          %s188 = sand.u32 %s41, 1
          %s189 = smul.addr %s188, 52
          %s190 = scalar_lea.vmem [#allocation3], %s189
          %s191 = smul.u32 13, %s17
          %s192 = smul.addr %s191, 23
          %s193 = sadd.s32 %s19, %s192
          %s194 = smul.addr %s193, 4
          %s195 = scalar_lea.vmem %s0, %s194
          // Predicated region
          $region21: #{mixed_6a_forward.4} parent=19 // pred_check
            _
          $region22: #{mixed_6a_forward.4} parent=19 // pred_check_branch
            %197 = sbr.rel (0) target = $region24
          $region23: #{mixed_6a_forward.4} parent=19 // pred_region
            // Predicated region
            $region25: #{mixed_6a_forward.4} parent=23 // pred_check
              _
            $region26: #{mixed_6a_forward.4} parent=23 // pred_check_branch
              %199 = sbr.rel target = $region28
            $region27: #{mixed_6a_forward.4} parent=23 // pred_region
              // Predicated region
              $region40: #{mixed_6a_forward.4} parent=27 // pred_check
                _
              $region41: #{mixed_6a_forward.4} parent=27 // pred_check_branch
                %238 = sbr.rel (0) target = $region43
              $region42: #{mixed_6a_forward.4} parent=27 // pred_region
                loop: start=0, step=1, limit=1
                $region44: #{mixed_6a_forward.4} parent=42 // loop_pre_header
                  _
                $region45: #{mixed_6a_forward.4} parent=42 // loop_header
                  %s240 = sphi 0, %s244
                  %p241 = scmp.ge.s32.totalorder %s240, 1
                  %s245 = sphi %s195, %s195
                  %s246 = sphi %s190, %s190
                $region46: #{mixed_6a_forward.4} parent=42 // loop_header_branch
                  %243 = sbr.rel (%p241) target = $region50
                $region47: #{mixed_6a_forward.4} parent=42 // loop_body
                  _
                $region48: #{mixed_6a_forward.4} parent=42 // loop_footer
                  %s244 = sadd.s32 1, %s240
                $region49: #{mixed_6a_forward.4} parent=42 // loop_footer_branch
                  %239 = sbr.rel target = $region45
                $region50: #{mixed_6a_forward.4} parent=42 // loop_exit
                  _
                loop: start=0, step=1, limit=1
                $region51: #{mixed_6a_forward.4} parent=42 // loop_pre_header
                  _
                $region52: #{mixed_6a_forward.4} parent=42 // loop_header
                  %s249 = sphi 0, %s253
                  %p250 = scmp.ge.s32.totalorder %s249, 1
                  %s254 = sphi %s195, %s195
                  %s255 = sphi %s190, %s190
                $region53: #{mixed_6a_forward.4} parent=42 // loop_header_branch
                  %252 = sbr.rel (%p250) target = $region57
                $region54: #{mixed_6a_forward.4} parent=42 // loop_body
                  %v256 = vld [vmem:[%s254] sm:$0xf]
                  %257 = vst [vmem:[%s255] sm:$0xf] %v256
                  %v258 = vld [vmem:[%s254 + $0x5c] sm:$0xf]
                  %259 = vst [vmem:[%s255 + $0x4] sm:$0xf] %v258
                  %v260 = vld [vmem:[%s254 + $0xb8] sm:$0xf]
                  %261 = vst [vmem:[%s255 + $0x8] sm:$0xf] %v260
                  %v262 = vld [vmem:[%s254 + $0x114] sm:$0xf]
                  %263 = vst [vmem:[%s255 + $0xc] sm:$0xf] %v262
                  %v264 = vld [vmem:[%s254 + $0x170] sm:$0xf]
                  %265 = vst [vmem:[%s255 + $0x10] sm:$0xf] %v264
                  %v266 = vld [vmem:[%s254 + $0x1cc] sm:$0xf]
                  %267 = vst [vmem:[%s255 + $0x14] sm:$0xf] %v266
                  %v268 = vld [vmem:[%s254 + $0x228] sm:$0xf]
                  %269 = vst [vmem:[%s255 + $0x18] sm:$0xf] %v268
                  %v270 = vld [vmem:[%s254 + $0x284] sm:$0xf]
                  %271 = vst [vmem:[%s255 + $0x1c] sm:$0xf] %v270
                  %v272 = vld [vmem:[%s254 + $0x2e0] sm:$0xf]
                  %273 = vst [vmem:[%s255 + $0x20] sm:$0xf] %v272
                  %v274 = vld [vmem:[%s254 + $0x33c] sm:$0xf]
                  %275 = vst [vmem:[%s255 + $0x24] sm:$0xf] %v274
                  %v276 = vld [vmem:[%s254 + $0x398] sm:$0xf]
                  %277 = vst [vmem:[%s255 + $0x28] sm:$0xf] %v276
                  %v278 = vld [vmem:[%s254 + $0x3f4] sm:$0xf]
                  %279 = vst [vmem:[%s255 + $0x2c] sm:$0xf] %v278
                  %v280 = vld [vmem:[%s254 + $0x450] sm:$0xf]
                  %281 = vst [vmem:[%s255 + $0x30] sm:$0xf] %v280
                $region55: #{mixed_6a_forward.4} parent=42 // loop_footer
                  %s253 = sadd.s32 1, %s249
                $region56: #{mixed_6a_forward.4} parent=42 // loop_footer_branch
                  %248 = sbr.rel target = $region52
                $region57: #{mixed_6a_forward.4} parent=42 // loop_exit
                  _
              $region43: #{mixed_6a_forward.4} parent=27 // pred_fallthru
                _
            $region28: #{mixed_6a_forward.4} parent=23 // pred_fallthru
              _
            // Predicated region
            $region29: #{mixed_6a_forward.4} parent=23 // pred_check
              _
            $region30: #{mixed_6a_forward.4} parent=23 // pred_check_branch
              %201 = sbr.rel (0) target = $region32
            $region31: #{mixed_6a_forward.4} parent=23 // pred_region
              loop: start=0, step=1, limit=1
              $region33: #{mixed_6a_forward.4} parent=31 // loop_pre_header
                _
              $region34: #{mixed_6a_forward.4} parent=31 // loop_header
                %s204 = sphi 0, %s208
                %p205 = scmp.ge.s32.totalorder %s204, 1
                %s209 = sphi %s195, %s195
                %s210 = sphi %s190, %s190
              $region35: #{mixed_6a_forward.4} parent=31 // loop_header_branch
                %207 = sbr.rel (%p205) target = $region39
              $region36: #{mixed_6a_forward.4} parent=31 // loop_body
                %v211 = vld [vmem:[%s209] sm:$0xf]
                %212 = vst [vmem:[%s210] sm:$0xf] %v211
                %v213 = vld [vmem:[%s209 + $0x5c] sm:$0xf]
                %214 = vst [vmem:[%s210 + $0x4] sm:$0xf] %v213
                %v215 = vld [vmem:[%s209 + $0xb8] sm:$0xf]
                %216 = vst [vmem:[%s210 + $0x8] sm:$0xf] %v215
                %v217 = vld [vmem:[%s209 + $0x114] sm:$0xf]
                %218 = vst [vmem:[%s210 + $0xc] sm:$0xf] %v217
                %v219 = vld [vmem:[%s209 + $0x170] sm:$0xf]
                %220 = vst [vmem:[%s210 + $0x10] sm:$0xf] %v219
                %v221 = vld [vmem:[%s209 + $0x1cc] sm:$0xf]
                %222 = vst [vmem:[%s210 + $0x14] sm:$0xf] %v221
                %v223 = vld [vmem:[%s209 + $0x228] sm:$0xf]
                %224 = vst [vmem:[%s210 + $0x18] sm:$0xf] %v223
                %v225 = vld [vmem:[%s209 + $0x284] sm:$0xf]
                %226 = vst [vmem:[%s210 + $0x1c] sm:$0xf] %v225
                %v227 = vld [vmem:[%s209 + $0x2e0] sm:$0xf]
                %228 = vst [vmem:[%s210 + $0x20] sm:$0xf] %v227
                %v229 = vld [vmem:[%s209 + $0x33c] sm:$0xf]
                %230 = vst [vmem:[%s210 + $0x24] sm:$0xf] %v229
                %v231 = vld [vmem:[%s209 + $0x398] sm:$0xf]
                %232 = vst [vmem:[%s210 + $0x28] sm:$0xf] %v231
                %v233 = vld [vmem:[%s209 + $0x3f4] sm:$0xf]
                %234 = vst [vmem:[%s210 + $0x2c] sm:$0xf] %v233
                %v235 = vld [vmem:[%s209 + $0x450] sm:$0xf]
                %236 = vst [vmem:[%s210 + $0x30] sm:$0xf] %v235
              $region37: #{mixed_6a_forward.4} parent=31 // loop_footer
                %s208 = sadd.s32 1, %s204
              $region38: #{mixed_6a_forward.4} parent=31 // loop_footer_branch
                %203 = sbr.rel target = $region34
              $region39: #{mixed_6a_forward.4} parent=31 // loop_exit
                _
            $region32: #{mixed_6a_forward.4} parent=23 // pred_fallthru
              _
          $region24: #{mixed_6a_forward.4} parent=19 // pred_fallthru
            _
          %282 = vnop
        $region20: #{mixed_6a_forward.4} parent=15 // pred_fallthru
          _
        // Predicated region
        $region58: #{mixed_6a_forward.4} parent=15 // pred_check
          %p283 = pneg %p79
        $region59: #{mixed_6a_forward.4} parent=15 // pred_check_branch
          %285 = sbr.rel (%p283) target = $region61
        $region60: #{mixed_6a_forward.4} parent=15 // pred_region
          %s286 = sand.u32 %s69, 1
          %s287 = sand.u32 %s69, 1
          %s288 = smul.addr %s287, 64
          %s289 = scalar_lea.vmem [#allocation4], %s288
          %s290 = smul.u32 16, %s19
          %s291 = smul.addr %s290, 3
          %s292 = sadd.s32 %s18, %s291
          %s293 = smul.addr %s292, 4
          %s294 = scalar_lea.vmem %s1, %s293
          // Predicated region
          $region62: #{mixed_6a_forward.4} parent=60 // pred_check
            _
          $region63: #{mixed_6a_forward.4} parent=60 // pred_check_branch
            %296 = sbr.rel (0) target = $region65
          $region64: #{mixed_6a_forward.4} parent=60 // pred_region
            // Predicated region
            $region66: #{mixed_6a_forward.4} parent=64 // pred_check
              _
            $region67: #{mixed_6a_forward.4} parent=64 // pred_check_branch
              %298 = sbr.rel target = $region69
            $region68: #{mixed_6a_forward.4} parent=64 // pred_region
              // Predicated region
              $region81: #{mixed_6a_forward.4} parent=68 // pred_check
                _
              $region82: #{mixed_6a_forward.4} parent=68 // pred_check_branch
                %343 = sbr.rel (0) target = $region84
              $region83: #{mixed_6a_forward.4} parent=68 // pred_region
                loop: start=0, step=1, limit=1
                $region85: #{mixed_6a_forward.4} parent=83 // loop_pre_header
                  _
                $region86: #{mixed_6a_forward.4} parent=83 // loop_header
                  %s345 = sphi 0, %s349
                  %p346 = scmp.ge.s32.totalorder %s345, 1
                  %s350 = sphi %s294, %s294
                  %s351 = sphi %s289, %s289
                $region87: #{mixed_6a_forward.4} parent=83 // loop_header_branch
                  %348 = sbr.rel (%p346) target = $region91
                $region88: #{mixed_6a_forward.4} parent=83 // loop_body
                  _
                $region89: #{mixed_6a_forward.4} parent=83 // loop_footer
                  %s349 = sadd.s32 1, %s345
                $region90: #{mixed_6a_forward.4} parent=83 // loop_footer_branch
                  %344 = sbr.rel target = $region86
                $region91: #{mixed_6a_forward.4} parent=83 // loop_exit
                  _
                loop: start=0, step=1, limit=1
                $region92: #{mixed_6a_forward.4} parent=83 // loop_pre_header
                  _
                $region93: #{mixed_6a_forward.4} parent=83 // loop_header
                  %s354 = sphi 0, %s358
                  %p355 = scmp.ge.s32.totalorder %s354, 1
                  %s359 = sphi %s294, %s294
                  %s360 = sphi %s289, %s289
                $region94: #{mixed_6a_forward.4} parent=83 // loop_header_branch
                  %357 = sbr.rel (%p355) target = $region98
                $region95: #{mixed_6a_forward.4} parent=83 // loop_body
                  %v361 = vld [vmem:[%s359] sm:$0xf]
                  %362 = vst [vmem:[%s360] sm:$0xf] %v361
                  %v363 = vld [vmem:[%s359 + $0xc] sm:$0xf]
                  %364 = vst [vmem:[%s360 + $0x4] sm:$0xf] %v363
                  %v365 = vld [vmem:[%s359 + $0x18] sm:$0xf]
                  %366 = vst [vmem:[%s360 + $0x8] sm:$0xf] %v365
                  %v367 = vld [vmem:[%s359 + $0x24] sm:$0xf]
                  %368 = vst [vmem:[%s360 + $0xc] sm:$0xf] %v367
                  %v369 = vld [vmem:[%s359 + $0x30] sm:$0xf]
                  %370 = vst [vmem:[%s360 + $0x10] sm:$0xf] %v369
                  %v371 = vld [vmem:[%s359 + $0x3c] sm:$0xf]
                  %372 = vst [vmem:[%s360 + $0x14] sm:$0xf] %v371
                  %v373 = vld [vmem:[%s359 + $0x48] sm:$0xf]
                  %374 = vst [vmem:[%s360 + $0x18] sm:$0xf] %v373
                  %v375 = vld [vmem:[%s359 + $0x54] sm:$0xf]
                  %376 = vst [vmem:[%s360 + $0x1c] sm:$0xf] %v375
                  %v377 = vld [vmem:[%s359 + $0x60] sm:$0xf]
                  %378 = vst [vmem:[%s360 + $0x20] sm:$0xf] %v377
                  %v379 = vld [vmem:[%s359 + $0x6c] sm:$0xf]
                  %380 = vst [vmem:[%s360 + $0x24] sm:$0xf] %v379
                  %v381 = vld [vmem:[%s359 + $0x78] sm:$0xf]
                  %382 = vst [vmem:[%s360 + $0x28] sm:$0xf] %v381
                  %v383 = vld [vmem:[%s359 + $0x84] sm:$0xf]
                  %384 = vst [vmem:[%s360 + $0x2c] sm:$0xf] %v383
                  %v385 = vld [vmem:[%s359 + $0x90] sm:$0xf]
                  %386 = vst [vmem:[%s360 + $0x30] sm:$0xf] %v385
                  %v387 = vld [vmem:[%s359 + $0x9c] sm:$0xf]
                  %388 = vst [vmem:[%s360 + $0x34] sm:$0xf] %v387
                  %v389 = vld [vmem:[%s359 + $0xa8] sm:$0xf]
                  %390 = vst [vmem:[%s360 + $0x38] sm:$0xf] %v389
                  %v391 = vld [vmem:[%s359 + $0xb4] sm:$0xf]
                  %392 = vst [vmem:[%s360 + $0x3c] sm:$0xf] %v391
                $region96: #{mixed_6a_forward.4} parent=83 // loop_footer
                  %s358 = sadd.s32 1, %s354
                $region97: #{mixed_6a_forward.4} parent=83 // loop_footer_branch
                  %353 = sbr.rel target = $region93
                $region98: #{mixed_6a_forward.4} parent=83 // loop_exit
                  _
              $region84: #{mixed_6a_forward.4} parent=68 // pred_fallthru
                _
            $region69: #{mixed_6a_forward.4} parent=64 // pred_fallthru
              _
            // Predicated region
            $region70: #{mixed_6a_forward.4} parent=64 // pred_check
              _
            $region71: #{mixed_6a_forward.4} parent=64 // pred_check_branch
              %300 = sbr.rel (0) target = $region73
            $region72: #{mixed_6a_forward.4} parent=64 // pred_region
              loop: start=0, step=1, limit=1
              $region74: #{mixed_6a_forward.4} parent=72 // loop_pre_header
                _
              $region75: #{mixed_6a_forward.4} parent=72 // loop_header
                %s303 = sphi 0, %s307
                %p304 = scmp.ge.s32.totalorder %s303, 1
                %s308 = sphi %s294, %s294
                %s309 = sphi %s289, %s289
              $region76: #{mixed_6a_forward.4} parent=72 // loop_header_branch
                %306 = sbr.rel (%p304) target = $region80
              $region77: #{mixed_6a_forward.4} parent=72 // loop_body
                %v310 = vld [vmem:[%s308] sm:$0xf]
                %311 = vst [vmem:[%s309] sm:$0xf] %v310
                %v312 = vld [vmem:[%s308 + $0xc] sm:$0xf]
                %313 = vst [vmem:[%s309 + $0x4] sm:$0xf] %v312
                %v314 = vld [vmem:[%s308 + $0x18] sm:$0xf]
                %315 = vst [vmem:[%s309 + $0x8] sm:$0xf] %v314
                %v316 = vld [vmem:[%s308 + $0x24] sm:$0xf]
                %317 = vst [vmem:[%s309 + $0xc] sm:$0xf] %v316
                %v318 = vld [vmem:[%s308 + $0x30] sm:$0xf]
                %319 = vst [vmem:[%s309 + $0x10] sm:$0xf] %v318
                %v320 = vld [vmem:[%s308 + $0x3c] sm:$0xf]
                %321 = vst [vmem:[%s309 + $0x14] sm:$0xf] %v320
                %v322 = vld [vmem:[%s308 + $0x48] sm:$0xf]
                %323 = vst [vmem:[%s309 + $0x18] sm:$0xf] %v322
                %v324 = vld [vmem:[%s308 + $0x54] sm:$0xf]
                %325 = vst [vmem:[%s309 + $0x1c] sm:$0xf] %v324
                %v326 = vld [vmem:[%s308 + $0x60] sm:$0xf]
                %327 = vst [vmem:[%s309 + $0x20] sm:$0xf] %v326
                %v328 = vld [vmem:[%s308 + $0x6c] sm:$0xf]
                %329 = vst [vmem:[%s309 + $0x24] sm:$0xf] %v328
                %v330 = vld [vmem:[%s308 + $0x78] sm:$0xf]
                %331 = vst [vmem:[%s309 + $0x28] sm:$0xf] %v330
                %v332 = vld [vmem:[%s308 + $0x84] sm:$0xf]
                %333 = vst [vmem:[%s309 + $0x2c] sm:$0xf] %v332
                %v334 = vld [vmem:[%s308 + $0x90] sm:$0xf]
                %335 = vst [vmem:[%s309 + $0x30] sm:$0xf] %v334
                %v336 = vld [vmem:[%s308 + $0x9c] sm:$0xf]
                %337 = vst [vmem:[%s309 + $0x34] sm:$0xf] %v336
                %v338 = vld [vmem:[%s308 + $0xa8] sm:$0xf]
                %339 = vst [vmem:[%s309 + $0x38] sm:$0xf] %v338
                %v340 = vld [vmem:[%s308 + $0xb4] sm:$0xf]
                %341 = vst [vmem:[%s309 + $0x3c] sm:$0xf] %v340
              $region78: #{mixed_6a_forward.4} parent=72 // loop_footer
                %s307 = sadd.s32 1, %s303
              $region79: #{mixed_6a_forward.4} parent=72 // loop_footer_branch
                %302 = sbr.rel target = $region75
              $region80: #{mixed_6a_forward.4} parent=72 // loop_exit
                _
            $region73: #{mixed_6a_forward.4} parent=64 // pred_fallthru
              _
          $region65: #{mixed_6a_forward.4} parent=60 // pred_fallthru
            _
          %393 = vnop
        $region61: #{mixed_6a_forward.4} parent=15 // pred_fallthru
          _
        // Predicated region
        $region99: #{mixed_6a_forward.4} parent=15 // pred_check
          %p394 = pneg %p105
        $region100: #{mixed_6a_forward.4} parent=15 // pred_check_branch
          %396 = sbr.rel (%p394) target = $region102
        $region101: #{mixed_6a_forward.4} parent=15 // pred_region
          %p397 = scmp.lt.s32.totalorder %s18, 2
          %s398 = scalar_select %p397, %s18, 2
          %s399 = scalar_lea.vmem %s2, %s398
        $region102: #{mixed_6a_forward.4} parent=15 // pred_fallthru
          _
        // Predicated region
        $region103: #{mixed_6a_forward.4} parent=15 // pred_check
          %p400 = pneg %p131
        $region104: #{mixed_6a_forward.4} parent=15 // pred_check_branch
          %402 = sbr.rel (%p400) target = $region106
        $region105: #{mixed_6a_forward.4} parent=15 // pred_region
          %p403 = scmp.lt.s32.totalorder %s18, 2
          %s404 = scalar_select %p403, %s18, 2
          %s405 = scalar_lea.vmem %s3, %s404
        $region106: #{mixed_6a_forward.4} parent=15 // pred_fallthru
          _
      $region16: #{mixed_6a_forward.4} parent=5 // pred_fallthru
        _
      %p406 = scmp.le.s32.totalorder 1, %s10
      %p407 = scmp.lt.s32.totalorder %s10, 70
      %p408 = pnand %p406, %p407
      %p409 = pneg %p408
      // Predicated region
      $region107: #{mixed_6a_forward.4} parent=5 // pred_check
        _
      $region108: #{mixed_6a_forward.4} parent=5 // pred_check_branch
        %411 = sbr.rel (%p408) target = $region110
      $region109: #{mixed_6a_forward.4} parent=5 // pred_region
        %s412 = ssub.s32 %s10, 1
        %s413 = sand.u32 %s44, 1
        %s414 = sand.u32 %s44, 1
        %s415 = smul.addr %s414, 52
        %s416 = scalar_lea.vmem [#allocation3], %s415
        // Predicated region
        $region111: #{mixed_6a_forward.4} parent=109 // pred_check
          %p417 = pneg %p57
        $region112: #{mixed_6a_forward.4} parent=109 // pred_check_branch
          %419 = sbr.rel (%p417) target = $region114
        $region113: #{mixed_6a_forward.4} parent=109 // pred_region
          _
        $region114: #{mixed_6a_forward.4} parent=109 // pred_fallthru
          _
        %s420 = sand.u32 %s72, 1
        %s421 = sand.u32 %s72, 1
        %s422 = smul.addr %s421, 64
        %s423 = scalar_lea.vmem [#allocation4], %s422
        // Predicated region
        $region115: #{mixed_6a_forward.4} parent=109 // pred_check
          %p424 = pneg %p85
        $region116: #{mixed_6a_forward.4} parent=109 // pred_check_branch
          %426 = sbr.rel (%p424) target = $region118
        $region117: #{mixed_6a_forward.4} parent=109 // pred_region
          _
        $region118: #{mixed_6a_forward.4} parent=109 // pred_fallthru
          _
        %s427 = sand.u32 %s44, 1
        %s428 = sand.u32 %s44, 1
        %s429 = smul.addr %s428, 52
        %s430 = scalar_lea.vmem [#allocation3], %s429
        %p431 = pneg %p57
        %p432 = pneg %p54
        %s433 = sand.u32 %s72, 1
        %s434 = sand.u32 %s72, 1
        %s435 = smul.addr %s434, 64
        %s436 = scalar_lea.vmem [#allocation4], %s435
        %p437 = pneg %p85
        %p438 = pneg %p82
        %p439 = scmp.lt.s32.totalorder %s21, 2
        %s440 = scalar_select %p439, %s21, 2
        %s441 = scalar_lea.vmem %s2, %s440
        %p442 = pneg %p111
        %p443 = pneg %p108
        %p444 = scmp.lt.s32.totalorder %s21, 2
        %s445 = scalar_select %p444, %s21, 2
        %s446 = scalar_lea.vmem %s3, %s445
        %p447 = pneg %p137
        %p448 = pneg %p134
        %p449 = pneg %p165
        %p450 = pneg %p162
        %s451 = sand.u32 %s152, 1
        %s452 = sand.u32 %s152, 1
        %s453 = smul.addr %s452, 104
        %s454 = scalar_lea.vmem [#allocation5], %s453
        %s455 = smul.u32 13, %s20
        %s456 = smul.u32 16, %s22
        %p457 = scmp.lt.s32.totalorder %s21, 2
        %s458 = scalar_select %p457, %s21, 2
        %s459 = scalar_lea.vmem %s2, %s458
        %p460 = scmp.lt.s32.totalorder %s21, 2
        %s461 = scalar_select %p460, %s21, 2
        %s462 = scalar_lea.vmem %s3, %s461
        %s463 = smul.u32 13, %s20
        %p465 = scmp.eq.s32.totalorder %s22, 0
        // Predicated region
        $region119: #{mixed_6a_forward.4} parent=109 // pred_check
          %p466 = pneg %p465
        $region120: #{mixed_6a_forward.4} parent=109 // pred_check_branch
          %468 = sbr.rel (%p466) target = $region122
        $region121: #{mixed_6a_forward.4} parent=109 // pred_region
          %469 = vst [vmem:[#allocation2] sm:$0xff] 0.0
          %470 = vst [vmem:[#allocation2 + $0x8] sm:$0xff] 0.0
          %471 = vst [vmem:[#allocation2 + $0x10] sm:$0xff] 0.0
          %472 = vst [vmem:[#allocation2 + $0x18] sm:$0xff] 0.0
          %473 = vst [vmem:[#allocation2 + $0x20] sm:$0xff] 0.0
          %474 = vst [vmem:[#allocation2 + $0x28] sm:$0xff] 0.0
          %475 = vst [vmem:[#allocation2 + $0x30] sm:$0xff] 0.0
          %476 = vst [vmem:[#allocation2 + $0x38] sm:$0xff] 0.0
          %477 = vst [vmem:[#allocation2 + $0x40] sm:$0xff] 0.0
          %478 = vst [vmem:[#allocation2 + $0x48] sm:$0xff] 0.0
          %479 = vst [vmem:[#allocation2 + $0x50] sm:$0xff] 0.0
          %480 = vst [vmem:[#allocation2 + $0x58] sm:$0xff] 0.0
          %481 = vst [vmem:[#allocation2 + $0x60] sm:$0xff] 0.0
        $region122: #{mixed_6a_forward.4} parent=109 // pred_fallthru
          _
        %v482 = vld [vmem:[#allocation2] sm:$0xff]
        %v483 = vld [vmem:[#allocation2 + $0x8] sm:$0xff]
        %v484 = vld [vmem:[#allocation2 + $0x10] sm:$0xff]
        %v485 = vld [vmem:[#allocation2 + $0x18] sm:$0xff]
        %v486 = vld [vmem:[#allocation2 + $0x20] sm:$0xff]
        %v487 = vld [vmem:[#allocation2 + $0x28] sm:$0xff]
        %v488 = vld [vmem:[#allocation2 + $0x30] sm:$0xff]
        %v489 = vld [vmem:[#allocation2 + $0x38] sm:$0xff]
        %v490 = vld [vmem:[#allocation2 + $0x40] sm:$0xff]
        %v491 = vld [vmem:[#allocation2 + $0x48] sm:$0xff]
        %v492 = vld [vmem:[#allocation2 + $0x50] sm:$0xff]
        %v493 = vld [vmem:[#allocation2 + $0x58] sm:$0xff]
        %v494 = vld [vmem:[#allocation2 + $0x60] sm:$0xff]
        %v495 = vld [vmem:[%s416] sm:$0xf]
        %v496 = vld [vmem:[%s416 + $0x4] sm:$0xf]
        %v497 = vld [vmem:[%s416 + $0x8] sm:$0xf]
        %v498 = vld [vmem:[%s416 + $0xc] sm:$0xf]
        %v499 = vld [vmem:[%s416 + $0x10] sm:$0xf]
        %v500 = vld [vmem:[%s416 + $0x14] sm:$0xf]
        %v501 = vld [vmem:[%s416 + $0x18] sm:$0xf]
        %v502 = vld [vmem:[%s416 + $0x1c] sm:$0xf]
        %v503 = vld [vmem:[%s416 + $0x20] sm:$0xf]
        %v504 = vld [vmem:[%s416 + $0x24] sm:$0xf]
        %v505 = vld [vmem:[%s416 + $0x28] sm:$0xf]
        %v506 = vld [vmem:[%s416 + $0x2c] sm:$0xf]
        %v507 = vld [vmem:[%s416 + $0x30] sm:$0xf]
        %v508 = vld [vmem:[%s423] sm:$0xf]
        %v509 = vld [vmem:[%s423 + $0x4] sm:$0xf]
        %v510 = vld [vmem:[%s423 + $0x8] sm:$0xf]
        %v511 = vld [vmem:[%s423 + $0xc] sm:$0xf]
        %v512 = vld [vmem:[%s423 + $0x10] sm:$0xf]
        %v513 = vld [vmem:[%s423 + $0x14] sm:$0xf]
        %v514 = vld [vmem:[%s423 + $0x18] sm:$0xf]
        %v515 = vld [vmem:[%s423 + $0x1c] sm:$0xf]
        %v516 = vld [vmem:[%s423 + $0x20] sm:$0xf]
        %v517 = vld [vmem:[%s423 + $0x24] sm:$0xf]
        %v518 = vld [vmem:[%s423 + $0x28] sm:$0xf]
        %v519 = vld [vmem:[%s423 + $0x2c] sm:$0xf]
        %v520 = vld [vmem:[%s423 + $0x30] sm:$0xf]
        %v521 = vld [vmem:[%s423 + $0x34] sm:$0xf]
        %v522 = vld [vmem:[%s423 + $0x38] sm:$0xf]
        %v523 = vld [vmem:[%s423 + $0x3c] sm:$0xf]
        %v537 = vunpack.c.l.b16 %v495
        %v538 = vunpack.c.l.b16 %v496
        %v539 = vunpack.c.l.b16 %v497
        %v540 = vunpack.c.l.b16 %v498
        %v541 = vunpack.c.l.b16 %v499
        %v542 = vunpack.c.l.b16 %v500
        %v543 = vunpack.c.l.b16 %v501
        %v544 = vunpack.c.l.b16 %v502
        %v545 = vunpack.c.l.b16 %v503
        %v546 = vunpack.c.l.b16 %v504
        %v547 = vunpack.c.l.b16 %v505
        %v548 = vunpack.c.l.b16 %v506
        %v549 = vunpack.c.l.b16 %v507
        %v550 = vpack.c.b16 %v538, %v537
        %v551 = vpack.c.b16 %v540, %v539
        %v552 = vpack.c.b16 %v542, %v541
        %v553 = vpack.c.b16 %v544, %v543
        %v554 = vpack.c.b16 %v546, %v545
        %v555 = vpack.c.b16 %v548, %v547
        %v556 = vpack.c.b16 %v549, %v549
        %v580 = vunpack.c.l.b16 %v508
        %v581 = vunpack.c.l.b16 %v509
        %v582 = vunpack.c.l.b16 %v510
        %v583 = vunpack.c.l.b16 %v511
        %v584 = vunpack.c.l.b16 %v512
        %v585 = vunpack.c.l.b16 %v513
        %v586 = vunpack.c.l.b16 %v514
        %v587 = vunpack.c.l.b16 %v515
        %v588 = vunpack.c.l.b16 %v516
        %v589 = vunpack.c.l.b16 %v517
        %v590 = vunpack.c.l.b16 %v518
        %v591 = vunpack.c.l.b16 %v519
        %v592 = vunpack.c.l.b16 %v520
        %v593 = vunpack.c.l.b16 %v521
        %v594 = vunpack.c.l.b16 %v522
        %v595 = vunpack.c.l.b16 %v523
        %v596 = vpack.c.b16 %v581, %v580
        %v597 = vpack.c.b16 %v583, %v582
        %v598 = vpack.c.b16 %v585, %v584
        %v599 = vpack.c.b16 %v587, %v586
        %v600 = vpack.c.b16 %v589, %v588
        %v601 = vpack.c.b16 %v591, %v590
        %v602 = vpack.c.b16 %v593, %v592
        %v603 = vpack.c.b16 %v595, %v594
        %612 = vmatprep.subr.bf16.mxu0 0
        %613 = vmatpush1.bf16.msra.mxu0 %v596
        %614 = vmatprep.subr.bf16.mxu0 0
        %615 = vmatpush1.bf16.msra.mxu0 %v597
        %616 = vmatprep.subr.bf16.mxu0 0
        %617 = vmatpush1.bf16.msra.mxu0 %v598
        %618 = vmatprep.subr.bf16.mxu0 0
        %619 = vmatpush1.bf16.msra.mxu0 %v599
        %620 = vmatprep.subr.bf16.mxu0 0
        %621 = vmatpush1.bf16.msra.mxu0 %v600
        %622 = vmatprep.subr.bf16.mxu0 0
        %623 = vmatpush1.bf16.msra.mxu0 %v601
        %624 = vmatprep.subr.bf16.mxu0 0
        %625 = vmatpush1.bf16.msra.mxu0 %v602
        %626 = vmatprep.subr.bf16.mxu0 0
        %627 = vmatpush1.bf16.msra.mxu0 %v603
        %628 = vmatprep.subr.bf16.mxu0 0
        %629 = vmatpush1.bf16.msra.mxu0 0
        %630 = vmatprep.subr.bf16.mxu0 0
        %631 = vmatpush1.bf16.msra.mxu0 0
        %632 = vmatprep.subr.bf16.mxu0 0
        %633 = vmatpush1.bf16.msra.mxu0 0
        %634 = vmatprep.subr.bf16.mxu0 0
        %635 = vmatpush1.bf16.msra.mxu0 0
        %636 = vmatprep.subr.bf16.mxu0 0
        %637 = vmatpush1.bf16.msra.mxu0 0
        %638 = vmatprep.subr.bf16.mxu0 0
        %639 = vmatpush1.bf16.msra.mxu0 0
        %640 = vmatprep.subr.bf16.mxu0 0
        %641 = vmatpush1.bf16.msra.mxu0 0
        %642 = vmatprep.subr.bf16.mxu0 0
        %643 = vmatpush1.bf16.msra.mxu0 0
        %644 = vmatprep.mubr.bf16.mxu0 0
        %645 = vmatmul.mubr.bf16.gmra.mrb[0].mxu0 %v550
        %v646 = vpop.f32.mrb[0].mxu0
        %v647 = vadd.f32 0.0, %v646
        %v648 = vpop.f32.mrb[0].mxu0
        %v649 = vpop.f32.mrb[0].mxu0
        %v650 = vadd.f32 0.0, %v649
        %v651 = vpop.f32.mrb[0].mxu0
        %652 = vmatprep.mubr.bf16.mxu0 0
        %653 = vmatmul.mubr.bf16.gmra.mrb[0].mxu0 %v551
        %v654 = vpop.f32.mrb[0].mxu0
        %v655 = vadd.f32 0.0, %v654
        %v656 = vpop.f32.mrb[0].mxu0
        %v657 = vpop.f32.mrb[0].mxu0
        %v658 = vadd.f32 0.0, %v657
        %v659 = vpop.f32.mrb[0].mxu0
        %660 = vmatprep.mubr.bf16.mxu0 0
        %661 = vmatmul.mubr.bf16.gmra.mrb[0].mxu0 %v552
        %v662 = vpop.f32.mrb[0].mxu0
        %v663 = vadd.f32 0.0, %v662
        %v664 = vpop.f32.mrb[0].mxu0
        %v665 = vpop.f32.mrb[0].mxu0
        %v666 = vadd.f32 0.0, %v665
        %v667 = vpop.f32.mrb[0].mxu0
        %668 = vmatprep.mubr.bf16.mxu0 0
        %669 = vmatmul.mubr.bf16.gmra.mrb[0].mxu0 %v553
        %v670 = vpop.f32.mrb[0].mxu0
        %v671 = vadd.f32 0.0, %v670
        %v672 = vpop.f32.mrb[0].mxu0
        %v673 = vpop.f32.mrb[0].mxu0
        %v674 = vadd.f32 0.0, %v673
        %v675 = vpop.f32.mrb[0].mxu0
        %676 = vmatprep.mubr.bf16.mxu0 0
        %677 = vmatmul.mubr.bf16.gmra.mrb[0].mxu0 %v554
        %v678 = vpop.f32.mrb[0].mxu0
        %v679 = vadd.f32 0.0, %v678
        %v680 = vpop.f32.mrb[0].mxu0
        %v681 = vpop.f32.mrb[0].mxu0
        %v682 = vadd.f32 0.0, %v681
        %v683 = vpop.f32.mrb[0].mxu0
        %684 = vmatprep.mubr.bf16.mxu0 0
        %685 = vmatmul.mubr.bf16.gmra.mrb[0].mxu0 %v555
        %v686 = vpop.f32.mrb[0].mxu0
        %v687 = vadd.f32 0.0, %v686
        %v688 = vpop.f32.mrb[0].mxu0
        %v689 = vpop.f32.mrb[0].mxu0
        %v690 = vadd.f32 0.0, %v689
        %v691 = vpop.f32.mrb[0].mxu0
        %692 = vmatprep.mubr.bf16.mxu0 0
        %693 = vmatmul.mubr.bf16.gmra.mrb[0].mxu0 %v556
        %v694 = vpop.f32.mrb[0].mxu0
        %v695 = vadd.f32 0.0, %v694
        %v696 = vpop.f32.mrb[0].mxu0
        %v697 = vpop.f32.mrb[0].mxu0
        %v698 = vpop.f32.mrb[0].mxu0
        %699 = vdwg.mxu0
        %v700 = vadd.f32 %v482, %v647
        %v701 = vadd.f32 %v483, %v650
        %v702 = vadd.f32 %v484, %v655
        %v703 = vadd.f32 %v485, %v658
        %v704 = vadd.f32 %v486, %v663
        %v705 = vadd.f32 %v487, %v666
        %v706 = vadd.f32 %v488, %v671
        %v707 = vadd.f32 %v489, %v674
        %v708 = vadd.f32 %v490, %v679
        %v709 = vadd.f32 %v491, %v682
        %v710 = vadd.f32 %v492, %v687
        %v711 = vadd.f32 %v493, %v690
        %v712 = vadd.f32 %v494, %v695
        %713 = vst [vmem:[#allocation2] sm:$0xff] %v700
        %714 = vst [vmem:[#allocation2 + $0x8] sm:$0xff] %v701
        %715 = vst [vmem:[#allocation2 + $0x10] sm:$0xff] %v702
        %716 = vst [vmem:[#allocation2 + $0x18] sm:$0xff] %v703
        %717 = vst [vmem:[#allocation2 + $0x20] sm:$0xff] %v704
        %718 = vst [vmem:[#allocation2 + $0x28] sm:$0xff] %v705
        %719 = vst [vmem:[#allocation2 + $0x30] sm:$0xff] %v706
        %720 = vst [vmem:[#allocation2 + $0x38] sm:$0xff] %v707
        %721 = vst [vmem:[#allocation2 + $0x40] sm:$0xff] %v708
        %722 = vst [vmem:[#allocation2 + $0x48] sm:$0xff] %v709
        %723 = vst [vmem:[#allocation2 + $0x50] sm:$0xff] %v710
        %724 = vst [vmem:[#allocation2 + $0x58] sm:$0xff] %v711
        %725 = vst [vmem:[#allocation2 + $0x60] sm:$0xff] %v712
        %p726 = scmp.eq.s32.totalorder %s22, 22
        // Predicated region
        $region123: #{mixed_6a_forward.4} parent=109 // pred_check
          %p727 = pneg %p726
        $region124: #{mixed_6a_forward.4} parent=109 // pred_check_branch
          %729 = sbr.rel (%p727) target = $region126
        $region125: #{mixed_6a_forward.4} parent=109 // pred_region
          %v730 = vld [vmem:[#allocation2] sm:$0xff]
          %v731 = vld [vmem:[#allocation2 + $0x8] sm:$0xff]
          %v732 = vld [vmem:[#allocation2 + $0x10] sm:$0xff]
          %v733 = vld [vmem:[#allocation2 + $0x18] sm:$0xff]
          %v734 = vld [vmem:[#allocation2 + $0x20] sm:$0xff]
          %v735 = vld [vmem:[#allocation2 + $0x28] sm:$0xff]
          %v736 = vld [vmem:[#allocation2 + $0x30] sm:$0xff]
          %v737 = vld [vmem:[#allocation2 + $0x38] sm:$0xff]
          %v738 = vld [vmem:[#allocation2 + $0x40] sm:$0xff]
          %v739 = vld [vmem:[#allocation2 + $0x48] sm:$0xff]
          %v740 = vld [vmem:[#allocation2 + $0x50] sm:$0xff]
          %v741 = vld [vmem:[#allocation2 + $0x58] sm:$0xff]
          %v742 = vld [vmem:[#allocation2 + $0x60] sm:$0xff]
          %v743 = vld [vmem:[%s459] sm:$0x1]
          %v745 = vlaneseq
          %v746 = vshrl.u32 %v745, 7
          %v747 = vsub.s32 0, %v746
          %v748 = vrot.slane %v743, %v747
          %v750 = vmul.f32 %v730, %v748
          %v751 = vmul.f32 %v731, %v748
          %v752 = vmul.f32 %v732, %v748
          %v753 = vmul.f32 %v733, %v748
          %v754 = vmul.f32 %v734, %v748
          %v755 = vmul.f32 %v735, %v748
          %v756 = vmul.f32 %v736, %v748
          %v757 = vmul.f32 %v737, %v748
          %v758 = vmul.f32 %v738, %v748
          %v759 = vmul.f32 %v739, %v748
          %v760 = vmul.f32 %v740, %v748
          %v761 = vmul.f32 %v741, %v748
          %v762 = vmul.f32 %v742, %v748
          %v763 = vld [vmem:[%s462] sm:$0x1]
          %v765 = vlaneseq
          %v766 = vshrl.u32 %v765, 7
          %v767 = vsub.s32 0, %v766
          %v768 = vrot.slane %v763, %v767
          %v770 = vadd.f32 %v750, %v768
          %v771 = vadd.f32 %v751, %v768
          %v772 = vadd.f32 %v752, %v768
          %v773 = vadd.f32 %v753, %v768
          %v774 = vadd.f32 %v754, %v768
          %v775 = vadd.f32 %v755, %v768
          %v776 = vadd.f32 %v756, %v768
          %v777 = vadd.f32 %v757, %v768
          %v778 = vadd.f32 %v758, %v768
          %v779 = vadd.f32 %v759, %v768
          %v780 = vadd.f32 %v760, %v768
          %v781 = vadd.f32 %v761, %v768
          %v782 = vadd.f32 %v762, %v768
          %v783 = vmax.f32 %v770, 0.0
          %v784 = vmax.f32 %v771, 0.0
          %v785 = vmax.f32 %v772, 0.0
          %v786 = vmax.f32 %v773, 0.0
          %v787 = vmax.f32 %v774, 0.0
          %v788 = vmax.f32 %v775, 0.0
          %v789 = vmax.f32 %v776, 0.0
          %v790 = vmax.f32 %v777, 0.0
          %v791 = vmax.f32 %v778, 0.0
          %v792 = vmax.f32 %v779, 0.0
          %v793 = vmax.f32 %v780, 0.0
          %v794 = vmax.f32 %v781, 0.0
          %v795 = vmax.f32 %v782, 0.0
          %796 = vst [vmem:[%s454] sm:$0xff] %v783
          %797 = vst [vmem:[%s454 + $0x8] sm:$0xff] %v784
          %798 = vst [vmem:[%s454 + $0x10] sm:$0xff] %v785
          %799 = vst [vmem:[%s454 + $0x18] sm:$0xff] %v786
          %800 = vst [vmem:[%s454 + $0x20] sm:$0xff] %v787
          %801 = vst [vmem:[%s454 + $0x28] sm:$0xff] %v788
          %802 = vst [vmem:[%s454 + $0x30] sm:$0xff] %v789
          %803 = vst [vmem:[%s454 + $0x38] sm:$0xff] %v790
          %804 = vst [vmem:[%s454 + $0x40] sm:$0xff] %v791
          %805 = vst [vmem:[%s454 + $0x48] sm:$0xff] %v792
          %806 = vst [vmem:[%s454 + $0x50] sm:$0xff] %v793
          %807 = vst [vmem:[%s454 + $0x58] sm:$0xff] %v794
          %808 = vst [vmem:[%s454 + $0x60] sm:$0xff] %v795
        $region126: #{mixed_6a_forward.4} parent=109 // pred_fallthru
          _
        %s809 = sand.u32 %s152, 1
        %s810 = sand.u32 %s152, 1
        %s811 = smul.addr %s810, 104
        %s812 = scalar_lea.vmem [#allocation5], %s811
        // Predicated region
        $region127: #{mixed_6a_forward.4} parent=109 // pred_check
          %p813 = pneg %p162
        $region128: #{mixed_6a_forward.4} parent=109 // pred_check_branch
          %815 = sbr.rel (%p813) target = $region130
        $region129: #{mixed_6a_forward.4} parent=109 // pred_region
          %s816 = smul.u32 13, %s20
          %s817 = smul.addr %s816, 3
          %s818 = sadd.s32 %s21, %s817
          %s819 = smul.addr %s818, 8
          %s820 = scalar_lea.vmem %s4, %s819
          // Predicated region
          $region131: #{mixed_6a_forward.4} parent=129 // pred_check
            _
          $region132: #{mixed_6a_forward.4} parent=129 // pred_check_branch
            %822 = sbr.rel (0) target = $region134
          $region133: #{mixed_6a_forward.4} parent=129 // pred_region
            // Predicated region
            $region135: #{mixed_6a_forward.4} parent=133 // pred_check
              _
            $region136: #{mixed_6a_forward.4} parent=133 // pred_check_branch
              %824 = sbr.rel (0) target = $region138
            $region137: #{mixed_6a_forward.4} parent=133 // pred_region
              // Predicated region
              $region150: #{mixed_6a_forward.4} parent=137 // pred_check
                _
              $region151: #{mixed_6a_forward.4} parent=137 // pred_check_branch
                %863 = sbr.rel (0) target = $region153
              $region152: #{mixed_6a_forward.4} parent=137 // pred_region
                loop: start=0, step=1, limit=1
                $region154: #{mixed_6a_forward.4} parent=152 // loop_pre_header
                  _
                $region155: #{mixed_6a_forward.4} parent=152 // loop_header
                  %s865 = sphi 0, %s869
                  %p866 = scmp.ge.s32.totalorder %s865, 1
                  %s870 = sphi %s812, %s812
                  %s871 = sphi %s820, %s820
                $region156: #{mixed_6a_forward.4} parent=152 // loop_header_branch
                  %868 = sbr.rel (%p866) target = $region160
                $region157: #{mixed_6a_forward.4} parent=152 // loop_body
                  %v872 = vld [vmem:[%s870] sm:$0xff]
                  %873 = vst [vmem:[%s871] sm:$0xff] %v872
                  %v874 = vld [vmem:[%s870 + $0x8] sm:$0xff]
                  %875 = vst [vmem:[%s871 + $0x18] sm:$0xff] %v874
                  %v876 = vld [vmem:[%s870 + $0x10] sm:$0xff]
                  %877 = vst [vmem:[%s871 + $0x30] sm:$0xff] %v876
                  %v878 = vld [vmem:[%s870 + $0x18] sm:$0xff]
                  %879 = vst [vmem:[%s871 + $0x48] sm:$0xff] %v878
                  %v880 = vld [vmem:[%s870 + $0x20] sm:$0xff]
                  %881 = vst [vmem:[%s871 + $0x60] sm:$0xff] %v880
                  %v882 = vld [vmem:[%s870 + $0x28] sm:$0xff]
                  %883 = vst [vmem:[%s871 + $0x78] sm:$0xff] %v882
                  %v884 = vld [vmem:[%s870 + $0x30] sm:$0xff]
                  %885 = vst [vmem:[%s871 + $0x90] sm:$0xff] %v884
                  %v886 = vld [vmem:[%s870 + $0x38] sm:$0xff]
                  %887 = vst [vmem:[%s871 + $0xa8] sm:$0xff] %v886
                  %v888 = vld [vmem:[%s870 + $0x40] sm:$0xff]
                  %889 = vst [vmem:[%s871 + $0xc0] sm:$0xff] %v888
                  %v890 = vld [vmem:[%s870 + $0x48] sm:$0xff]
                  %891 = vst [vmem:[%s871 + $0xd8] sm:$0xff] %v890
                  %v892 = vld [vmem:[%s870 + $0x50] sm:$0xff]
                  %893 = vst [vmem:[%s871 + $0xf0] sm:$0xff] %v892
                  %v894 = vld [vmem:[%s870 + $0x58] sm:$0xff]
                  %895 = vst [vmem:[%s871 + $0x108] sm:$0xff] %v894
                  %v896 = vld [vmem:[%s870 + $0x60] sm:$0xff]
                  %897 = vst [vmem:[%s871 + $0x120] sm:$0xff] %v896
                $region158: #{mixed_6a_forward.4} parent=152 // loop_footer
                  %s869 = sadd.s32 1, %s865
                $region159: #{mixed_6a_forward.4} parent=152 // loop_footer_branch
                  %864 = sbr.rel target = $region155
                $region160: #{mixed_6a_forward.4} parent=152 // loop_exit
                  _
              $region153: #{mixed_6a_forward.4} parent=137 // pred_fallthru
                _
              // Predicated region
              $region161: #{mixed_6a_forward.4} parent=137 // pred_check
                _
              $region162: #{mixed_6a_forward.4} parent=137 // pred_check_branch
                %899 = sbr.rel target = $region164
              $region163: #{mixed_6a_forward.4} parent=137 // pred_region
                _
              $region164: #{mixed_6a_forward.4} parent=137 // pred_fallthru
                _
            $region138: #{mixed_6a_forward.4} parent=133 // pred_fallthru
              _
            // Predicated region
            $region139: #{mixed_6a_forward.4} parent=133 // pred_check
              _
            $region140: #{mixed_6a_forward.4} parent=133 // pred_check_branch
              %826 = sbr.rel target = $region142
            $region141: #{mixed_6a_forward.4} parent=133 // pred_region
              loop: start=0, step=1, limit=1
              $region143: #{mixed_6a_forward.4} parent=141 // loop_pre_header
                _
              $region144: #{mixed_6a_forward.4} parent=141 // loop_header
                %s829 = sphi 0, %s833
                %p830 = scmp.ge.s32.totalorder %s829, 1
                %s834 = sphi %s812, %s812
                %s835 = sphi %s820, %s820
              $region145: #{mixed_6a_forward.4} parent=141 // loop_header_branch
                %832 = sbr.rel (%p830) target = $region149
              $region146: #{mixed_6a_forward.4} parent=141 // loop_body
                %v836 = vld [vmem:[%s834] sm:$0xff]
                %837 = vst [vmem:[%s835] sm:$0xff] %v836
                %v838 = vld [vmem:[%s834 + $0x8] sm:$0xff]
                %839 = vst [vmem:[%s835 + $0x18] sm:$0xff] %v838
                %v840 = vld [vmem:[%s834 + $0x10] sm:$0xff]
                %841 = vst [vmem:[%s835 + $0x30] sm:$0xff] %v840
                %v842 = vld [vmem:[%s834 + $0x18] sm:$0xff]
                %843 = vst [vmem:[%s835 + $0x48] sm:$0xff] %v842
                %v844 = vld [vmem:[%s834 + $0x20] sm:$0xff]
                %845 = vst [vmem:[%s835 + $0x60] sm:$0xff] %v844
                %v846 = vld [vmem:[%s834 + $0x28] sm:$0xff]
                %847 = vst [vmem:[%s835 + $0x78] sm:$0xff] %v846
                %v848 = vld [vmem:[%s834 + $0x30] sm:$0xff]
                %849 = vst [vmem:[%s835 + $0x90] sm:$0xff] %v848
                %v850 = vld [vmem:[%s834 + $0x38] sm:$0xff]
                %851 = vst [vmem:[%s835 + $0xa8] sm:$0xff] %v850
                %v852 = vld [vmem:[%s834 + $0x40] sm:$0xff]
                %853 = vst [vmem:[%s835 + $0xc0] sm:$0xff] %v852
                %v854 = vld [vmem:[%s834 + $0x48] sm:$0xff]
                %855 = vst [vmem:[%s835 + $0xd8] sm:$0xff] %v854
                %v856 = vld [vmem:[%s834 + $0x50] sm:$0xff]
                %857 = vst [vmem:[%s835 + $0xf0] sm:$0xff] %v856
                %v858 = vld [vmem:[%s834 + $0x58] sm:$0xff]
                %859 = vst [vmem:[%s835 + $0x108] sm:$0xff] %v858
                %v860 = vld [vmem:[%s834 + $0x60] sm:$0xff]
                %861 = vst [vmem:[%s835 + $0x120] sm:$0xff] %v860
              $region147: #{mixed_6a_forward.4} parent=141 // loop_footer
                %s833 = sadd.s32 1, %s829
              $region148: #{mixed_6a_forward.4} parent=141 // loop_footer_branch
                %828 = sbr.rel target = $region144
              $region149: #{mixed_6a_forward.4} parent=141 // loop_exit
                _
            $region142: #{mixed_6a_forward.4} parent=133 // pred_fallthru
              _
          $region134: #{mixed_6a_forward.4} parent=129 // pred_fallthru
            _
          %900 = vnop
        $region130: #{mixed_6a_forward.4} parent=109 // pred_fallthru
          _
      $region110: #{mixed_6a_forward.4} parent=5 // pred_fallthru
        _
      %p901 = scmp.le.s32.totalorder 2, %s10
      // Predicated region
      $region165: #{mixed_6a_forward.4} parent=5 // pred_check
        %p902 = pneg %p901
      $region166: #{mixed_6a_forward.4} parent=5 // pred_check_branch
        %904 = sbr.rel (%p902) target = $region168
      $region167: #{mixed_6a_forward.4} parent=5 // pred_region
        %s905 = ssub.s32 %s10, 2
        // Predicated region
        $region169: #{mixed_6a_forward.4} parent=167 // pred_check
          %p906 = pneg %p168
        $region170: #{mixed_6a_forward.4} parent=167 // pred_check_branch
          %908 = sbr.rel (%p906) target = $region172
        $region171: #{mixed_6a_forward.4} parent=167 // pred_region
          %s909 = sand.u32 %s153, 1
          %s910 = sand.u32 %s153, 1
          %s911 = smul.addr %s910, 104
          %s912 = scalar_lea.vmem [#allocation5], %s911
        $region172: #{mixed_6a_forward.4} parent=167 // pred_fallthru
          _
      $region168: #{mixed_6a_forward.4} parent=5 // pred_fallthru
        _
    $region6: #{mixed_6a_forward.4} parent=1 // loop_footer
      %s14 = sadd.s32 1, %s10
    $region7: #{mixed_6a_forward.4} parent=1 // loop_footer_branch
      %9 = sbr.rel target = $region3
    $region8: #{mixed_6a_forward.4} parent=1 // loop_exit
      _

</llo_original>
